<compile_context>
chip_gen: v7x
topology: tpu7x:2x2x1
jax: 0.10.0
libtpu: 0.0.40
codegen_flags: <defaults>
</compile_context>

<pallas_src>
import jax
import jax.numpy as jnp
from jax.experimental import pallas as pl
from jax.experimental.pallas import tpu as pltpu

W_BOARD, H_BOARD = 16, 16
D_IN = W_BOARD * H_BOARD * 3      # 768  (w*h*3)
D_HID = D_IN                      # 768
N_ACT = W_BOARD * H_BOARD         # 256  (w*h)


def actor_kernel(x_ref, g_ref, w1_ref, b1_ref, w2_ref, b2_ref, w3_ref, b3_ref,
                 act_ref, logp_ref):
    bb = x_ref.shape[0]

    # --- 3-layer MLP on the MXU with f32 accumulation ------------------------
    x = x_ref[...]                                                    # (bb, D_IN)
    h = jnp.maximum(
        jnp.dot(x, w1_ref[...], preferred_element_type=jnp.float32) + b1_ref[...],
        0.0)
    h = jnp.maximum(
        jnp.dot(h, w2_ref[...], preferred_element_type=jnp.float32) + b2_ref[...],
        0.0)
    logits = (jnp.dot(h, w3_ref[...], preferred_element_type=jnp.float32)
              + b3_ref[...])                                          # (bb, N_ACT)

    # --- Categorical sample via Gumbel-max over the lane (action) axis -------
    z = logits + g_ref[...]
    z_max = jnp.max(z, axis=-1, keepdims=True)
    col_idx = jax.lax.broadcasted_iota(jnp.int32, z.shape, 1).astype(jnp.float32)
    act_col = jnp.min(jnp.where(z >= z_max, col_idx, jnp.float32(N_ACT)),
                      axis=-1, keepdims=True)          # first argmax, (bb, 1)

    # --- log_prob(sample) = logits[a] - logsumexp(logits) --------------------
    one_hot = (col_idx == act_col).astype(jnp.float32)
    chosen = jnp.sum(logits * one_hot, axis=-1, keepdims=True)
    l_max = jnp.max(logits, axis=-1, keepdims=True)
    lse = l_max + jnp.log(jnp.sum(jnp.exp(logits - l_max), axis=-1, keepdims=True))
    logp_col = chosen - lse                                            # (bb, 1)

    # --- lane-dense outputs: (bb,1) column -> (1,bb) row ---------------------
    # Select the diagonal of a (bb,bb) broadcast and reduce over sublanes
    # (VPU + XLU) so each output is a single unmasked row-block store.
    rid = jax.lax.broadcasted_iota(jnp.int32, (bb, bb), 0)
    cid = jax.lax.broadcasted_iota(jnp.int32, (bb, bb), 1)
    diag = rid == cid
    act_row = jnp.sum(jnp.where(diag, act_col, 0.0), axis=0, keepdims=True)
    logp_row = jnp.sum(jnp.where(diag, logp_col, 0.0), axis=0, keepdims=True)
    act_ref[...] = act_row.astype(jnp.int32)
    logp_ref[...] = logp_row


def _choose_bb(batch):
    # 128 fills the MXU M dimension on all generations (review: 128 on v5e,
    # 128-256 on v6e/v7x); small batches use a single sublane-aligned tile.
    if batch >= 128:
        return 128
    return ((batch + 7) // 8) * 8


def _build_actor_call(bb, b_pad, use_buffered):
    n_tiles = b_pad // bb
    batched = lambda i: (i, 0)
    out_map = lambda i: (0, i)
    const = lambda i: (0, 0)

    def resident(shape):
        # Constant index_map -> block never changes; Buffered(1) avoids holding
        # a second copy of ~5.3 MiB of weights (matters on v7x's smaller VMEM).
        if use_buffered:
            return pl.BlockSpec(shape, const, pipeline_mode=pl.Buffered(1))
        return pl.BlockSpec(shape, const)

    return pl.pallas_call(
        actor_kernel,
        out_shape=(jax.ShapeDtypeStruct((1, b_pad), jnp.int32),
                   jax.ShapeDtypeStruct((1, b_pad), jnp.float32)),
        grid_spec=pltpu.PrefetchScalarGridSpec(
            num_scalar_prefetch=0,
            grid=(n_tiles,),
            in_specs=[
                pl.BlockSpec((bb, D_IN), batched),      # x tile
                pl.BlockSpec((bb, N_ACT), batched),     # gumbel tile
                resident((D_IN, D_HID)),                # W1^T (VMEM-resident)
                resident((1, D_HID)),                   # b1
                resident((D_HID, D_HID)),               # W2^T
                resident((1, D_HID)),                   # b2
                resident((D_HID, N_ACT)),               # W3^T
                resident((1, N_ACT)),                   # b3
            ],
            out_specs=[
                pl.BlockSpec((1, bb), out_map),         # action (lane-dense)
                pl.BlockSpec((1, bb), out_map),         # log_prob (lane-dense)
            ],
        ),
        compiler_params=pltpu.CompilerParams(
            dimension_semantics=("parallel",),
            vmem_limit_bytes=32 * 1024 * 1024),
    )


def prepare_params(params):
    """One-time conversion from torch nn.Linear (out,in) layout to the kernel
    layout: (in,out) weights, (1,out) biases. Call once at init, not per step."""
    w1, b1, w2, b2, w3, b3 = params
    return (w1.T, b1.reshape(1, -1),
            w2.T, b2.reshape(1, -1),
            w3.T, b3.reshape(1, -1))


def minesweeper_actor(conv_out, prepared_params, key):
    """conv_out: (B, 768) f32 -> (action (B,) int32, log_prob (B,) f32).

    TODO(synk): the torch module's `mask` argument (in-place -inf masking of
    logits before sampling) is not implemented; only the mask=None path is.
    """
    B = conv_out.shape[0]
    bb = _choose_bb(B)
    b_pad = ((B + bb - 1) // bb) * bb

    gumbel = jax.random.gumbel(key, (B, N_ACT), dtype=jnp.float32)
    x = conv_out.astype(jnp.float32)
    if b_pad != B:  # pad only when needed (no full-array copy otherwise)
        x = jnp.pad(x, ((0, b_pad - B), (0, 0)))
        gumbel = jnp.pad(gumbel, ((0, b_pad - B), (0, 0)))

    args = (x, gumbel) + tuple(prepared_params)
    try:
        act2d, logp2d = _build_actor_call(bb, b_pad, use_buffered=True)(*args)
    except Exception:
        # Fallback if this runtime rejects pipeline_mode=pl.Buffered(1).
        act2d, logp2d = _build_actor_call(bb, b_pad, use_buffered=False)(*args)
    return act2d[0, :B], logp2d[0, :B]


# ----------------------------- reference & test ------------------------------

def _ref_logits(conv_out, params):
    w1, b1, w2, b2, w3, b3 = params
    hp = jax.lax.Precision.HIGHEST
    h = jax.nn.relu(jnp.dot(conv_out, w1.T, precision=hp) + b1)
    h = jax.nn.relu(jnp.dot(h, w2.T, precision=hp) + b2)
    return jnp.dot(h, w3.T, precision=hp) + b3


def reference(conv_out, params, key):
    """Pure-JAX reference with identical Gumbel noise / tie-breaking."""
    logits = _ref_logits(conv_out, params)
    gumbel = jax.random.gumbel(key, (conv_out.shape[0], N_ACT), dtype=jnp.float32)
    action = jnp.argmax(logits + gumbel, axis=-1).astype(jnp.int32)
    logp = jax.nn.log_softmax(logits, axis=-1)[
        jnp.arange(conv_out.shape[0]), action]
    return action, logp


def init_params():
    # Deterministic synthetic parameters in PyTorch nn.Linear (out, in) layout.
    ks = jax.random.split(jax.random.PRNGKey(42), 6)
    s = 0.05
    w1 = s * jax.random.normal(ks[0], (D_HID, D_IN), jnp.float32)
    b1 = s * jax.random.normal(ks[1], (D_HID,), jnp.float32)
    w2 = s * jax.random.normal(ks[2], (D_HID, D_HID), jnp.float32)
    b2 = s * jax.random.normal(ks[3], (D_HID,), jnp.float32)
    w3 = s * jax.random.normal(ks[4], (N_ACT, D_HID), jnp.float32)
    b3 = s * jax.random.normal(ks[5], (N_ACT,), jnp.float32)
    return (w1, b1, w2, b2, w3, b3)


if __name__ == "__main__":
    params = init_params()                 # torch nn.Linear (out,in) layout
    prepared = prepare_params(params)      # one-time layout prep (not hot path)

    # Small deterministic example (batch=2) -- single-tile path.
    key_x, key_sample = jax.random.split(jax.random.PRNGKey(0))
    conv_out = jax.random.normal(key_x, (2, D_IN), jnp.float32)
    act, logp = jax.block_until_ready(
        minesweeper_actor(conv_out, prepared, key_sample))
    act_ref, logp_ref = jax.block_until_ready(
        reference(conv_out, params, key_sample))
    assert act.shape == (2,) and logp.shape == (2,), (act.shape, logp.shape)
    assert act.dtype == jnp.int32
    assert bool(jnp.all(act == act_ref)), (act, act_ref)
    assert jnp.allclose(logp, logp_ref, atol=5e-4, rtol=5e-4), (
        float(jnp.max(jnp.abs(logp - logp_ref))))

    # Larger batch exercises BB=128 tiles, a multi-step grid, tail padding and
    # the lane-dense multi-tile outputs.
    B2 = 200
    conv_out2 = jax.random.normal(jax.random.PRNGKey(1), (B2, D_IN), jnp.float32)
    key2 = jax.random.PRNGKey(2)
    act2, logp2 = jax.block_until_ready(
        minesweeper_actor(conv_out2, prepared, key2))
    assert act2.shape == (B2,) and logp2.shape == (B2,)
    assert bool(jnp.all((act2 >= 0) & (act2 < N_ACT)))
    logits2 = _ref_logits(conv_out2, params)
    z2 = logits2 + jax.random.gumbel(key2, (B2, N_ACT), dtype=jnp.float32)
    rows = jnp.arange(B2)
    # Sampled action must be a (near-)argmax of the Gumbel-perturbed logits
    # (tolerance absorbs MXU-vs-HIGHEST rounding on near-ties).
    assert bool(jnp.all(z2[rows, act2] >= jnp.max(z2, axis=-1) - 1e-3))
    lp2_ref = jax.nn.log_softmax(logits2, axis=-1)[rows, act2]
    assert jnp.allclose(logp2, lp2_ref, atol=5e-4, rtol=5e-4), (
        float(jnp.max(jnp.abs(logp2 - lp2_ref))))

    print("KERNEL_OK")
</pallas_src>

<mosaic_0001>
module attributes {stable_mosaic.version = 11 : i64} {
  func.func @actor_kernel(%arg0: i32, %arg1: memref<8x768xf32, #tpu.memory_space<vmem>>, %arg2: memref<8x256xf32, #tpu.memory_space<vmem>>, %arg3: memref<768x768xf32, #tpu.memory_space<vmem>>, %arg4: memref<1x768xf32, #tpu.memory_space<vmem>>, %arg5: memref<768x768xf32, #tpu.memory_space<vmem>>, %arg6: memref<1x768xf32, #tpu.memory_space<vmem>>, %arg7: memref<768x256xf32, #tpu.memory_space<vmem>>, %arg8: memref<1x256xf32, #tpu.memory_space<vmem>>, %arg9: memref<1x8xi32, #tpu.memory_space<vmem>>, %arg10: memref<1x8xf32, #tpu.memory_space<vmem>>) attributes {dimension_semantics = [#tpu.dimension_semantics<parallel>], iteration_bounds = array<i64: 1>, scalar_prefetch = 0 : i64, scratch_operands = 0 : i64, tpu.core_type = #tpu.core_type<tc>, window_params = [{transform_indices = @transform_0, window_bounds = array<i64: 8, 768>}, {transform_indices = @transform_1, window_bounds = array<i64: 8, 256>}, {pipeline_mode = #tpu.pipeline_mode<synchronous>, transform_indices = @transform_2, window_bounds = array<i64: 768, 768>}, {pipeline_mode = #tpu.pipeline_mode<synchronous>, transform_indices = @transform_3, window_bounds = array<i64: 1, 768>}, {pipeline_mode = #tpu.pipeline_mode<synchronous>, transform_indices = @transform_4, window_bounds = array<i64: 768, 768>}, {pipeline_mode = #tpu.pipeline_mode<synchronous>, transform_indices = @transform_5, window_bounds = array<i64: 1, 768>}, {pipeline_mode = #tpu.pipeline_mode<synchronous>, transform_indices = @transform_6, window_bounds = array<i64: 768, 256>}, {pipeline_mode = #tpu.pipeline_mode<synchronous>, transform_indices = @transform_7, window_bounds = array<i64: 1, 256>}, {transform_indices = @transform_8, window_bounds = array<i64: 1, 8>}, {transform_indices = @transform_9, window_bounds = array<i64: 1, 8>}]} {
    %c0 = arith.constant 0 : index
    %c0_0 = arith.constant 0 : index
    %0 = vector.load %arg1[%c0, %c0_0] : memref<8x768xf32, #tpu.memory_space<vmem>>, vector<8x768xf32>
    %c0_1 = arith.constant 0 : index
    %c0_2 = arith.constant 0 : index
    %1 = vector.load %arg3[%c0_1, %c0_2] : memref<768x768xf32, #tpu.memory_space<vmem>>, vector<768x768xf32>
    %cst = arith.constant dense<0.000000e+00> : vector<8x768xf32>
    %2 = tpu.matmul %0, %1, %cst {dimension_numbers = #tpu.dot_dimension_numbers<[1], [0], [0], [1], [0, 0, 1, 1], [], []>} : vector<8x768xf32>, vector<768x768xf32>, vector<8x768xf32> -> vector<8x768xf32>
    %c0_3 = arith.constant 0 : index
    %c0_4 = arith.constant 0 : index
    %3 = vector.load %arg4[%c0_3, %c0_4] : memref<1x768xf32, #tpu.memory_space<vmem>>, vector<1x768xf32>
    %4 = vector.broadcast %3 : vector<1x768xf32> to vector<8x768xf32>
    %5 = arith.addf %2, %4 : vector<8x768xf32>
    %cst_5 = arith.constant 0.000000e+00 : f32
    %6 = vector.broadcast %cst_5 : f32 to vector<8x768xf32>
    %7 = arith.maximumf %5, %6 : vector<8x768xf32>
    %c0_6 = arith.constant 0 : index
    %c0_7 = arith.constant 0 : index
    %8 = vector.load %arg5[%c0_6, %c0_7] : memref<768x768xf32, #tpu.memory_space<vmem>>, vector<768x768xf32>
    %cst_8 = arith.constant dense<0.000000e+00> : vector<8x768xf32>
    %9 = tpu.matmul %7, %8, %cst_8 {dimension_numbers = #tpu.dot_dimension_numbers<[1], [0], [0], [1], [0, 0, 1, 1], [], []>} : vector<8x768xf32>, vector<768x768xf32>, vector<8x768xf32> -> vector<8x768xf32>
    %c0_9 = arith.constant 0 : index
    %c0_10 = arith.constant 0 : index
    %10 = vector.load %arg6[%c0_9, %c0_10] : memref<1x768xf32, #tpu.memory_space<vmem>>, vector<1x768xf32>
    %11 = vector.broadcast %10 : vector<1x768xf32> to vector<8x768xf32>
    %12 = arith.addf %9, %11 : vector<8x768xf32>
    %cst_11 = arith.constant 0.000000e+00 : f32
    %13 = vector.broadcast %cst_11 : f32 to vector<8x768xf32>
    %14 = arith.maximumf %12, %13 : vector<8x768xf32>
    %c0_12 = arith.constant 0 : index
    %c0_13 = arith.constant 0 : index
    %15 = vector.load %arg7[%c0_12, %c0_13] : memref<768x256xf32, #tpu.memory_space<vmem>>, vector<768x256xf32>
    %cst_14 = arith.constant dense<0.000000e+00> : vector<8x256xf32>
    %16 = tpu.matmul %14, %15, %cst_14 {dimension_numbers = #tpu.dot_dimension_numbers<[1], [0], [0], [1], [0, 0, 1, 1], [], []>} : vector<8x768xf32>, vector<768x256xf32>, vector<8x256xf32> -> vector<8x256xf32>
    %c0_15 = arith.constant 0 : index
    %c0_16 = arith.constant 0 : index
    %17 = vector.load %arg8[%c0_15, %c0_16] : memref<1x256xf32, #tpu.memory_space<vmem>>, vector<1x256xf32>
    %18 = vector.broadcast %17 : vector<1x256xf32> to vector<8x256xf32>
    %19 = arith.addf %16, %18 : vector<8x256xf32>
    %c0_17 = arith.constant 0 : index
    %c0_18 = arith.constant 0 : index
    %20 = vector.load %arg2[%c0_17, %c0_18] : memref<8x256xf32, #tpu.memory_space<vmem>>, vector<8x256xf32>
    %21 = arith.addf %19, %20 : vector<8x256xf32>
    %cst_19 = arith.constant dense<0xFF800000> : vector<8xf32>
    %22 = vector.multi_reduction <maximumf>, %21, %cst_19 [1] : vector<8x256xf32> to vector<8xf32>
    %23 = vector.shape_cast %22 : vector<8xf32> to vector<8x1xf32>
    %24 = tpu.iota {dimensions = array<i32: 1>} : vector<8x256xi32>
    %25 = arith.sitofp %24 : vector<8x256xi32> to vector<8x256xf32>
    %26 = vector.broadcast %23 : vector<8x1xf32> to vector<8x256xf32>
    %27 = arith.cmpf oge, %21, %26 : vector<8x256xf32>
    %cst_20 = arith.constant 2.560000e+02 : f32
    %28 = vector.broadcast %cst_20 : f32 to vector<8x256xf32>
    %29 = arith.select %27, %25, %28 : vector<8x256xi1>, vector<8x256xf32>
    %cst_21 = arith.constant dense<0x7F800000> : vector<8xf32>
    %30 = vector.multi_reduction <minimumf>, %29, %cst_21 [1] : vector<8x256xf32> to vector<8xf32>
    %31 = vector.shape_cast %30 : vector<8xf32> to vector<8x1xf32>
    %32 = vector.broadcast %31 : vector<8x1xf32> to vector<8x256xf32>
    %33 = arith.cmpf oeq, %25, %32 : vector<8x256xf32>
    %34 = arith.extui %33 : vector<8x256xi1> to vector<8x256xi32>
    %35 = arith.sitofp %34 : vector<8x256xi32> to vector<8x256xf32>
    %36 = arith.mulf %19, %35 : vector<8x256xf32>
    %cst_22 = arith.constant dense<0.000000e+00> : vector<8xf32>
    %37 = vector.multi_reduction <add>, %36, %cst_22 [1] : vector<8x256xf32> to vector<8xf32>
    %38 = vector.shape_cast %37 : vector<8xf32> to vector<8x1xf32>
    %cst_23 = arith.constant dense<0xFF800000> : vector<8xf32>
    %39 = vector.multi_reduction <maximumf>, %19, %cst_23 [1] : vector<8x256xf32> to vector<8xf32>
    %40 = vector.shape_cast %39 : vector<8xf32> to vector<8x1xf32>
    %41 = vector.broadcast %40 : vector<8x1xf32> to vector<8x256xf32>
    %42 = arith.subf %19, %41 : vector<8x256xf32>
    %43 = math.exp %42 : vector<8x256xf32>
    %cst_24 = arith.constant dense<0.000000e+00> : vector<8xf32>
    %44 = vector.multi_reduction <add>, %43, %cst_24 [1] : vector<8x256xf32> to vector<8xf32>
    %45 = vector.shape_cast %44 : vector<8xf32> to vector<8x1xf32>
    %46 = math.log %45 : vector<8x1xf32>
    %47 = arith.addf %40, %46 : vector<8x1xf32>
    %48 = arith.subf %38, %47 : vector<8x1xf32>
    %49 = tpu.iota {dimensions = array<i32: 0>} : vector<8x8xi32>
    %50 = tpu.iota {dimensions = array<i32: 1>} : vector<8x8xi32>
    %51 = arith.cmpi eq, %49, %50 : vector<8x8xi32>
    %cst_25 = arith.constant 0.000000e+00 : f32
    %52 = vector.shape_cast %31 : vector<8x1xf32> to vector<8x1xf32>
    %53 = vector.broadcast %52 : vector<8x1xf32> to vector<8x8xf32>
    %54 = vector.broadcast %cst_25 : f32 to vector<8x8xf32>
    %55 = arith.select %51, %53, %54 : vector<8x8xi1>, vector<8x8xf32>
    %cst_26 = arith.constant dense<0.000000e+00> : vector<8xf32>
    %56 = vector.multi_reduction <add>, %55, %cst_26 [0] : vector<8x8xf32> to vector<8xf32>
    %57 = vector.shape_cast %56 : vector<8xf32> to vector<1x8xf32>
    %cst_27 = arith.constant 0.000000e+00 : f32
    %58 = vector.shape_cast %48 : vector<8x1xf32> to vector<8x1xf32>
    %59 = vector.broadcast %58 : vector<8x1xf32> to vector<8x8xf32>
    %60 = vector.broadcast %cst_27 : f32 to vector<8x8xf32>
    %61 = arith.select %51, %59, %60 : vector<8x8xi1>, vector<8x8xf32>
    %cst_28 = arith.constant dense<0.000000e+00> : vector<8xf32>
    %62 = vector.multi_reduction <add>, %61, %cst_28 [0] : vector<8x8xf32> to vector<8xf32>
    %63 = vector.shape_cast %62 : vector<8xf32> to vector<1x8xf32>
    %64 = arith.fptosi %57 : vector<1x8xf32> to vector<1x8xi32>
    %c0_29 = arith.constant 0 : index
    %c0_30 = arith.constant 0 : index
    %65 = vector.load %arg9[%c0_29, %c0_30] : memref<1x8xi32, #tpu.memory_space<vmem>>, vector<1x8xi32>
    tpu.vector_store %arg9[%c0_29, %c0_30], %64 {strides = array<i32>} : memref<1x8xi32, #tpu.memory_space<vmem>>, vector<1x8xi32>,
    %c0_31 = arith.constant 0 : index
    %c0_32 = arith.constant 0 : index
    %66 = vector.load %arg10[%c0_31, %c0_32] : memref<1x8xf32, #tpu.memory_space<vmem>>, vector<1x8xf32>
    tpu.vector_store %arg10[%c0_31, %c0_32], %63 {strides = array<i32>} : memref<1x8xf32, #tpu.memory_space<vmem>>, vector<1x8xf32>,
    return
  }
  func.func @transform_0(%arg0: i32) -> (i32, i32) {
    %c0_i32 = arith.constant 0 : i32
    %c0_i32_0 = arith.constant 0 : i32
    return %arg0, %c0_i32 : i32, i32
  }
  func.func @transform_1(%arg0: i32) -> (i32, i32) {
    %c0_i32 = arith.constant 0 : i32
    %c0_i32_0 = arith.constant 0 : i32
    return %arg0, %c0_i32 : i32, i32
  }
  func.func @transform_2(%arg0: i32) -> (i32, i32) {
    %c0_i32 = arith.constant 0 : i32
    %c0_i32_0 = arith.constant 0 : i32
    %c0_i32_1 = arith.constant 0 : i32
    return %c0_i32, %c0_i32_0 : i32, i32
  }
  func.func @transform_3(%arg0: i32) -> (i32, i32) {
    %c0_i32 = arith.constant 0 : i32
    %c0_i32_0 = arith.constant 0 : i32
    %c0_i32_1 = arith.constant 0 : i32
    return %c0_i32, %c0_i32_0 : i32, i32
  }
  func.func @transform_4(%arg0: i32) -> (i32, i32) {
    %c0_i32 = arith.constant 0 : i32
    %c0_i32_0 = arith.constant 0 : i32
    %c0_i32_1 = arith.constant 0 : i32
    return %c0_i32, %c0_i32_0 : i32, i32
  }
  func.func @transform_5(%arg0: i32) -> (i32, i32) {
    %c0_i32 = arith.constant 0 : i32
    %c0_i32_0 = arith.constant 0 : i32
    %c0_i32_1 = arith.constant 0 : i32
    return %c0_i32, %c0_i32_0 : i32, i32
  }
  func.func @transform_6(%arg0: i32) -> (i32, i32) {
    %c0_i32 = arith.constant 0 : i32
    %c0_i32_0 = arith.constant 0 : i32
    %c0_i32_1 = arith.constant 0 : i32
    return %c0_i32, %c0_i32_0 : i32, i32
  }
  func.func @transform_7(%arg0: i32) -> (i32, i32) {
    %c0_i32 = arith.constant 0 : i32
    %c0_i32_0 = arith.constant 0 : i32
    %c0_i32_1 = arith.constant 0 : i32
    return %c0_i32, %c0_i32_0 : i32, i32
  }
  func.func @transform_8(%arg0: i32) -> (i32, i32) {
    %c0_i32 = arith.constant 0 : i32
    %c0_i32_0 = arith.constant 0 : i32
    return %c0_i32, %arg0 : i32, i32
  }
  func.func @transform_9(%arg0: i32) -> (i32, i32) {
    %c0_i32 = arith.constant 0 : i32
    %c0_i32_0 = arith.constant 0 : i32
    return %c0_i32, %arg0 : i32, i32
  }
}

module attributes {stable_mosaic.version = 11 : i64} {
  func.func @actor_kernel(%arg0: i32, %arg1: memref<8x768xf32, #tpu.memory_space<vmem>>, %arg2: memref<8x256xf32, #tpu.memory_space<vmem>>, %arg3: memref<768x768xf32, #tpu.memory_space<vmem>>, %arg4: memref<1x768xf32, #tpu.memory_space<vmem>>, %arg5: memref<768x768xf32, #tpu.memory_space<vmem>>, %arg6: memref<1x768xf32, #tpu.memory_space<vmem>>, %arg7: memref<768x256xf32, #tpu.memory_space<vmem>>, %arg8: memref<1x256xf32, #tpu.memory_space<vmem>>, %arg9: memref<1x8xi32, #tpu.memory_space<vmem>>, %arg10: memref<1x8xf32, #tpu.memory_space<vmem>>) attributes {dimension_semantics = [#tpu.dimension_semantics<parallel>], iteration_bounds = array<i64: 1>, scalar_prefetch = 0 : i64, scratch_operands = 0 : i64, tpu.core_type = #tpu.core_type<tc>, window_params = [{transform_indices = @transform_0, window_bounds = array<i64: 8, 768>}, {transform_indices = @transform_1, window_bounds = array<i64: 8, 256>}, {pipeline_mode = #tpu.pipeline_mode<synchronous>, transform_indices = @transform_2, window_bounds = array<i64: 768, 768>}, {pipeline_mode = #tpu.pipeline_mode<synchronous>, transform_indices = @transform_3, window_bounds = array<i64: 1, 768>}, {pipeline_mode = #tpu.pipeline_mode<synchronous>, transform_indices = @transform_4, window_bounds = array<i64: 768, 768>}, {pipeline_mode = #tpu.pipeline_mode<synchronous>, transform_indices = @transform_5, window_bounds = array<i64: 1, 768>}, {pipeline_mode = #tpu.pipeline_mode<synchronous>, transform_indices = @transform_6, window_bounds = array<i64: 768, 256>}, {pipeline_mode = #tpu.pipeline_mode<synchronous>, transform_indices = @transform_7, window_bounds = array<i64: 1, 256>}, {transform_indices = @transform_8, window_bounds = array<i64: 1, 8>}, {transform_indices = @transform_9, window_bounds = array<i64: 1, 8>}]} {
    %c0 = arith.constant 0 : index
    %c0_0 = arith.constant 0 : index
    %0 = vector.load %arg1[%c0, %c0_0] : memref<8x768xf32, #tpu.memory_space<vmem>>, vector<8x768xf32>
    %c0_1 = arith.constant 0 : index
    %c0_2 = arith.constant 0 : index
    %1 = vector.load %arg3[%c0_1, %c0_2] : memref<768x768xf32, #tpu.memory_space<vmem>>, vector<768x768xf32>
    %cst = arith.constant dense<0.000000e+00> : vector<8x768xf32>
    %2 = tpu.matmul %0, %1, %cst {dimension_numbers = #tpu.dot_dimension_numbers<[1], [0], [0], [1], [0, 0, 1, 1], [], []>} : vector<8x768xf32>, vector<768x768xf32>, vector<8x768xf32> -> vector<8x768xf32>
    %c0_3 = arith.constant 0 : index
    %c0_4 = arith.constant 0 : index
    %3 = vector.load %arg4[%c0_3, %c0_4] : memref<1x768xf32, #tpu.memory_space<vmem>>, vector<1x768xf32>
    %4 = vector.broadcast %3 : vector<1x768xf32> to vector<8x768xf32>
    %5 = arith.addf %2, %4 : vector<8x768xf32>
    %cst_5 = arith.constant 0.000000e+00 : f32
    %6 = vector.broadcast %cst_5 : f32 to vector<8x768xf32>
    %7 = arith.maximumf %5, %6 : vector<8x768xf32>
    %c0_6 = arith.constant 0 : index
    %c0_7 = arith.constant 0 : index
    %8 = vector.load %arg5[%c0_6, %c0_7] : memref<768x768xf32, #tpu.memory_space<vmem>>, vector<768x768xf32>
    %cst_8 = arith.constant dense<0.000000e+00> : vector<8x768xf32>
    %9 = tpu.matmul %7, %8, %cst_8 {dimension_numbers = #tpu.dot_dimension_numbers<[1], [0], [0], [1], [0, 0, 1, 1], [], []>} : vector<8x768xf32>, vector<768x768xf32>, vector<8x768xf32> -> vector<8x768xf32>
    %c0_9 = arith.constant 0 : index
    %c0_10 = arith.constant 0 : index
    %10 = vector.load %arg6[%c0_9, %c0_10] : memref<1x768xf32, #tpu.memory_space<vmem>>, vector<1x768xf32>
    %11 = vector.broadcast %10 : vector<1x768xf32> to vector<8x768xf32>
    %12 = arith.addf %9, %11 : vector<8x768xf32>
    %cst_11 = arith.constant 0.000000e+00 : f32
    %13 = vector.broadcast %cst_11 : f32 to vector<8x768xf32>
    %14 = arith.maximumf %12, %13 : vector<8x768xf32>
    %c0_12 = arith.constant 0 : index
    %c0_13 = arith.constant 0 : index
    %15 = vector.load %arg7[%c0_12, %c0_13] : memref<768x256xf32, #tpu.memory_space<vmem>>, vector<768x256xf32>
    %cst_14 = arith.constant dense<0.000000e+00> : vector<8x256xf32>
    %16 = tpu.matmul %14, %15, %cst_14 {dimension_numbers = #tpu.dot_dimension_numbers<[1], [0], [0], [1], [0, 0, 1, 1], [], []>} : vector<8x768xf32>, vector<768x256xf32>, vector<8x256xf32> -> vector<8x256xf32>
    %c0_15 = arith.constant 0 : index
    %c0_16 = arith.constant 0 : index
    %17 = vector.load %arg8[%c0_15, %c0_16] : memref<1x256xf32, #tpu.memory_space<vmem>>, vector<1x256xf32>
    %18 = vector.broadcast %17 : vector<1x256xf32> to vector<8x256xf32>
    %19 = arith.addf %16, %18 : vector<8x256xf32>
    %c0_17 = arith.constant 0 : index
    %c0_18 = arith.constant 0 : index
    %20 = vector.load %arg2[%c0_17, %c0_18] : memref<8x256xf32, #tpu.memory_space<vmem>>, vector<8x256xf32>
    %21 = arith.addf %19, %20 : vector<8x256xf32>
    %cst_19 = arith.constant dense<0xFF800000> : vector<8xf32>
    %22 = vector.multi_reduction <maximumf>, %21, %cst_19 [1] : vector<8x256xf32> to vector<8xf32>
    %23 = vector.shape_cast %22 : vector<8xf32> to vector<8x1xf32>
    %24 = tpu.iota {dimensions = array<i32: 1>} : vector<8x256xi32>
    %25 = arith.sitofp %24 : vector<8x256xi32> to vector<8x256xf32>
    %26 = vector.broadcast %23 : vector<8x1xf32> to vector<8x256xf32>
    %27 = arith.cmpf oge, %21, %26 : vector<8x256xf32>
    %cst_20 = arith.constant 2.560000e+02 : f32
    %28 = vector.broadcast %cst_20 : f32 to vector<8x256xf32>
    %29 = arith.select %27, %25, %28 : vector<8x256xi1>, vector<8x256xf32>
    %cst_21 = arith.constant dense<0x7F800000> : vector<8xf32>
    %30 = vector.multi_reduction <minimumf>, %29, %cst_21 [1] : vector<8x256xf32> to vector<8xf32>
    %31 = vector.shape_cast %30 : vector<8xf32> to vector<8x1xf32>
    %32 = vector.broadcast %31 : vector<8x1xf32> to vector<8x256xf32>
    %33 = arith.cmpf oeq, %25, %32 : vector<8x256xf32>
    %34 = arith.extui %33 : vector<8x256xi1> to vector<8x256xi32>
    %35 = arith.sitofp %34 : vector<8x256xi32> to vector<8x256xf32>
    %36 = arith.mulf %19, %35 : vector<8x256xf32>
    %cst_22 = arith.constant dense<0.000000e+00> : vector<8xf32>
    %37 = vector.multi_reduction <add>, %36, %cst_22 [1] : vector<8x256xf32> to vector<8xf32>
    %38 = vector.shape_cast %37 : vector<8xf32> to vector<8x1xf32>
    %cst_23 = arith.constant dense<0xFF800000> : vector<8xf32>
    %39 = vector.multi_reduction <maximumf>, %19, %cst_23 [1] : vector<8x256xf32> to vector<8xf32>
    %40 = vector.shape_cast %39 : vector<8xf32> to vector<8x1xf32>
    %41 = vector.broadcast %40 : vector<8x1xf32> to vector<8x256xf32>
    %42 = arith.subf %19, %41 : vector<8x256xf32>
    %43 = math.exp %42 : vector<8x256xf32>
    %cst_24 = arith.constant dense<0.000000e+00> : vector<8xf32>
    %44 = vector.multi_reduction <add>, %43, %cst_24 [1] : vector<8x256xf32> to vector<8xf32>
    %45 = vector.shape_cast %44 : vector<8xf32> to vector<8x1xf32>
    %46 = math.log %45 : vector<8x1xf32>
    %47 = arith.addf %40, %46 : vector<8x1xf32>
    %48 = arith.subf %38, %47 : vector<8x1xf32>
    %49 = tpu.iota {dimensions = array<i32: 0>} : vector<8x8xi32>
    %50 = tpu.iota {dimensions = array<i32: 1>} : vector<8x8xi32>
    %51 = arith.cmpi eq, %49, %50 : vector<8x8xi32>
    %cst_25 = arith.constant 0.000000e+00 : f32
    %52 = vector.shape_cast %31 : vector<8x1xf32> to vector<8x1xf32>
    %53 = vector.broadcast %52 : vector<8x1xf32> to vector<8x8xf32>
    %54 = vector.broadcast %cst_25 : f32 to vector<8x8xf32>
    %55 = arith.select %51, %53, %54 : vector<8x8xi1>, vector<8x8xf32>
    %cst_26 = arith.constant dense<0.000000e+00> : vector<8xf32>
    %56 = vector.multi_reduction <add>, %55, %cst_26 [0] : vector<8x8xf32> to vector<8xf32>
    %57 = vector.shape_cast %56 : vector<8xf32> to vector<1x8xf32>
    %cst_27 = arith.constant 0.000000e+00 : f32
    %58 = vector.shape_cast %48 : vector<8x1xf32> to vector<8x1xf32>
    %59 = vector.broadcast %58 : vector<8x1xf32> to vector<8x8xf32>
    %60 = vector.broadcast %cst_27 : f32 to vector<8x8xf32>
    %61 = arith.select %51, %59, %60 : vector<8x8xi1>, vector<8x8xf32>
    %cst_28 = arith.constant dense<0.000000e+00> : vector<8xf32>
    %62 = vector.multi_reduction <add>, %61, %cst_28 [0] : vector<8x8xf32> to vector<8xf32>
    %63 = vector.shape_cast %62 : vector<8xf32> to vector<1x8xf32>
    %64 = arith.fptosi %57 : vector<1x8xf32> to vector<1x8xi32>
    %c0_29 = arith.constant 0 : index
    %c0_30 = arith.constant 0 : index
    %65 = vector.load %arg9[%c0_29, %c0_30] : memref<1x8xi32, #tpu.memory_space<vmem>>, vector<1x8xi32>
    tpu.vector_store %arg9[%c0_29, %c0_30], %64 {strides = array<i32>} : memref<1x8xi32, #tpu.memory_space<vmem>>, vector<1x8xi32>,
    %c0_31 = arith.constant 0 : index
    %c0_32 = arith.constant 0 : index
    %66 = vector.load %arg10[%c0_31, %c0_32] : memref<1x8xf32, #tpu.memory_space<vmem>>, vector<1x8xf32>
    tpu.vector_store %arg10[%c0_31, %c0_32], %63 {strides = array<i32>} : memref<1x8xf32, #tpu.memory_space<vmem>>, vector<1x8xf32>,
    return
  }
  func.func @transform_0(%arg0: i32) -> (i32, i32) {
    %c0_i32 = arith.constant 0 : i32
    %c0_i32_0 = arith.constant 0 : i32
    return %arg0, %c0_i32 : i32, i32
  }
  func.func @transform_1(%arg0: i32) -> (i32, i32) {
    %c0_i32 = arith.constant 0 : i32
    %c0_i32_0 = arith.constant 0 : i32
    return %arg0, %c0_i32 : i32, i32
  }
  func.func @transform_2(%arg0: i32) -> (i32, i32) {
    %c0_i32 = arith.constant 0 : i32
    %c0_i32_0 = arith.constant 0 : i32
    %c0_i32_1 = arith.constant 0 : i32
    return %c0_i32, %c0_i32_0 : i32, i32
  }
  func.func @transform_3(%arg0: i32) -> (i32, i32) {
    %c0_i32 = arith.constant 0 : i32
    %c0_i32_0 = arith.constant 0 : i32
    %c0_i32_1 = arith.constant 0 : i32
    return %c0_i32, %c0_i32_0 : i32, i32
  }
  func.func @transform_4(%arg0: i32) -> (i32, i32) {
    %c0_i32 = arith.constant 0 : i32
    %c0_i32_0 = arith.constant 0 : i32
    %c0_i32_1 = arith.constant 0 : i32
    return %c0_i32, %c0_i32_0 : i32, i32
  }
  func.func @transform_5(%arg0: i32) -> (i32, i32) {
    %c0_i32 = arith.constant 0 : i32
    %c0_i32_0 = arith.constant 0 : i32
    %c0_i32_1 = arith.constant 0 : i32
    return %c0_i32, %c0_i32_0 : i32, i32
  }
  func.func @transform_6(%arg0: i32) -> (i32, i32) {
    %c0_i32 = arith.constant 0 : i32
    %c0_i32_0 = arith.constant 0 : i32
    %c0_i32_1 = arith.constant 0 : i32
    return %c0_i32, %c0_i32_0 : i32, i32
  }
  func.func @transform_7(%arg0: i32) -> (i32, i32) {
    %c0_i32 = arith.constant 0 : i32
    %c0_i32_0 = arith.constant 0 : i32
    %c0_i32_1 = arith.constant 0 : i32
    return %c0_i32, %c0_i32_0 : i32, i32
  }
  func.func @transform_8(%arg0: i32) -> (i32, i32) {
    %c0_i32 = arith.constant 0 : i32
    %c0_i32_0 = arith.constant 0 : i32
    return %c0_i32, %arg0 : i32, i32
  }
  func.func @transform_9(%arg0: i32) -> (i32, i32) {
    %c0_i32 = arith.constant 0 : i32
    %c0_i32_0 = arith.constant 0 : i32
    return %c0_i32, %arg0 : i32, i32
  }
}

</mosaic_0001>

<llo_original>
// kernel: tpu_custom_call.1
$region0: #{tpu_custom_call.1}
  #allocation0 [shape = 'u32[]', space=smem, size = 0x4, offset = 0x4, fixed_abs, tag = 'smem constant byte address 0x4 - core index']
  #allocation1 [shape = 'u32[144,128]{1,0:T(1,128)}', space=vmem, size = 0x12000, scoped, tag = 'internal scratch']
  %s0 = inlined_call_operand.hbm [shape: f32[8,768], index: 0, kind: input, shape index: {}]
  %s1 = inlined_call_operand.hbm [shape: f32[8,256], index: 1, kind: input, shape index: {}]
  %s2 = inlined_call_operand.hbm [shape: f32[768,768], index: 2, kind: input, shape index: {}]
  %s3 = inlined_call_operand.hbm [shape: f32[1,768], index: 3, kind: input, shape index: {}]
  %s4 = inlined_call_operand.hbm [shape: f32[768,768], index: 4, kind: input, shape index: {}]
  %s5 = inlined_call_operand.hbm [shape: f32[1,768], index: 5, kind: input, shape index: {}]
  %s6 = inlined_call_operand.hbm [shape: f32[768,256], index: 6, kind: input, shape index: {}]
  %s7 = inlined_call_operand.hbm [shape: f32[1,256], index: 7, kind: input, shape index: {}]
  %s8 = inlined_call_operand.hbm [shape: s32[1,8], index: 8, kind: output, shape index: {0}]
  %s9 = inlined_call_operand.hbm [shape: f32[1,8], index: 9, kind: output, shape index: {1}]
  %10 = xla_tuple %s8, %s9
  %s11 = sld [smem:[#allocation0]]
  $region82: #{tpu_custom_call.1} parent=0
    _
  %s13 = ssub.s32 1, %s11
  %s14 = scalar_select 0, %s13, %s11
  $region1: #{tpu_custom_call.1} parent=0
    #allocation2 [shape = 'u8[24576]{0}', space=vmem, size = 0x6000, scoped, tag = 'input window, operand 0, single buffered']
    #allocation3 [shape = 's32[1]{0}', space=sflag, size = 0x4, scoped, tag = 'scoped memory for tpu_custom_call.1']
    #allocation4 [shape = 's32[1]{0}', space=sflag, size = 0x4, scoped, tag = 'scoped memory for tpu_custom_call.1']
    #allocation5 [shape = 'u8[8192]{0}', space=vmem, size = 0x2000, scoped, tag = 'input window, operand 1, single buffered']
    #allocation6 [shape = 's32[1]{0}', space=sflag, size = 0x4, scoped, tag = 'scoped memory for tpu_custom_call.1']
    #allocation7 [shape = 'u8[2359296]{0}', space=vmem, size = 0x240000, scoped, tag = 'input window, operand 2, single buffered']
    #allocation8 [shape = 'u8[3072]{0}', space=vmem, size = 0xc00, scoped, tag = 'input window, operand 3, single buffered']
    #allocation9 [shape = 's32[1]{0}', space=sflag, size = 0x4, scoped, tag = 'scoped memory for tpu_custom_call.1']
    #allocation10 [shape = 'u8[2359296]{0}', space=vmem, size = 0x240000, scoped, tag = 'input window, operand 4, single buffered']
    #allocation11 [shape = 'u8[3072]{0}', space=vmem, size = 0xc00, scoped, tag = 'input window, operand 5, single buffered']
    #allocation12 [shape = 's32[1]{0}', space=sflag, size = 0x4, scoped, tag = 'scoped memory for tpu_custom_call.1']
    #allocation13 [shape = 'u8[786432]{0}', space=vmem, size = 0xc0000, scoped, tag = 'input window, operand 6, single buffered']
    #allocation14 [shape = 'u8[1024]{0}', space=vmem, size = 0x400, scoped, tag = 'input window, operand 7, single buffered']
    #allocation15 [shape = 's32[1]{0}', space=sflag, size = 0x4, scoped, tag = 'scoped memory for tpu_custom_call.1']
    #allocation16 [shape = 'u8[512]{0}', space=vmem, size = 0x400, scoped, tag = 'output window, operand 0, single buffered']
    #allocation17 [shape = 'u8[512]{0}', space=vmem, size = 0x400, scoped, tag = 'output window, operand 1, single buffered']
    #allocation18 [shape = 's32[1]{0}', space=sflag, size = 0x4, scoped, tag = 'scoped memory for tpu_custom_call.1']
    %15 = vsyncpa [#allocation3], 0
    %16 = vsyncpa [#allocation6], 0
    %17 = vsyncpa [#allocation9], 0
    %18 = vsyncpa [#allocation12], 0
    %19 = vsyncpa [#allocation15], 0
    %20 = vsyncpa [#allocation4], 0
    %21 = vsyncpa [#allocation18], 0
    // Predicated region
    $region2: #{tpu_custom_call.1} parent=1 // pred_check
      _
    $region3: #{tpu_custom_call.1} parent=1 // pred_check_branch
      %23 = sbr.rel (0) target = $region5
    $region4: #{tpu_custom_call.1} parent=1 // pred_region
      %s25 = ssub.s32 768, 768
      %26 = vsyncadd [#allocation3], %s25
      %s28 = sshll.u32 [#allocation2], 4
      %s29 = int_to_ptr.vmem [resolvable:$true] %s28
      %31 = dma.hbm_to_vmem [thread:$0]  %s0, 768, %s29, [#allocation3]
    $region5: #{tpu_custom_call.1} parent=1 // pred_fallthru
      _
    // Predicated region
    $region6: #{tpu_custom_call.1} parent=1 // pred_check
      _
    $region7: #{tpu_custom_call.1} parent=1 // pred_check_branch
      %33 = sbr.rel (0) target = $region9
    $region8: #{tpu_custom_call.1} parent=1 // pred_region
      %s35 = ssub.s32 256, 256
      %36 = vsyncadd [#allocation6], %s35
      %s38 = sshll.u32 [#allocation5], 4
      %s39 = int_to_ptr.vmem [resolvable:$true] %s38
      %41 = dma.hbm_to_vmem [thread:$0]  %s1, 256, %s39, [#allocation6]
    $region9: #{tpu_custom_call.1} parent=1 // pred_fallthru
      _
    // Predicated region
    $region10: #{tpu_custom_call.1} parent=1 // pred_check
      _
    $region11: #{tpu_custom_call.1} parent=1 // pred_check_branch
      %43 = sbr.rel (0) target = $region13
    $region12: #{tpu_custom_call.1} parent=1 // pred_region
      %s45 = ssub.s32 73728, 73728
      %46 = vsyncadd [#allocation6], %s45
      %s47 = sshll.u32 [#allocation7], 4
      %s48 = int_to_ptr.vmem [resolvable:$true] %s47
      %53 = dma.hbm_to_vmem [thread:$0]  %s2, 73728, %s48, [#allocation6], 768, 768, 48
    $region13: #{tpu_custom_call.1} parent=1 // pred_fallthru
      _
    // Predicated region
    $region14: #{tpu_custom_call.1} parent=1 // pred_check
      _
    $region15: #{tpu_custom_call.1} parent=1 // pred_check_branch
      %55 = sbr.rel (0) target = $region17
    $region16: #{tpu_custom_call.1} parent=1 // pred_region
      %s57 = ssub.s32 96, 96
      %58 = vsyncadd [#allocation9], %s57
      %s60 = sshll.u32 [#allocation8], 4
      %s61 = int_to_ptr.vmem [resolvable:$true] %s60
      %63 = dma.hbm_to_vmem [thread:$0]  %s3, 96, %s61, [#allocation9]
    $region17: #{tpu_custom_call.1} parent=1 // pred_fallthru
      _
    // Predicated region
    $region18: #{tpu_custom_call.1} parent=1 // pred_check
      _
    $region19: #{tpu_custom_call.1} parent=1 // pred_check_branch
      %65 = sbr.rel (0) target = $region21
    $region20: #{tpu_custom_call.1} parent=1 // pred_region
      %s67 = ssub.s32 73728, 73728
      %68 = vsyncadd [#allocation9], %s67
      %s69 = sshll.u32 [#allocation10], 4
      %s70 = int_to_ptr.vmem [resolvable:$true] %s69
      %75 = dma.hbm_to_vmem [thread:$0]  %s4, 73728, %s70, [#allocation9], 768, 768, 48
    $region21: #{tpu_custom_call.1} parent=1 // pred_fallthru
      _
    // Predicated region
    $region22: #{tpu_custom_call.1} parent=1 // pred_check
      _
    $region23: #{tpu_custom_call.1} parent=1 // pred_check_branch
      %77 = sbr.rel (0) target = $region25
    $region24: #{tpu_custom_call.1} parent=1 // pred_region
      %s79 = ssub.s32 96, 96
      %80 = vsyncadd [#allocation12], %s79
      %s82 = sshll.u32 [#allocation11], 4
      %s83 = int_to_ptr.vmem [resolvable:$true] %s82
      %85 = dma.hbm_to_vmem [thread:$0]  %s5, 96, %s83, [#allocation12]
    $region25: #{tpu_custom_call.1} parent=1 // pred_fallthru
      _
    // Predicated region
    $region26: #{tpu_custom_call.1} parent=1 // pred_check
      _
    $region27: #{tpu_custom_call.1} parent=1 // pred_check_branch
      %87 = sbr.rel (0) target = $region29
    $region28: #{tpu_custom_call.1} parent=1 // pred_region
      %s89 = ssub.s32 24576, 24576
      %90 = vsyncadd [#allocation12], %s89
      %s91 = sshll.u32 [#allocation13], 4
      %s92 = int_to_ptr.vmem [resolvable:$true] %s91
      %97 = dma.hbm_to_vmem [thread:$0]  %s6, 24576, %s92, [#allocation12], 256, 256, 16
    $region29: #{tpu_custom_call.1} parent=1 // pred_fallthru
      _
    // Predicated region
    $region30: #{tpu_custom_call.1} parent=1 // pred_check
      _
    $region31: #{tpu_custom_call.1} parent=1 // pred_check_branch
      %99 = sbr.rel (0) target = $region33
    $region32: #{tpu_custom_call.1} parent=1 // pred_region
      %s101 = ssub.s32 32, 32
      %102 = vsyncadd [#allocation15], %s101
      %s104 = sshll.u32 [#allocation14], 4
      %s105 = int_to_ptr.vmem [resolvable:$true] %s104
      %107 = dma.hbm_to_vmem [thread:$0]  %s7, 32, %s105, [#allocation15]
    $region33: #{tpu_custom_call.1} parent=1 // pred_fallthru
      _
    // Predicated region
    $region34: #{tpu_custom_call.1} parent=1 // pred_check
      _
    $region35: #{tpu_custom_call.1} parent=1 // pred_check_branch
      %109 = sbr.rel (0) target = $region37
    $region36: #{tpu_custom_call.1} parent=1 // pred_region
      %110 = dma.done [#allocation3], 768
    $region37: #{tpu_custom_call.1} parent=1 // pred_fallthru
      _
    // Predicated region
    $region38: #{tpu_custom_call.1} parent=1 // pred_check
      _
    $region39: #{tpu_custom_call.1} parent=1 // pred_check_branch
      %112 = sbr.rel (0) target = $region41
    $region40: #{tpu_custom_call.1} parent=1 // pred_region
      %113 = dma.done [#allocation6], 256
    $region41: #{tpu_custom_call.1} parent=1 // pred_fallthru
      _
    // Predicated region
    $region42: #{tpu_custom_call.1} parent=1 // pred_check
      _
    $region43: #{tpu_custom_call.1} parent=1 // pred_check_branch
      %115 = sbr.rel (0) target = $region45
    $region44: #{tpu_custom_call.1} parent=1 // pred_region
      %116 = dma.done [#allocation6], 73728
    $region45: #{tpu_custom_call.1} parent=1 // pred_fallthru
      _
    // Predicated region
    $region46: #{tpu_custom_call.1} parent=1 // pred_check
      _
    $region47: #{tpu_custom_call.1} parent=1 // pred_check_branch
      %118 = sbr.rel (0) target = $region49
    $region48: #{tpu_custom_call.1} parent=1 // pred_region
      %119 = dma.done [#allocation9], 96
    $region49: #{tpu_custom_call.1} parent=1 // pred_fallthru
      _
    // Predicated region
    $region50: #{tpu_custom_call.1} parent=1 // pred_check
      _
    $region51: #{tpu_custom_call.1} parent=1 // pred_check_branch
      %121 = sbr.rel (0) target = $region53
    $region52: #{tpu_custom_call.1} parent=1 // pred_region
      %122 = dma.done [#allocation9], 73728
    $region53: #{tpu_custom_call.1} parent=1 // pred_fallthru
      _
    // Predicated region
    $region54: #{tpu_custom_call.1} parent=1 // pred_check
      _
    $region55: #{tpu_custom_call.1} parent=1 // pred_check_branch
      %124 = sbr.rel (0) target = $region57
    $region56: #{tpu_custom_call.1} parent=1 // pred_region
      %125 = dma.done [#allocation12], 96
    $region57: #{tpu_custom_call.1} parent=1 // pred_fallthru
      _
    // Predicated region
    $region58: #{tpu_custom_call.1} parent=1 // pred_check
      _
    $region59: #{tpu_custom_call.1} parent=1 // pred_check_branch
      %127 = sbr.rel (0) target = $region61
    $region60: #{tpu_custom_call.1} parent=1 // pred_region
      %128 = dma.done [#allocation12], 24576
    $region61: #{tpu_custom_call.1} parent=1 // pred_fallthru
      _
    // Predicated region
    $region62: #{tpu_custom_call.1} parent=1 // pred_check
      _
    $region63: #{tpu_custom_call.1} parent=1 // pred_check_branch
      %130 = sbr.rel (0) target = $region65
    $region64: #{tpu_custom_call.1} parent=1 // pred_region
      %131 = dma.done [#allocation15], 32
    $region65: #{tpu_custom_call.1} parent=1 // pred_fallthru
      _
    %v132 = vld [vmem:[#allocation2] sm:$0xff]
    %v133 = vld [vmem:[#allocation2 + $0x8] sm:$0xff]
    %v134 = vld [vmem:[#allocation2 + $0x10] sm:$0xff]
    %v135 = vld [vmem:[#allocation2 + $0x18] sm:$0xff]
    %v136 = vld [vmem:[#allocation2 + $0x20] sm:$0xff]
    %v137 = vld [vmem:[#allocation2 + $0x28] sm:$0xff]
    %v138 = vld [vmem:[#allocation7] sm:$0xff]
    %v139 = vld [vmem:[#allocation7 + $0x8] sm:$0xff]
    %v140 = vld [vmem:[#allocation7 + $0x10] sm:$0xff]
    %v141 = vld [vmem:[#allocation7 + $0x18] sm:$0xff]
    %v142 = vld [vmem:[#allocation7 + $0x20] sm:$0xff]
    %v143 = vld [vmem:[#allocation7 + $0x28] sm:$0xff]
    %v144 = vld [vmem:[#allocation7 + $0x30] sm:$0xff]
    %v145 = vld [vmem:[#allocation7 + $0x38] sm:$0xff]
    %v146 = vld [vmem:[#allocation7 + $0x40] sm:$0xff]
    %v147 = vld [vmem:[#allocation7 + $0x48] sm:$0xff]
    %v148 = vld [vmem:[#allocation7 + $0x50] sm:$0xff]
    %v149 = vld [vmem:[#allocation7 + $0x58] sm:$0xff]
    %v150 = vld [vmem:[#allocation7 + $0x60] sm:$0xff]
    %v151 = vld [vmem:[#allocation7 + $0x68] sm:$0xff]
    %v152 = vld [vmem:[#allocation7 + $0x70] sm:$0xff]
    %v153 = vld [vmem:[#allocation7 + $0x78] sm:$0xff]
    %v154 = vld [vmem:[#allocation7 + $0x80] sm:$0xff]
    %v155 = vld [vmem:[#allocation7 + $0x88] sm:$0xff]
    %v156 = vld [vmem:[#allocation7 + $0x90] sm:$0xff]
    %v157 = vld [vmem:[#allocation7 + $0x98] sm:$0xff]
    %v158 = vld [vmem:[#allocation7 + $0xa0] sm:$0xff]
    %v159 = vld [vmem:[#allocation7 + $0xa8] sm:$0xff]
    %v160 = vld [vmem:[#allocation7 + $0xb0] sm:$0xff]
    %v161 = vld [vmem:[#allocation7 + $0xb8] sm:$0xff]
    %v162 = vld [vmem:[#allocation7 + $0xc0] sm:$0xff]
    %v163 = vld [vmem:[#allocation7 + $0xc8] sm:$0xff]
    %v164 = vld [vmem:[#allocation7 + $0xd0] sm:$0xff]
    %v165 = vld [vmem:[#allocation7 + $0xd8] sm:$0xff]
    %v166 = vld [vmem:[#allocation7 + $0xe0] sm:$0xff]
    %v167 = vld [vmem:[#allocation7 + $0xe8] sm:$0xff]
    %v168 = vld [vmem:[#allocation7 + $0xf0] sm:$0xff]
    %v169 = vld [vmem:[#allocation7 + $0xf8] sm:$0xff]
    %v170 = vld [vmem:[#allocation7 + $0x100] sm:$0xff]
    %v171 = vld [vmem:[#allocation7 + $0x108] sm:$0xff]
    %v172 = vld [vmem:[#allocation7 + $0x110] sm:$0xff]
    %v173 = vld [vmem:[#allocation7 + $0x118] sm:$0xff]
    %v174 = vld [vmem:[#allocation7 + $0x120] sm:$0xff]
    %v175 = vld [vmem:[#allocation7 + $0x128] sm:$0xff]
    %v176 = vld [vmem:[#allocation7 + $0x130] sm:$0xff]
    %v177 = vld [vmem:[#allocation7 + $0x138] sm:$0xff]
    %v178 = vld [vmem:[#allocation7 + $0x140] sm:$0xff]
    %v179 = vld [vmem:[#allocation7 + $0x148] sm:$0xff]
    %v180 = vld [vmem:[#allocation7 + $0x150] sm:$0xff]
    %v181 = vld [vmem:[#allocation7 + $0x158] sm:$0xff]
    %v182 = vld [vmem:[#allocation7 + $0x160] sm:$0xff]
    %v183 = vld [vmem:[#allocation7 + $0x168] sm:$0xff]
    %v184 = vld [vmem:[#allocation7 + $0x170] sm:$0xff]
    %v185 = vld [vmem:[#allocation7 + $0x178] sm:$0xff]
    %v186 = vld [vmem:[#allocation7 + $0x180] sm:$0xff]
    %v187 = vld [vmem:[#allocation7 + $0x188] sm:$0xff]
    %v188 = vld [vmem:[#allocation7 + $0x190] sm:$0xff]
    %v189 = vld [vmem:[#allocation7 + $0x198] sm:$0xff]
    %v190 = vld [vmem:[#allocation7 + $0x1a0] sm:$0xff]
    %v191 = vld [vmem:[#allocation7 + $0x1a8] sm:$0xff]
    %v192 = vld [vmem:[#allocation7 + $0x1b0] sm:$0xff]
    %v193 = vld [vmem:[#allocation7 + $0x1b8] sm:$0xff]
    %v194 = vld [vmem:[#allocation7 + $0x1c0] sm:$0xff]
    %v195 = vld [vmem:[#allocation7 + $0x1c8] sm:$0xff]
    %v196 = vld [vmem:[#allocation7 + $0x1d0] sm:$0xff]
    %v197 = vld [vmem:[#allocation7 + $0x1d8] sm:$0xff]
    %v198 = vld [vmem:[#allocation7 + $0x1e0] sm:$0xff]
    %v199 = vld [vmem:[#allocation7 + $0x1e8] sm:$0xff]
    %v200 = vld [vmem:[#allocation7 + $0x1f0] sm:$0xff]
    %v201 = vld [vmem:[#allocation7 + $0x1f8] sm:$0xff]
    %v202 = vld [vmem:[#allocation7 + $0x200] sm:$0xff]
    %v203 = vld [vmem:[#allocation7 + $0x208] sm:$0xff]
    %v204 = vld [vmem:[#allocation7 + $0x210] sm:$0xff]
    %v205 = vld [vmem:[#allocation7 + $0x218] sm:$0xff]
    %v206 = vld [vmem:[#allocation7 + $0x220] sm:$0xff]
    %v207 = vld [vmem:[#allocation7 + $0x228] sm:$0xff]
    %v208 = vld [vmem:[#allocation7 + $0x230] sm:$0xff]
    %v209 = vld [vmem:[#allocation7 + $0x238] sm:$0xff]
    %v210 = vld [vmem:[#allocation7 + $0x240] sm:$0xff]
    %v211 = vld [vmem:[#allocation7 + $0x248] sm:$0xff]
    %v212 = vld [vmem:[#allocation7 + $0x250] sm:$0xff]
    %v213 = vld [vmem:[#allocation7 + $0x258] sm:$0xff]
    %v214 = vld [vmem:[#allocation7 + $0x260] sm:$0xff]
    %v215 = vld [vmem:[#allocation7 + $0x268] sm:$0xff]
    %v216 = vld [vmem:[#allocation7 + $0x270] sm:$0xff]
    %v217 = vld [vmem:[#allocation7 + $0x278] sm:$0xff]
    %v218 = vld [vmem:[#allocation7 + $0x280] sm:$0xff]
    %v219 = vld [vmem:[#allocation7 + $0x288] sm:$0xff]
    %v220 = vld [vmem:[#allocation7 + $0x290] sm:$0xff]
    %v221 = vld [vmem:[#allocation7 + $0x298] sm:$0xff]
    %v222 = vld [vmem:[#allocation7 + $0x2a0] sm:$0xff]
    %v223 = vld [vmem:[#allocation7 + $0x2a8] sm:$0xff]
    %v224 = vld [vmem:[#allocation7 + $0x2b0] sm:$0xff]
    %v225 = vld [vmem:[#allocation7 + $0x2b8] sm:$0xff]
    %v226 = vld [vmem:[#allocation7 + $0x2c0] sm:$0xff]
    %v227 = vld [vmem:[#allocation7 + $0x2c8] sm:$0xff]
    %v228 = vld [vmem:[#allocation7 + $0x2d0] sm:$0xff]
    %v229 = vld [vmem:[#allocation7 + $0x2d8] sm:$0xff]
    %v230 = vld [vmem:[#allocation7 + $0x2e0] sm:$0xff]
    %v231 = vld [vmem:[#allocation7 + $0x2e8] sm:$0xff]
    %v232 = vld [vmem:[#allocation7 + $0x2f0] sm:$0xff]
    %v233 = vld [vmem:[#allocation7 + $0x2f8] sm:$0xff]
    %v234 = vld [vmem:[#allocation7 + $0x300] sm:$0xff]
    %v235 = vld [vmem:[#allocation7 + $0x308] sm:$0xff]
    %v236 = vld [vmem:[#allocation7 + $0x310] sm:$0xff]
    %v237 = vld [vmem:[#allocation7 + $0x318] sm:$0xff]
    %v238 = vld [vmem:[#allocation7 + $0x320] sm:$0xff]
    %v239 = vld [vmem:[#allocation7 + $0x328] sm:$0xff]
    %v240 = vld [vmem:[#allocation7 + $0x330] sm:$0xff]
    %v241 = vld [vmem:[#allocation7 + $0x338] sm:$0xff]
    %v242 = vld [vmem:[#allocation7 + $0x340] sm:$0xff]
    %v243 = vld [vmem:[#allocation7 + $0x348] sm:$0xff]
    %v244 = vld [vmem:[#allocation7 + $0x350] sm:$0xff]
    %v245 = vld [vmem:[#allocation7 + $0x358] sm:$0xff]
    %v246 = vld [vmem:[#allocation7 + $0x360] sm:$0xff]
    %v247 = vld [vmem:[#allocation7 + $0x368] sm:$0xff]
    %v248 = vld [vmem:[#allocation7 + $0x370] sm:$0xff]
    %v249 = vld [vmem:[#allocation7 + $0x378] sm:$0xff]
    %v250 = vld [vmem:[#allocation7 + $0x380] sm:$0xff]
    %v251 = vld [vmem:[#allocation7 + $0x388] sm:$0xff]
    %v252 = vld [vmem:[#allocation7 + $0x390] sm:$0xff]
    %v253 = vld [vmem:[#allocation7 + $0x398] sm:$0xff]
    %v254 = vld [vmem:[#allocation7 + $0x3a0] sm:$0xff]
    %v255 = vld [vmem:[#allocation7 + $0x3a8] sm:$0xff]
    %v256 = vld [vmem:[#allocation7 + $0x3b0] sm:$0xff]
    %v257 = vld [vmem:[#allocation7 + $0x3b8] sm:$0xff]
    %v258 = vld [vmem:[#allocation7 + $0x3c0] sm:$0xff]
    %v259 = vld [vmem:[#allocation7 + $0x3c8] sm:$0xff]
    %v260 = vld [vmem:[#allocation7 + $0x3d0] sm:$0xff]
    %v261 = vld [vmem:[#allocation7 + $0x3d8] sm:$0xff]
    %v262 = vld [vmem:[#allocation7 + $0x3e0] sm:$0xff]
    %v263 = vld [vmem:[#allocation7 + $0x3e8] sm:$0xff]
    %v264 = vld [vmem:[#allocation7 + $0x3f0] sm:$0xff]
    %v265 = vld [vmem:[#allocation7 + $0x3f8] sm:$0xff]
    %v266 = vld [vmem:[#allocation7 + $0x400] sm:$0xff]
    %v267 = vld [vmem:[#allocation7 + $0x408] sm:$0xff]
    %v268 = vld [vmem:[#allocation7 + $0x410] sm:$0xff]
    %v269 = vld [vmem:[#allocation7 + $0x418] sm:$0xff]
    %v270 = vld [vmem:[#allocation7 + $0x420] sm:$0xff]
    %v271 = vld [vmem:[#allocation7 + $0x428] sm:$0xff]
    %v272 = vld [vmem:[#allocation7 + $0x430] sm:$0xff]
    %v273 = vld [vmem:[#allocation7 + $0x438] sm:$0xff]
    %v274 = vld [vmem:[#allocation7 + $0x440] sm:$0xff]
    %v275 = vld [vmem:[#allocation7 + $0x448] sm:$0xff]
    %v276 = vld [vmem:[#allocation7 + $0x450] sm:$0xff]
    %v277 = vld [vmem:[#allocation7 + $0x458] sm:$0xff]
    %v278 = vld [vmem:[#allocation7 + $0x460] sm:$0xff]
    %v279 = vld [vmem:[#allocation7 + $0x468] sm:$0xff]
    %v280 = vld [vmem:[#allocation7 + $0x470] sm:$0xff]
    %v281 = vld [vmem:[#allocation7 + $0x478] sm:$0xff]
    %v282 = vld [vmem:[#allocation7 + $0x480] sm:$0xff]
    %v283 = vld [vmem:[#allocation7 + $0x488] sm:$0xff]
    %v284 = vld [vmem:[#allocation7 + $0x490] sm:$0xff]
    %v285 = vld [vmem:[#allocation7 + $0x498] sm:$0xff]
    %v286 = vld [vmem:[#allocation7 + $0x4a0] sm:$0xff]
    %v287 = vld [vmem:[#allocation7 + $0x4a8] sm:$0xff]
    %v288 = vld [vmem:[#allocation7 + $0x4b0] sm:$0xff]
    %v289 = vld [vmem:[#allocation7 + $0x4b8] sm:$0xff]
    %v290 = vld [vmem:[#allocation7 + $0x4c0] sm:$0xff]
    %v291 = vld [vmem:[#allocation7 + $0x4c8] sm:$0xff]
    %v292 = vld [vmem:[#allocation7 + $0x4d0] sm:$0xff]
    %v293 = vld [vmem:[#allocation7 + $0x4d8] sm:$0xff]
    %v294 = vld [vmem:[#allocation7 + $0x4e0] sm:$0xff]
    %v295 = vld [vmem:[#allocation7 + $0x4e8] sm:$0xff]
    %v296 = vld [vmem:[#allocation7 + $0x4f0] sm:$0xff]
    %v297 = vld [vmem:[#allocation7 + $0x4f8] sm:$0xff]
    %v298 = vld [vmem:[#allocation7 + $0x500] sm:$0xff]
    %v299 = vld [vmem:[#allocation7 + $0x508] sm:$0xff]
    %v300 = vld [vmem:[#allocation7 + $0x510] sm:$0xff]
    %v301 = vld [vmem:[#allocation7 + $0x518] sm:$0xff]
    %v302 = vld [vmem:[#allocation7 + $0x520] sm:$0xff]
    %v303 = vld [vmem:[#allocation7 + $0x528] sm:$0xff]
    %v304 = vld [vmem:[#allocation7 + $0x530] sm:$0xff]
    %v305 = vld [vmem:[#allocation7 + $0x538] sm:$0xff]
    %v306 = vld [vmem:[#allocation7 + $0x540] sm:$0xff]
    %v307 = vld [vmem:[#allocation7 + $0x548] sm:$0xff]
    %v308 = vld [vmem:[#allocation7 + $0x550] sm:$0xff]
    %v309 = vld [vmem:[#allocation7 + $0x558] sm:$0xff]
    %v310 = vld [vmem:[#allocation7 + $0x560] sm:$0xff]
    %v311 = vld [vmem:[#allocation7 + $0x568] sm:$0xff]
    %v312 = vld [vmem:[#allocation7 + $0x570] sm:$0xff]
    %v313 = vld [vmem:[#allocation7 + $0x578] sm:$0xff]
    %v314 = vld [vmem:[#allocation7 + $0x580] sm:$0xff]
    %v315 = vld [vmem:[#allocation7 + $0x588] sm:$0xff]
    %v316 = vld [vmem:[#allocation7 + $0x590] sm:$0xff]
    %v317 = vld [vmem:[#allocation7 + $0x598] sm:$0xff]
    %v318 = vld [vmem:[#allocation7 + $0x5a0] sm:$0xff]
    %v319 = vld [vmem:[#allocation7 + $0x5a8] sm:$0xff]
    %v320 = vld [vmem:[#allocation7 + $0x5b0] sm:$0xff]
    %v321 = vld [vmem:[#allocation7 + $0x5b8] sm:$0xff]
    %v322 = vld [vmem:[#allocation7 + $0x5c0] sm:$0xff]
    %v323 = vld [vmem:[#allocation7 + $0x5c8] sm:$0xff]
    %v324 = vld [vmem:[#allocation7 + $0x5d0] sm:$0xff]
    %v325 = vld [vmem:[#allocation7 + $0x5d8] sm:$0xff]
    %v326 = vld [vmem:[#allocation7 + $0x5e0] sm:$0xff]
    %v327 = vld [vmem:[#allocation7 + $0x5e8] sm:$0xff]
    %v328 = vld [vmem:[#allocation7 + $0x5f0] sm:$0xff]
    %v329 = vld [vmem:[#allocation7 + $0x5f8] sm:$0xff]
    %v330 = vld [vmem:[#allocation7 + $0x600] sm:$0xff]
    %v331 = vld [vmem:[#allocation7 + $0x608] sm:$0xff]
    %v332 = vld [vmem:[#allocation7 + $0x610] sm:$0xff]
    %v333 = vld [vmem:[#allocation7 + $0x618] sm:$0xff]
    %v334 = vld [vmem:[#allocation7 + $0x620] sm:$0xff]
    %v335 = vld [vmem:[#allocation7 + $0x628] sm:$0xff]
    %v336 = vld [vmem:[#allocation7 + $0x630] sm:$0xff]
    %v337 = vld [vmem:[#allocation7 + $0x638] sm:$0xff]
    %v338 = vld [vmem:[#allocation7 + $0x640] sm:$0xff]
    %v339 = vld [vmem:[#allocation7 + $0x648] sm:$0xff]
    %v340 = vld [vmem:[#allocation7 + $0x650] sm:$0xff]
    %v341 = vld [vmem:[#allocation7 + $0x658] sm:$0xff]
    %v342 = vld [vmem:[#allocation7 + $0x660] sm:$0xff]
    %v343 = vld [vmem:[#allocation7 + $0x668] sm:$0xff]
    %v344 = vld [vmem:[#allocation7 + $0x670] sm:$0xff]
    %v345 = vld [vmem:[#allocation7 + $0x678] sm:$0xff]
    %v346 = vld [vmem:[#allocation7 + $0x680] sm:$0xff]
    %v347 = vld [vmem:[#allocation7 + $0x688] sm:$0xff]
    %v348 = vld [vmem:[#allocation7 + $0x690] sm:$0xff]
    %v349 = vld [vmem:[#allocation7 + $0x698] sm:$0xff]
    %v350 = vld [vmem:[#allocation7 + $0x6a0] sm:$0xff]
    %v351 = vld [vmem:[#allocation7 + $0x6a8] sm:$0xff]
    %v352 = vld [vmem:[#allocation7 + $0x6b0] sm:$0xff]
    %v353 = vld [vmem:[#allocation7 + $0x6b8] sm:$0xff]
    %v354 = vld [vmem:[#allocation7 + $0x6c0] sm:$0xff]
    %v355 = vld [vmem:[#allocation7 + $0x6c8] sm:$0xff]
    %v356 = vld [vmem:[#allocation7 + $0x6d0] sm:$0xff]
    %v357 = vld [vmem:[#allocation7 + $0x6d8] sm:$0xff]
    %v358 = vld [vmem:[#allocation7 + $0x6e0] sm:$0xff]
    %v359 = vld [vmem:[#allocation7 + $0x6e8] sm:$0xff]
    %v360 = vld [vmem:[#allocation7 + $0x6f0] sm:$0xff]
    %v361 = vld [vmem:[#allocation7 + $0x6f8] sm:$0xff]
    %v362 = vld [vmem:[#allocation7 + $0x700] sm:$0xff]
    %v363 = vld [vmem:[#allocation7 + $0x708] sm:$0xff]
    %v364 = vld [vmem:[#allocation7 + $0x710] sm:$0xff]
    %v365 = vld [vmem:[#allocation7 + $0x718] sm:$0xff]
    %v366 = vld [vmem:[#allocation7 + $0x720] sm:$0xff]
    %v367 = vld [vmem:[#allocation7 + $0x728] sm:$0xff]
    %v368 = vld [vmem:[#allocation7 + $0x730] sm:$0xff]
    %v369 = vld [vmem:[#allocation7 + $0x738] sm:$0xff]
    %v370 = vld [vmem:[#allocation7 + $0x740] sm:$0xff]
    %v371 = vld [vmem:[#allocation7 + $0x748] sm:$0xff]
    %v372 = vld [vmem:[#allocation7 + $0x750] sm:$0xff]
    %v373 = vld [vmem:[#allocation7 + $0x758] sm:$0xff]
    %v374 = vld [vmem:[#allocation7 + $0x760] sm:$0xff]
    %v375 = vld [vmem:[#allocation7 + $0x768] sm:$0xff]
    %v376 = vld [vmem:[#allocation7 + $0x770] sm:$0xff]
    %v377 = vld [vmem:[#allocation7 + $0x778] sm:$0xff]
    %v378 = vld [vmem:[#allocation7 + $0x780] sm:$0xff]
    %v379 = vld [vmem:[#allocation7 + $0x788] sm:$0xff]
    %v380 = vld [vmem:[#allocation7 + $0x790] sm:$0xff]
    %v381 = vld [vmem:[#allocation7 + $0x798] sm:$0xff]
    %v382 = vld [vmem:[#allocation7 + $0x7a0] sm:$0xff]
    %v383 = vld [vmem:[#allocation7 + $0x7a8] sm:$0xff]
    %v384 = vld [vmem:[#allocation7 + $0x7b0] sm:$0xff]
    %v385 = vld [vmem:[#allocation7 + $0x7b8] sm:$0xff]
    %v386 = vld [vmem:[#allocation7 + $0x7c0] sm:$0xff]
    %v387 = vld [vmem:[#allocation7 + $0x7c8] sm:$0xff]
    %v388 = vld [vmem:[#allocation7 + $0x7d0] sm:$0xff]
    %v389 = vld [vmem:[#allocation7 + $0x7d8] sm:$0xff]
    %v390 = vld [vmem:[#allocation7 + $0x7e0] sm:$0xff]
    %v391 = vld [vmem:[#allocation7 + $0x7e8] sm:$0xff]
    %v392 = vld [vmem:[#allocation7 + $0x7f0] sm:$0xff]
    %v393 = vld [vmem:[#allocation7 + $0x7f8] sm:$0xff]
    %v394 = vld [vmem:[#allocation7 + $0x800] sm:$0xff]
    %v395 = vld [vmem:[#allocation7 + $0x808] sm:$0xff]
    %v396 = vld [vmem:[#allocation7 + $0x810] sm:$0xff]
    %v397 = vld [vmem:[#allocation7 + $0x818] sm:$0xff]
    %v398 = vld [vmem:[#allocation7 + $0x820] sm:$0xff]
    %v399 = vld [vmem:[#allocation7 + $0x828] sm:$0xff]
    %v400 = vld [vmem:[#allocation7 + $0x830] sm:$0xff]
    %v401 = vld [vmem:[#allocation7 + $0x838] sm:$0xff]
    %v402 = vld [vmem:[#allocation7 + $0x840] sm:$0xff]
    %v403 = vld [vmem:[#allocation7 + $0x848] sm:$0xff]
    %v404 = vld [vmem:[#allocation7 + $0x850] sm:$0xff]
    %v405 = vld [vmem:[#allocation7 + $0x858] sm:$0xff]
    %v406 = vld [vmem:[#allocation7 + $0x860] sm:$0xff]
    %v407 = vld [vmem:[#allocation7 + $0x868] sm:$0xff]
    %v408 = vld [vmem:[#allocation7 + $0x870] sm:$0xff]
    %v409 = vld [vmem:[#allocation7 + $0x878] sm:$0xff]
    %v410 = vld [vmem:[#allocation7 + $0x880] sm:$0xff]
    %v411 = vld [vmem:[#allocation7 + $0x888] sm:$0xff]
    %v412 = vld [vmem:[#allocation7 + $0x890] sm:$0xff]
    %v413 = vld [vmem:[#allocation7 + $0x898] sm:$0xff]
    %v414 = vld [vmem:[#allocation7 + $0x8a0] sm:$0xff]
    %v415 = vld [vmem:[#allocation7 + $0x8a8] sm:$0xff]
    %v416 = vld [vmem:[#allocation7 + $0x8b0] sm:$0xff]
    %v417 = vld [vmem:[#allocation7 + $0x8b8] sm:$0xff]
    %v418 = vld [vmem:[#allocation7 + $0x8c0] sm:$0xff]
    %v419 = vld [vmem:[#allocation7 + $0x8c8] sm:$0xff]
    %v420 = vld [vmem:[#allocation7 + $0x8d0] sm:$0xff]
    %v421 = vld [vmem:[#allocation7 + $0x8d8] sm:$0xff]
    %v422 = vld [vmem:[#allocation7 + $0x8e0] sm:$0xff]
    %v423 = vld [vmem:[#allocation7 + $0x8e8] sm:$0xff]
    %v424 = vld [vmem:[#allocation7 + $0x8f0] sm:$0xff]
    %v425 = vld [vmem:[#allocation7 + $0x8f8] sm:$0xff]
    %v426 = vld [vmem:[#allocation7 + $0x900] sm:$0xff]
    %v427 = vld [vmem:[#allocation7 + $0x908] sm:$0xff]
    %v428 = vld [vmem:[#allocation7 + $0x910] sm:$0xff]
    %v429 = vld [vmem:[#allocation7 + $0x918] sm:$0xff]
    %v430 = vld [vmem:[#allocation7 + $0x920] sm:$0xff]
    %v431 = vld [vmem:[#allocation7 + $0x928] sm:$0xff]
    %v432 = vld [vmem:[#allocation7 + $0x930] sm:$0xff]
    %v433 = vld [vmem:[#allocation7 + $0x938] sm:$0xff]
    %v434 = vld [vmem:[#allocation7 + $0x940] sm:$0xff]
    %v435 = vld [vmem:[#allocation7 + $0x948] sm:$0xff]
    %v436 = vld [vmem:[#allocation7 + $0x950] sm:$0xff]
    %v437 = vld [vmem:[#allocation7 + $0x958] sm:$0xff]
    %v438 = vld [vmem:[#allocation7 + $0x960] sm:$0xff]
    %v439 = vld [vmem:[#allocation7 + $0x968] sm:$0xff]
    %v440 = vld [vmem:[#allocation7 + $0x970] sm:$0xff]
    %v441 = vld [vmem:[#allocation7 + $0x978] sm:$0xff]
    %v442 = vld [vmem:[#allocation7 + $0x980] sm:$0xff]
    %v443 = vld [vmem:[#allocation7 + $0x988] sm:$0xff]
    %v444 = vld [vmem:[#allocation7 + $0x990] sm:$0xff]
    %v445 = vld [vmem:[#allocation7 + $0x998] sm:$0xff]
    %v446 = vld [vmem:[#allocation7 + $0x9a0] sm:$0xff]
    %v447 = vld [vmem:[#allocation7 + $0x9a8] sm:$0xff]
    %v448 = vld [vmem:[#allocation7 + $0x9b0] sm:$0xff]
    %v449 = vld [vmem:[#allocation7 + $0x9b8] sm:$0xff]
    %v450 = vld [vmem:[#allocation7 + $0x9c0] sm:$0xff]
    %v451 = vld [vmem:[#allocation7 + $0x9c8] sm:$0xff]
    %v452 = vld [vmem:[#allocation7 + $0x9d0] sm:$0xff]
    %v453 = vld [vmem:[#allocation7 + $0x9d8] sm:$0xff]
    %v454 = vld [vmem:[#allocation7 + $0x9e0] sm:$0xff]
    %v455 = vld [vmem:[#allocation7 + $0x9e8] sm:$0xff]
    %v456 = vld [vmem:[#allocation7 + $0x9f0] sm:$0xff]
    %v457 = vld [vmem:[#allocation7 + $0x9f8] sm:$0xff]
    %v458 = vld [vmem:[#allocation7 + $0xa00] sm:$0xff]
    %v459 = vld [vmem:[#allocation7 + $0xa08] sm:$0xff]
    %v460 = vld [vmem:[#allocation7 + $0xa10] sm:$0xff]
    %v461 = vld [vmem:[#allocation7 + $0xa18] sm:$0xff]
    %v462 = vld [vmem:[#allocation7 + $0xa20] sm:$0xff]
    %v463 = vld [vmem:[#allocation7 + $0xa28] sm:$0xff]
    %v464 = vld [vmem:[#allocation7 + $0xa30] sm:$0xff]
    %v465 = vld [vmem:[#allocation7 + $0xa38] sm:$0xff]
    %v466 = vld [vmem:[#allocation7 + $0xa40] sm:$0xff]
    %v467 = vld [vmem:[#allocation7 + $0xa48] sm:$0xff]
    %v468 = vld [vmem:[#allocation7 + $0xa50] sm:$0xff]
    %v469 = vld [vmem:[#allocation7 + $0xa58] sm:$0xff]
    %v470 = vld [vmem:[#allocation7 + $0xa60] sm:$0xff]
    %v471 = vld [vmem:[#allocation7 + $0xa68] sm:$0xff]
    %v472 = vld [vmem:[#allocation7 + $0xa70] sm:$0xff]
    %v473 = vld [vmem:[#allocation7 + $0xa78] sm:$0xff]
    %v474 = vld [vmem:[#allocation7 + $0xa80] sm:$0xff]
    %v475 = vld [vmem:[#allocation7 + $0xa88] sm:$0xff]
    %v476 = vld [vmem:[#allocation7 + $0xa90] sm:$0xff]
    %v477 = vld [vmem:[#allocation7 + $0xa98] sm:$0xff]
    %v478 = vld [vmem:[#allocation7 + $0xaa0] sm:$0xff]
    %v479 = vld [vmem:[#allocation7 + $0xaa8] sm:$0xff]
    %v480 = vld [vmem:[#allocation7 + $0xab0] sm:$0xff]
    %v481 = vld [vmem:[#allocation7 + $0xab8] sm:$0xff]
    %v482 = vld [vmem:[#allocation7 + $0xac0] sm:$0xff]
    %v483 = vld [vmem:[#allocation7 + $0xac8] sm:$0xff]
    %v484 = vld [vmem:[#allocation7 + $0xad0] sm:$0xff]
    %v485 = vld [vmem:[#allocation7 + $0xad8] sm:$0xff]
    %v486 = vld [vmem:[#allocation7 + $0xae0] sm:$0xff]
    %v487 = vld [vmem:[#allocation7 + $0xae8] sm:$0xff]
    %v488 = vld [vmem:[#allocation7 + $0xaf0] sm:$0xff]
    %v489 = vld [vmem:[#allocation7 + $0xaf8] sm:$0xff]
    %v490 = vld [vmem:[#allocation7 + $0xb00] sm:$0xff]
    %v491 = vld [vmem:[#allocation7 + $0xb08] sm:$0xff]
    %v492 = vld [vmem:[#allocation7 + $0xb10] sm:$0xff]
    %v493 = vld [vmem:[#allocation7 + $0xb18] sm:$0xff]
    %v494 = vld [vmem:[#allocation7 + $0xb20] sm:$0xff]
    %v495 = vld [vmem:[#allocation7 + $0xb28] sm:$0xff]
    %v496 = vld [vmem:[#allocation7 + $0xb30] sm:$0xff]
    %v497 = vld [vmem:[#allocation7 + $0xb38] sm:$0xff]
    %v498 = vld [vmem:[#allocation7 + $0xb40] sm:$0xff]
    %v499 = vld [vmem:[#allocation7 + $0xb48] sm:$0xff]
    %v500 = vld [vmem:[#allocation7 + $0xb50] sm:$0xff]
    %v501 = vld [vmem:[#allocation7 + $0xb58] sm:$0xff]
    %v502 = vld [vmem:[#allocation7 + $0xb60] sm:$0xff]
    %v503 = vld [vmem:[#allocation7 + $0xb68] sm:$0xff]
    %v504 = vld [vmem:[#allocation7 + $0xb70] sm:$0xff]
    %v505 = vld [vmem:[#allocation7 + $0xb78] sm:$0xff]
    %v506 = vld [vmem:[#allocation7 + $0xb80] sm:$0xff]
    %v507 = vld [vmem:[#allocation7 + $0xb88] sm:$0xff]
    %v508 = vld [vmem:[#allocation7 + $0xb90] sm:$0xff]
    %v509 = vld [vmem:[#allocation7 + $0xb98] sm:$0xff]
    %v510 = vld [vmem:[#allocation7 + $0xba0] sm:$0xff]
    %v511 = vld [vmem:[#allocation7 + $0xba8] sm:$0xff]
    %v512 = vld [vmem:[#allocation7 + $0xbb0] sm:$0xff]
    %v513 = vld [vmem:[#allocation7 + $0xbb8] sm:$0xff]
    %v514 = vld [vmem:[#allocation7 + $0xbc0] sm:$0xff]
    %v515 = vld [vmem:[#allocation7 + $0xbc8] sm:$0xff]
    %v516 = vld [vmem:[#allocation7 + $0xbd0] sm:$0xff]
    %v517 = vld [vmem:[#allocation7 + $0xbd8] sm:$0xff]
    %v518 = vld [vmem:[#allocation7 + $0xbe0] sm:$0xff]
    %v519 = vld [vmem:[#allocation7 + $0xbe8] sm:$0xff]
    %v520 = vld [vmem:[#allocation7 + $0xbf0] sm:$0xff]
    %v521 = vld [vmem:[#allocation7 + $0xbf8] sm:$0xff]
    %v522 = vld [vmem:[#allocation7 + $0xc00] sm:$0xff]
    %v523 = vld [vmem:[#allocation7 + $0xc08] sm:$0xff]
    %v524 = vld [vmem:[#allocation7 + $0xc10] sm:$0xff]
    %v525 = vld [vmem:[#allocation7 + $0xc18] sm:$0xff]
    %v526 = vld [vmem:[#allocation7 + $0xc20] sm:$0xff]
    %v527 = vld [vmem:[#allocation7 + $0xc28] sm:$0xff]
    %v528 = vld [vmem:[#allocation7 + $0xc30] sm:$0xff]
    %v529 = vld [vmem:[#allocation7 + $0xc38] sm:$0xff]
    %v530 = vld [vmem:[#allocation7 + $0xc40] sm:$0xff]
    %v531 = vld [vmem:[#allocation7 + $0xc48] sm:$0xff]
    %v532 = vld [vmem:[#allocation7 + $0xc50] sm:$0xff]
    %v533 = vld [vmem:[#allocation7 + $0xc58] sm:$0xff]
    %v534 = vld [vmem:[#allocation7 + $0xc60] sm:$0xff]
    %v535 = vld [vmem:[#allocation7 + $0xc68] sm:$0xff]
    %v536 = vld [vmem:[#allocation7 + $0xc70] sm:$0xff]
    %v537 = vld [vmem:[#allocation7 + $0xc78] sm:$0xff]
    %v538 = vld [vmem:[#allocation7 + $0xc80] sm:$0xff]
    %v539 = vld [vmem:[#allocation7 + $0xc88] sm:$0xff]
    %v540 = vld [vmem:[#allocation7 + $0xc90] sm:$0xff]
    %v541 = vld [vmem:[#allocation7 + $0xc98] sm:$0xff]
    %v542 = vld [vmem:[#allocation7 + $0xca0] sm:$0xff]
    %v543 = vld [vmem:[#allocation7 + $0xca8] sm:$0xff]
    %v544 = vld [vmem:[#allocation7 + $0xcb0] sm:$0xff]
    %v545 = vld [vmem:[#allocation7 + $0xcb8] sm:$0xff]
    %v546 = vld [vmem:[#allocation7 + $0xcc0] sm:$0xff]
    %v547 = vld [vmem:[#allocation7 + $0xcc8] sm:$0xff]
    %v548 = vld [vmem:[#allocation7 + $0xcd0] sm:$0xff]
    %v549 = vld [vmem:[#allocation7 + $0xcd8] sm:$0xff]
    %v550 = vld [vmem:[#allocation7 + $0xce0] sm:$0xff]
    %v551 = vld [vmem:[#allocation7 + $0xce8] sm:$0xff]
    %v552 = vld [vmem:[#allocation7 + $0xcf0] sm:$0xff]
    %v553 = vld [vmem:[#allocation7 + $0xcf8] sm:$0xff]
    %v554 = vld [vmem:[#allocation7 + $0xd00] sm:$0xff]
    %v555 = vld [vmem:[#allocation7 + $0xd08] sm:$0xff]
    %v556 = vld [vmem:[#allocation7 + $0xd10] sm:$0xff]
    %v557 = vld [vmem:[#allocation7 + $0xd18] sm:$0xff]
    %v558 = vld [vmem:[#allocation7 + $0xd20] sm:$0xff]
    %v559 = vld [vmem:[#allocation7 + $0xd28] sm:$0xff]
    %v560 = vld [vmem:[#allocation7 + $0xd30] sm:$0xff]
    %v561 = vld [vmem:[#allocation7 + $0xd38] sm:$0xff]
    %v562 = vld [vmem:[#allocation7 + $0xd40] sm:$0xff]
    %v563 = vld [vmem:[#allocation7 + $0xd48] sm:$0xff]
    %v564 = vld [vmem:[#allocation7 + $0xd50] sm:$0xff]
    %v565 = vld [vmem:[#allocation7 + $0xd58] sm:$0xff]
    %v566 = vld [vmem:[#allocation7 + $0xd60] sm:$0xff]
    %v567 = vld [vmem:[#allocation7 + $0xd68] sm:$0xff]
    %v568 = vld [vmem:[#allocation7 + $0xd70] sm:$0xff]
    %v569 = vld [vmem:[#allocation7 + $0xd78] sm:$0xff]
    %v570 = vld [vmem:[#allocation7 + $0xd80] sm:$0xff]
    %v571 = vld [vmem:[#allocation7 + $0xd88] sm:$0xff]
    %v572 = vld [vmem:[#allocation7 + $0xd90] sm:$0xff]
    %v573 = vld [vmem:[#allocation7 + $0xd98] sm:$0xff]
    %v574 = vld [vmem:[#allocation7 + $0xda0] sm:$0xff]
    %v575 = vld [vmem:[#allocation7 + $0xda8] sm:$0xff]
    %v576 = vld [vmem:[#allocation7 + $0xdb0] sm:$0xff]
    %v577 = vld [vmem:[#allocation7 + $0xdb8] sm:$0xff]
    %v578 = vld [vmem:[#allocation7 + $0xdc0] sm:$0xff]
    %v579 = vld [vmem:[#allocation7 + $0xdc8] sm:$0xff]
    %v580 = vld [vmem:[#allocation7 + $0xdd0] sm:$0xff]
    %v581 = vld [vmem:[#allocation7 + $0xdd8] sm:$0xff]
    %v582 = vld [vmem:[#allocation7 + $0xde0] sm:$0xff]
    %v583 = vld [vmem:[#allocation7 + $0xde8] sm:$0xff]
    %v584 = vld [vmem:[#allocation7 + $0xdf0] sm:$0xff]
    %v585 = vld [vmem:[#allocation7 + $0xdf8] sm:$0xff]
    %v586 = vld [vmem:[#allocation7 + $0xe00] sm:$0xff]
    %v587 = vld [vmem:[#allocation7 + $0xe08] sm:$0xff]
    %v588 = vld [vmem:[#allocation7 + $0xe10] sm:$0xff]
    %v589 = vld [vmem:[#allocation7 + $0xe18] sm:$0xff]
    %v590 = vld [vmem:[#allocation7 + $0xe20] sm:$0xff]
    %v591 = vld [vmem:[#allocation7 + $0xe28] sm:$0xff]
    %v592 = vld [vmem:[#allocation7 + $0xe30] sm:$0xff]
    %v593 = vld [vmem:[#allocation7 + $0xe38] sm:$0xff]
    %v594 = vld [vmem:[#allocation7 + $0xe40] sm:$0xff]
    %v595 = vld [vmem:[#allocation7 + $0xe48] sm:$0xff]
    %v596 = vld [vmem:[#allocation7 + $0xe50] sm:$0xff]
    %v597 = vld [vmem:[#allocation7 + $0xe58] sm:$0xff]
    %v598 = vld [vmem:[#allocation7 + $0xe60] sm:$0xff]
    %v599 = vld [vmem:[#allocation7 + $0xe68] sm:$0xff]
    %v600 = vld [vmem:[#allocation7 + $0xe70] sm:$0xff]
    %v601 = vld [vmem:[#allocation7 + $0xe78] sm:$0xff]
    %v602 = vld [vmem:[#allocation7 + $0xe80] sm:$0xff]
    %v603 = vld [vmem:[#allocation7 + $0xe88] sm:$0xff]
    %v604 = vld [vmem:[#allocation7 + $0xe90] sm:$0xff]
    %v605 = vld [vmem:[#allocation7 + $0xe98] sm:$0xff]
    %v606 = vld [vmem:[#allocation7 + $0xea0] sm:$0xff]
    %v607 = vld [vmem:[#allocation7 + $0xea8] sm:$0xff]
    %v608 = vld [vmem:[#allocation7 + $0xeb0] sm:$0xff]
    %v609 = vld [vmem:[#allocation7 + $0xeb8] sm:$0xff]
    %v610 = vld [vmem:[#allocation7 + $0xec0] sm:$0xff]
    %v611 = vld [vmem:[#allocation7 + $0xec8] sm:$0xff]
    %v612 = vld [vmem:[#allocation7 + $0xed0] sm:$0xff]
    %v613 = vld [vmem:[#allocation7 + $0xed8] sm:$0xff]
    %v614 = vld [vmem:[#allocation7 + $0xee0] sm:$0xff]
    %v615 = vld [vmem:[#allocation7 + $0xee8] sm:$0xff]
    %v616 = vld [vmem:[#allocation7 + $0xef0] sm:$0xff]
    %v617 = vld [vmem:[#allocation7 + $0xef8] sm:$0xff]
    %v618 = vld [vmem:[#allocation7 + $0xf00] sm:$0xff]
    %v619 = vld [vmem:[#allocation7 + $0xf08] sm:$0xff]
    %v620 = vld [vmem:[#allocation7 + $0xf10] sm:$0xff]
    %v621 = vld [vmem:[#allocation7 + $0xf18] sm:$0xff]
    %v622 = vld [vmem:[#allocation7 + $0xf20] sm:$0xff]
    %v623 = vld [vmem:[#allocation7 + $0xf28] sm:$0xff]
    %v624 = vld [vmem:[#allocation7 + $0xf30] sm:$0xff]
    %v625 = vld [vmem:[#allocation7 + $0xf38] sm:$0xff]
    %v626 = vld [vmem:[#allocation7 + $0xf40] sm:$0xff]
    %v627 = vld [vmem:[#allocation7 + $0xf48] sm:$0xff]
    %v628 = vld [vmem:[#allocation7 + $0xf50] sm:$0xff]
    %v629 = vld [vmem:[#allocation7 + $0xf58] sm:$0xff]
    %v630 = vld [vmem:[#allocation7 + $0xf60] sm:$0xff]
    %v631 = vld [vmem:[#allocation7 + $0xf68] sm:$0xff]
    %v632 = vld [vmem:[#allocation7 + $0xf70] sm:$0xff]
    %v633 = vld [vmem:[#allocation7 + $0xf78] sm:$0xff]
    %v634 = vld [vmem:[#allocation7 + $0xf80] sm:$0xff]
    %v635 = vld [vmem:[#allocation7 + $0xf88] sm:$0xff]
    %v636 = vld [vmem:[#allocation7 + $0xf90] sm:$0xff]
    %v637 = vld [vmem:[#allocation7 + $0xf98] sm:$0xff]
    %v638 = vld [vmem:[#allocation7 + $0xfa0] sm:$0xff]
    %v639 = vld [vmem:[#allocation7 + $0xfa8] sm:$0xff]
    %v640 = vld [vmem:[#allocation7 + $0xfb0] sm:$0xff]
    %v641 = vld [vmem:[#allocation7 + $0xfb8] sm:$0xff]
    %v642 = vld [vmem:[#allocation7 + $0xfc0] sm:$0xff]
    %v643 = vld [vmem:[#allocation7 + $0xfc8] sm:$0xff]
    %v644 = vld [vmem:[#allocation7 + $0xfd0] sm:$0xff]
    %v645 = vld [vmem:[#allocation7 + $0xfd8] sm:$0xff]
    %v646 = vld [vmem:[#allocation7 + $0xfe0] sm:$0xff]
    %v647 = vld [vmem:[#allocation7 + $0xfe8] sm:$0xff]
    %v648 = vld [vmem:[#allocation7 + $0xff0] sm:$0xff]
    %v649 = vld [vmem:[#allocation7 + $0xff8] sm:$0xff]
    %v650 = vld [vmem:[#allocation7 + $0x1000] sm:$0xff]
    %v651 = vld [vmem:[#allocation7 + $0x1008] sm:$0xff]
    %v652 = vld [vmem:[#allocation7 + $0x1010] sm:$0xff]
    %v653 = vld [vmem:[#allocation7 + $0x1018] sm:$0xff]
    %v654 = vld [vmem:[#allocation7 + $0x1020] sm:$0xff]
    %v655 = vld [vmem:[#allocation7 + $0x1028] sm:$0xff]
    %v656 = vld [vmem:[#allocation7 + $0x1030] sm:$0xff]
    %v657 = vld [vmem:[#allocation7 + $0x1038] sm:$0xff]
    %v658 = vld [vmem:[#allocation7 + $0x1040] sm:$0xff]
    %v659 = vld [vmem:[#allocation7 + $0x1048] sm:$0xff]
    %v660 = vld [vmem:[#allocation7 + $0x1050] sm:$0xff]
    %v661 = vld [vmem:[#allocation7 + $0x1058] sm:$0xff]
    %v662 = vld [vmem:[#allocation7 + $0x1060] sm:$0xff]
    %v663 = vld [vmem:[#allocation7 + $0x1068] sm:$0xff]
    %v664 = vld [vmem:[#allocation7 + $0x1070] sm:$0xff]
    %v665 = vld [vmem:[#allocation7 + $0x1078] sm:$0xff]
    %v666 = vld [vmem:[#allocation7 + $0x1080] sm:$0xff]
    %v667 = vld [vmem:[#allocation7 + $0x1088] sm:$0xff]
    %v668 = vld [vmem:[#allocation7 + $0x1090] sm:$0xff]
    %v669 = vld [vmem:[#allocation7 + $0x1098] sm:$0xff]
    %v670 = vld [vmem:[#allocation7 + $0x10a0] sm:$0xff]
    %v671 = vld [vmem:[#allocation7 + $0x10a8] sm:$0xff]
    %v672 = vld [vmem:[#allocation7 + $0x10b0] sm:$0xff]
    %v673 = vld [vmem:[#allocation7 + $0x10b8] sm:$0xff]
    %v674 = vld [vmem:[#allocation7 + $0x10c0] sm:$0xff]
    %v675 = vld [vmem:[#allocation7 + $0x10c8] sm:$0xff]
    %v676 = vld [vmem:[#allocation7 + $0x10d0] sm:$0xff]
    %v677 = vld [vmem:[#allocation7 + $0x10d8] sm:$0xff]
    %v678 = vld [vmem:[#allocation7 + $0x10e0] sm:$0xff]
    %v679 = vld [vmem:[#allocation7 + $0x10e8] sm:$0xff]
    %v680 = vld [vmem:[#allocation7 + $0x10f0] sm:$0xff]
    %v681 = vld [vmem:[#allocation7 + $0x10f8] sm:$0xff]
    %v682 = vld [vmem:[#allocation7 + $0x1100] sm:$0xff]
    %v683 = vld [vmem:[#allocation7 + $0x1108] sm:$0xff]
    %v684 = vld [vmem:[#allocation7 + $0x1110] sm:$0xff]
    %v685 = vld [vmem:[#allocation7 + $0x1118] sm:$0xff]
    %v686 = vld [vmem:[#allocation7 + $0x1120] sm:$0xff]
    %v687 = vld [vmem:[#allocation7 + $0x1128] sm:$0xff]
    %v688 = vld [vmem:[#allocation7 + $0x1130] sm:$0xff]
    %v689 = vld [vmem:[#allocation7 + $0x1138] sm:$0xff]
    %v690 = vld [vmem:[#allocation7 + $0x1140] sm:$0xff]
    %v691 = vld [vmem:[#allocation7 + $0x1148] sm:$0xff]
    %v692 = vld [vmem:[#allocation7 + $0x1150] sm:$0xff]
    %v693 = vld [vmem:[#allocation7 + $0x1158] sm:$0xff]
    %v694 = vld [vmem:[#allocation7 + $0x1160] sm:$0xff]
    %v695 = vld [vmem:[#allocation7 + $0x1168] sm:$0xff]
    %v696 = vld [vmem:[#allocation7 + $0x1170] sm:$0xff]
    %v697 = vld [vmem:[#allocation7 + $0x1178] sm:$0xff]
    %v698 = vld [vmem:[#allocation7 + $0x1180] sm:$0xff]
    %v699 = vld [vmem:[#allocation7 + $0x1188] sm:$0xff]
    %v700 = vld [vmem:[#allocation7 + $0x1190] sm:$0xff]
    %v701 = vld [vmem:[#allocation7 + $0x1198] sm:$0xff]
    %v702 = vld [vmem:[#allocation7 + $0x11a0] sm:$0xff]
    %v703 = vld [vmem:[#allocation7 + $0x11a8] sm:$0xff]
    %v704 = vld [vmem:[#allocation7 + $0x11b0] sm:$0xff]
    %v705 = vld [vmem:[#allocation7 + $0x11b8] sm:$0xff]
    %v706 = vld [vmem:[#allocation7 + $0x11c0] sm:$0xff]
    %v707 = vld [vmem:[#allocation7 + $0x11c8] sm:$0xff]
    %v708 = vld [vmem:[#allocation7 + $0x11d0] sm:$0xff]
    %v709 = vld [vmem:[#allocation7 + $0x11d8] sm:$0xff]
    %v710 = vld [vmem:[#allocation7 + $0x11e0] sm:$0xff]
    %v711 = vld [vmem:[#allocation7 + $0x11e8] sm:$0xff]
    %v712 = vld [vmem:[#allocation7 + $0x11f0] sm:$0xff]
    %v713 = vld [vmem:[#allocation7 + $0x11f8] sm:$0xff]
    %v714 = vld [vmem:[#allocation8] sm:$0x3f]
    %v716 = vlaneseq
    %v717 = vshrl.u32 %v716, 7
    %v718 = vsub.s32 0, %v717
    %v719 = vrot.slane %v714, %v718
    %v720 = vlaneseq
    %v721 = vshrl.u32 %v720, 7
    %v722 = vsub.s32 1, %v721
    %v723 = vrot.slane %v714, %v722
    %v724 = vlaneseq
    %v725 = vshrl.u32 %v724, 7
    %v726 = vsub.s32 2, %v725
    %v727 = vrot.slane %v714, %v726
    %v728 = vlaneseq
    %v729 = vshrl.u32 %v728, 7
    %v730 = vsub.s32 3, %v729
    %v731 = vrot.slane %v714, %v730
    %v732 = vlaneseq
    %v733 = vshrl.u32 %v732, 7
    %v734 = vsub.s32 4, %v733
    %v735 = vrot.slane %v714, %v734
    %v736 = vlaneseq
    %v737 = vshrl.u32 %v736, 7
    %v738 = vsub.s32 5, %v737
    %v739 = vrot.slane %v714, %v738
    %746 = vmatprep.subr.mxu0 %v139
    %747 = vmatpush1.msra.mxu0 %v138
    %748 = vmatprep.subr.mxu0 %v145
    %749 = vmatpush1.msra.mxu0 %v144
    %750 = vmatprep.subr.mxu0 %v151
    %751 = vmatpush1.msra.mxu0 %v150
    %752 = vmatprep.subr.mxu0 %v157
    %753 = vmatpush1.msra.mxu0 %v156
    %754 = vmatprep.subr.mxu0 %v163
    %755 = vmatpush1.msra.mxu0 %v162
    %756 = vmatprep.subr.mxu0 %v169
    %757 = vmatpush1.msra.mxu0 %v168
    %758 = vmatprep.subr.mxu0 %v175
    %759 = vmatpush1.msra.mxu0 %v174
    %760 = vmatprep.subr.mxu0 %v181
    %761 = vmatpush1.msra.mxu0 %v180
    %762 = vmatprep.subr.mxu0 %v187
    %763 = vmatpush1.msra.mxu0 %v186
    %764 = vmatprep.subr.mxu0 %v193
    %765 = vmatpush1.msra.mxu0 %v192
    %766 = vmatprep.subr.mxu0 %v199
    %767 = vmatpush1.msra.mxu0 %v198
    %768 = vmatprep.subr.mxu0 %v205
    %769 = vmatpush1.msra.mxu0 %v204
    %770 = vmatprep.subr.mxu0 %v211
    %771 = vmatpush1.msra.mxu0 %v210
    %772 = vmatprep.subr.mxu0 %v217
    %773 = vmatpush1.msra.mxu0 %v216
    %774 = vmatprep.subr.mxu0 %v223
    %775 = vmatpush1.msra.mxu0 %v222
    %776 = vmatprep.subr.mxu0 %v229
    %777 = vmatpush1.msra.mxu0 %v228
    %778 = vmatprep.subr.mxu0 %v235
    %779 = vmatpush1.msra.mxu0 %v234
    %780 = vmatprep.subr.mxu0 %v241
    %781 = vmatpush1.msra.mxu0 %v240
    %782 = vmatprep.subr.mxu0 %v247
    %783 = vmatpush1.msra.mxu0 %v246
    %784 = vmatprep.subr.mxu0 %v253
    %785 = vmatpush1.msra.mxu0 %v252
    %786 = vmatprep.subr.mxu0 %v259
    %787 = vmatpush1.msra.mxu0 %v258
    %788 = vmatprep.subr.mxu0 %v265
    %789 = vmatpush1.msra.mxu0 %v264
    %790 = vmatprep.subr.mxu0 %v271
    %791 = vmatpush1.msra.mxu0 %v270
    %792 = vmatprep.subr.mxu0 %v277
    %793 = vmatpush1.msra.mxu0 %v276
    %794 = vmatprep.subr.mxu0 %v283
    %795 = vmatpush1.msra.mxu0 %v282
    %796 = vmatprep.subr.mxu0 %v289
    %797 = vmatpush1.msra.mxu0 %v288
    %798 = vmatprep.subr.mxu0 %v295
    %799 = vmatpush1.msra.mxu0 %v294
    %800 = vmatprep.subr.mxu0 %v301
    %801 = vmatpush1.msra.mxu0 %v300
    %802 = vmatprep.subr.mxu0 %v307
    %803 = vmatpush1.msra.mxu0 %v306
    %804 = vmatprep.subr.mxu0 %v313
    %805 = vmatpush1.msra.mxu0 %v312
    %806 = vmatprep.subr.mxu0 %v319
    %807 = vmatpush1.msra.mxu0 %v318
    %808 = vmatprep.subr.mxu0 %v325
    %809 = vmatpush1.msra.mxu0 %v324
    %810 = vmatprep.mubr.f32.mxu0 %v133
    %811 = vmatmul.mubr.f32.gmra.mrb[0].mxu0 %v132
    %v812 = vpop.f32.mrb[0].mxu0
    %v813 = vadd.f32 %v719, %v812
    %v814 = vpop.f32.mrb[0].mxu0
    %v815 = vadd.f32 %v723, %v814
    %816 = vdwg.mxu0
    %817 = vmatprep.subr.mxu0 %v331
    %818 = vmatpush1.msra.mxu0 %v330
    %819 = vmatprep.subr.mxu0 %v337
    %820 = vmatpush1.msra.mxu0 %v336
    %821 = vmatprep.subr.mxu0 %v343
    %822 = vmatpush1.msra.mxu0 %v342
    %823 = vmatprep.subr.mxu0 %v349
    %824 = vmatpush1.msra.mxu0 %v348
    %825 = vmatprep.subr.mxu0 %v355
    %826 = vmatpush1.msra.mxu0 %v354
    %827 = vmatprep.subr.mxu0 %v361
    %828 = vmatpush1.msra.mxu0 %v360
    %829 = vmatprep.subr.mxu0 %v367
    %830 = vmatpush1.msra.mxu0 %v366
    %831 = vmatprep.subr.mxu0 %v373
    %832 = vmatpush1.msra.mxu0 %v372
    %833 = vmatprep.subr.mxu0 %v379
    %834 = vmatpush1.msra.mxu0 %v378
    %835 = vmatprep.subr.mxu0 %v385
    %836 = vmatpush1.msra.mxu0 %v384
    %837 = vmatprep.subr.mxu0 %v391
    %838 = vmatpush1.msra.mxu0 %v390
    %839 = vmatprep.subr.mxu0 %v397
    %840 = vmatpush1.msra.mxu0 %v396
    %841 = vmatprep.subr.mxu0 %v403
    %842 = vmatpush1.msra.mxu0 %v402
    %843 = vmatprep.subr.mxu0 %v409
    %844 = vmatpush1.msra.mxu0 %v408
    %845 = vmatprep.subr.mxu0 %v415
    %846 = vmatpush1.msra.mxu0 %v414
    %847 = vmatprep.subr.mxu0 %v421
    %848 = vmatpush1.msra.mxu0 %v420
    %849 = vmatprep.subr.mxu0 %v427
    %850 = vmatpush1.msra.mxu0 %v426
    %851 = vmatprep.subr.mxu0 %v433
    %852 = vmatpush1.msra.mxu0 %v432
    %853 = vmatprep.subr.mxu0 %v439
    %854 = vmatpush1.msra.mxu0 %v438
    %855 = vmatprep.subr.mxu0 %v445
    %856 = vmatpush1.msra.mxu0 %v444
    %857 = vmatprep.subr.mxu0 %v451
    %858 = vmatpush1.msra.mxu0 %v450
    %859 = vmatprep.subr.mxu0 %v457
    %860 = vmatpush1.msra.mxu0 %v456
    %861 = vmatprep.subr.mxu0 %v463
    %862 = vmatpush1.msra.mxu0 %v462
    %863 = vmatprep.subr.mxu0 %v469
    %864 = vmatpush1.msra.mxu0 %v468
    %865 = vmatprep.subr.mxu0 %v475
    %866 = vmatpush1.msra.mxu0 %v474
    %867 = vmatprep.subr.mxu0 %v481
    %868 = vmatpush1.msra.mxu0 %v480
    %869 = vmatprep.subr.mxu0 %v487
    %870 = vmatpush1.msra.mxu0 %v486
    %871 = vmatprep.subr.mxu0 %v493
    %872 = vmatpush1.msra.mxu0 %v492
    %873 = vmatprep.subr.mxu0 %v499
    %874 = vmatpush1.msra.mxu0 %v498
    %875 = vmatprep.subr.mxu0 %v505
    %876 = vmatpush1.msra.mxu0 %v504
    %877 = vmatprep.subr.mxu0 %v511
    %878 = vmatpush1.msra.mxu0 %v510
    %879 = vmatprep.subr.mxu0 %v517
    %880 = vmatpush1.msra.mxu0 %v516
    %881 = vmatprep.mubr.f32.mxu0 %v135
    %882 = vmatmul.mubr.f32.gmra.mrb[0].mxu0 %v134
    %v883 = vpop.f32.mrb[0].mxu0
    %v884 = vadd.f32 %v813, %v883
    %v885 = vpop.f32.mrb[0].mxu0
    %v886 = vadd.f32 %v815, %v885
    %887 = vdwg.mxu0
    %888 = vmatprep.subr.mxu0 %v523
    %889 = vmatpush1.msra.mxu0 %v522
    %890 = vmatprep.subr.mxu0 %v529
    %891 = vmatpush1.msra.mxu0 %v528
    %892 = vmatprep.subr.mxu0 %v535
    %893 = vmatpush1.msra.mxu0 %v534
    %894 = vmatprep.subr.mxu0 %v541
    %895 = vmatpush1.msra.mxu0 %v540
    %896 = vmatprep.subr.mxu0 %v547
    %897 = vmatpush1.msra.mxu0 %v546
    %898 = vmatprep.subr.mxu0 %v553
    %899 = vmatpush1.msra.mxu0 %v552
    %900 = vmatprep.subr.mxu0 %v559
    %901 = vmatpush1.msra.mxu0 %v558
    %902 = vmatprep.subr.mxu0 %v565
    %903 = vmatpush1.msra.mxu0 %v564
    %904 = vmatprep.subr.mxu0 %v571
    %905 = vmatpush1.msra.mxu0 %v570
    %906 = vmatprep.subr.mxu0 %v577
    %907 = vmatpush1.msra.mxu0 %v576
    %908 = vmatprep.subr.mxu0 %v583
    %909 = vmatpush1.msra.mxu0 %v582
    %910 = vmatprep.subr.mxu0 %v589
    %911 = vmatpush1.msra.mxu0 %v588
    %912 = vmatprep.subr.mxu0 %v595
    %913 = vmatpush1.msra.mxu0 %v594
    %914 = vmatprep.subr.mxu0 %v601
    %915 = vmatpush1.msra.mxu0 %v600
    %916 = vmatprep.subr.mxu0 %v607
    %917 = vmatpush1.msra.mxu0 %v606
    %918 = vmatprep.subr.mxu0 %v613
    %919 = vmatpush1.msra.mxu0 %v612
    %920 = vmatprep.subr.mxu0 %v619
    %921 = vmatpush1.msra.mxu0 %v618
    %922 = vmatprep.subr.mxu0 %v625
    %923 = vmatpush1.msra.mxu0 %v624
    %924 = vmatprep.subr.mxu0 %v631
    %925 = vmatpush1.msra.mxu0 %v630
    %926 = vmatprep.subr.mxu0 %v637
    %927 = vmatpush1.msra.mxu0 %v636
    %928 = vmatprep.subr.mxu0 %v643
    %929 = vmatpush1.msra.mxu0 %v642
    %930 = vmatprep.subr.mxu0 %v649
    %931 = vmatpush1.msra.mxu0 %v648
    %932 = vmatprep.subr.mxu0 %v655
    %933 = vmatpush1.msra.mxu0 %v654
    %934 = vmatprep.subr.mxu0 %v661
    %935 = vmatpush1.msra.mxu0 %v660
    %936 = vmatprep.subr.mxu0 %v667
    %937 = vmatpush1.msra.mxu0 %v666
    %938 = vmatprep.subr.mxu0 %v673
    %939 = vmatpush1.msra.mxu0 %v672
    %940 = vmatprep.subr.mxu0 %v679
    %941 = vmatpush1.msra.mxu0 %v678
    %942 = vmatprep.subr.mxu0 %v685
    %943 = vmatpush1.msra.mxu0 %v684
    %944 = vmatprep.subr.mxu0 %v691
    %945 = vmatpush1.msra.mxu0 %v690
    %946 = vmatprep.subr.mxu0 %v697
    %947 = vmatpush1.msra.mxu0 %v696
    %948 = vmatprep.subr.mxu0 %v703
    %949 = vmatpush1.msra.mxu0 %v702
    %950 = vmatprep.subr.mxu0 %v709
    %951 = vmatpush1.msra.mxu0 %v708
    %952 = vmatprep.mubr.f32.mxu0 %v137
    %953 = vmatmul.mubr.f32.gmra.mrb[0].mxu0 %v136
    %v954 = vpop.f32.mrb[0].mxu0
    %v955 = vadd.f32 %v884, %v954
    %v956 = vpop.f32.mrb[0].mxu0
    %v957 = vadd.f32 %v886, %v956
    %958 = vdwg.mxu0
    %959 = vmatprep.subr.mxu0 %v141
    %960 = vmatpush1.msra.mxu0 %v140
    %961 = vmatprep.subr.mxu0 %v147
    %962 = vmatpush1.msra.mxu0 %v146
    %963 = vmatprep.subr.mxu0 %v153
    %964 = vmatpush1.msra.mxu0 %v152
    %965 = vmatprep.subr.mxu0 %v159
    %966 = vmatpush1.msra.mxu0 %v158
    %967 = vmatprep.subr.mxu0 %v165
    %968 = vmatpush1.msra.mxu0 %v164
    %969 = vmatprep.subr.mxu0 %v171
    %970 = vmatpush1.msra.mxu0 %v170
    %971 = vmatprep.subr.mxu0 %v177
    %972 = vmatpush1.msra.mxu0 %v176
    %973 = vmatprep.subr.mxu0 %v183
    %974 = vmatpush1.msra.mxu0 %v182
    %975 = vmatprep.subr.mxu0 %v189
    %976 = vmatpush1.msra.mxu0 %v188
    %977 = vmatprep.subr.mxu0 %v195
    %978 = vmatpush1.msra.mxu0 %v194
    %979 = vmatprep.subr.mxu0 %v201
    %980 = vmatpush1.msra.mxu0 %v200
    %981 = vmatprep.subr.mxu0 %v207
    %982 = vmatpush1.msra.mxu0 %v206
    %983 = vmatprep.subr.mxu0 %v213
    %984 = vmatpush1.msra.mxu0 %v212
    %985 = vmatprep.subr.mxu0 %v219
    %986 = vmatpush1.msra.mxu0 %v218
    %987 = vmatprep.subr.mxu0 %v225
    %988 = vmatpush1.msra.mxu0 %v224
    %989 = vmatprep.subr.mxu0 %v231
    %990 = vmatpush1.msra.mxu0 %v230
    %991 = vmatprep.subr.mxu0 %v237
    %992 = vmatpush1.msra.mxu0 %v236
    %993 = vmatprep.subr.mxu0 %v243
    %994 = vmatpush1.msra.mxu0 %v242
    %995 = vmatprep.subr.mxu0 %v249
    %996 = vmatpush1.msra.mxu0 %v248
    %997 = vmatprep.subr.mxu0 %v255
    %998 = vmatpush1.msra.mxu0 %v254
    %999 = vmatprep.subr.mxu0 %v261
    %1000 = vmatpush1.msra.mxu0 %v260
    %1001 = vmatprep.subr.mxu0 %v267
    %1002 = vmatpush1.msra.mxu0 %v266
    %1003 = vmatprep.subr.mxu0 %v273
    %1004 = vmatpush1.msra.mxu0 %v272
    %1005 = vmatprep.subr.mxu0 %v279
    %1006 = vmatpush1.msra.mxu0 %v278
    %1007 = vmatprep.subr.mxu0 %v285
    %1008 = vmatpush1.msra.mxu0 %v284
    %1009 = vmatprep.subr.mxu0 %v291
    %1010 = vmatpush1.msra.mxu0 %v290
    %1011 = vmatprep.subr.mxu0 %v297
    %1012 = vmatpush1.msra.mxu0 %v296
    %1013 = vmatprep.subr.mxu0 %v303
    %1014 = vmatpush1.msra.mxu0 %v302
    %1015 = vmatprep.subr.mxu0 %v309
    %1016 = vmatpush1.msra.mxu0 %v308
    %1017 = vmatprep.subr.mxu0 %v315
    %1018 = vmatpush1.msra.mxu0 %v314
    %1019 = vmatprep.subr.mxu0 %v321
    %1020 = vmatpush1.msra.mxu0 %v320
    %1021 = vmatprep.subr.mxu0 %v327
    %1022 = vmatpush1.msra.mxu0 %v326
    %1023 = vmatprep.mubr.f32.mxu0 %v133
    %1024 = vmatmul.mubr.f32.gmra.mrb[0].mxu0 %v132
    %v1025 = vpop.f32.mrb[0].mxu0
    %v1026 = vadd.f32 %v727, %v1025
    %v1027 = vpop.f32.mrb[0].mxu0
    %v1028 = vadd.f32 %v731, %v1027
    %1029 = vdwg.mxu0
    %1030 = vmatprep.subr.mxu0 %v333
    %1031 = vmatpush1.msra.mxu0 %v332
    %1032 = vmatprep.subr.mxu0 %v339
    %1033 = vmatpush1.msra.mxu0 %v338
    %1034 = vmatprep.subr.mxu0 %v345
    %1035 = vmatpush1.msra.mxu0 %v344
    %1036 = vmatprep.subr.mxu0 %v351
    %1037 = vmatpush1.msra.mxu0 %v350
    %1038 = vmatprep.subr.mxu0 %v357
    %1039 = vmatpush1.msra.mxu0 %v356
    %1040 = vmatprep.subr.mxu0 %v363
    %1041 = vmatpush1.msra.mxu0 %v362
    %1042 = vmatprep.subr.mxu0 %v369
    %1043 = vmatpush1.msra.mxu0 %v368
    %1044 = vmatprep.subr.mxu0 %v375
    %1045 = vmatpush1.msra.mxu0 %v374
    %1046 = vmatprep.subr.mxu0 %v381
    %1047 = vmatpush1.msra.mxu0 %v380
    %1048 = vmatprep.subr.mxu0 %v387
    %1049 = vmatpush1.msra.mxu0 %v386
    %1050 = vmatprep.subr.mxu0 %v393
    %1051 = vmatpush1.msra.mxu0 %v392
    %1052 = vmatprep.subr.mxu0 %v399
    %1053 = vmatpush1.msra.mxu0 %v398
    %1054 = vmatprep.subr.mxu0 %v405
    %1055 = vmatpush1.msra.mxu0 %v404
    %1056 = vmatprep.subr.mxu0 %v411
    %1057 = vmatpush1.msra.mxu0 %v410
    %1058 = vmatprep.subr.mxu0 %v417
    %1059 = vmatpush1.msra.mxu0 %v416
    %1060 = vmatprep.subr.mxu0 %v423
    %1061 = vmatpush1.msra.mxu0 %v422
    %1062 = vmatprep.subr.mxu0 %v429
    %1063 = vmatpush1.msra.mxu0 %v428
    %1064 = vmatprep.subr.mxu0 %v435
    %1065 = vmatpush1.msra.mxu0 %v434
    %1066 = vmatprep.subr.mxu0 %v441
    %1067 = vmatpush1.msra.mxu0 %v440
    %1068 = vmatprep.subr.mxu0 %v447
    %1069 = vmatpush1.msra.mxu0 %v446
    %1070 = vmatprep.subr.mxu0 %v453
    %1071 = vmatpush1.msra.mxu0 %v452
    %1072 = vmatprep.subr.mxu0 %v459
    %1073 = vmatpush1.msra.mxu0 %v458
    %1074 = vmatprep.subr.mxu0 %v465
    %1075 = vmatpush1.msra.mxu0 %v464
    %1076 = vmatprep.subr.mxu0 %v471
    %1077 = vmatpush1.msra.mxu0 %v470
    %1078 = vmatprep.subr.mxu0 %v477
    %1079 = vmatpush1.msra.mxu0 %v476
    %1080 = vmatprep.subr.mxu0 %v483
    %1081 = vmatpush1.msra.mxu0 %v482
    %1082 = vmatprep.subr.mxu0 %v489
    %1083 = vmatpush1.msra.mxu0 %v488
    %1084 = vmatprep.subr.mxu0 %v495
    %1085 = vmatpush1.msra.mxu0 %v494
    %1086 = vmatprep.subr.mxu0 %v501
    %1087 = vmatpush1.msra.mxu0 %v500
    %1088 = vmatprep.subr.mxu0 %v507
    %1089 = vmatpush1.msra.mxu0 %v506
    %1090 = vmatprep.subr.mxu0 %v513
    %1091 = vmatpush1.msra.mxu0 %v512
    %1092 = vmatprep.subr.mxu0 %v519
    %1093 = vmatpush1.msra.mxu0 %v518
    %1094 = vmatprep.mubr.f32.mxu0 %v135
    %1095 = vmatmul.mubr.f32.gmra.mrb[0].mxu0 %v134
    %v1096 = vpop.f32.mrb[0].mxu0
    %v1097 = vadd.f32 %v1026, %v1096
    %v1098 = vpop.f32.mrb[0].mxu0
    %v1099 = vadd.f32 %v1028, %v1098
    %1100 = vdwg.mxu0
    %1101 = vmatprep.subr.mxu0 %v525
    %1102 = vmatpush1.msra.mxu0 %v524
    %1103 = vmatprep.subr.mxu0 %v531
    %1104 = vmatpush1.msra.mxu0 %v530
    %1105 = vmatprep.subr.mxu0 %v537
    %1106 = vmatpush1.msra.mxu0 %v536
    %1107 = vmatprep.subr.mxu0 %v543
    %1108 = vmatpush1.msra.mxu0 %v542
    %1109 = vmatprep.subr.mxu0 %v549
    %1110 = vmatpush1.msra.mxu0 %v548
    %1111 = vmatprep.subr.mxu0 %v555
    %1112 = vmatpush1.msra.mxu0 %v554
    %1113 = vmatprep.subr.mxu0 %v561
    %1114 = vmatpush1.msra.mxu0 %v560
    %1115 = vmatprep.subr.mxu0 %v567
    %1116 = vmatpush1.msra.mxu0 %v566
    %1117 = vmatprep.subr.mxu0 %v573
    %1118 = vmatpush1.msra.mxu0 %v572
    %1119 = vmatprep.subr.mxu0 %v579
    %1120 = vmatpush1.msra.mxu0 %v578
    %1121 = vmatprep.subr.mxu0 %v585
    %1122 = vmatpush1.msra.mxu0 %v584
    %1123 = vmatprep.subr.mxu0 %v591
    %1124 = vmatpush1.msra.mxu0 %v590
    %1125 = vmatprep.subr.mxu0 %v597
    %1126 = vmatpush1.msra.mxu0 %v596
    %1127 = vmatprep.subr.mxu0 %v603
    %1128 = vmatpush1.msra.mxu0 %v602
    %1129 = vmatprep.subr.mxu0 %v609
    %1130 = vmatpush1.msra.mxu0 %v608
    %1131 = vmatprep.subr.mxu0 %v615
    %1132 = vmatpush1.msra.mxu0 %v614
    %1133 = vmatprep.subr.mxu0 %v621
    %1134 = vmatpush1.msra.mxu0 %v620
    %1135 = vmatprep.subr.mxu0 %v627
    %1136 = vmatpush1.msra.mxu0 %v626
    %1137 = vmatprep.subr.mxu0 %v633
    %1138 = vmatpush1.msra.mxu0 %v632
    %1139 = vmatprep.subr.mxu0 %v639
    %1140 = vmatpush1.msra.mxu0 %v638
    %1141 = vmatprep.subr.mxu0 %v645
    %1142 = vmatpush1.msra.mxu0 %v644
    %1143 = vmatprep.subr.mxu0 %v651
    %1144 = vmatpush1.msra.mxu0 %v650
    %1145 = vmatprep.subr.mxu0 %v657
    %1146 = vmatpush1.msra.mxu0 %v656
    %1147 = vmatprep.subr.mxu0 %v663
    %1148 = vmatpush1.msra.mxu0 %v662
    %1149 = vmatprep.subr.mxu0 %v669
    %1150 = vmatpush1.msra.mxu0 %v668
    %1151 = vmatprep.subr.mxu0 %v675
    %1152 = vmatpush1.msra.mxu0 %v674
    %1153 = vmatprep.subr.mxu0 %v681
    %1154 = vmatpush1.msra.mxu0 %v680
    %1155 = vmatprep.subr.mxu0 %v687
    %1156 = vmatpush1.msra.mxu0 %v686
    %1157 = vmatprep.subr.mxu0 %v693
    %1158 = vmatpush1.msra.mxu0 %v692
    %1159 = vmatprep.subr.mxu0 %v699
    %1160 = vmatpush1.msra.mxu0 %v698
    %1161 = vmatprep.subr.mxu0 %v705
    %1162 = vmatpush1.msra.mxu0 %v704
    %1163 = vmatprep.subr.mxu0 %v711
    %1164 = vmatpush1.msra.mxu0 %v710
    %1165 = vmatprep.mubr.f32.mxu0 %v137
    %1166 = vmatmul.mubr.f32.gmra.mrb[0].mxu0 %v136
    %v1167 = vpop.f32.mrb[0].mxu0
    %v1168 = vadd.f32 %v1097, %v1167
    %v1169 = vpop.f32.mrb[0].mxu0
    %v1170 = vadd.f32 %v1099, %v1169
    %1171 = vdwg.mxu0
    %1172 = vmatprep.subr.mxu0 %v143
    %1173 = vmatpush1.msra.mxu0 %v142
    %1174 = vmatprep.subr.mxu0 %v149
    %1175 = vmatpush1.msra.mxu0 %v148
    %1176 = vmatprep.subr.mxu0 %v155
    %1177 = vmatpush1.msra.mxu0 %v154
    %1178 = vmatprep.subr.mxu0 %v161
    %1179 = vmatpush1.msra.mxu0 %v160
    %1180 = vmatprep.subr.mxu0 %v167
    %1181 = vmatpush1.msra.mxu0 %v166
    %1182 = vmatprep.subr.mxu0 %v173
    %1183 = vmatpush1.msra.mxu0 %v172
    %1184 = vmatprep.subr.mxu0 %v179
    %1185 = vmatpush1.msra.mxu0 %v178
    %1186 = vmatprep.subr.mxu0 %v185
    %1187 = vmatpush1.msra.mxu0 %v184
    %1188 = vmatprep.subr.mxu0 %v191
    %1189 = vmatpush1.msra.mxu0 %v190
    %1190 = vmatprep.subr.mxu0 %v197
    %1191 = vmatpush1.msra.mxu0 %v196
    %1192 = vmatprep.subr.mxu0 %v203
    %1193 = vmatpush1.msra.mxu0 %v202
    %1194 = vmatprep.subr.mxu0 %v209
    %1195 = vmatpush1.msra.mxu0 %v208
    %1196 = vmatprep.subr.mxu0 %v215
    %1197 = vmatpush1.msra.mxu0 %v214
    %1198 = vmatprep.subr.mxu0 %v221
    %1199 = vmatpush1.msra.mxu0 %v220
    %1200 = vmatprep.subr.mxu0 %v227
    %1201 = vmatpush1.msra.mxu0 %v226
    %1202 = vmatprep.subr.mxu0 %v233
    %1203 = vmatpush1.msra.mxu0 %v232
    %1204 = vmatprep.subr.mxu0 %v239
    %1205 = vmatpush1.msra.mxu0 %v238
    %1206 = vmatprep.subr.mxu0 %v245
    %1207 = vmatpush1.msra.mxu0 %v244
    %1208 = vmatprep.subr.mxu0 %v251
    %1209 = vmatpush1.msra.mxu0 %v250
    %1210 = vmatprep.subr.mxu0 %v257
    %1211 = vmatpush1.msra.mxu0 %v256
    %1212 = vmatprep.subr.mxu0 %v263
    %1213 = vmatpush1.msra.mxu0 %v262
    %1214 = vmatprep.subr.mxu0 %v269
    %1215 = vmatpush1.msra.mxu0 %v268
    %1216 = vmatprep.subr.mxu0 %v275
    %1217 = vmatpush1.msra.mxu0 %v274
    %1218 = vmatprep.subr.mxu0 %v281
    %1219 = vmatpush1.msra.mxu0 %v280
    %1220 = vmatprep.subr.mxu0 %v287
    %1221 = vmatpush1.msra.mxu0 %v286
    %1222 = vmatprep.subr.mxu0 %v293
    %1223 = vmatpush1.msra.mxu0 %v292
    %1224 = vmatprep.subr.mxu0 %v299
    %1225 = vmatpush1.msra.mxu0 %v298
    %1226 = vmatprep.subr.mxu0 %v305
    %1227 = vmatpush1.msra.mxu0 %v304
    %1228 = vmatprep.subr.mxu0 %v311
    %1229 = vmatpush1.msra.mxu0 %v310
    %1230 = vmatprep.subr.mxu0 %v317
    %1231 = vmatpush1.msra.mxu0 %v316
    %1232 = vmatprep.subr.mxu0 %v323
    %1233 = vmatpush1.msra.mxu0 %v322
    %1234 = vmatprep.subr.mxu0 %v329
    %1235 = vmatpush1.msra.mxu0 %v328
    %1236 = vmatprep.mubr.f32.mxu0 %v133
    %1237 = vmatmul.mubr.f32.gmra.mrb[0].mxu0 %v132
    %v1238 = vpop.f32.mrb[0].mxu0
    %v1239 = vadd.f32 %v735, %v1238
    %v1240 = vpop.f32.mrb[0].mxu0
    %v1241 = vadd.f32 %v739, %v1240
    %1242 = vdwg.mxu0
    %1243 = vmatprep.subr.mxu0 %v335
    %1244 = vmatpush1.msra.mxu0 %v334
    %1245 = vmatprep.subr.mxu0 %v341
    %1246 = vmatpush1.msra.mxu0 %v340
    %1247 = vmatprep.subr.mxu0 %v347
    %1248 = vmatpush1.msra.mxu0 %v346
    %1249 = vmatprep.subr.mxu0 %v353
    %1250 = vmatpush1.msra.mxu0 %v352
    %1251 = vmatprep.subr.mxu0 %v359
    %1252 = vmatpush1.msra.mxu0 %v358
    %1253 = vmatprep.subr.mxu0 %v365
    %1254 = vmatpush1.msra.mxu0 %v364
    %1255 = vmatprep.subr.mxu0 %v371
    %1256 = vmatpush1.msra.mxu0 %v370
    %1257 = vmatprep.subr.mxu0 %v377
    %1258 = vmatpush1.msra.mxu0 %v376
    %1259 = vmatprep.subr.mxu0 %v383
    %1260 = vmatpush1.msra.mxu0 %v382
    %1261 = vmatprep.subr.mxu0 %v389
    %1262 = vmatpush1.msra.mxu0 %v388
    %1263 = vmatprep.subr.mxu0 %v395
    %1264 = vmatpush1.msra.mxu0 %v394
    %1265 = vmatprep.subr.mxu0 %v401
    %1266 = vmatpush1.msra.mxu0 %v400
    %1267 = vmatprep.subr.mxu0 %v407
    %1268 = vmatpush1.msra.mxu0 %v406
    %1269 = vmatprep.subr.mxu0 %v413
    %1270 = vmatpush1.msra.mxu0 %v412
    %1271 = vmatprep.subr.mxu0 %v419
    %1272 = vmatpush1.msra.mxu0 %v418
    %1273 = vmatprep.subr.mxu0 %v425
    %1274 = vmatpush1.msra.mxu0 %v424
    %1275 = vmatprep.subr.mxu0 %v431
    %1276 = vmatpush1.msra.mxu0 %v430
    %1277 = vmatprep.subr.mxu0 %v437
    %1278 = vmatpush1.msra.mxu0 %v436
    %1279 = vmatprep.subr.mxu0 %v443
    %1280 = vmatpush1.msra.mxu0 %v442
    %1281 = vmatprep.subr.mxu0 %v449
    %1282 = vmatpush1.msra.mxu0 %v448
    %1283 = vmatprep.subr.mxu0 %v455
    %1284 = vmatpush1.msra.mxu0 %v454
    %1285 = vmatprep.subr.mxu0 %v461
    %1286 = vmatpush1.msra.mxu0 %v460
    %1287 = vmatprep.subr.mxu0 %v467
    %1288 = vmatpush1.msra.mxu0 %v466
    %1289 = vmatprep.subr.mxu0 %v473
    %1290 = vmatpush1.msra.mxu0 %v472
    %1291 = vmatprep.subr.mxu0 %v479
    %1292 = vmatpush1.msra.mxu0 %v478
    %1293 = vmatprep.subr.mxu0 %v485
    %1294 = vmatpush1.msra.mxu0 %v484
    %1295 = vmatprep.subr.mxu0 %v491
    %1296 = vmatpush1.msra.mxu0 %v490
    %1297 = vmatprep.subr.mxu0 %v497
    %1298 = vmatpush1.msra.mxu0 %v496
    %1299 = vmatprep.subr.mxu0 %v503
    %1300 = vmatpush1.msra.mxu0 %v502
    %1301 = vmatprep.subr.mxu0 %v509
    %1302 = vmatpush1.msra.mxu0 %v508
    %1303 = vmatprep.subr.mxu0 %v515
    %1304 = vmatpush1.msra.mxu0 %v514
    %1305 = vmatprep.subr.mxu0 %v521
    %1306 = vmatpush1.msra.mxu0 %v520
    %1307 = vmatprep.mubr.f32.mxu0 %v135
    %1308 = vmatmul.mubr.f32.gmra.mrb[0].mxu0 %v134
    %v1309 = vpop.f32.mrb[0].mxu0
    %v1310 = vadd.f32 %v1239, %v1309
    %v1311 = vpop.f32.mrb[0].mxu0
    %v1312 = vadd.f32 %v1241, %v1311
    %1313 = vdwg.mxu0
    %1314 = vmatprep.subr.mxu0 %v527
    %1315 = vmatpush1.msra.mxu0 %v526
    %1316 = vmatprep.subr.mxu0 %v533
    %1317 = vmatpush1.msra.mxu0 %v532
    %1318 = vmatprep.subr.mxu0 %v539
    %1319 = vmatpush1.msra.mxu0 %v538
    %1320 = vmatprep.subr.mxu0 %v545
    %1321 = vmatpush1.msra.mxu0 %v544
    %1322 = vmatprep.subr.mxu0 %v551
    %1323 = vmatpush1.msra.mxu0 %v550
    %1324 = vmatprep.subr.mxu0 %v557
    %1325 = vmatpush1.msra.mxu0 %v556
    %1326 = vmatprep.subr.mxu0 %v563
    %1327 = vmatpush1.msra.mxu0 %v562
    %1328 = vmatprep.subr.mxu0 %v569
    %1329 = vmatpush1.msra.mxu0 %v568
    %1330 = vmatprep.subr.mxu0 %v575
    %1331 = vmatpush1.msra.mxu0 %v574
    %1332 = vmatprep.subr.mxu0 %v581
    %1333 = vmatpush1.msra.mxu0 %v580
    %1334 = vmatprep.subr.mxu0 %v587
    %1335 = vmatpush1.msra.mxu0 %v586
    %1336 = vmatprep.subr.mxu0 %v593
    %1337 = vmatpush1.msra.mxu0 %v592
    %1338 = vmatprep.subr.mxu0 %v599
    %1339 = vmatpush1.msra.mxu0 %v598
    %1340 = vmatprep.subr.mxu0 %v605
    %1341 = vmatpush1.msra.mxu0 %v604
    %1342 = vmatprep.subr.mxu0 %v611
    %1343 = vmatpush1.msra.mxu0 %v610
    %1344 = vmatprep.subr.mxu0 %v617
    %1345 = vmatpush1.msra.mxu0 %v616
    %1346 = vmatprep.subr.mxu0 %v623
    %1347 = vmatpush1.msra.mxu0 %v622
    %1348 = vmatprep.subr.mxu0 %v629
    %1349 = vmatpush1.msra.mxu0 %v628
    %1350 = vmatprep.subr.mxu0 %v635
    %1351 = vmatpush1.msra.mxu0 %v634
    %1352 = vmatprep.subr.mxu0 %v641
    %1353 = vmatpush1.msra.mxu0 %v640
    %1354 = vmatprep.subr.mxu0 %v647
    %1355 = vmatpush1.msra.mxu0 %v646
    %1356 = vmatprep.subr.mxu0 %v653
    %1357 = vmatpush1.msra.mxu0 %v652
    %1358 = vmatprep.subr.mxu0 %v659
    %1359 = vmatpush1.msra.mxu0 %v658
    %1360 = vmatprep.subr.mxu0 %v665
    %1361 = vmatpush1.msra.mxu0 %v664
    %1362 = vmatprep.subr.mxu0 %v671
    %1363 = vmatpush1.msra.mxu0 %v670
    %1364 = vmatprep.subr.mxu0 %v677
    %1365 = vmatpush1.msra.mxu0 %v676
    %1366 = vmatprep.subr.mxu0 %v683
    %1367 = vmatpush1.msra.mxu0 %v682
    %1368 = vmatprep.subr.mxu0 %v689
    %1369 = vmatpush1.msra.mxu0 %v688
    %1370 = vmatprep.subr.mxu0 %v695
    %1371 = vmatpush1.msra.mxu0 %v694
    %1372 = vmatprep.subr.mxu0 %v701
    %1373 = vmatpush1.msra.mxu0 %v700
    %1374 = vmatprep.subr.mxu0 %v707
    %1375 = vmatpush1.msra.mxu0 %v706
    %1376 = vmatprep.subr.mxu0 %v713
    %1377 = vmatpush1.msra.mxu0 %v712
    %1378 = vmatprep.mubr.f32.mxu0 %v137
    %1379 = vmatmul.mubr.f32.gmra.mrb[0].mxu0 %v136
    %v1380 = vpop.f32.mrb[0].mxu0
    %v1381 = vadd.f32 %v1310, %v1380
    %v1382 = vpop.f32.mrb[0].mxu0
    %v1383 = vadd.f32 %v1312, %v1382
    %1384 = vdwg.mxu0
    %v1385 = vmax.f32 %v955, 0.0
    %v1386 = vmax.f32 %v957, 0.0
    %v1387 = vmax.f32 %v1168, 0.0
    %v1388 = vmax.f32 %v1170, 0.0
    %v1389 = vmax.f32 %v1381, 0.0
    %v1390 = vmax.f32 %v1383, 0.0
    %v1391 = vld [vmem:[#allocation10] sm:$0xff]
    %v1392 = vld [vmem:[#allocation10 + $0x8] sm:$0xff]
    %v1393 = vld [vmem:[#allocation10 + $0x10] sm:$0xff]
    %v1394 = vld [vmem:[#allocation10 + $0x18] sm:$0xff]
    %v1395 = vld [vmem:[#allocation10 + $0x20] sm:$0xff]
    %v1396 = vld [vmem:[#allocation10 + $0x28] sm:$0xff]
    %v1397 = vld [vmem:[#allocation10 + $0x30] sm:$0xff]
    %v1398 = vld [vmem:[#allocation10 + $0x38] sm:$0xff]
    %v1399 = vld [vmem:[#allocation10 + $0x40] sm:$0xff]
    %v1400 = vld [vmem:[#allocation10 + $0x48] sm:$0xff]
    %v1401 = vld [vmem:[#allocation10 + $0x50] sm:$0xff]
    %v1402 = vld [vmem:[#allocation10 + $0x58] sm:$0xff]
    %v1403 = vld [vmem:[#allocation10 + $0x60] sm:$0xff]
    %v1404 = vld [vmem:[#allocation10 + $0x68] sm:$0xff]
    %v1405 = vld [vmem:[#allocation10 + $0x70] sm:$0xff]
    %v1406 = vld [vmem:[#allocation10 + $0x78] sm:$0xff]
    %v1407 = vld [vmem:[#allocation10 + $0x80] sm:$0xff]
    %v1408 = vld [vmem:[#allocation10 + $0x88] sm:$0xff]
    %v1409 = vld [vmem:[#allocation10 + $0x90] sm:$0xff]
    %v1410 = vld [vmem:[#allocation10 + $0x98] sm:$0xff]
    %v1411 = vld [vmem:[#allocation10 + $0xa0] sm:$0xff]
    %v1412 = vld [vmem:[#allocation10 + $0xa8] sm:$0xff]
    %v1413 = vld [vmem:[#allocation10 + $0xb0] sm:$0xff]
    %v1414 = vld [vmem:[#allocation10 + $0xb8] sm:$0xff]
    %v1415 = vld [vmem:[#allocation10 + $0xc0] sm:$0xff]
    %v1416 = vld [vmem:[#allocation10 + $0xc8] sm:$0xff]
    %v1417 = vld [vmem:[#allocation10 + $0xd0] sm:$0xff]
    %v1418 = vld [vmem:[#allocation10 + $0xd8] sm:$0xff]
    %v1419 = vld [vmem:[#allocation10 + $0xe0] sm:$0xff]
    %v1420 = vld [vmem:[#allocation10 + $0xe8] sm:$0xff]
    %v1421 = vld [vmem:[#allocation10 + $0xf0] sm:$0xff]
    %v1422 = vld [vmem:[#allocation10 + $0xf8] sm:$0xff]
    %v1423 = vld [vmem:[#allocation10 + $0x100] sm:$0xff]
    %v1424 = vld [vmem:[#allocation10 + $0x108] sm:$0xff]
    %v1425 = vld [vmem:[#allocation10 + $0x110] sm:$0xff]
    %v1426 = vld [vmem:[#allocation10 + $0x118] sm:$0xff]
    %v1427 = vld [vmem:[#allocation10 + $0x120] sm:$0xff]
    %v1428 = vld [vmem:[#allocation10 + $0x128] sm:$0xff]
    %v1429 = vld [vmem:[#allocation10 + $0x130] sm:$0xff]
    %v1430 = vld [vmem:[#allocation10 + $0x138] sm:$0xff]
    %v1431 = vld [vmem:[#allocation10 + $0x140] sm:$0xff]
    %v1432 = vld [vmem:[#allocation10 + $0x148] sm:$0xff]
    %v1433 = vld [vmem:[#allocation10 + $0x150] sm:$0xff]
    %v1434 = vld [vmem:[#allocation10 + $0x158] sm:$0xff]
    %v1435 = vld [vmem:[#allocation10 + $0x160] sm:$0xff]
    %v1436 = vld [vmem:[#allocation10 + $0x168] sm:$0xff]
    %v1437 = vld [vmem:[#allocation10 + $0x170] sm:$0xff]
    %v1438 = vld [vmem:[#allocation10 + $0x178] sm:$0xff]
    %v1439 = vld [vmem:[#allocation10 + $0x180] sm:$0xff]
    %v1440 = vld [vmem:[#allocation10 + $0x188] sm:$0xff]
    %v1441 = vld [vmem:[#allocation10 + $0x190] sm:$0xff]
    %v1442 = vld [vmem:[#allocation10 + $0x198] sm:$0xff]
    %v1443 = vld [vmem:[#allocation10 + $0x1a0] sm:$0xff]
    %v1444 = vld [vmem:[#allocation10 + $0x1a8] sm:$0xff]
    %v1445 = vld [vmem:[#allocation10 + $0x1b0] sm:$0xff]
    %v1446 = vld [vmem:[#allocation10 + $0x1b8] sm:$0xff]
    %v1447 = vld [vmem:[#allocation10 + $0x1c0] sm:$0xff]
    %v1448 = vld [vmem:[#allocation10 + $0x1c8] sm:$0xff]
    %v1449 = vld [vmem:[#allocation10 + $0x1d0] sm:$0xff]
    %v1450 = vld [vmem:[#allocation10 + $0x1d8] sm:$0xff]
    %v1451 = vld [vmem:[#allocation10 + $0x1e0] sm:$0xff]
    %v1452 = vld [vmem:[#allocation10 + $0x1e8] sm:$0xff]
    %v1453 = vld [vmem:[#allocation10 + $0x1f0] sm:$0xff]
    %v1454 = vld [vmem:[#allocation10 + $0x1f8] sm:$0xff]
    %v1455 = vld [vmem:[#allocation10 + $0x200] sm:$0xff]
    %v1456 = vld [vmem:[#allocation10 + $0x208] sm:$0xff]
    %v1457 = vld [vmem:[#allocation10 + $0x210] sm:$0xff]
    %v1458 = vld [vmem:[#allocation10 + $0x218] sm:$0xff]
    %v1459 = vld [vmem:[#allocation10 + $0x220] sm:$0xff]
    %v1460 = vld [vmem:[#allocation10 + $0x228] sm:$0xff]
    %v1461 = vld [vmem:[#allocation10 + $0x230] sm:$0xff]
    %v1462 = vld [vmem:[#allocation10 + $0x238] sm:$0xff]
    %v1463 = vld [vmem:[#allocation10 + $0x240] sm:$0xff]
    %v1464 = vld [vmem:[#allocation10 + $0x248] sm:$0xff]
    %v1465 = vld [vmem:[#allocation10 + $0x250] sm:$0xff]
    %v1466 = vld [vmem:[#allocation10 + $0x258] sm:$0xff]
    %v1467 = vld [vmem:[#allocation10 + $0x260] sm:$0xff]
    %v1468 = vld [vmem:[#allocation10 + $0x268] sm:$0xff]
    %v1469 = vld [vmem:[#allocation10 + $0x270] sm:$0xff]
    %v1470 = vld [vmem:[#allocation10 + $0x278] sm:$0xff]
    %v1471 = vld [vmem:[#allocation10 + $0x280] sm:$0xff]
    %v1472 = vld [vmem:[#allocation10 + $0x288] sm:$0xff]
    %v1473 = vld [vmem:[#allocation10 + $0x290] sm:$0xff]
    %v1474 = vld [vmem:[#allocation10 + $0x298] sm:$0xff]
    %v1475 = vld [vmem:[#allocation10 + $0x2a0] sm:$0xff]
    %v1476 = vld [vmem:[#allocation10 + $0x2a8] sm:$0xff]
    %v1477 = vld [vmem:[#allocation10 + $0x2b0] sm:$0xff]
    %v1478 = vld [vmem:[#allocation10 + $0x2b8] sm:$0xff]
    %v1479 = vld [vmem:[#allocation10 + $0x2c0] sm:$0xff]
    %v1480 = vld [vmem:[#allocation10 + $0x2c8] sm:$0xff]
    %v1481 = vld [vmem:[#allocation10 + $0x2d0] sm:$0xff]
    %v1482 = vld [vmem:[#allocation10 + $0x2d8] sm:$0xff]
    %v1483 = vld [vmem:[#allocation10 + $0x2e0] sm:$0xff]
    %v1484 = vld [vmem:[#allocation10 + $0x2e8] sm:$0xff]
    %v1485 = vld [vmem:[#allocation10 + $0x2f0] sm:$0xff]
    %v1486 = vld [vmem:[#allocation10 + $0x2f8] sm:$0xff]
    %v1487 = vld [vmem:[#allocation10 + $0x300] sm:$0xff]
    %v1488 = vld [vmem:[#allocation10 + $0x308] sm:$0xff]
    %v1489 = vld [vmem:[#allocation10 + $0x310] sm:$0xff]
    %v1490 = vld [vmem:[#allocation10 + $0x318] sm:$0xff]
    %v1491 = vld [vmem:[#allocation10 + $0x320] sm:$0xff]
    %v1492 = vld [vmem:[#allocation10 + $0x328] sm:$0xff]
    %v1493 = vld [vmem:[#allocation10 + $0x330] sm:$0xff]
    %v1494 = vld [vmem:[#allocation10 + $0x338] sm:$0xff]
    %v1495 = vld [vmem:[#allocation10 + $0x340] sm:$0xff]
    %v1496 = vld [vmem:[#allocation10 + $0x348] sm:$0xff]
    %v1497 = vld [vmem:[#allocation10 + $0x350] sm:$0xff]
    %v1498 = vld [vmem:[#allocation10 + $0x358] sm:$0xff]
    %v1499 = vld [vmem:[#allocation10 + $0x360] sm:$0xff]
    %v1500 = vld [vmem:[#allocation10 + $0x368] sm:$0xff]
    %v1501 = vld [vmem:[#allocation10 + $0x370] sm:$0xff]
    %v1502 = vld [vmem:[#allocation10 + $0x378] sm:$0xff]
    %v1503 = vld [vmem:[#allocation10 + $0x380] sm:$0xff]
    %v1504 = vld [vmem:[#allocation10 + $0x388] sm:$0xff]
    %v1505 = vld [vmem:[#allocation10 + $0x390] sm:$0xff]
    %v1506 = vld [vmem:[#allocation10 + $0x398] sm:$0xff]
    %v1507 = vld [vmem:[#allocation10 + $0x3a0] sm:$0xff]
    %v1508 = vld [vmem:[#allocation10 + $0x3a8] sm:$0xff]
    %v1509 = vld [vmem:[#allocation10 + $0x3b0] sm:$0xff]
    %v1510 = vld [vmem:[#allocation10 + $0x3b8] sm:$0xff]
    %v1511 = vld [vmem:[#allocation10 + $0x3c0] sm:$0xff]
    %v1512 = vld [vmem:[#allocation10 + $0x3c8] sm:$0xff]
    %v1513 = vld [vmem:[#allocation10 + $0x3d0] sm:$0xff]
    %v1514 = vld [vmem:[#allocation10 + $0x3d8] sm:$0xff]
    %v1515 = vld [vmem:[#allocation10 + $0x3e0] sm:$0xff]
    %v1516 = vld [vmem:[#allocation10 + $0x3e8] sm:$0xff]
    %v1517 = vld [vmem:[#allocation10 + $0x3f0] sm:$0xff]
    %v1518 = vld [vmem:[#allocation10 + $0x3f8] sm:$0xff]
    %v1519 = vld [vmem:[#allocation10 + $0x400] sm:$0xff]
    %v1520 = vld [vmem:[#allocation10 + $0x408] sm:$0xff]
    %v1521 = vld [vmem:[#allocation10 + $0x410] sm:$0xff]
    %v1522 = vld [vmem:[#allocation10 + $0x418] sm:$0xff]
    %v1523 = vld [vmem:[#allocation10 + $0x420] sm:$0xff]
    %v1524 = vld [vmem:[#allocation10 + $0x428] sm:$0xff]
    %v1525 = vld [vmem:[#allocation10 + $0x430] sm:$0xff]
    %v1526 = vld [vmem:[#allocation10 + $0x438] sm:$0xff]
    %v1527 = vld [vmem:[#allocation10 + $0x440] sm:$0xff]
    %v1528 = vld [vmem:[#allocation10 + $0x448] sm:$0xff]
    %v1529 = vld [vmem:[#allocation10 + $0x450] sm:$0xff]
    %v1530 = vld [vmem:[#allocation10 + $0x458] sm:$0xff]
    %v1531 = vld [vmem:[#allocation10 + $0x460] sm:$0xff]
    %v1532 = vld [vmem:[#allocation10 + $0x468] sm:$0xff]
    %v1533 = vld [vmem:[#allocation10 + $0x470] sm:$0xff]
    %v1534 = vld [vmem:[#allocation10 + $0x478] sm:$0xff]
    %v1535 = vld [vmem:[#allocation10 + $0x480] sm:$0xff]
    %v1536 = vld [vmem:[#allocation10 + $0x488] sm:$0xff]
    %v1537 = vld [vmem:[#allocation10 + $0x490] sm:$0xff]
    %v1538 = vld [vmem:[#allocation10 + $0x498] sm:$0xff]
    %v1539 = vld [vmem:[#allocation10 + $0x4a0] sm:$0xff]
    %v1540 = vld [vmem:[#allocation10 + $0x4a8] sm:$0xff]
    %v1541 = vld [vmem:[#allocation10 + $0x4b0] sm:$0xff]
    %v1542 = vld [vmem:[#allocation10 + $0x4b8] sm:$0xff]
    %v1543 = vld [vmem:[#allocation10 + $0x4c0] sm:$0xff]
    %v1544 = vld [vmem:[#allocation10 + $0x4c8] sm:$0xff]
    %v1545 = vld [vmem:[#allocation10 + $0x4d0] sm:$0xff]
    %v1546 = vld [vmem:[#allocation10 + $0x4d8] sm:$0xff]
    %v1547 = vld [vmem:[#allocation10 + $0x4e0] sm:$0xff]
    %v1548 = vld [vmem:[#allocation10 + $0x4e8] sm:$0xff]
    %v1549 = vld [vmem:[#allocation10 + $0x4f0] sm:$0xff]
    %v1550 = vld [vmem:[#allocation10 + $0x4f8] sm:$0xff]
    %v1551 = vld [vmem:[#allocation10 + $0x500] sm:$0xff]
    %v1552 = vld [vmem:[#allocation10 + $0x508] sm:$0xff]
    %v1553 = vld [vmem:[#allocation10 + $0x510] sm:$0xff]
    %v1554 = vld [vmem:[#allocation10 + $0x518] sm:$0xff]
    %v1555 = vld [vmem:[#allocation10 + $0x520] sm:$0xff]
    %v1556 = vld [vmem:[#allocation10 + $0x528] sm:$0xff]
    %v1557 = vld [vmem:[#allocation10 + $0x530] sm:$0xff]
    %v1558 = vld [vmem:[#allocation10 + $0x538] sm:$0xff]
    %v1559 = vld [vmem:[#allocation10 + $0x540] sm:$0xff]
    %v1560 = vld [vmem:[#allocation10 + $0x548] sm:$0xff]
    %v1561 = vld [vmem:[#allocation10 + $0x550] sm:$0xff]
    %v1562 = vld [vmem:[#allocation10 + $0x558] sm:$0xff]
    %v1563 = vld [vmem:[#allocation10 + $0x560] sm:$0xff]
    %v1564 = vld [vmem:[#allocation10 + $0x568] sm:$0xff]
    %v1565 = vld [vmem:[#allocation10 + $0x570] sm:$0xff]
    %v1566 = vld [vmem:[#allocation10 + $0x578] sm:$0xff]
    %v1567 = vld [vmem:[#allocation10 + $0x580] sm:$0xff]
    %v1568 = vld [vmem:[#allocation10 + $0x588] sm:$0xff]
    %v1569 = vld [vmem:[#allocation10 + $0x590] sm:$0xff]
    %v1570 = vld [vmem:[#allocation10 + $0x598] sm:$0xff]
    %v1571 = vld [vmem:[#allocation10 + $0x5a0] sm:$0xff]
    %v1572 = vld [vmem:[#allocation10 + $0x5a8] sm:$0xff]
    %v1573 = vld [vmem:[#allocation10 + $0x5b0] sm:$0xff]
    %v1574 = vld [vmem:[#allocation10 + $0x5b8] sm:$0xff]
    %v1575 = vld [vmem:[#allocation10 + $0x5c0] sm:$0xff]
    %v1576 = vld [vmem:[#allocation10 + $0x5c8] sm:$0xff]
    %v1577 = vld [vmem:[#allocation10 + $0x5d0] sm:$0xff]
    %v1578 = vld [vmem:[#allocation10 + $0x5d8] sm:$0xff]
    %v1579 = vld [vmem:[#allocation10 + $0x5e0] sm:$0xff]
    %v1580 = vld [vmem:[#allocation10 + $0x5e8] sm:$0xff]
    %v1581 = vld [vmem:[#allocation10 + $0x5f0] sm:$0xff]
    %v1582 = vld [vmem:[#allocation10 + $0x5f8] sm:$0xff]
    %v1583 = vld [vmem:[#allocation10 + $0x600] sm:$0xff]
    %v1584 = vld [vmem:[#allocation10 + $0x608] sm:$0xff]
    %v1585 = vld [vmem:[#allocation10 + $0x610] sm:$0xff]
    %v1586 = vld [vmem:[#allocation10 + $0x618] sm:$0xff]
    %v1587 = vld [vmem:[#allocation10 + $0x620] sm:$0xff]
    %v1588 = vld [vmem:[#allocation10 + $0x628] sm:$0xff]
    %v1589 = vld [vmem:[#allocation10 + $0x630] sm:$0xff]
    %v1590 = vld [vmem:[#allocation10 + $0x638] sm:$0xff]
    %v1591 = vld [vmem:[#allocation10 + $0x640] sm:$0xff]
    %v1592 = vld [vmem:[#allocation10 + $0x648] sm:$0xff]
    %v1593 = vld [vmem:[#allocation10 + $0x650] sm:$0xff]
    %v1594 = vld [vmem:[#allocation10 + $0x658] sm:$0xff]
    %v1595 = vld [vmem:[#allocation10 + $0x660] sm:$0xff]
    %v1596 = vld [vmem:[#allocation10 + $0x668] sm:$0xff]
    %v1597 = vld [vmem:[#allocation10 + $0x670] sm:$0xff]
    %v1598 = vld [vmem:[#allocation10 + $0x678] sm:$0xff]
    %v1599 = vld [vmem:[#allocation10 + $0x680] sm:$0xff]
    %v1600 = vld [vmem:[#allocation10 + $0x688] sm:$0xff]
    %v1601 = vld [vmem:[#allocation10 + $0x690] sm:$0xff]
    %v1602 = vld [vmem:[#allocation10 + $0x698] sm:$0xff]
    %v1603 = vld [vmem:[#allocation10 + $0x6a0] sm:$0xff]
    %v1604 = vld [vmem:[#allocation10 + $0x6a8] sm:$0xff]
    %v1605 = vld [vmem:[#allocation10 + $0x6b0] sm:$0xff]
    %v1606 = vld [vmem:[#allocation10 + $0x6b8] sm:$0xff]
    %v1607 = vld [vmem:[#allocation10 + $0x6c0] sm:$0xff]
    %v1608 = vld [vmem:[#allocation10 + $0x6c8] sm:$0xff]
    %v1609 = vld [vmem:[#allocation10 + $0x6d0] sm:$0xff]
    %v1610 = vld [vmem:[#allocation10 + $0x6d8] sm:$0xff]
    %v1611 = vld [vmem:[#allocation10 + $0x6e0] sm:$0xff]
    %v1612 = vld [vmem:[#allocation10 + $0x6e8] sm:$0xff]
    %v1613 = vld [vmem:[#allocation10 + $0x6f0] sm:$0xff]
    %v1614 = vld [vmem:[#allocation10 + $0x6f8] sm:$0xff]
    %v1615 = vld [vmem:[#allocation10 + $0x700] sm:$0xff]
    %v1616 = vld [vmem:[#allocation10 + $0x708] sm:$0xff]
    %v1617 = vld [vmem:[#allocation10 + $0x710] sm:$0xff]
    %v1618 = vld [vmem:[#allocation10 + $0x718] sm:$0xff]
    %v1619 = vld [vmem:[#allocation10 + $0x720] sm:$0xff]
    %v1620 = vld [vmem:[#allocation10 + $0x728] sm:$0xff]
    %v1621 = vld [vmem:[#allocation10 + $0x730] sm:$0xff]
    %v1622 = vld [vmem:[#allocation10 + $0x738] sm:$0xff]
    %v1623 = vld [vmem:[#allocation10 + $0x740] sm:$0xff]
    %v1624 = vld [vmem:[#allocation10 + $0x748] sm:$0xff]
    %v1625 = vld [vmem:[#allocation10 + $0x750] sm:$0xff]
    %v1626 = vld [vmem:[#allocation10 + $0x758] sm:$0xff]
    %v1627 = vld [vmem:[#allocation10 + $0x760] sm:$0xff]
    %v1628 = vld [vmem:[#allocation10 + $0x768] sm:$0xff]
    %v1629 = vld [vmem:[#allocation10 + $0x770] sm:$0xff]
    %v1630 = vld [vmem:[#allocation10 + $0x778] sm:$0xff]
    %v1631 = vld [vmem:[#allocation10 + $0x780] sm:$0xff]
    %v1632 = vld [vmem:[#allocation10 + $0x788] sm:$0xff]
    %v1633 = vld [vmem:[#allocation10 + $0x790] sm:$0xff]
    %v1634 = vld [vmem:[#allocation10 + $0x798] sm:$0xff]
    %v1635 = vld [vmem:[#allocation10 + $0x7a0] sm:$0xff]
    %v1636 = vld [vmem:[#allocation10 + $0x7a8] sm:$0xff]
    %v1637 = vld [vmem:[#allocation10 + $0x7b0] sm:$0xff]
    %v1638 = vld [vmem:[#allocation10 + $0x7b8] sm:$0xff]
    %v1639 = vld [vmem:[#allocation10 + $0x7c0] sm:$0xff]
    %v1640 = vld [vmem:[#allocation10 + $0x7c8] sm:$0xff]
    %v1641 = vld [vmem:[#allocation10 + $0x7d0] sm:$0xff]
    %v1642 = vld [vmem:[#allocation10 + $0x7d8] sm:$0xff]
    %v1643 = vld [vmem:[#allocation10 + $0x7e0] sm:$0xff]
    %v1644 = vld [vmem:[#allocation10 + $0x7e8] sm:$0xff]
    %v1645 = vld [vmem:[#allocation10 + $0x7f0] sm:$0xff]
    %v1646 = vld [vmem:[#allocation10 + $0x7f8] sm:$0xff]
    %v1647 = vld [vmem:[#allocation10 + $0x800] sm:$0xff]
    %v1648 = vld [vmem:[#allocation10 + $0x808] sm:$0xff]
    %v1649 = vld [vmem:[#allocation10 + $0x810] sm:$0xff]
    %v1650 = vld [vmem:[#allocation10 + $0x818] sm:$0xff]
    %v1651 = vld [vmem:[#allocation10 + $0x820] sm:$0xff]
    %v1652 = vld [vmem:[#allocation10 + $0x828] sm:$0xff]
    %v1653 = vld [vmem:[#allocation10 + $0x830] sm:$0xff]
    %v1654 = vld [vmem:[#allocation10 + $0x838] sm:$0xff]
    %v1655 = vld [vmem:[#allocation10 + $0x840] sm:$0xff]
    %v1656 = vld [vmem:[#allocation10 + $0x848] sm:$0xff]
    %v1657 = vld [vmem:[#allocation10 + $0x850] sm:$0xff]
    %v1658 = vld [vmem:[#allocation10 + $0x858] sm:$0xff]
    %v1659 = vld [vmem:[#allocation10 + $0x860] sm:$0xff]
    %v1660 = vld [vmem:[#allocation10 + $0x868] sm:$0xff]
    %v1661 = vld [vmem:[#allocation10 + $0x870] sm:$0xff]
    %v1662 = vld [vmem:[#allocation10 + $0x878] sm:$0xff]
    %v1663 = vld [vmem:[#allocation10 + $0x880] sm:$0xff]
    %v1664 = vld [vmem:[#allocation10 + $0x888] sm:$0xff]
    %v1665 = vld [vmem:[#allocation10 + $0x890] sm:$0xff]
    %v1666 = vld [vmem:[#allocation10 + $0x898] sm:$0xff]
    %v1667 = vld [vmem:[#allocation10 + $0x8a0] sm:$0xff]
    %v1668 = vld [vmem:[#allocation10 + $0x8a8] sm:$0xff]
    %v1669 = vld [vmem:[#allocation10 + $0x8b0] sm:$0xff]
    %v1670 = vld [vmem:[#allocation10 + $0x8b8] sm:$0xff]
    %v1671 = vld [vmem:[#allocation10 + $0x8c0] sm:$0xff]
    %v1672 = vld [vmem:[#allocation10 + $0x8c8] sm:$0xff]
    %v1673 = vld [vmem:[#allocation10 + $0x8d0] sm:$0xff]
    %v1674 = vld [vmem:[#allocation10 + $0x8d8] sm:$0xff]
    %v1675 = vld [vmem:[#allocation10 + $0x8e0] sm:$0xff]
    %v1676 = vld [vmem:[#allocation10 + $0x8e8] sm:$0xff]
    %v1677 = vld [vmem:[#allocation10 + $0x8f0] sm:$0xff]
    %v1678 = vld [vmem:[#allocation10 + $0x8f8] sm:$0xff]
    %v1679 = vld [vmem:[#allocation10 + $0x900] sm:$0xff]
    %v1680 = vld [vmem:[#allocation10 + $0x908] sm:$0xff]
    %v1681 = vld [vmem:[#allocation10 + $0x910] sm:$0xff]
    %v1682 = vld [vmem:[#allocation10 + $0x918] sm:$0xff]
    %v1683 = vld [vmem:[#allocation10 + $0x920] sm:$0xff]
    %v1684 = vld [vmem:[#allocation10 + $0x928] sm:$0xff]
    %v1685 = vld [vmem:[#allocation10 + $0x930] sm:$0xff]
    %v1686 = vld [vmem:[#allocation10 + $0x938] sm:$0xff]
    %v1687 = vld [vmem:[#allocation10 + $0x940] sm:$0xff]
    %v1688 = vld [vmem:[#allocation10 + $0x948] sm:$0xff]
    %v1689 = vld [vmem:[#allocation10 + $0x950] sm:$0xff]
    %v1690 = vld [vmem:[#allocation10 + $0x958] sm:$0xff]
    %v1691 = vld [vmem:[#allocation10 + $0x960] sm:$0xff]
    %v1692 = vld [vmem:[#allocation10 + $0x968] sm:$0xff]
    %v1693 = vld [vmem:[#allocation10 + $0x970] sm:$0xff]
    %v1694 = vld [vmem:[#allocation10 + $0x978] sm:$0xff]
    %v1695 = vld [vmem:[#allocation10 + $0x980] sm:$0xff]
    %v1696 = vld [vmem:[#allocation10 + $0x988] sm:$0xff]
    %v1697 = vld [vmem:[#allocation10 + $0x990] sm:$0xff]
    %v1698 = vld [vmem:[#allocation10 + $0x998] sm:$0xff]
    %v1699 = vld [vmem:[#allocation10 + $0x9a0] sm:$0xff]
    %v1700 = vld [vmem:[#allocation10 + $0x9a8] sm:$0xff]
    %v1701 = vld [vmem:[#allocation10 + $0x9b0] sm:$0xff]
    %v1702 = vld [vmem:[#allocation10 + $0x9b8] sm:$0xff]
    %v1703 = vld [vmem:[#allocation10 + $0x9c0] sm:$0xff]
    %v1704 = vld [vmem:[#allocation10 + $0x9c8] sm:$0xff]
    %v1705 = vld [vmem:[#allocation10 + $0x9d0] sm:$0xff]
    %v1706 = vld [vmem:[#allocation10 + $0x9d8] sm:$0xff]
    %v1707 = vld [vmem:[#allocation10 + $0x9e0] sm:$0xff]
    %v1708 = vld [vmem:[#allocation10 + $0x9e8] sm:$0xff]
    %v1709 = vld [vmem:[#allocation10 + $0x9f0] sm:$0xff]
    %v1710 = vld [vmem:[#allocation10 + $0x9f8] sm:$0xff]
    %v1711 = vld [vmem:[#allocation10 + $0xa00] sm:$0xff]
    %v1712 = vld [vmem:[#allocation10 + $0xa08] sm:$0xff]
    %v1713 = vld [vmem:[#allocation10 + $0xa10] sm:$0xff]
    %v1714 = vld [vmem:[#allocation10 + $0xa18] sm:$0xff]
    %v1715 = vld [vmem:[#allocation10 + $0xa20] sm:$0xff]
    %v1716 = vld [vmem:[#allocation10 + $0xa28] sm:$0xff]
    %v1717 = vld [vmem:[#allocation10 + $0xa30] sm:$0xff]
    %v1718 = vld [vmem:[#allocation10 + $0xa38] sm:$0xff]
    %v1719 = vld [vmem:[#allocation10 + $0xa40] sm:$0xff]
    %v1720 = vld [vmem:[#allocation10 + $0xa48] sm:$0xff]
    %v1721 = vld [vmem:[#allocation10 + $0xa50] sm:$0xff]
    %v1722 = vld [vmem:[#allocation10 + $0xa58] sm:$0xff]
    %v1723 = vld [vmem:[#allocation10 + $0xa60] sm:$0xff]
    %v1724 = vld [vmem:[#allocation10 + $0xa68] sm:$0xff]
    %v1725 = vld [vmem:[#allocation10 + $0xa70] sm:$0xff]
    %v1726 = vld [vmem:[#allocation10 + $0xa78] sm:$0xff]
    %v1727 = vld [vmem:[#allocation10 + $0xa80] sm:$0xff]
    %v1728 = vld [vmem:[#allocation10 + $0xa88] sm:$0xff]
    %v1729 = vld [vmem:[#allocation10 + $0xa90] sm:$0xff]
    %v1730 = vld [vmem:[#allocation10 + $0xa98] sm:$0xff]
    %v1731 = vld [vmem:[#allocation10 + $0xaa0] sm:$0xff]
    %v1732 = vld [vmem:[#allocation10 + $0xaa8] sm:$0xff]
    %v1733 = vld [vmem:[#allocation10 + $0xab0] sm:$0xff]
    %v1734 = vld [vmem:[#allocation10 + $0xab8] sm:$0xff]
    %v1735 = vld [vmem:[#allocation10 + $0xac0] sm:$0xff]
    %v1736 = vld [vmem:[#allocation10 + $0xac8] sm:$0xff]
    %v1737 = vld [vmem:[#allocation10 + $0xad0] sm:$0xff]
    %v1738 = vld [vmem:[#allocation10 + $0xad8] sm:$0xff]
    %v1739 = vld [vmem:[#allocation10 + $0xae0] sm:$0xff]
    %v1740 = vld [vmem:[#allocation10 + $0xae8] sm:$0xff]
    %v1741 = vld [vmem:[#allocation10 + $0xaf0] sm:$0xff]
    %v1742 = vld [vmem:[#allocation10 + $0xaf8] sm:$0xff]
    %v1743 = vld [vmem:[#allocation10 + $0xb00] sm:$0xff]
    %v1744 = vld [vmem:[#allocation10 + $0xb08] sm:$0xff]
    %v1745 = vld [vmem:[#allocation10 + $0xb10] sm:$0xff]
    %v1746 = vld [vmem:[#allocation10 + $0xb18] sm:$0xff]
    %v1747 = vld [vmem:[#allocation10 + $0xb20] sm:$0xff]
    %v1748 = vld [vmem:[#allocation10 + $0xb28] sm:$0xff]
    %v1749 = vld [vmem:[#allocation10 + $0xb30] sm:$0xff]
    %v1750 = vld [vmem:[#allocation10 + $0xb38] sm:$0xff]
    %v1751 = vld [vmem:[#allocation10 + $0xb40] sm:$0xff]
    %v1752 = vld [vmem:[#allocation10 + $0xb48] sm:$0xff]
    %v1753 = vld [vmem:[#allocation10 + $0xb50] sm:$0xff]
    %v1754 = vld [vmem:[#allocation10 + $0xb58] sm:$0xff]
    %v1755 = vld [vmem:[#allocation10 + $0xb60] sm:$0xff]
    %v1756 = vld [vmem:[#allocation10 + $0xb68] sm:$0xff]
    %v1757 = vld [vmem:[#allocation10 + $0xb70] sm:$0xff]
    %v1758 = vld [vmem:[#allocation10 + $0xb78] sm:$0xff]
    %v1759 = vld [vmem:[#allocation10 + $0xb80] sm:$0xff]
    %v1760 = vld [vmem:[#allocation10 + $0xb88] sm:$0xff]
    %v1761 = vld [vmem:[#allocation10 + $0xb90] sm:$0xff]
    %v1762 = vld [vmem:[#allocation10 + $0xb98] sm:$0xff]
    %v1763 = vld [vmem:[#allocation10 + $0xba0] sm:$0xff]
    %v1764 = vld [vmem:[#allocation10 + $0xba8] sm:$0xff]
    %v1765 = vld [vmem:[#allocation10 + $0xbb0] sm:$0xff]
    %v1766 = vld [vmem:[#allocation10 + $0xbb8] sm:$0xff]
    %v1767 = vld [vmem:[#allocation10 + $0xbc0] sm:$0xff]
    %v1768 = vld [vmem:[#allocation10 + $0xbc8] sm:$0xff]
    %v1769 = vld [vmem:[#allocation10 + $0xbd0] sm:$0xff]
    %v1770 = vld [vmem:[#allocation10 + $0xbd8] sm:$0xff]
    %v1771 = vld [vmem:[#allocation10 + $0xbe0] sm:$0xff]
    %v1772 = vld [vmem:[#allocation10 + $0xbe8] sm:$0xff]
    %v1773 = vld [vmem:[#allocation10 + $0xbf0] sm:$0xff]
    %v1774 = vld [vmem:[#allocation10 + $0xbf8] sm:$0xff]
    %v1775 = vld [vmem:[#allocation10 + $0xc00] sm:$0xff]
    %v1776 = vld [vmem:[#allocation10 + $0xc08] sm:$0xff]
    %v1777 = vld [vmem:[#allocation10 + $0xc10] sm:$0xff]
    %v1778 = vld [vmem:[#allocation10 + $0xc18] sm:$0xff]
    %v1779 = vld [vmem:[#allocation10 + $0xc20] sm:$0xff]
    %v1780 = vld [vmem:[#allocation10 + $0xc28] sm:$0xff]
    %v1781 = vld [vmem:[#allocation10 + $0xc30] sm:$0xff]
    %v1782 = vld [vmem:[#allocation10 + $0xc38] sm:$0xff]
    %v1783 = vld [vmem:[#allocation10 + $0xc40] sm:$0xff]
    %v1784 = vld [vmem:[#allocation10 + $0xc48] sm:$0xff]
    %v1785 = vld [vmem:[#allocation10 + $0xc50] sm:$0xff]
    %v1786 = vld [vmem:[#allocation10 + $0xc58] sm:$0xff]
    %v1787 = vld [vmem:[#allocation10 + $0xc60] sm:$0xff]
    %v1788 = vld [vmem:[#allocation10 + $0xc68] sm:$0xff]
    %v1789 = vld [vmem:[#allocation10 + $0xc70] sm:$0xff]
    %v1790 = vld [vmem:[#allocation10 + $0xc78] sm:$0xff]
    %v1791 = vld [vmem:[#allocation10 + $0xc80] sm:$0xff]
    %v1792 = vld [vmem:[#allocation10 + $0xc88] sm:$0xff]
    %v1793 = vld [vmem:[#allocation10 + $0xc90] sm:$0xff]
    %v1794 = vld [vmem:[#allocation10 + $0xc98] sm:$0xff]
    %v1795 = vld [vmem:[#allocation10 + $0xca0] sm:$0xff]
    %v1796 = vld [vmem:[#allocation10 + $0xca8] sm:$0xff]
    %v1797 = vld [vmem:[#allocation10 + $0xcb0] sm:$0xff]
    %v1798 = vld [vmem:[#allocation10 + $0xcb8] sm:$0xff]
    %v1799 = vld [vmem:[#allocation10 + $0xcc0] sm:$0xff]
    %v1800 = vld [vmem:[#allocation10 + $0xcc8] sm:$0xff]
    %v1801 = vld [vmem:[#allocation10 + $0xcd0] sm:$0xff]
    %v1802 = vld [vmem:[#allocation10 + $0xcd8] sm:$0xff]
    %v1803 = vld [vmem:[#allocation10 + $0xce0] sm:$0xff]
    %v1804 = vld [vmem:[#allocation10 + $0xce8] sm:$0xff]
    %v1805 = vld [vmem:[#allocation10 + $0xcf0] sm:$0xff]
    %v1806 = vld [vmem:[#allocation10 + $0xcf8] sm:$0xff]
    %v1807 = vld [vmem:[#allocation10 + $0xd00] sm:$0xff]
    %v1808 = vld [vmem:[#allocation10 + $0xd08] sm:$0xff]
    %v1809 = vld [vmem:[#allocation10 + $0xd10] sm:$0xff]
    %v1810 = vld [vmem:[#allocation10 + $0xd18] sm:$0xff]
    %v1811 = vld [vmem:[#allocation10 + $0xd20] sm:$0xff]
    %v1812 = vld [vmem:[#allocation10 + $0xd28] sm:$0xff]
    %v1813 = vld [vmem:[#allocation10 + $0xd30] sm:$0xff]
    %v1814 = vld [vmem:[#allocation10 + $0xd38] sm:$0xff]
    %v1815 = vld [vmem:[#allocation10 + $0xd40] sm:$0xff]
    %v1816 = vld [vmem:[#allocation10 + $0xd48] sm:$0xff]
    %v1817 = vld [vmem:[#allocation10 + $0xd50] sm:$0xff]
    %v1818 = vld [vmem:[#allocation10 + $0xd58] sm:$0xff]
    %v1819 = vld [vmem:[#allocation10 + $0xd60] sm:$0xff]
    %v1820 = vld [vmem:[#allocation10 + $0xd68] sm:$0xff]
    %v1821 = vld [vmem:[#allocation10 + $0xd70] sm:$0xff]
    %v1822 = vld [vmem:[#allocation10 + $0xd78] sm:$0xff]
    %v1823 = vld [vmem:[#allocation10 + $0xd80] sm:$0xff]
    %v1824 = vld [vmem:[#allocation10 + $0xd88] sm:$0xff]
    %v1825 = vld [vmem:[#allocation10 + $0xd90] sm:$0xff]
    %v1826 = vld [vmem:[#allocation10 + $0xd98] sm:$0xff]
    %v1827 = vld [vmem:[#allocation10 + $0xda0] sm:$0xff]
    %v1828 = vld [vmem:[#allocation10 + $0xda8] sm:$0xff]
    %v1829 = vld [vmem:[#allocation10 + $0xdb0] sm:$0xff]
    %v1830 = vld [vmem:[#allocation10 + $0xdb8] sm:$0xff]
    %v1831 = vld [vmem:[#allocation10 + $0xdc0] sm:$0xff]
    %v1832 = vld [vmem:[#allocation10 + $0xdc8] sm:$0xff]
    %v1833 = vld [vmem:[#allocation10 + $0xdd0] sm:$0xff]
    %v1834 = vld [vmem:[#allocation10 + $0xdd8] sm:$0xff]
    %v1835 = vld [vmem:[#allocation10 + $0xde0] sm:$0xff]
    %v1836 = vld [vmem:[#allocation10 + $0xde8] sm:$0xff]
    %v1837 = vld [vmem:[#allocation10 + $0xdf0] sm:$0xff]
    %v1838 = vld [vmem:[#allocation10 + $0xdf8] sm:$0xff]
    %v1839 = vld [vmem:[#allocation10 + $0xe00] sm:$0xff]
    %v1840 = vld [vmem:[#allocation10 + $0xe08] sm:$0xff]
    %v1841 = vld [vmem:[#allocation10 + $0xe10] sm:$0xff]
    %v1842 = vld [vmem:[#allocation10 + $0xe18] sm:$0xff]
    %v1843 = vld [vmem:[#allocation10 + $0xe20] sm:$0xff]
    %v1844 = vld [vmem:[#allocation10 + $0xe28] sm:$0xff]
    %v1845 = vld [vmem:[#allocation10 + $0xe30] sm:$0xff]
    %v1846 = vld [vmem:[#allocation10 + $0xe38] sm:$0xff]
    %v1847 = vld [vmem:[#allocation10 + $0xe40] sm:$0xff]
    %v1848 = vld [vmem:[#allocation10 + $0xe48] sm:$0xff]
    %v1849 = vld [vmem:[#allocation10 + $0xe50] sm:$0xff]
    %v1850 = vld [vmem:[#allocation10 + $0xe58] sm:$0xff]
    %v1851 = vld [vmem:[#allocation10 + $0xe60] sm:$0xff]
    %v1852 = vld [vmem:[#allocation10 + $0xe68] sm:$0xff]
    %v1853 = vld [vmem:[#allocation10 + $0xe70] sm:$0xff]
    %v1854 = vld [vmem:[#allocation10 + $0xe78] sm:$0xff]
    %v1855 = vld [vmem:[#allocation10 + $0xe80] sm:$0xff]
    %v1856 = vld [vmem:[#allocation10 + $0xe88] sm:$0xff]
    %v1857 = vld [vmem:[#allocation10 + $0xe90] sm:$0xff]
    %v1858 = vld [vmem:[#allocation10 + $0xe98] sm:$0xff]
    %v1859 = vld [vmem:[#allocation10 + $0xea0] sm:$0xff]
    %v1860 = vld [vmem:[#allocation10 + $0xea8] sm:$0xff]
    %v1861 = vld [vmem:[#allocation10 + $0xeb0] sm:$0xff]
    %v1862 = vld [vmem:[#allocation10 + $0xeb8] sm:$0xff]
    %v1863 = vld [vmem:[#allocation10 + $0xec0] sm:$0xff]
    %v1864 = vld [vmem:[#allocation10 + $0xec8] sm:$0xff]
    %v1865 = vld [vmem:[#allocation10 + $0xed0] sm:$0xff]
    %v1866 = vld [vmem:[#allocation10 + $0xed8] sm:$0xff]
    %v1867 = vld [vmem:[#allocation10 + $0xee0] sm:$0xff]
    %v1868 = vld [vmem:[#allocation10 + $0xee8] sm:$0xff]
    %v1869 = vld [vmem:[#allocation10 + $0xef0] sm:$0xff]
    %v1870 = vld [vmem:[#allocation10 + $0xef8] sm:$0xff]
    %v1871 = vld [vmem:[#allocation10 + $0xf00] sm:$0xff]
    %v1872 = vld [vmem:[#allocation10 + $0xf08] sm:$0xff]
    %v1873 = vld [vmem:[#allocation10 + $0xf10] sm:$0xff]
    %v1874 = vld [vmem:[#allocation10 + $0xf18] sm:$0xff]
    %v1875 = vld [vmem:[#allocation10 + $0xf20] sm:$0xff]
    %v1876 = vld [vmem:[#allocation10 + $0xf28] sm:$0xff]
    %v1877 = vld [vmem:[#allocation10 + $0xf30] sm:$0xff]
    %v1878 = vld [vmem:[#allocation10 + $0xf38] sm:$0xff]
    %v1879 = vld [vmem:[#allocation10 + $0xf40] sm:$0xff]
    %v1880 = vld [vmem:[#allocation10 + $0xf48] sm:$0xff]
    %v1881 = vld [vmem:[#allocation10 + $0xf50] sm:$0xff]
    %v1882 = vld [vmem:[#allocation10 + $0xf58] sm:$0xff]
    %v1883 = vld [vmem:[#allocation10 + $0xf60] sm:$0xff]
    %v1884 = vld [vmem:[#allocation10 + $0xf68] sm:$0xff]
    %v1885 = vld [vmem:[#allocation10 + $0xf70] sm:$0xff]
    %v1886 = vld [vmem:[#allocation10 + $0xf78] sm:$0xff]
    %v1887 = vld [vmem:[#allocation10 + $0xf80] sm:$0xff]
    %v1888 = vld [vmem:[#allocation10 + $0xf88] sm:$0xff]
    %v1889 = vld [vmem:[#allocation10 + $0xf90] sm:$0xff]
    %v1890 = vld [vmem:[#allocation10 + $0xf98] sm:$0xff]
    %v1891 = vld [vmem:[#allocation10 + $0xfa0] sm:$0xff]
    %v1892 = vld [vmem:[#allocation10 + $0xfa8] sm:$0xff]
    %v1893 = vld [vmem:[#allocation10 + $0xfb0] sm:$0xff]
    %v1894 = vld [vmem:[#allocation10 + $0xfb8] sm:$0xff]
    %v1895 = vld [vmem:[#allocation10 + $0xfc0] sm:$0xff]
    %v1896 = vld [vmem:[#allocation10 + $0xfc8] sm:$0xff]
    %v1897 = vld [vmem:[#allocation10 + $0xfd0] sm:$0xff]
    %v1898 = vld [vmem:[#allocation10 + $0xfd8] sm:$0xff]
    %v1899 = vld [vmem:[#allocation10 + $0xfe0] sm:$0xff]
    %v1900 = vld [vmem:[#allocation10 + $0xfe8] sm:$0xff]
    %v1901 = vld [vmem:[#allocation10 + $0xff0] sm:$0xff]
    %v1902 = vld [vmem:[#allocation10 + $0xff8] sm:$0xff]
    %v1903 = vld [vmem:[#allocation10 + $0x1000] sm:$0xff]
    %v1904 = vld [vmem:[#allocation10 + $0x1008] sm:$0xff]
    %v1905 = vld [vmem:[#allocation10 + $0x1010] sm:$0xff]
    %v1906 = vld [vmem:[#allocation10 + $0x1018] sm:$0xff]
    %v1907 = vld [vmem:[#allocation10 + $0x1020] sm:$0xff]
    %v1908 = vld [vmem:[#allocation10 + $0x1028] sm:$0xff]
    %v1909 = vld [vmem:[#allocation10 + $0x1030] sm:$0xff]
    %v1910 = vld [vmem:[#allocation10 + $0x1038] sm:$0xff]
    %v1911 = vld [vmem:[#allocation10 + $0x1040] sm:$0xff]
    %v1912 = vld [vmem:[#allocation10 + $0x1048] sm:$0xff]
    %v1913 = vld [vmem:[#allocation10 + $0x1050] sm:$0xff]
    %v1914 = vld [vmem:[#allocation10 + $0x1058] sm:$0xff]
    %v1915 = vld [vmem:[#allocation10 + $0x1060] sm:$0xff]
    %v1916 = vld [vmem:[#allocation10 + $0x1068] sm:$0xff]
    %v1917 = vld [vmem:[#allocation10 + $0x1070] sm:$0xff]
    %v1918 = vld [vmem:[#allocation10 + $0x1078] sm:$0xff]
    %v1919 = vld [vmem:[#allocation10 + $0x1080] sm:$0xff]
    %v1920 = vld [vmem:[#allocation10 + $0x1088] sm:$0xff]
    %v1921 = vld [vmem:[#allocation10 + $0x1090] sm:$0xff]
    %v1922 = vld [vmem:[#allocation10 + $0x1098] sm:$0xff]
    %v1923 = vld [vmem:[#allocation10 + $0x10a0] sm:$0xff]
    %v1924 = vld [vmem:[#allocation10 + $0x10a8] sm:$0xff]
    %v1925 = vld [vmem:[#allocation10 + $0x10b0] sm:$0xff]
    %v1926 = vld [vmem:[#allocation10 + $0x10b8] sm:$0xff]
    %v1927 = vld [vmem:[#allocation10 + $0x10c0] sm:$0xff]
    %v1928 = vld [vmem:[#allocation10 + $0x10c8] sm:$0xff]
    %v1929 = vld [vmem:[#allocation10 + $0x10d0] sm:$0xff]
    %v1930 = vld [vmem:[#allocation10 + $0x10d8] sm:$0xff]
    %v1931 = vld [vmem:[#allocation10 + $0x10e0] sm:$0xff]
    %v1932 = vld [vmem:[#allocation10 + $0x10e8] sm:$0xff]
    %v1933 = vld [vmem:[#allocation10 + $0x10f0] sm:$0xff]
    %v1934 = vld [vmem:[#allocation10 + $0x10f8] sm:$0xff]
    %v1935 = vld [vmem:[#allocation10 + $0x1100] sm:$0xff]
    %v1936 = vld [vmem:[#allocation10 + $0x1108] sm:$0xff]
    %v1937 = vld [vmem:[#allocation10 + $0x1110] sm:$0xff]
    %v1938 = vld [vmem:[#allocation10 + $0x1118] sm:$0xff]
    %v1939 = vld [vmem:[#allocation10 + $0x1120] sm:$0xff]
    %v1940 = vld [vmem:[#allocation10 + $0x1128] sm:$0xff]
    %v1941 = vld [vmem:[#allocation10 + $0x1130] sm:$0xff]
    %v1942 = vld [vmem:[#allocation10 + $0x1138] sm:$0xff]
    %v1943 = vld [vmem:[#allocation10 + $0x1140] sm:$0xff]
    %v1944 = vld [vmem:[#allocation10 + $0x1148] sm:$0xff]
    %v1945 = vld [vmem:[#allocation10 + $0x1150] sm:$0xff]
    %v1946 = vld [vmem:[#allocation10 + $0x1158] sm:$0xff]
    %v1947 = vld [vmem:[#allocation10 + $0x1160] sm:$0xff]
    %v1948 = vld [vmem:[#allocation10 + $0x1168] sm:$0xff]
    %v1949 = vld [vmem:[#allocation10 + $0x1170] sm:$0xff]
    %v1950 = vld [vmem:[#allocation10 + $0x1178] sm:$0xff]
    %v1951 = vld [vmem:[#allocation10 + $0x1180] sm:$0xff]
    %v1952 = vld [vmem:[#allocation10 + $0x1188] sm:$0xff]
    %v1953 = vld [vmem:[#allocation10 + $0x1190] sm:$0xff]
    %v1954 = vld [vmem:[#allocation10 + $0x1198] sm:$0xff]
    %v1955 = vld [vmem:[#allocation10 + $0x11a0] sm:$0xff]
    %v1956 = vld [vmem:[#allocation10 + $0x11a8] sm:$0xff]
    %v1957 = vld [vmem:[#allocation10 + $0x11b0] sm:$0xff]
    %v1958 = vld [vmem:[#allocation10 + $0x11b8] sm:$0xff]
    %v1959 = vld [vmem:[#allocation10 + $0x11c0] sm:$0xff]
    %v1960 = vld [vmem:[#allocation10 + $0x11c8] sm:$0xff]
    %v1961 = vld [vmem:[#allocation10 + $0x11d0] sm:$0xff]
    %v1962 = vld [vmem:[#allocation10 + $0x11d8] sm:$0xff]
    %v1963 = vld [vmem:[#allocation10 + $0x11e0] sm:$0xff]
    %v1964 = vld [vmem:[#allocation10 + $0x11e8] sm:$0xff]
    %v1965 = vld [vmem:[#allocation10 + $0x11f0] sm:$0xff]
    %v1966 = vld [vmem:[#allocation10 + $0x11f8] sm:$0xff]
    %v1967 = vld [vmem:[#allocation11] sm:$0x3f]
    %v1969 = vlaneseq
    %v1970 = vshrl.u32 %v1969, 7
    %v1971 = vsub.s32 0, %v1970
    %v1972 = vrot.slane %v1967, %v1971
    %v1973 = vlaneseq
    %v1974 = vshrl.u32 %v1973, 7
    %v1975 = vsub.s32 1, %v1974
    %v1976 = vrot.slane %v1967, %v1975
    %v1977 = vlaneseq
    %v1978 = vshrl.u32 %v1977, 7
    %v1979 = vsub.s32 2, %v1978
    %v1980 = vrot.slane %v1967, %v1979
    %v1981 = vlaneseq
    %v1982 = vshrl.u32 %v1981, 7
    %v1983 = vsub.s32 3, %v1982
    %v1984 = vrot.slane %v1967, %v1983
    %v1985 = vlaneseq
    %v1986 = vshrl.u32 %v1985, 7
    %v1987 = vsub.s32 4, %v1986
    %v1988 = vrot.slane %v1967, %v1987
    %v1989 = vlaneseq
    %v1990 = vshrl.u32 %v1989, 7
    %v1991 = vsub.s32 5, %v1990
    %v1992 = vrot.slane %v1967, %v1991
    %1999 = vmatprep.subr.mxu0 %v1392
    %2000 = vmatpush1.msra.mxu0 %v1391
    %2001 = vmatprep.subr.mxu0 %v1398
    %2002 = vmatpush1.msra.mxu0 %v1397
    %2003 = vmatprep.subr.mxu0 %v1404
    %2004 = vmatpush1.msra.mxu0 %v1403
    %2005 = vmatprep.subr.mxu0 %v1410
    %2006 = vmatpush1.msra.mxu0 %v1409
    %2007 = vmatprep.subr.mxu0 %v1416
    %2008 = vmatpush1.msra.mxu0 %v1415
    %2009 = vmatprep.subr.mxu0 %v1422
    %2010 = vmatpush1.msra.mxu0 %v1421
    %2011 = vmatprep.subr.mxu0 %v1428
    %2012 = vmatpush1.msra.mxu0 %v1427
    %2013 = vmatprep.subr.mxu0 %v1434
    %2014 = vmatpush1.msra.mxu0 %v1433
    %2015 = vmatprep.subr.mxu0 %v1440
    %2016 = vmatpush1.msra.mxu0 %v1439
    %2017 = vmatprep.subr.mxu0 %v1446
    %2018 = vmatpush1.msra.mxu0 %v1445
    %2019 = vmatprep.subr.mxu0 %v1452
    %2020 = vmatpush1.msra.mxu0 %v1451
    %2021 = vmatprep.subr.mxu0 %v1458
    %2022 = vmatpush1.msra.mxu0 %v1457
    %2023 = vmatprep.subr.mxu0 %v1464
    %2024 = vmatpush1.msra.mxu0 %v1463
    %2025 = vmatprep.subr.mxu0 %v1470
    %2026 = vmatpush1.msra.mxu0 %v1469
    %2027 = vmatprep.subr.mxu0 %v1476
    %2028 = vmatpush1.msra.mxu0 %v1475
    %2029 = vmatprep.subr.mxu0 %v1482
    %2030 = vmatpush1.msra.mxu0 %v1481
    %2031 = vmatprep.subr.mxu0 %v1488
    %2032 = vmatpush1.msra.mxu0 %v1487
    %2033 = vmatprep.subr.mxu0 %v1494
    %2034 = vmatpush1.msra.mxu0 %v1493
    %2035 = vmatprep.subr.mxu0 %v1500
    %2036 = vmatpush1.msra.mxu0 %v1499
    %2037 = vmatprep.subr.mxu0 %v1506
    %2038 = vmatpush1.msra.mxu0 %v1505
    %2039 = vmatprep.subr.mxu0 %v1512
    %2040 = vmatpush1.msra.mxu0 %v1511
    %2041 = vmatprep.subr.mxu0 %v1518
    %2042 = vmatpush1.msra.mxu0 %v1517
    %2043 = vmatprep.subr.mxu0 %v1524
    %2044 = vmatpush1.msra.mxu0 %v1523
    %2045 = vmatprep.subr.mxu0 %v1530
    %2046 = vmatpush1.msra.mxu0 %v1529
    %2047 = vmatprep.subr.mxu0 %v1536
    %2048 = vmatpush1.msra.mxu0 %v1535
    %2049 = vmatprep.subr.mxu0 %v1542
    %2050 = vmatpush1.msra.mxu0 %v1541
    %2051 = vmatprep.subr.mxu0 %v1548
    %2052 = vmatpush1.msra.mxu0 %v1547
    %2053 = vmatprep.subr.mxu0 %v1554
    %2054 = vmatpush1.msra.mxu0 %v1553
    %2055 = vmatprep.subr.mxu0 %v1560
    %2056 = vmatpush1.msra.mxu0 %v1559
    %2057 = vmatprep.subr.mxu0 %v1566
    %2058 = vmatpush1.msra.mxu0 %v1565
    %2059 = vmatprep.subr.mxu0 %v1572
    %2060 = vmatpush1.msra.mxu0 %v1571
    %2061 = vmatprep.subr.mxu0 %v1578
    %2062 = vmatpush1.msra.mxu0 %v1577
    %2063 = vmatprep.mubr.f32.mxu0 %v1386
    %2064 = vmatmul.mubr.f32.gmra.mrb[0].mxu0 %v1385
    %v2065 = vpop.f32.mrb[0].mxu0
    %v2066 = vadd.f32 %v1972, %v2065
    %v2067 = vpop.f32.mrb[0].mxu0
    %v2068 = vadd.f32 %v1976, %v2067
    %2069 = vdwg.mxu0
    %2070 = vmatprep.subr.mxu0 %v1584
    %2071 = vmatpush1.msra.mxu0 %v1583
    %2072 = vmatprep.subr.mxu0 %v1590
    %2073 = vmatpush1.msra.mxu0 %v1589
    %2074 = vmatprep.subr.mxu0 %v1596
    %2075 = vmatpush1.msra.mxu0 %v1595
    %2076 = vmatprep.subr.mxu0 %v1602
    %2077 = vmatpush1.msra.mxu0 %v1601
    %2078 = vmatprep.subr.mxu0 %v1608
    %2079 = vmatpush1.msra.mxu0 %v1607
    %2080 = vmatprep.subr.mxu0 %v1614
    %2081 = vmatpush1.msra.mxu0 %v1613
    %2082 = vmatprep.subr.mxu0 %v1620
    %2083 = vmatpush1.msra.mxu0 %v1619
    %2084 = vmatprep.subr.mxu0 %v1626
    %2085 = vmatpush1.msra.mxu0 %v1625
    %2086 = vmatprep.subr.mxu0 %v1632
    %2087 = vmatpush1.msra.mxu0 %v1631
    %2088 = vmatprep.subr.mxu0 %v1638
    %2089 = vmatpush1.msra.mxu0 %v1637
    %2090 = vmatprep.subr.mxu0 %v1644
    %2091 = vmatpush1.msra.mxu0 %v1643
    %2092 = vmatprep.subr.mxu0 %v1650
    %2093 = vmatpush1.msra.mxu0 %v1649
    %2094 = vmatprep.subr.mxu0 %v1656
    %2095 = vmatpush1.msra.mxu0 %v1655
    %2096 = vmatprep.subr.mxu0 %v1662
    %2097 = vmatpush1.msra.mxu0 %v1661
    %2098 = vmatprep.subr.mxu0 %v1668
    %2099 = vmatpush1.msra.mxu0 %v1667
    %2100 = vmatprep.subr.mxu0 %v1674
    %2101 = vmatpush1.msra.mxu0 %v1673
    %2102 = vmatprep.subr.mxu0 %v1680
    %2103 = vmatpush1.msra.mxu0 %v1679
    %2104 = vmatprep.subr.mxu0 %v1686
    %2105 = vmatpush1.msra.mxu0 %v1685
    %2106 = vmatprep.subr.mxu0 %v1692
    %2107 = vmatpush1.msra.mxu0 %v1691
    %2108 = vmatprep.subr.mxu0 %v1698
    %2109 = vmatpush1.msra.mxu0 %v1697
    %2110 = vmatprep.subr.mxu0 %v1704
    %2111 = vmatpush1.msra.mxu0 %v1703
    %2112 = vmatprep.subr.mxu0 %v1710
    %2113 = vmatpush1.msra.mxu0 %v1709
    %2114 = vmatprep.subr.mxu0 %v1716
    %2115 = vmatpush1.msra.mxu0 %v1715
    %2116 = vmatprep.subr.mxu0 %v1722
    %2117 = vmatpush1.msra.mxu0 %v1721
    %2118 = vmatprep.subr.mxu0 %v1728
    %2119 = vmatpush1.msra.mxu0 %v1727
    %2120 = vmatprep.subr.mxu0 %v1734
    %2121 = vmatpush1.msra.mxu0 %v1733
    %2122 = vmatprep.subr.mxu0 %v1740
    %2123 = vmatpush1.msra.mxu0 %v1739
    %2124 = vmatprep.subr.mxu0 %v1746
    %2125 = vmatpush1.msra.mxu0 %v1745
    %2126 = vmatprep.subr.mxu0 %v1752
    %2127 = vmatpush1.msra.mxu0 %v1751
    %2128 = vmatprep.subr.mxu0 %v1758
    %2129 = vmatpush1.msra.mxu0 %v1757
    %2130 = vmatprep.subr.mxu0 %v1764
    %2131 = vmatpush1.msra.mxu0 %v1763
    %2132 = vmatprep.subr.mxu0 %v1770
    %2133 = vmatpush1.msra.mxu0 %v1769
    %2134 = vmatprep.mubr.f32.mxu0 %v1388
    %2135 = vmatmul.mubr.f32.gmra.mrb[0].mxu0 %v1387
    %v2136 = vpop.f32.mrb[0].mxu0
    %v2137 = vadd.f32 %v2066, %v2136
    %v2138 = vpop.f32.mrb[0].mxu0
    %v2139 = vadd.f32 %v2068, %v2138
    %2140 = vdwg.mxu0
    %2141 = vmatprep.subr.mxu0 %v1776
    %2142 = vmatpush1.msra.mxu0 %v1775
    %2143 = vmatprep.subr.mxu0 %v1782
    %2144 = vmatpush1.msra.mxu0 %v1781
    %2145 = vmatprep.subr.mxu0 %v1788
    %2146 = vmatpush1.msra.mxu0 %v1787
    %2147 = vmatprep.subr.mxu0 %v1794
    %2148 = vmatpush1.msra.mxu0 %v1793
    %2149 = vmatprep.subr.mxu0 %v1800
    %2150 = vmatpush1.msra.mxu0 %v1799
    %2151 = vmatprep.subr.mxu0 %v1806
    %2152 = vmatpush1.msra.mxu0 %v1805
    %2153 = vmatprep.subr.mxu0 %v1812
    %2154 = vmatpush1.msra.mxu0 %v1811
    %2155 = vmatprep.subr.mxu0 %v1818
    %2156 = vmatpush1.msra.mxu0 %v1817
    %2157 = vmatprep.subr.mxu0 %v1824
    %2158 = vmatpush1.msra.mxu0 %v1823
    %2159 = vmatprep.subr.mxu0 %v1830
    %2160 = vmatpush1.msra.mxu0 %v1829
    %2161 = vmatprep.subr.mxu0 %v1836
    %2162 = vmatpush1.msra.mxu0 %v1835
    %2163 = vmatprep.subr.mxu0 %v1842
    %2164 = vmatpush1.msra.mxu0 %v1841
    %2165 = vmatprep.subr.mxu0 %v1848
    %2166 = vmatpush1.msra.mxu0 %v1847
    %2167 = vmatprep.subr.mxu0 %v1854
    %2168 = vmatpush1.msra.mxu0 %v1853
    %2169 = vmatprep.subr.mxu0 %v1860
    %2170 = vmatpush1.msra.mxu0 %v1859
    %2171 = vmatprep.subr.mxu0 %v1866
    %2172 = vmatpush1.msra.mxu0 %v1865
    %2173 = vmatprep.subr.mxu0 %v1872
    %2174 = vmatpush1.msra.mxu0 %v1871
    %2175 = vmatprep.subr.mxu0 %v1878
    %2176 = vmatpush1.msra.mxu0 %v1877
    %2177 = vmatprep.subr.mxu0 %v1884
    %2178 = vmatpush1.msra.mxu0 %v1883
    %2179 = vmatprep.subr.mxu0 %v1890
    %2180 = vmatpush1.msra.mxu0 %v1889
    %2181 = vmatprep.subr.mxu0 %v1896
    %2182 = vmatpush1.msra.mxu0 %v1895
    %2183 = vmatprep.subr.mxu0 %v1902
    %2184 = vmatpush1.msra.mxu0 %v1901
    %2185 = vmatprep.subr.mxu0 %v1908
    %2186 = vmatpush1.msra.mxu0 %v1907
    %2187 = vmatprep.subr.mxu0 %v1914
    %2188 = vmatpush1.msra.mxu0 %v1913
    %2189 = vmatprep.subr.mxu0 %v1920
    %2190 = vmatpush1.msra.mxu0 %v1919
    %2191 = vmatprep.subr.mxu0 %v1926
    %2192 = vmatpush1.msra.mxu0 %v1925
    %2193 = vmatprep.subr.mxu0 %v1932
    %2194 = vmatpush1.msra.mxu0 %v1931
    %2195 = vmatprep.subr.mxu0 %v1938
    %2196 = vmatpush1.msra.mxu0 %v1937
    %2197 = vmatprep.subr.mxu0 %v1944
    %2198 = vmatpush1.msra.mxu0 %v1943
    %2199 = vmatprep.subr.mxu0 %v1950
    %2200 = vmatpush1.msra.mxu0 %v1949
    %2201 = vmatprep.subr.mxu0 %v1956
    %2202 = vmatpush1.msra.mxu0 %v1955
    %2203 = vmatprep.subr.mxu0 %v1962
    %2204 = vmatpush1.msra.mxu0 %v1961
    %2205 = vmatprep.mubr.f32.mxu0 %v1390
    %2206 = vmatmul.mubr.f32.gmra.mrb[0].mxu0 %v1389
    %v2207 = vpop.f32.mrb[0].mxu0
    %v2208 = vadd.f32 %v2137, %v2207
    %v2209 = vpop.f32.mrb[0].mxu0
    %v2210 = vadd.f32 %v2139, %v2209
    %2211 = vdwg.mxu0
    %2212 = vmatprep.subr.mxu0 %v1394
    %2213 = vmatpush1.msra.mxu0 %v1393
    %2214 = vmatprep.subr.mxu0 %v1400
    %2215 = vmatpush1.msra.mxu0 %v1399
    %2216 = vmatprep.subr.mxu0 %v1406
    %2217 = vmatpush1.msra.mxu0 %v1405
    %2218 = vmatprep.subr.mxu0 %v1412
    %2219 = vmatpush1.msra.mxu0 %v1411
    %2220 = vmatprep.subr.mxu0 %v1418
    %2221 = vmatpush1.msra.mxu0 %v1417
    %2222 = vmatprep.subr.mxu0 %v1424
    %2223 = vmatpush1.msra.mxu0 %v1423
    %2224 = vmatprep.subr.mxu0 %v1430
    %2225 = vmatpush1.msra.mxu0 %v1429
    %2226 = vmatprep.subr.mxu0 %v1436
    %2227 = vmatpush1.msra.mxu0 %v1435
    %2228 = vmatprep.subr.mxu0 %v1442
    %2229 = vmatpush1.msra.mxu0 %v1441
    %2230 = vmatprep.subr.mxu0 %v1448
    %2231 = vmatpush1.msra.mxu0 %v1447
    %2232 = vmatprep.subr.mxu0 %v1454
    %2233 = vmatpush1.msra.mxu0 %v1453
    %2234 = vmatprep.subr.mxu0 %v1460
    %2235 = vmatpush1.msra.mxu0 %v1459
    %2236 = vmatprep.subr.mxu0 %v1466
    %2237 = vmatpush1.msra.mxu0 %v1465
    %2238 = vmatprep.subr.mxu0 %v1472
    %2239 = vmatpush1.msra.mxu0 %v1471
    %2240 = vmatprep.subr.mxu0 %v1478
    %2241 = vmatpush1.msra.mxu0 %v1477
    %2242 = vmatprep.subr.mxu0 %v1484
    %2243 = vmatpush1.msra.mxu0 %v1483
    %2244 = vmatprep.subr.mxu0 %v1490
    %2245 = vmatpush1.msra.mxu0 %v1489
    %2246 = vmatprep.subr.mxu0 %v1496
    %2247 = vmatpush1.msra.mxu0 %v1495
    %2248 = vmatprep.subr.mxu0 %v1502
    %2249 = vmatpush1.msra.mxu0 %v1501
    %2250 = vmatprep.subr.mxu0 %v1508
    %2251 = vmatpush1.msra.mxu0 %v1507
    %2252 = vmatprep.subr.mxu0 %v1514
    %2253 = vmatpush1.msra.mxu0 %v1513
    %2254 = vmatprep.subr.mxu0 %v1520
    %2255 = vmatpush1.msra.mxu0 %v1519
    %2256 = vmatprep.subr.mxu0 %v1526
    %2257 = vmatpush1.msra.mxu0 %v1525
    %2258 = vmatprep.subr.mxu0 %v1532
    %2259 = vmatpush1.msra.mxu0 %v1531
    %2260 = vmatprep.subr.mxu0 %v1538
    %2261 = vmatpush1.msra.mxu0 %v1537
    %2262 = vmatprep.subr.mxu0 %v1544
    %2263 = vmatpush1.msra.mxu0 %v1543
    %2264 = vmatprep.subr.mxu0 %v1550
    %2265 = vmatpush1.msra.mxu0 %v1549
    %2266 = vmatprep.subr.mxu0 %v1556
    %2267 = vmatpush1.msra.mxu0 %v1555
    %2268 = vmatprep.subr.mxu0 %v1562
    %2269 = vmatpush1.msra.mxu0 %v1561
    %2270 = vmatprep.subr.mxu0 %v1568
    %2271 = vmatpush1.msra.mxu0 %v1567
    %2272 = vmatprep.subr.mxu0 %v1574
    %2273 = vmatpush1.msra.mxu0 %v1573
    %2274 = vmatprep.subr.mxu0 %v1580
    %2275 = vmatpush1.msra.mxu0 %v1579
    %2276 = vmatprep.mubr.f32.mxu0 %v1386
    %2277 = vmatmul.mubr.f32.gmra.mrb[0].mxu0 %v1385
    %v2278 = vpop.f32.mrb[0].mxu0
    %v2279 = vadd.f32 %v1980, %v2278
    %v2280 = vpop.f32.mrb[0].mxu0
    %v2281 = vadd.f32 %v1984, %v2280
    %2282 = vdwg.mxu0
    %2283 = vmatprep.subr.mxu0 %v1586
    %2284 = vmatpush1.msra.mxu0 %v1585
    %2285 = vmatprep.subr.mxu0 %v1592
    %2286 = vmatpush1.msra.mxu0 %v1591
    %2287 = vmatprep.subr.mxu0 %v1598
    %2288 = vmatpush1.msra.mxu0 %v1597
    %2289 = vmatprep.subr.mxu0 %v1604
    %2290 = vmatpush1.msra.mxu0 %v1603
    %2291 = vmatprep.subr.mxu0 %v1610
    %2292 = vmatpush1.msra.mxu0 %v1609
    %2293 = vmatprep.subr.mxu0 %v1616
    %2294 = vmatpush1.msra.mxu0 %v1615
    %2295 = vmatprep.subr.mxu0 %v1622
    %2296 = vmatpush1.msra.mxu0 %v1621
    %2297 = vmatprep.subr.mxu0 %v1628
    %2298 = vmatpush1.msra.mxu0 %v1627
    %2299 = vmatprep.subr.mxu0 %v1634
    %2300 = vmatpush1.msra.mxu0 %v1633
    %2301 = vmatprep.subr.mxu0 %v1640
    %2302 = vmatpush1.msra.mxu0 %v1639
    %2303 = vmatprep.subr.mxu0 %v1646
    %2304 = vmatpush1.msra.mxu0 %v1645
    %2305 = vmatprep.subr.mxu0 %v1652
    %2306 = vmatpush1.msra.mxu0 %v1651
    %2307 = vmatprep.subr.mxu0 %v1658
    %2308 = vmatpush1.msra.mxu0 %v1657
    %2309 = vmatprep.subr.mxu0 %v1664
    %2310 = vmatpush1.msra.mxu0 %v1663
    %2311 = vmatprep.subr.mxu0 %v1670
    %2312 = vmatpush1.msra.mxu0 %v1669
    %2313 = vmatprep.subr.mxu0 %v1676
    %2314 = vmatpush1.msra.mxu0 %v1675
    %2315 = vmatprep.subr.mxu0 %v1682
    %2316 = vmatpush1.msra.mxu0 %v1681
    %2317 = vmatprep.subr.mxu0 %v1688
    %2318 = vmatpush1.msra.mxu0 %v1687
    %2319 = vmatprep.subr.mxu0 %v1694
    %2320 = vmatpush1.msra.mxu0 %v1693
    %2321 = vmatprep.subr.mxu0 %v1700
    %2322 = vmatpush1.msra.mxu0 %v1699
    %2323 = vmatprep.subr.mxu0 %v1706
    %2324 = vmatpush1.msra.mxu0 %v1705
    %2325 = vmatprep.subr.mxu0 %v1712
    %2326 = vmatpush1.msra.mxu0 %v1711
    %2327 = vmatprep.subr.mxu0 %v1718
    %2328 = vmatpush1.msra.mxu0 %v1717
    %2329 = vmatprep.subr.mxu0 %v1724
    %2330 = vmatpush1.msra.mxu0 %v1723
    %2331 = vmatprep.subr.mxu0 %v1730
    %2332 = vmatpush1.msra.mxu0 %v1729
    %2333 = vmatprep.subr.mxu0 %v1736
    %2334 = vmatpush1.msra.mxu0 %v1735
    %2335 = vmatprep.subr.mxu0 %v1742
    %2336 = vmatpush1.msra.mxu0 %v1741
    %2337 = vmatprep.subr.mxu0 %v1748
    %2338 = vmatpush1.msra.mxu0 %v1747
    %2339 = vmatprep.subr.mxu0 %v1754
    %2340 = vmatpush1.msra.mxu0 %v1753
    %2341 = vmatprep.subr.mxu0 %v1760
    %2342 = vmatpush1.msra.mxu0 %v1759
    %2343 = vmatprep.subr.mxu0 %v1766
    %2344 = vmatpush1.msra.mxu0 %v1765
    %2345 = vmatprep.subr.mxu0 %v1772
    %2346 = vmatpush1.msra.mxu0 %v1771
    %2347 = vmatprep.mubr.f32.mxu0 %v1388
    %2348 = vmatmul.mubr.f32.gmra.mrb[0].mxu0 %v1387
    %v2349 = vpop.f32.mrb[0].mxu0
    %v2350 = vadd.f32 %v2279, %v2349
    %v2351 = vpop.f32.mrb[0].mxu0
    %v2352 = vadd.f32 %v2281, %v2351
    %2353 = vdwg.mxu0
    %2354 = vmatprep.subr.mxu0 %v1778
    %2355 = vmatpush1.msra.mxu0 %v1777
    %2356 = vmatprep.subr.mxu0 %v1784
    %2357 = vmatpush1.msra.mxu0 %v1783
    %2358 = vmatprep.subr.mxu0 %v1790
    %2359 = vmatpush1.msra.mxu0 %v1789
    %2360 = vmatprep.subr.mxu0 %v1796
    %2361 = vmatpush1.msra.mxu0 %v1795
    %2362 = vmatprep.subr.mxu0 %v1802
    %2363 = vmatpush1.msra.mxu0 %v1801
    %2364 = vmatprep.subr.mxu0 %v1808
    %2365 = vmatpush1.msra.mxu0 %v1807
    %2366 = vmatprep.subr.mxu0 %v1814
    %2367 = vmatpush1.msra.mxu0 %v1813
    %2368 = vmatprep.subr.mxu0 %v1820
    %2369 = vmatpush1.msra.mxu0 %v1819
    %2370 = vmatprep.subr.mxu0 %v1826
    %2371 = vmatpush1.msra.mxu0 %v1825
    %2372 = vmatprep.subr.mxu0 %v1832
    %2373 = vmatpush1.msra.mxu0 %v1831
    %2374 = vmatprep.subr.mxu0 %v1838
    %2375 = vmatpush1.msra.mxu0 %v1837
    %2376 = vmatprep.subr.mxu0 %v1844
    %2377 = vmatpush1.msra.mxu0 %v1843
    %2378 = vmatprep.subr.mxu0 %v1850
    %2379 = vmatpush1.msra.mxu0 %v1849
    %2380 = vmatprep.subr.mxu0 %v1856
    %2381 = vmatpush1.msra.mxu0 %v1855
    %2382 = vmatprep.subr.mxu0 %v1862
    %2383 = vmatpush1.msra.mxu0 %v1861
    %2384 = vmatprep.subr.mxu0 %v1868
    %2385 = vmatpush1.msra.mxu0 %v1867
    %2386 = vmatprep.subr.mxu0 %v1874
    %2387 = vmatpush1.msra.mxu0 %v1873
    %2388 = vmatprep.subr.mxu0 %v1880
    %2389 = vmatpush1.msra.mxu0 %v1879
    %2390 = vmatprep.subr.mxu0 %v1886
    %2391 = vmatpush1.msra.mxu0 %v1885
    %2392 = vmatprep.subr.mxu0 %v1892
    %2393 = vmatpush1.msra.mxu0 %v1891
    %2394 = vmatprep.subr.mxu0 %v1898
    %2395 = vmatpush1.msra.mxu0 %v1897
    %2396 = vmatprep.subr.mxu0 %v1904
    %2397 = vmatpush1.msra.mxu0 %v1903
    %2398 = vmatprep.subr.mxu0 %v1910
    %2399 = vmatpush1.msra.mxu0 %v1909
    %2400 = vmatprep.subr.mxu0 %v1916
    %2401 = vmatpush1.msra.mxu0 %v1915
    %2402 = vmatprep.subr.mxu0 %v1922
    %2403 = vmatpush1.msra.mxu0 %v1921
    %2404 = vmatprep.subr.mxu0 %v1928
    %2405 = vmatpush1.msra.mxu0 %v1927
    %2406 = vmatprep.subr.mxu0 %v1934
    %2407 = vmatpush1.msra.mxu0 %v1933
    %2408 = vmatprep.subr.mxu0 %v1940
    %2409 = vmatpush1.msra.mxu0 %v1939
    %2410 = vmatprep.subr.mxu0 %v1946
    %2411 = vmatpush1.msra.mxu0 %v1945
    %2412 = vmatprep.subr.mxu0 %v1952
    %2413 = vmatpush1.msra.mxu0 %v1951
    %2414 = vmatprep.subr.mxu0 %v1958
    %2415 = vmatpush1.msra.mxu0 %v1957
    %2416 = vmatprep.subr.mxu0 %v1964
    %2417 = vmatpush1.msra.mxu0 %v1963
    %2418 = vmatprep.mubr.f32.mxu0 %v1390
    %2419 = vmatmul.mubr.f32.gmra.mrb[0].mxu0 %v1389
    %v2420 = vpop.f32.mrb[0].mxu0
    %v2421 = vadd.f32 %v2350, %v2420
    %v2422 = vpop.f32.mrb[0].mxu0
    %v2423 = vadd.f32 %v2352, %v2422
    %2424 = vdwg.mxu0
    %2425 = vmatprep.subr.mxu0 %v1396
    %2426 = vmatpush1.msra.mxu0 %v1395
    %2427 = vmatprep.subr.mxu0 %v1402
    %2428 = vmatpush1.msra.mxu0 %v1401
    %2429 = vmatprep.subr.mxu0 %v1408
    %2430 = vmatpush1.msra.mxu0 %v1407
    %2431 = vmatprep.subr.mxu0 %v1414
    %2432 = vmatpush1.msra.mxu0 %v1413
    %2433 = vmatprep.subr.mxu0 %v1420
    %2434 = vmatpush1.msra.mxu0 %v1419
    %2435 = vmatprep.subr.mxu0 %v1426
    %2436 = vmatpush1.msra.mxu0 %v1425
    %2437 = vmatprep.subr.mxu0 %v1432
    %2438 = vmatpush1.msra.mxu0 %v1431
    %2439 = vmatprep.subr.mxu0 %v1438
    %2440 = vmatpush1.msra.mxu0 %v1437
    %2441 = vmatprep.subr.mxu0 %v1444
    %2442 = vmatpush1.msra.mxu0 %v1443
    %2443 = vmatprep.subr.mxu0 %v1450
    %2444 = vmatpush1.msra.mxu0 %v1449
    %2445 = vmatprep.subr.mxu0 %v1456
    %2446 = vmatpush1.msra.mxu0 %v1455
    %2447 = vmatprep.subr.mxu0 %v1462
    %2448 = vmatpush1.msra.mxu0 %v1461
    %2449 = vmatprep.subr.mxu0 %v1468
    %2450 = vmatpush1.msra.mxu0 %v1467
    %2451 = vmatprep.subr.mxu0 %v1474
    %2452 = vmatpush1.msra.mxu0 %v1473
    %2453 = vmatprep.subr.mxu0 %v1480
    %2454 = vmatpush1.msra.mxu0 %v1479
    %2455 = vmatprep.subr.mxu0 %v1486
    %2456 = vmatpush1.msra.mxu0 %v1485
    %2457 = vmatprep.subr.mxu0 %v1492
    %2458 = vmatpush1.msra.mxu0 %v1491
    %2459 = vmatprep.subr.mxu0 %v1498
    %2460 = vmatpush1.msra.mxu0 %v1497
    %2461 = vmatprep.subr.mxu0 %v1504
    %2462 = vmatpush1.msra.mxu0 %v1503
    %2463 = vmatprep.subr.mxu0 %v1510
    %2464 = vmatpush1.msra.mxu0 %v1509
    %2465 = vmatprep.subr.mxu0 %v1516
    %2466 = vmatpush1.msra.mxu0 %v1515
    %2467 = vmatprep.subr.mxu0 %v1522
    %2468 = vmatpush1.msra.mxu0 %v1521
    %2469 = vmatprep.subr.mxu0 %v1528
    %2470 = vmatpush1.msra.mxu0 %v1527
    %2471 = vmatprep.subr.mxu0 %v1534
    %2472 = vmatpush1.msra.mxu0 %v1533
    %2473 = vmatprep.subr.mxu0 %v1540
    %2474 = vmatpush1.msra.mxu0 %v1539
    %2475 = vmatprep.subr.mxu0 %v1546
    %2476 = vmatpush1.msra.mxu0 %v1545
    %2477 = vmatprep.subr.mxu0 %v1552
    %2478 = vmatpush1.msra.mxu0 %v1551
    %2479 = vmatprep.subr.mxu0 %v1558
    %2480 = vmatpush1.msra.mxu0 %v1557
    %2481 = vmatprep.subr.mxu0 %v1564
    %2482 = vmatpush1.msra.mxu0 %v1563
    %2483 = vmatprep.subr.mxu0 %v1570
    %2484 = vmatpush1.msra.mxu0 %v1569
    %2485 = vmatprep.subr.mxu0 %v1576
    %2486 = vmatpush1.msra.mxu0 %v1575
    %2487 = vmatprep.subr.mxu0 %v1582
    %2488 = vmatpush1.msra.mxu0 %v1581
    %2489 = vmatprep.mubr.f32.mxu0 %v1386
    %2490 = vmatmul.mubr.f32.gmra.mrb[0].mxu0 %v1385
    %v2491 = vpop.f32.mrb[0].mxu0
    %v2492 = vadd.f32 %v1988, %v2491
    %v2493 = vpop.f32.mrb[0].mxu0
    %v2494 = vadd.f32 %v1992, %v2493
    %2495 = vdwg.mxu0
    %2496 = vmatprep.subr.mxu0 %v1588
    %2497 = vmatpush1.msra.mxu0 %v1587
    %2498 = vmatprep.subr.mxu0 %v1594
    %2499 = vmatpush1.msra.mxu0 %v1593
    %2500 = vmatprep.subr.mxu0 %v1600
    %2501 = vmatpush1.msra.mxu0 %v1599
    %2502 = vmatprep.subr.mxu0 %v1606
    %2503 = vmatpush1.msra.mxu0 %v1605
    %2504 = vmatprep.subr.mxu0 %v1612
    %2505 = vmatpush1.msra.mxu0 %v1611
    %2506 = vmatprep.subr.mxu0 %v1618
    %2507 = vmatpush1.msra.mxu0 %v1617
    %2508 = vmatprep.subr.mxu0 %v1624
    %2509 = vmatpush1.msra.mxu0 %v1623
    %2510 = vmatprep.subr.mxu0 %v1630
    %2511 = vmatpush1.msra.mxu0 %v1629
    %2512 = vmatprep.subr.mxu0 %v1636
    %2513 = vmatpush1.msra.mxu0 %v1635
    %2514 = vmatprep.subr.mxu0 %v1642
    %2515 = vmatpush1.msra.mxu0 %v1641
    %2516 = vmatprep.subr.mxu0 %v1648
    %2517 = vmatpush1.msra.mxu0 %v1647
    %2518 = vmatprep.subr.mxu0 %v1654
    %2519 = vmatpush1.msra.mxu0 %v1653
    %2520 = vmatprep.subr.mxu0 %v1660
    %2521 = vmatpush1.msra.mxu0 %v1659
    %2522 = vmatprep.subr.mxu0 %v1666
    %2523 = vmatpush1.msra.mxu0 %v1665
    %2524 = vmatprep.subr.mxu0 %v1672
    %2525 = vmatpush1.msra.mxu0 %v1671
    %2526 = vmatprep.subr.mxu0 %v1678
    %2527 = vmatpush1.msra.mxu0 %v1677
    %2528 = vmatprep.subr.mxu0 %v1684
    %2529 = vmatpush1.msra.mxu0 %v1683
    %2530 = vmatprep.subr.mxu0 %v1690
    %2531 = vmatpush1.msra.mxu0 %v1689
    %2532 = vmatprep.subr.mxu0 %v1696
    %2533 = vmatpush1.msra.mxu0 %v1695
    %2534 = vmatprep.subr.mxu0 %v1702
    %2535 = vmatpush1.msra.mxu0 %v1701
    %2536 = vmatprep.subr.mxu0 %v1708
    %2537 = vmatpush1.msra.mxu0 %v1707
    %2538 = vmatprep.subr.mxu0 %v1714
    %2539 = vmatpush1.msra.mxu0 %v1713
    %2540 = vmatprep.subr.mxu0 %v1720
    %2541 = vmatpush1.msra.mxu0 %v1719
    %2542 = vmatprep.subr.mxu0 %v1726
    %2543 = vmatpush1.msra.mxu0 %v1725
    %2544 = vmatprep.subr.mxu0 %v1732
    %2545 = vmatpush1.msra.mxu0 %v1731
    %2546 = vmatprep.subr.mxu0 %v1738
    %2547 = vmatpush1.msra.mxu0 %v1737
    %2548 = vmatprep.subr.mxu0 %v1744
    %2549 = vmatpush1.msra.mxu0 %v1743
    %2550 = vmatprep.subr.mxu0 %v1750
    %2551 = vmatpush1.msra.mxu0 %v1749
    %2552 = vmatprep.subr.mxu0 %v1756
    %2553 = vmatpush1.msra.mxu0 %v1755
    %2554 = vmatprep.subr.mxu0 %v1762
    %2555 = vmatpush1.msra.mxu0 %v1761
    %2556 = vmatprep.subr.mxu0 %v1768
    %2557 = vmatpush1.msra.mxu0 %v1767
    %2558 = vmatprep.subr.mxu0 %v1774
    %2559 = vmatpush1.msra.mxu0 %v1773
    %2560 = vmatprep.mubr.f32.mxu0 %v1388
    %2561 = vmatmul.mubr.f32.gmra.mrb[0].mxu0 %v1387
    %v2562 = vpop.f32.mrb[0].mxu0
    %v2563 = vadd.f32 %v2492, %v2562
    %v2564 = vpop.f32.mrb[0].mxu0
    %v2565 = vadd.f32 %v2494, %v2564
    %2566 = vdwg.mxu0
    %2567 = vmatprep.subr.mxu0 %v1780
    %2568 = vmatpush1.msra.mxu0 %v1779
    %2569 = vmatprep.subr.mxu0 %v1786
    %2570 = vmatpush1.msra.mxu0 %v1785
    %2571 = vmatprep.subr.mxu0 %v1792
    %2572 = vmatpush1.msra.mxu0 %v1791
    %2573 = vmatprep.subr.mxu0 %v1798
    %2574 = vmatpush1.msra.mxu0 %v1797
    %2575 = vmatprep.subr.mxu0 %v1804
    %2576 = vmatpush1.msra.mxu0 %v1803
    %2577 = vmatprep.subr.mxu0 %v1810
    %2578 = vmatpush1.msra.mxu0 %v1809
    %2579 = vmatprep.subr.mxu0 %v1816
    %2580 = vmatpush1.msra.mxu0 %v1815
    %2581 = vmatprep.subr.mxu0 %v1822
    %2582 = vmatpush1.msra.mxu0 %v1821
    %2583 = vmatprep.subr.mxu0 %v1828
    %2584 = vmatpush1.msra.mxu0 %v1827
    %2585 = vmatprep.subr.mxu0 %v1834
    %2586 = vmatpush1.msra.mxu0 %v1833
    %2587 = vmatprep.subr.mxu0 %v1840
    %2588 = vmatpush1.msra.mxu0 %v1839
    %2589 = vmatprep.subr.mxu0 %v1846
    %2590 = vmatpush1.msra.mxu0 %v1845
    %2591 = vmatprep.subr.mxu0 %v1852
    %2592 = vmatpush1.msra.mxu0 %v1851
    %2593 = vmatprep.subr.mxu0 %v1858
    %2594 = vmatpush1.msra.mxu0 %v1857
    %2595 = vmatprep.subr.mxu0 %v1864
    %2596 = vmatpush1.msra.mxu0 %v1863
    %2597 = vmatprep.subr.mxu0 %v1870
    %2598 = vmatpush1.msra.mxu0 %v1869
    %2599 = vmatprep.subr.mxu0 %v1876
    %2600 = vmatpush1.msra.mxu0 %v1875
    %2601 = vmatprep.subr.mxu0 %v1882
    %2602 = vmatpush1.msra.mxu0 %v1881
    %2603 = vmatprep.subr.mxu0 %v1888
    %2604 = vmatpush1.msra.mxu0 %v1887
    %2605 = vmatprep.subr.mxu0 %v1894
    %2606 = vmatpush1.msra.mxu0 %v1893
    %2607 = vmatprep.subr.mxu0 %v1900
    %2608 = vmatpush1.msra.mxu0 %v1899
    %2609 = vmatprep.subr.mxu0 %v1906
    %2610 = vmatpush1.msra.mxu0 %v1905
    %2611 = vmatprep.subr.mxu0 %v1912
    %2612 = vmatpush1.msra.mxu0 %v1911
    %2613 = vmatprep.subr.mxu0 %v1918
    %2614 = vmatpush1.msra.mxu0 %v1917
    %2615 = vmatprep.subr.mxu0 %v1924
    %2616 = vmatpush1.msra.mxu0 %v1923
    %2617 = vmatprep.subr.mxu0 %v1930
    %2618 = vmatpush1.msra.mxu0 %v1929
    %2619 = vmatprep.subr.mxu0 %v1936
    %2620 = vmatpush1.msra.mxu0 %v1935
    %2621 = vmatprep.subr.mxu0 %v1942
    %2622 = vmatpush1.msra.mxu0 %v1941
    %2623 = vmatprep.subr.mxu0 %v1948
    %2624 = vmatpush1.msra.mxu0 %v1947
    %2625 = vmatprep.subr.mxu0 %v1954
    %2626 = vmatpush1.msra.mxu0 %v1953
    %2627 = vmatprep.subr.mxu0 %v1960
    %2628 = vmatpush1.msra.mxu0 %v1959
    %2629 = vmatprep.subr.mxu0 %v1966
    %2630 = vmatpush1.msra.mxu0 %v1965
    %2631 = vmatprep.mubr.f32.mxu0 %v1390
    %2632 = vmatmul.mubr.f32.gmra.mrb[0].mxu0 %v1389
    %v2633 = vpop.f32.mrb[0].mxu0
    %v2634 = vadd.f32 %v2563, %v2633
    %v2635 = vpop.f32.mrb[0].mxu0
    %v2636 = vadd.f32 %v2565, %v2635
    %2637 = vdwg.mxu0
    %v2638 = vmax.f32 %v2208, 0.0
    %v2639 = vmax.f32 %v2210, 0.0
    %v2640 = vmax.f32 %v2421, 0.0
    %v2641 = vmax.f32 %v2423, 0.0
    %v2642 = vmax.f32 %v2634, 0.0
    %v2643 = vmax.f32 %v2636, 0.0
    %v2644 = vld [vmem:[#allocation13] sm:$0xff]
    %v2645 = vld [vmem:[#allocation13 + $0x8] sm:$0xff]
    %v2646 = vld [vmem:[#allocation13 + $0x10] sm:$0xff]
    %v2647 = vld [vmem:[#allocation13 + $0x18] sm:$0xff]
    %v2648 = vld [vmem:[#allocation13 + $0x20] sm:$0xff]
    %v2649 = vld [vmem:[#allocation13 + $0x28] sm:$0xff]
    %v2650 = vld [vmem:[#allocation13 + $0x30] sm:$0xff]
    %v2651 = vld [vmem:[#allocation13 + $0x38] sm:$0xff]
    %v2652 = vld [vmem:[#allocation13 + $0x40] sm:$0xff]
    %v2653 = vld [vmem:[#allocation13 + $0x48] sm:$0xff]
    %v2654 = vld [vmem:[#allocation13 + $0x50] sm:$0xff]
    %v2655 = vld [vmem:[#allocation13 + $0x58] sm:$0xff]
    %v2656 = vld [vmem:[#allocation13 + $0x60] sm:$0xff]
    %v2657 = vld [vmem:[#allocation13 + $0x68] sm:$0xff]
    %v2658 = vld [vmem:[#allocation13 + $0x70] sm:$0xff]
    %v2659 = vld [vmem:[#allocation13 + $0x78] sm:$0xff]
    %v2660 = vld [vmem:[#allocation13 + $0x80] sm:$0xff]
    %v2661 = vld [vmem:[#allocation13 + $0x88] sm:$0xff]
    %v2662 = vld [vmem:[#allocation13 + $0x90] sm:$0xff]
    %v2663 = vld [vmem:[#allocation13 + $0x98] sm:$0xff]
    %v2664 = vld [vmem:[#allocation13 + $0xa0] sm:$0xff]
    %v2665 = vld [vmem:[#allocation13 + $0xa8] sm:$0xff]
    %v2666 = vld [vmem:[#allocation13 + $0xb0] sm:$0xff]
    %v2667 = vld [vmem:[#allocation13 + $0xb8] sm:$0xff]
    %v2668 = vld [vmem:[#allocation13 + $0xc0] sm:$0xff]
    %v2669 = vld [vmem:[#allocation13 + $0xc8] sm:$0xff]
    %v2670 = vld [vmem:[#allocation13 + $0xd0] sm:$0xff]
    %v2671 = vld [vmem:[#allocation13 + $0xd8] sm:$0xff]
    %v2672 = vld [vmem:[#allocation13 + $0xe0] sm:$0xff]
    %v2673 = vld [vmem:[#allocation13 + $0xe8] sm:$0xff]
    %v2674 = vld [vmem:[#allocation13 + $0xf0] sm:$0xff]
    %v2675 = vld [vmem:[#allocation13 + $0xf8] sm:$0xff]
    %v2676 = vld [vmem:[#allocation13 + $0x100] sm:$0xff]
    %v2677 = vld [vmem:[#allocation13 + $0x108] sm:$0xff]
    %v2678 = vld [vmem:[#allocation13 + $0x110] sm:$0xff]
    %v2679 = vld [vmem:[#allocation13 + $0x118] sm:$0xff]
    %v2680 = vld [vmem:[#allocation13 + $0x120] sm:$0xff]
    %v2681 = vld [vmem:[#allocation13 + $0x128] sm:$0xff]
    %v2682 = vld [vmem:[#allocation13 + $0x130] sm:$0xff]
    %v2683 = vld [vmem:[#allocation13 + $0x138] sm:$0xff]
    %v2684 = vld [vmem:[#allocation13 + $0x140] sm:$0xff]
    %v2685 = vld [vmem:[#allocation13 + $0x148] sm:$0xff]
    %v2686 = vld [vmem:[#allocation13 + $0x150] sm:$0xff]
    %v2687 = vld [vmem:[#allocation13 + $0x158] sm:$0xff]
    %v2688 = vld [vmem:[#allocation13 + $0x160] sm:$0xff]
    %v2689 = vld [vmem:[#allocation13 + $0x168] sm:$0xff]
    %v2690 = vld [vmem:[#allocation13 + $0x170] sm:$0xff]
    %v2691 = vld [vmem:[#allocation13 + $0x178] sm:$0xff]
    %v2692 = vld [vmem:[#allocation13 + $0x180] sm:$0xff]
    %v2693 = vld [vmem:[#allocation13 + $0x188] sm:$0xff]
    %v2694 = vld [vmem:[#allocation13 + $0x190] sm:$0xff]
    %v2695 = vld [vmem:[#allocation13 + $0x198] sm:$0xff]
    %v2696 = vld [vmem:[#allocation13 + $0x1a0] sm:$0xff]
    %v2697 = vld [vmem:[#allocation13 + $0x1a8] sm:$0xff]
    %v2698 = vld [vmem:[#allocation13 + $0x1b0] sm:$0xff]
    %v2699 = vld [vmem:[#allocation13 + $0x1b8] sm:$0xff]
    %v2700 = vld [vmem:[#allocation13 + $0x1c0] sm:$0xff]
    %v2701 = vld [vmem:[#allocation13 + $0x1c8] sm:$0xff]
    %v2702 = vld [vmem:[#allocation13 + $0x1d0] sm:$0xff]
    %v2703 = vld [vmem:[#allocation13 + $0x1d8] sm:$0xff]
    %v2704 = vld [vmem:[#allocation13 + $0x1e0] sm:$0xff]
    %v2705 = vld [vmem:[#allocation13 + $0x1e8] sm:$0xff]
    %v2706 = vld [vmem:[#allocation13 + $0x1f0] sm:$0xff]
    %v2707 = vld [vmem:[#allocation13 + $0x1f8] sm:$0xff]
    %v2708 = vld [vmem:[#allocation13 + $0x200] sm:$0xff]
    %v2709 = vld [vmem:[#allocation13 + $0x208] sm:$0xff]
    %v2710 = vld [vmem:[#allocation13 + $0x210] sm:$0xff]
    %v2711 = vld [vmem:[#allocation13 + $0x218] sm:$0xff]
    %v2712 = vld [vmem:[#allocation13 + $0x220] sm:$0xff]
    %v2713 = vld [vmem:[#allocation13 + $0x228] sm:$0xff]
    %v2714 = vld [vmem:[#allocation13 + $0x230] sm:$0xff]
    %v2715 = vld [vmem:[#allocation13 + $0x238] sm:$0xff]
    %v2716 = vld [vmem:[#allocation13 + $0x240] sm:$0xff]
    %v2717 = vld [vmem:[#allocation13 + $0x248] sm:$0xff]
    %v2718 = vld [vmem:[#allocation13 + $0x250] sm:$0xff]
    %v2719 = vld [vmem:[#allocation13 + $0x258] sm:$0xff]
    %v2720 = vld [vmem:[#allocation13 + $0x260] sm:$0xff]
    %v2721 = vld [vmem:[#allocation13 + $0x268] sm:$0xff]
    %v2722 = vld [vmem:[#allocation13 + $0x270] sm:$0xff]
    %v2723 = vld [vmem:[#allocation13 + $0x278] sm:$0xff]
    %v2724 = vld [vmem:[#allocation13 + $0x280] sm:$0xff]
    %v2725 = vld [vmem:[#allocation13 + $0x288] sm:$0xff]
    %v2726 = vld [vmem:[#allocation13 + $0x290] sm:$0xff]
    %v2727 = vld [vmem:[#allocation13 + $0x298] sm:$0xff]
    %v2728 = vld [vmem:[#allocation13 + $0x2a0] sm:$0xff]
    %v2729 = vld [vmem:[#allocation13 + $0x2a8] sm:$0xff]
    %v2730 = vld [vmem:[#allocation13 + $0x2b0] sm:$0xff]
    %v2731 = vld [vmem:[#allocation13 + $0x2b8] sm:$0xff]
    %v2732 = vld [vmem:[#allocation13 + $0x2c0] sm:$0xff]
    %v2733 = vld [vmem:[#allocation13 + $0x2c8] sm:$0xff]
    %v2734 = vld [vmem:[#allocation13 + $0x2d0] sm:$0xff]
    %v2735 = vld [vmem:[#allocation13 + $0x2d8] sm:$0xff]
    %v2736 = vld [vmem:[#allocation13 + $0x2e0] sm:$0xff]
    %v2737 = vld [vmem:[#allocation13 + $0x2e8] sm:$0xff]
    %v2738 = vld [vmem:[#allocation13 + $0x2f0] sm:$0xff]
    %v2739 = vld [vmem:[#allocation13 + $0x2f8] sm:$0xff]
    %v2740 = vld [vmem:[#allocation13 + $0x300] sm:$0xff]
    %v2741 = vld [vmem:[#allocation13 + $0x308] sm:$0xff]
    %v2742 = vld [vmem:[#allocation13 + $0x310] sm:$0xff]
    %v2743 = vld [vmem:[#allocation13 + $0x318] sm:$0xff]
    %v2744 = vld [vmem:[#allocation13 + $0x320] sm:$0xff]
    %v2745 = vld [vmem:[#allocation13 + $0x328] sm:$0xff]
    %v2746 = vld [vmem:[#allocation13 + $0x330] sm:$0xff]
    %v2747 = vld [vmem:[#allocation13 + $0x338] sm:$0xff]
    %v2748 = vld [vmem:[#allocation13 + $0x340] sm:$0xff]
    %v2749 = vld [vmem:[#allocation13 + $0x348] sm:$0xff]
    %v2750 = vld [vmem:[#allocation13 + $0x350] sm:$0xff]
    %v2751 = vld [vmem:[#allocation13 + $0x358] sm:$0xff]
    %v2752 = vld [vmem:[#allocation13 + $0x360] sm:$0xff]
    %v2753 = vld [vmem:[#allocation13 + $0x368] sm:$0xff]
    %v2754 = vld [vmem:[#allocation13 + $0x370] sm:$0xff]
    %v2755 = vld [vmem:[#allocation13 + $0x378] sm:$0xff]
    %v2756 = vld [vmem:[#allocation13 + $0x380] sm:$0xff]
    %v2757 = vld [vmem:[#allocation13 + $0x388] sm:$0xff]
    %v2758 = vld [vmem:[#allocation13 + $0x390] sm:$0xff]
    %v2759 = vld [vmem:[#allocation13 + $0x398] sm:$0xff]
    %v2760 = vld [vmem:[#allocation13 + $0x3a0] sm:$0xff]
    %v2761 = vld [vmem:[#allocation13 + $0x3a8] sm:$0xff]
    %v2762 = vld [vmem:[#allocation13 + $0x3b0] sm:$0xff]
    %v2763 = vld [vmem:[#allocation13 + $0x3b8] sm:$0xff]
    %v2764 = vld [vmem:[#allocation13 + $0x3c0] sm:$0xff]
    %v2765 = vld [vmem:[#allocation13 + $0x3c8] sm:$0xff]
    %v2766 = vld [vmem:[#allocation13 + $0x3d0] sm:$0xff]
    %v2767 = vld [vmem:[#allocation13 + $0x3d8] sm:$0xff]
    %v2768 = vld [vmem:[#allocation13 + $0x3e0] sm:$0xff]
    %v2769 = vld [vmem:[#allocation13 + $0x3e8] sm:$0xff]
    %v2770 = vld [vmem:[#allocation13 + $0x3f0] sm:$0xff]
    %v2771 = vld [vmem:[#allocation13 + $0x3f8] sm:$0xff]
    %v2772 = vld [vmem:[#allocation13 + $0x400] sm:$0xff]
    %v2773 = vld [vmem:[#allocation13 + $0x408] sm:$0xff]
    %v2774 = vld [vmem:[#allocation13 + $0x410] sm:$0xff]
    %v2775 = vld [vmem:[#allocation13 + $0x418] sm:$0xff]
    %v2776 = vld [vmem:[#allocation13 + $0x420] sm:$0xff]
    %v2777 = vld [vmem:[#allocation13 + $0x428] sm:$0xff]
    %v2778 = vld [vmem:[#allocation13 + $0x430] sm:$0xff]
    %v2779 = vld [vmem:[#allocation13 + $0x438] sm:$0xff]
    %v2780 = vld [vmem:[#allocation13 + $0x440] sm:$0xff]
    %v2781 = vld [vmem:[#allocation13 + $0x448] sm:$0xff]
    %v2782 = vld [vmem:[#allocation13 + $0x450] sm:$0xff]
    %v2783 = vld [vmem:[#allocation13 + $0x458] sm:$0xff]
    %v2784 = vld [vmem:[#allocation13 + $0x460] sm:$0xff]
    %v2785 = vld [vmem:[#allocation13 + $0x468] sm:$0xff]
    %v2786 = vld [vmem:[#allocation13 + $0x470] sm:$0xff]
    %v2787 = vld [vmem:[#allocation13 + $0x478] sm:$0xff]
    %v2788 = vld [vmem:[#allocation13 + $0x480] sm:$0xff]
    %v2789 = vld [vmem:[#allocation13 + $0x488] sm:$0xff]
    %v2790 = vld [vmem:[#allocation13 + $0x490] sm:$0xff]
    %v2791 = vld [vmem:[#allocation13 + $0x498] sm:$0xff]
    %v2792 = vld [vmem:[#allocation13 + $0x4a0] sm:$0xff]
    %v2793 = vld [vmem:[#allocation13 + $0x4a8] sm:$0xff]
    %v2794 = vld [vmem:[#allocation13 + $0x4b0] sm:$0xff]
    %v2795 = vld [vmem:[#allocation13 + $0x4b8] sm:$0xff]
    %v2796 = vld [vmem:[#allocation13 + $0x4c0] sm:$0xff]
    %v2797 = vld [vmem:[#allocation13 + $0x4c8] sm:$0xff]
    %v2798 = vld [vmem:[#allocation13 + $0x4d0] sm:$0xff]
    %v2799 = vld [vmem:[#allocation13 + $0x4d8] sm:$0xff]
    %v2800 = vld [vmem:[#allocation13 + $0x4e0] sm:$0xff]
    %v2801 = vld [vmem:[#allocation13 + $0x4e8] sm:$0xff]
    %v2802 = vld [vmem:[#allocation13 + $0x4f0] sm:$0xff]
    %v2803 = vld [vmem:[#allocation13 + $0x4f8] sm:$0xff]
    %v2804 = vld [vmem:[#allocation13 + $0x500] sm:$0xff]
    %v2805 = vld [vmem:[#allocation13 + $0x508] sm:$0xff]
    %v2806 = vld [vmem:[#allocation13 + $0x510] sm:$0xff]
    %v2807 = vld [vmem:[#allocation13 + $0x518] sm:$0xff]
    %v2808 = vld [vmem:[#allocation13 + $0x520] sm:$0xff]
    %v2809 = vld [vmem:[#allocation13 + $0x528] sm:$0xff]
    %v2810 = vld [vmem:[#allocation13 + $0x530] sm:$0xff]
    %v2811 = vld [vmem:[#allocation13 + $0x538] sm:$0xff]
    %v2812 = vld [vmem:[#allocation13 + $0x540] sm:$0xff]
    %v2813 = vld [vmem:[#allocation13 + $0x548] sm:$0xff]
    %v2814 = vld [vmem:[#allocation13 + $0x550] sm:$0xff]
    %v2815 = vld [vmem:[#allocation13 + $0x558] sm:$0xff]
    %v2816 = vld [vmem:[#allocation13 + $0x560] sm:$0xff]
    %v2817 = vld [vmem:[#allocation13 + $0x568] sm:$0xff]
    %v2818 = vld [vmem:[#allocation13 + $0x570] sm:$0xff]
    %v2819 = vld [vmem:[#allocation13 + $0x578] sm:$0xff]
    %v2820 = vld [vmem:[#allocation13 + $0x580] sm:$0xff]
    %v2821 = vld [vmem:[#allocation13 + $0x588] sm:$0xff]
    %v2822 = vld [vmem:[#allocation13 + $0x590] sm:$0xff]
    %v2823 = vld [vmem:[#allocation13 + $0x598] sm:$0xff]
    %v2824 = vld [vmem:[#allocation13 + $0x5a0] sm:$0xff]
    %v2825 = vld [vmem:[#allocation13 + $0x5a8] sm:$0xff]
    %v2826 = vld [vmem:[#allocation13 + $0x5b0] sm:$0xff]
    %v2827 = vld [vmem:[#allocation13 + $0x5b8] sm:$0xff]
    %v2828 = vld [vmem:[#allocation13 + $0x5c0] sm:$0xff]
    %v2829 = vld [vmem:[#allocation13 + $0x5c8] sm:$0xff]
    %v2830 = vld [vmem:[#allocation13 + $0x5d0] sm:$0xff]
    %v2831 = vld [vmem:[#allocation13 + $0x5d8] sm:$0xff]
    %v2832 = vld [vmem:[#allocation13 + $0x5e0] sm:$0xff]
    %v2833 = vld [vmem:[#allocation13 + $0x5e8] sm:$0xff]
    %v2834 = vld [vmem:[#allocation13 + $0x5f0] sm:$0xff]
    %v2835 = vld [vmem:[#allocation13 + $0x5f8] sm:$0xff]
    %v2836 = vld [vmem:[#allocation14] sm:$0x3]
    %v2838 = vlaneseq
    %v2839 = vshrl.u32 %v2838, 7
    %v2840 = vsub.s32 0, %v2839
    %v2841 = vrot.slane %v2836, %v2840
    %v2842 = vlaneseq
    %v2843 = vshrl.u32 %v2842, 7
    %v2844 = vsub.s32 1, %v2843
    %v2845 = vrot.slane %v2836, %v2844
    %2848 = vmatprep.subr.mxu0 %v2645
    %2849 = vmatpush1.msra.mxu0 %v2644
    %2850 = vmatprep.subr.mxu0 %v2647
    %2851 = vmatpush1.msra.mxu0 %v2646
    %2852 = vmatprep.subr.mxu0 %v2649
    %2853 = vmatpush1.msra.mxu0 %v2648
    %2854 = vmatprep.subr.mxu0 %v2651
    %2855 = vmatpush1.msra.mxu0 %v2650
    %2856 = vmatprep.subr.mxu0 %v2653
    %2857 = vmatpush1.msra.mxu0 %v2652
    %2858 = vmatprep.subr.mxu0 %v2655
    %2859 = vmatpush1.msra.mxu0 %v2654
    %2860 = vmatprep.subr.mxu0 %v2657
    %2861 = vmatpush1.msra.mxu0 %v2656
    %2862 = vmatprep.subr.mxu0 %v2659
    %2863 = vmatpush1.msra.mxu0 %v2658
    %2864 = vmatprep.subr.mxu0 %v2661
    %2865 = vmatpush1.msra.mxu0 %v2660
    %2866 = vmatprep.subr.mxu0 %v2663
    %2867 = vmatpush1.msra.mxu0 %v2662
    %2868 = vmatprep.subr.mxu0 %v2665
    %2869 = vmatpush1.msra.mxu0 %v2664
    %2870 = vmatprep.subr.mxu0 %v2667
    %2871 = vmatpush1.msra.mxu0 %v2666
    %2872 = vmatprep.subr.mxu0 %v2669
    %2873 = vmatpush1.msra.mxu0 %v2668
    %2874 = vmatprep.subr.mxu0 %v2671
    %2875 = vmatpush1.msra.mxu0 %v2670
    %2876 = vmatprep.subr.mxu0 %v2673
    %2877 = vmatpush1.msra.mxu0 %v2672
    %2878 = vmatprep.subr.mxu0 %v2675
    %2879 = vmatpush1.msra.mxu0 %v2674
    %2880 = vmatprep.subr.mxu0 %v2677
    %2881 = vmatpush1.msra.mxu0 %v2676
    %2882 = vmatprep.subr.mxu0 %v2679
    %2883 = vmatpush1.msra.mxu0 %v2678
    %2884 = vmatprep.subr.mxu0 %v2681
    %2885 = vmatpush1.msra.mxu0 %v2680
    %2886 = vmatprep.subr.mxu0 %v2683
    %2887 = vmatpush1.msra.mxu0 %v2682
    %2888 = vmatprep.subr.mxu0 %v2685
    %2889 = vmatpush1.msra.mxu0 %v2684
    %2890 = vmatprep.subr.mxu0 %v2687
    %2891 = vmatpush1.msra.mxu0 %v2686
    %2892 = vmatprep.subr.mxu0 %v2689
    %2893 = vmatpush1.msra.mxu0 %v2688
    %2894 = vmatprep.subr.mxu0 %v2691
    %2895 = vmatpush1.msra.mxu0 %v2690
    %2896 = vmatprep.subr.mxu0 %v2693
    %2897 = vmatpush1.msra.mxu0 %v2692
    %2898 = vmatprep.subr.mxu0 %v2695
    %2899 = vmatpush1.msra.mxu0 %v2694
    %2900 = vmatprep.subr.mxu0 %v2697
    %2901 = vmatpush1.msra.mxu0 %v2696
    %2902 = vmatprep.subr.mxu0 %v2699
    %2903 = vmatpush1.msra.mxu0 %v2698
    %2904 = vmatprep.subr.mxu0 %v2701
    %2905 = vmatpush1.msra.mxu0 %v2700
    %2906 = vmatprep.subr.mxu0 %v2703
    %2907 = vmatpush1.msra.mxu0 %v2702
    %2908 = vmatprep.subr.mxu0 %v2705
    %2909 = vmatpush1.msra.mxu0 %v2704
    %2910 = vmatprep.subr.mxu0 %v2707
    %2911 = vmatpush1.msra.mxu0 %v2706
    %2912 = vmatprep.mubr.f32.mxu0 %v2639
    %2913 = vmatmul.mubr.f32.gmra.mrb[0].mxu0 %v2638
    %v2914 = vpop.f32.mrb[0].mxu0
    %v2915 = vadd.f32 %v2841, %v2914
    %v2916 = vpop.f32.mrb[0].mxu0
    %v2917 = vadd.f32 %v2845, %v2916
    %2918 = vdwg.mxu0
    %2919 = vmatprep.subr.mxu0 %v2709
    %2920 = vmatpush1.msra.mxu0 %v2708
    %2921 = vmatprep.subr.mxu0 %v2711
    %2922 = vmatpush1.msra.mxu0 %v2710
    %2923 = vmatprep.subr.mxu0 %v2713
    %2924 = vmatpush1.msra.mxu0 %v2712
    %2925 = vmatprep.subr.mxu0 %v2715
    %2926 = vmatpush1.msra.mxu0 %v2714
    %2927 = vmatprep.subr.mxu0 %v2717
    %2928 = vmatpush1.msra.mxu0 %v2716
    %2929 = vmatprep.subr.mxu0 %v2719
    %2930 = vmatpush1.msra.mxu0 %v2718
    %2931 = vmatprep.subr.mxu0 %v2721
    %2932 = vmatpush1.msra.mxu0 %v2720
    %2933 = vmatprep.subr.mxu0 %v2723
    %2934 = vmatpush1.msra.mxu0 %v2722
    %2935 = vmatprep.subr.mxu0 %v2725
    %2936 = vmatpush1.msra.mxu0 %v2724
    %2937 = vmatprep.subr.mxu0 %v2727
    %2938 = vmatpush1.msra.mxu0 %v2726
    %2939 = vmatprep.subr.mxu0 %v2729
    %2940 = vmatpush1.msra.mxu0 %v2728
    %2941 = vmatprep.subr.mxu0 %v2731
    %2942 = vmatpush1.msra.mxu0 %v2730
    %2943 = vmatprep.subr.mxu0 %v2733
    %2944 = vmatpush1.msra.mxu0 %v2732
    %2945 = vmatprep.subr.mxu0 %v2735
    %2946 = vmatpush1.msra.mxu0 %v2734
    %2947 = vmatprep.subr.mxu0 %v2737
    %2948 = vmatpush1.msra.mxu0 %v2736
    %2949 = vmatprep.subr.mxu0 %v2739
    %2950 = vmatpush1.msra.mxu0 %v2738
    %2951 = vmatprep.subr.mxu0 %v2741
    %2952 = vmatpush1.msra.mxu0 %v2740
    %2953 = vmatprep.subr.mxu0 %v2743
    %2954 = vmatpush1.msra.mxu0 %v2742
    %2955 = vmatprep.subr.mxu0 %v2745
    %2956 = vmatpush1.msra.mxu0 %v2744
    %2957 = vmatprep.subr.mxu0 %v2747
    %2958 = vmatpush1.msra.mxu0 %v2746
    %2959 = vmatprep.subr.mxu0 %v2749
    %2960 = vmatpush1.msra.mxu0 %v2748
    %2961 = vmatprep.subr.mxu0 %v2751
    %2962 = vmatpush1.msra.mxu0 %v2750
    %2963 = vmatprep.subr.mxu0 %v2753
    %2964 = vmatpush1.msra.mxu0 %v2752
    %2965 = vmatprep.subr.mxu0 %v2755
    %2966 = vmatpush1.msra.mxu0 %v2754
    %2967 = vmatprep.subr.mxu0 %v2757
    %2968 = vmatpush1.msra.mxu0 %v2756
    %2969 = vmatprep.subr.mxu0 %v2759
    %2970 = vmatpush1.msra.mxu0 %v2758
    %2971 = vmatprep.subr.mxu0 %v2761
    %2972 = vmatpush1.msra.mxu0 %v2760
    %2973 = vmatprep.subr.mxu0 %v2763
    %2974 = vmatpush1.msra.mxu0 %v2762
    %2975 = vmatprep.subr.mxu0 %v2765
    %2976 = vmatpush1.msra.mxu0 %v2764
    %2977 = vmatprep.subr.mxu0 %v2767
    %2978 = vmatpush1.msra.mxu0 %v2766
    %2979 = vmatprep.subr.mxu0 %v2769
    %2980 = vmatpush1.msra.mxu0 %v2768
    %2981 = vmatprep.subr.mxu0 %v2771
    %2982 = vmatpush1.msra.mxu0 %v2770
    %2983 = vmatprep.mubr.f32.mxu0 %v2641
    %2984 = vmatmul.mubr.f32.gmra.mrb[0].mxu0 %v2640
    %v2985 = vpop.f32.mrb[0].mxu0
    %v2986 = vadd.f32 %v2915, %v2985
    %v2987 = vpop.f32.mrb[0].mxu0
    %v2988 = vadd.f32 %v2917, %v2987
    %2989 = vdwg.mxu0
    %2990 = vmatprep.subr.mxu0 %v2773
    %2991 = vmatpush1.msra.mxu0 %v2772
    %2992 = vmatprep.subr.mxu0 %v2775
    %2993 = vmatpush1.msra.mxu0 %v2774
    %2994 = vmatprep.subr.mxu0 %v2777
    %2995 = vmatpush1.msra.mxu0 %v2776
    %2996 = vmatprep.subr.mxu0 %v2779
    %2997 = vmatpush1.msra.mxu0 %v2778
    %2998 = vmatprep.subr.mxu0 %v2781
    %2999 = vmatpush1.msra.mxu0 %v2780
    %3000 = vmatprep.subr.mxu0 %v2783
    %3001 = vmatpush1.msra.mxu0 %v2782
    %3002 = vmatprep.subr.mxu0 %v2785
    %3003 = vmatpush1.msra.mxu0 %v2784
    %3004 = vmatprep.subr.mxu0 %v2787
    %3005 = vmatpush1.msra.mxu0 %v2786
    %3006 = vmatprep.subr.mxu0 %v2789
    %3007 = vmatpush1.msra.mxu0 %v2788
    %3008 = vmatprep.subr.mxu0 %v2791
    %3009 = vmatpush1.msra.mxu0 %v2790
    %3010 = vmatprep.subr.mxu0 %v2793
    %3011 = vmatpush1.msra.mxu0 %v2792
    %3012 = vmatprep.subr.mxu0 %v2795
    %3013 = vmatpush1.msra.mxu0 %v2794
    %3014 = vmatprep.subr.mxu0 %v2797
    %3015 = vmatpush1.msra.mxu0 %v2796
    %3016 = vmatprep.subr.mxu0 %v2799
    %3017 = vmatpush1.msra.mxu0 %v2798
    %3018 = vmatprep.subr.mxu0 %v2801
    %3019 = vmatpush1.msra.mxu0 %v2800
    %3020 = vmatprep.subr.mxu0 %v2803
    %3021 = vmatpush1.msra.mxu0 %v2802
    %3022 = vmatprep.subr.mxu0 %v2805
    %3023 = vmatpush1.msra.mxu0 %v2804
    %3024 = vmatprep.subr.mxu0 %v2807
    %3025 = vmatpush1.msra.mxu0 %v2806
    %3026 = vmatprep.subr.mxu0 %v2809
    %3027 = vmatpush1.msra.mxu0 %v2808
    %3028 = vmatprep.subr.mxu0 %v2811
    %3029 = vmatpush1.msra.mxu0 %v2810
    %3030 = vmatprep.subr.mxu0 %v2813
    %3031 = vmatpush1.msra.mxu0 %v2812
    %3032 = vmatprep.subr.mxu0 %v2815
    %3033 = vmatpush1.msra.mxu0 %v2814
    %3034 = vmatprep.subr.mxu0 %v2817
    %3035 = vmatpush1.msra.mxu0 %v2816
    %3036 = vmatprep.subr.mxu0 %v2819
    %3037 = vmatpush1.msra.mxu0 %v2818
    %3038 = vmatprep.subr.mxu0 %v2821
    %3039 = vmatpush1.msra.mxu0 %v2820
    %3040 = vmatprep.subr.mxu0 %v2823
    %3041 = vmatpush1.msra.mxu0 %v2822
    %3042 = vmatprep.subr.mxu0 %v2825
    %3043 = vmatpush1.msra.mxu0 %v2824
    %3044 = vmatprep.subr.mxu0 %v2827
    %3045 = vmatpush1.msra.mxu0 %v2826
    %3046 = vmatprep.subr.mxu0 %v2829
    %3047 = vmatpush1.msra.mxu0 %v2828
    %3048 = vmatprep.subr.mxu0 %v2831
    %3049 = vmatpush1.msra.mxu0 %v2830
    %3050 = vmatprep.subr.mxu0 %v2833
    %3051 = vmatpush1.msra.mxu0 %v2832
    %3052 = vmatprep.subr.mxu0 %v2835
    %3053 = vmatpush1.msra.mxu0 %v2834
    %3054 = vmatprep.mubr.f32.mxu0 %v2643
    %3055 = vmatmul.mubr.f32.gmra.mrb[0].mxu0 %v2642
    %v3056 = vpop.f32.mrb[0].mxu0
    %v3057 = vadd.f32 %v2986, %v3056
    %v3058 = vpop.f32.mrb[0].mxu0
    %v3059 = vadd.f32 %v2988, %v3058
    %3060 = vdwg.mxu0
    %v3061 = vld [vmem:[#allocation5] sm:$0xff]
    %v3062 = vld [vmem:[#allocation5 + $0x8] sm:$0xff]
    %v3063 = vadd.f32 %v3057, %v3061
    %v3064 = vadd.f32 %v3059, %v3062
    %v3065 = vmax.f32 %v3063, %v3064
    %3066 = vmax.xlane.f32.xlu0 %v3065
    %v3067 = vpop.xlane.xlu0 %3066
    %v3068 = vlaneseq
    %v3069 = vand.u32 %v3068, 127
    %v3070 = vadd.s32 %v3069, 128
    %v3071 = vcvt.s32.f32 %v3069
    %v3072 = vcvt.s32.f32 %v3070
    %vm3073 = vcmp.ge.f32.partialorder %v3063, %v3067
    %vm3074 = vcmp.ge.f32.partialorder %v3064, %v3067
    %v3075 = vsel %vm3073, %v3071, 256.0
    %v3076 = vsel %vm3074, %v3072, 256.0
    %v3077 = vmin.f32 %v3075, %v3076
    %3078 = vmin.xlane.f32.xlu0 %v3077
    %v3079 = vpop.xlane.xlu0 %3078
    %vm3080 = vcmp.eq.f32.partialorder %v3071, %v3079
    %vm3081 = vcmp.eq.f32.partialorder %v3072, %v3079
    %v3082 = vsel %vm3080, 1, 0
    %v3083 = vsel %vm3081, 1, 0
    %v3084 = vcvt.s32.f32 %v3082
    %v3085 = vcvt.s32.f32 %v3083
    %v3086 = vmul.f32 %v3057, %v3084
    %v3087 = vmul.f32 %v3059, %v3085
    %v3088 = vadd.f32 %v3086, %v3087
    %3089 = vadd.xlane.f32.xlu0 %v3088
    %v3090 = vpop.xlane.xlu0 %3089
    %v3091 = vmax.f32 %v3057, %v3059
    %3092 = vmax.xlane.f32.xlu0 %v3091
    %v3093 = vpop.xlane.xlu0 %3092
    %v3094 = vsub.f32 %v3057, %v3093
    %v3095 = vsub.f32 %v3059, %v3093
    %v3096 = vmul.f32 %v3094, 1.442695
    %v3097 = vpow.pop %v3096
    %v3098 = vmul.f32 %v3095, 1.442695
    %v3099 = vpow.pop %v3098
    %v3100 = vadd.f32 %v3097, %v3099
    %3101 = vadd.xlane.f32.xlu0 %v3100
    %v3102 = vpop.xlane.xlu0 %3101
    %v3103 = vlog2.pop %v3102
    %v3104 = vmul.f32 %v3103, 0.6931472
    %v3105 = vadd.f32 %v3093, %v3104
    %v3106 = vsub.f32 %v3090, %v3105
    %v3107 = vlaneseq
    %v3108 = vshrl.u32 %v3107, 7
    %vm3109 = vcmp.eq.s32.totalorder %v3108, %v3069
    %v3110 = vsel %vm3109, %v3079, 0.0
    %vm3111 = vcmask 64512
    %v3112 = vsel %vm3111, %v3110, 0.0
    %v3113 = vrot.slane %v3112, 4
    %v3114 = vadd.f32 %v3112, %v3113
    %v3115 = vrot.slane %v3114, 2
    %v3116 = vadd.f32 %v3114, %v3115
    %v3117 = vrot.slane %v3116, 1
    %v3118 = vadd.f32 %v3116, %v3117
    %v3119 = vsel %vm3109, %v3106, 0.0
    %v3120 = vsel %vm3111, %v3119, 0.0
    %v3121 = vrot.slane %v3120, 4
    %v3122 = vadd.f32 %v3120, %v3121
    %v3123 = vrot.slane %v3122, 2
    %v3124 = vadd.f32 %v3122, %v3123
    %v3125 = vrot.slane %v3124, 1
    %v3126 = vadd.f32 %v3124, %v3125
    %v3127 = vcvt.f32.s32.to.zero.pseudo %v3118
    %vm3128 = vcmask 57344
    %3129 = vst.msk [vmem:[#allocation16] sm:$0x1] %vm3128, %v3127
    %3130 = vst.msk [vmem:[#allocation17] sm:$0x1] %vm3128, %v3126
    // Predicated region
    $region66: #{tpu_custom_call.1} parent=1 // pred_check
      _
    $region67: #{tpu_custom_call.1} parent=1 // pred_check_branch
      %3132 = sbr.rel (0) target = $region69
    $region68: #{tpu_custom_call.1} parent=1 // pred_region
      %s3134 = ssub.s32 16, 16
      %3135 = vsyncadd [#allocation4], %s3134
      %s3137 = sshll.u32 [#allocation16], 4
      %s3138 = int_to_ptr.vmem [resolvable:$true] %s3137
      %3140 = dma.vmem_to_hbm [thread:$0]  %s3138, 16, %s8, [#allocation4]
    $region69: #{tpu_custom_call.1} parent=1 // pred_fallthru
      _
    // Predicated region
    $region70: #{tpu_custom_call.1} parent=1 // pred_check
      _
    $region71: #{tpu_custom_call.1} parent=1 // pred_check_branch
      %3142 = sbr.rel (0) target = $region73
    $region72: #{tpu_custom_call.1} parent=1 // pred_region
      %s3144 = ssub.s32 16, 16
      %3145 = vsyncadd [#allocation18], %s3144
      %s3147 = sshll.u32 [#allocation17], 4
      %s3148 = int_to_ptr.vmem [resolvable:$true] %s3147
      %3150 = dma.vmem_to_hbm [thread:$0]  %s3148, 16, %s9, [#allocation18]
    $region73: #{tpu_custom_call.1} parent=1 // pred_fallthru
      _
    // Predicated region
    $region74: #{tpu_custom_call.1} parent=1 // pred_check
      _
    $region75: #{tpu_custom_call.1} parent=1 // pred_check_branch
      %3152 = sbr.rel (0) target = $region77
    $region76: #{tpu_custom_call.1} parent=1 // pred_region
      %3153 = dma.done [#allocation4], 16
    $region77: #{tpu_custom_call.1} parent=1 // pred_fallthru
      _
    // Predicated region
    $region78: #{tpu_custom_call.1} parent=1 // pred_check
      _
    $region79: #{tpu_custom_call.1} parent=1 // pred_check_branch
      %3155 = sbr.rel (0) target = $region81
    $region80: #{tpu_custom_call.1} parent=1 // pred_region
      %3156 = dma.done [#allocation18], 16
    $region81: #{tpu_custom_call.1} parent=1 // pred_fallthru
      _
    %3157 = vsyncpa [#allocation3], 1
    %3158 = vsyncpa [#allocation6], 1
    %3159 = vsyncpa [#allocation9], 1
    %3160 = vsyncpa [#allocation12], 1
    %3161 = vsyncpa [#allocation15], 1
    %3162 = vsyncpa [#allocation4], 1
    %3163 = vsyncpa [#allocation18], 1

// kernel: tpu_custom_call.1
$region0: #{tpu_custom_call.1}
  #allocation0 [shape = 'u32[]', space=smem, size = 0x4, offset = 0x4, fixed_abs, tag = 'smem constant byte address 0x4 - core index']
  #allocation1 [shape = 'u32[144,128]{1,0:T(1,128)}', space=vmem, size = 0x12000, scoped, tag = 'internal scratch']
  %s0 = inlined_call_operand.hbm [shape: f32[8,768], index: 0, kind: input, shape index: {}]
  %s1 = inlined_call_operand.hbm [shape: f32[8,256], index: 1, kind: input, shape index: {}]
  %s2 = inlined_call_operand.hbm [shape: f32[768,768], index: 2, kind: input, shape index: {}]
  %s3 = inlined_call_operand.hbm [shape: f32[1,768], index: 3, kind: input, shape index: {}]
  %s4 = inlined_call_operand.hbm [shape: f32[768,768], index: 4, kind: input, shape index: {}]
  %s5 = inlined_call_operand.hbm [shape: f32[1,768], index: 5, kind: input, shape index: {}]
  %s6 = inlined_call_operand.hbm [shape: f32[768,256], index: 6, kind: input, shape index: {}]
  %s7 = inlined_call_operand.hbm [shape: f32[1,256], index: 7, kind: input, shape index: {}]
  %s8 = inlined_call_operand.hbm [shape: s32[1,8], index: 8, kind: output, shape index: {0}]
  %s9 = inlined_call_operand.hbm [shape: f32[1,8], index: 9, kind: output, shape index: {1}]
  %10 = xla_tuple %s8, %s9
  %s11 = sld [smem:[#allocation0]]
  $region82: #{tpu_custom_call.1} parent=0
    _
  %s13 = ssub.s32 1, %s11
  %s14 = scalar_select 0, %s13, %s11
  $region1: #{tpu_custom_call.1} parent=0
    #allocation2 [shape = 'u8[24576]{0}', space=vmem, size = 0x6000, scoped, tag = 'input window, operand 0, single buffered']
    #allocation3 [shape = 's32[1]{0}', space=sflag, size = 0x4, scoped, tag = 'scoped memory for tpu_custom_call.1']
    #allocation4 [shape = 's32[1]{0}', space=sflag, size = 0x4, scoped, tag = 'scoped memory for tpu_custom_call.1']
    #allocation5 [shape = 'u8[8192]{0}', space=vmem, size = 0x2000, scoped, tag = 'input window, operand 1, single buffered']
    #allocation6 [shape = 's32[1]{0}', space=sflag, size = 0x4, scoped, tag = 'scoped memory for tpu_custom_call.1']
    #allocation7 [shape = 'u8[2359296]{0}', space=vmem, size = 0x240000, scoped, tag = 'input window, operand 2, single buffered']
    #allocation8 [shape = 'u8[3072]{0}', space=vmem, size = 0xc00, scoped, tag = 'input window, operand 3, single buffered']
    #allocation9 [shape = 's32[1]{0}', space=sflag, size = 0x4, scoped, tag = 'scoped memory for tpu_custom_call.1']
    #allocation10 [shape = 'u8[2359296]{0}', space=vmem, size = 0x240000, scoped, tag = 'input window, operand 4, single buffered']
    #allocation11 [shape = 'u8[3072]{0}', space=vmem, size = 0xc00, scoped, tag = 'input window, operand 5, single buffered']
    #allocation12 [shape = 's32[1]{0}', space=sflag, size = 0x4, scoped, tag = 'scoped memory for tpu_custom_call.1']
    #allocation13 [shape = 'u8[786432]{0}', space=vmem, size = 0xc0000, scoped, tag = 'input window, operand 6, single buffered']
    #allocation14 [shape = 'u8[1024]{0}', space=vmem, size = 0x400, scoped, tag = 'input window, operand 7, single buffered']
    #allocation15 [shape = 's32[1]{0}', space=sflag, size = 0x4, scoped, tag = 'scoped memory for tpu_custom_call.1']
    #allocation16 [shape = 'u8[512]{0}', space=vmem, size = 0x400, scoped, tag = 'output window, operand 0, single buffered']
    #allocation17 [shape = 'u8[512]{0}', space=vmem, size = 0x400, scoped, tag = 'output window, operand 1, single buffered']
    #allocation18 [shape = 's32[1]{0}', space=sflag, size = 0x4, scoped, tag = 'scoped memory for tpu_custom_call.1']
    %15 = vsyncpa [#allocation3], 0
    %16 = vsyncpa [#allocation6], 0
    %17 = vsyncpa [#allocation9], 0
    %18 = vsyncpa [#allocation12], 0
    %19 = vsyncpa [#allocation15], 0
    %20 = vsyncpa [#allocation4], 0
    %21 = vsyncpa [#allocation18], 0
    // Predicated region
    $region2: #{tpu_custom_call.1} parent=1 // pred_check
      _
    $region3: #{tpu_custom_call.1} parent=1 // pred_check_branch
      %23 = sbr.rel (0) target = $region5
    $region4: #{tpu_custom_call.1} parent=1 // pred_region
      %s25 = ssub.s32 768, 768
      %26 = vsyncadd [#allocation3], %s25
      %s28 = sshll.u32 [#allocation2], 4
      %s29 = int_to_ptr.vmem [resolvable:$true] %s28
      %31 = dma.hbm_to_vmem [thread:$0]  %s0, 768, %s29, [#allocation3]
    $region5: #{tpu_custom_call.1} parent=1 // pred_fallthru
      _
    // Predicated region
    $region6: #{tpu_custom_call.1} parent=1 // pred_check
      _
    $region7: #{tpu_custom_call.1} parent=1 // pred_check_branch
      %33 = sbr.rel (0) target = $region9
    $region8: #{tpu_custom_call.1} parent=1 // pred_region
      %s35 = ssub.s32 256, 256
      %36 = vsyncadd [#allocation6], %s35
      %s38 = sshll.u32 [#allocation5], 4
      %s39 = int_to_ptr.vmem [resolvable:$true] %s38
      %41 = dma.hbm_to_vmem [thread:$0]  %s1, 256, %s39, [#allocation6]
    $region9: #{tpu_custom_call.1} parent=1 // pred_fallthru
      _
    // Predicated region
    $region10: #{tpu_custom_call.1} parent=1 // pred_check
      _
    $region11: #{tpu_custom_call.1} parent=1 // pred_check_branch
      %43 = sbr.rel (0) target = $region13
    $region12: #{tpu_custom_call.1} parent=1 // pred_region
      %s45 = ssub.s32 73728, 73728
      %46 = vsyncadd [#allocation6], %s45
      %s47 = sshll.u32 [#allocation7], 4
      %s48 = int_to_ptr.vmem [resolvable:$true] %s47
      %53 = dma.hbm_to_vmem [thread:$0]  %s2, 73728, %s48, [#allocation6], 768, 768, 48
    $region13: #{tpu_custom_call.1} parent=1 // pred_fallthru
      _
    // Predicated region
    $region14: #{tpu_custom_call.1} parent=1 // pred_check
      _
    $region15: #{tpu_custom_call.1} parent=1 // pred_check_branch
      %55 = sbr.rel (0) target = $region17
    $region16: #{tpu_custom_call.1} parent=1 // pred_region
      %s57 = ssub.s32 96, 96
      %58 = vsyncadd [#allocation9], %s57
      %s60 = sshll.u32 [#allocation8], 4
      %s61 = int_to_ptr.vmem [resolvable:$true] %s60
      %63 = dma.hbm_to_vmem [thread:$0]  %s3, 96, %s61, [#allocation9]
    $region17: #{tpu_custom_call.1} parent=1 // pred_fallthru
      _
    // Predicated region
    $region18: #{tpu_custom_call.1} parent=1 // pred_check
      _
    $region19: #{tpu_custom_call.1} parent=1 // pred_check_branch
      %65 = sbr.rel (0) target = $region21
    $region20: #{tpu_custom_call.1} parent=1 // pred_region
      %s67 = ssub.s32 73728, 73728
      %68 = vsyncadd [#allocation9], %s67
      %s69 = sshll.u32 [#allocation10], 4
      %s70 = int_to_ptr.vmem [resolvable:$true] %s69
      %75 = dma.hbm_to_vmem [thread:$0]  %s4, 73728, %s70, [#allocation9], 768, 768, 48
    $region21: #{tpu_custom_call.1} parent=1 // pred_fallthru
      _
    // Predicated region
    $region22: #{tpu_custom_call.1} parent=1 // pred_check
      _
    $region23: #{tpu_custom_call.1} parent=1 // pred_check_branch
      %77 = sbr.rel (0) target = $region25
    $region24: #{tpu_custom_call.1} parent=1 // pred_region
      %s79 = ssub.s32 96, 96
      %80 = vsyncadd [#allocation12], %s79
      %s82 = sshll.u32 [#allocation11], 4
      %s83 = int_to_ptr.vmem [resolvable:$true] %s82
      %85 = dma.hbm_to_vmem [thread:$0]  %s5, 96, %s83, [#allocation12]
    $region25: #{tpu_custom_call.1} parent=1 // pred_fallthru
      _
    // Predicated region
    $region26: #{tpu_custom_call.1} parent=1 // pred_check
      _
    $region27: #{tpu_custom_call.1} parent=1 // pred_check_branch
      %87 = sbr.rel (0) target = $region29
    $region28: #{tpu_custom_call.1} parent=1 // pred_region
      %s89 = ssub.s32 24576, 24576
      %90 = vsyncadd [#allocation12], %s89
      %s91 = sshll.u32 [#allocation13], 4
      %s92 = int_to_ptr.vmem [resolvable:$true] %s91
      %97 = dma.hbm_to_vmem [thread:$0]  %s6, 24576, %s92, [#allocation12], 256, 256, 16
    $region29: #{tpu_custom_call.1} parent=1 // pred_fallthru
      _
    // Predicated region
    $region30: #{tpu_custom_call.1} parent=1 // pred_check
      _
    $region31: #{tpu_custom_call.1} parent=1 // pred_check_branch
      %99 = sbr.rel (0) target = $region33
    $region32: #{tpu_custom_call.1} parent=1 // pred_region
      %s101 = ssub.s32 32, 32
      %102 = vsyncadd [#allocation15], %s101
      %s104 = sshll.u32 [#allocation14], 4
      %s105 = int_to_ptr.vmem [resolvable:$true] %s104
      %107 = dma.hbm_to_vmem [thread:$0]  %s7, 32, %s105, [#allocation15]
    $region33: #{tpu_custom_call.1} parent=1 // pred_fallthru
      _
    // Predicated region
    $region34: #{tpu_custom_call.1} parent=1 // pred_check
      _
    $region35: #{tpu_custom_call.1} parent=1 // pred_check_branch
      %109 = sbr.rel (0) target = $region37
    $region36: #{tpu_custom_call.1} parent=1 // pred_region
      %110 = dma.done [#allocation3], 768
    $region37: #{tpu_custom_call.1} parent=1 // pred_fallthru
      _
    // Predicated region
    $region38: #{tpu_custom_call.1} parent=1 // pred_check
      _
    $region39: #{tpu_custom_call.1} parent=1 // pred_check_branch
      %112 = sbr.rel (0) target = $region41
    $region40: #{tpu_custom_call.1} parent=1 // pred_region
      %113 = dma.done [#allocation6], 256
    $region41: #{tpu_custom_call.1} parent=1 // pred_fallthru
      _
    // Predicated region
    $region42: #{tpu_custom_call.1} parent=1 // pred_check
      _
    $region43: #{tpu_custom_call.1} parent=1 // pred_check_branch
      %115 = sbr.rel (0) target = $region45
    $region44: #{tpu_custom_call.1} parent=1 // pred_region
      %116 = dma.done [#allocation6], 73728
    $region45: #{tpu_custom_call.1} parent=1 // pred_fallthru
      _
    // Predicated region
    $region46: #{tpu_custom_call.1} parent=1 // pred_check
      _
    $region47: #{tpu_custom_call.1} parent=1 // pred_check_branch
      %118 = sbr.rel (0) target = $region49
    $region48: #{tpu_custom_call.1} parent=1 // pred_region
      %119 = dma.done [#allocation9], 96
    $region49: #{tpu_custom_call.1} parent=1 // pred_fallthru
      _
    // Predicated region
    $region50: #{tpu_custom_call.1} parent=1 // pred_check
      _
    $region51: #{tpu_custom_call.1} parent=1 // pred_check_branch
      %121 = sbr.rel (0) target = $region53
    $region52: #{tpu_custom_call.1} parent=1 // pred_region
      %122 = dma.done [#allocation9], 73728
    $region53: #{tpu_custom_call.1} parent=1 // pred_fallthru
      _
    // Predicated region
    $region54: #{tpu_custom_call.1} parent=1 // pred_check
      _
    $region55: #{tpu_custom_call.1} parent=1 // pred_check_branch
      %124 = sbr.rel (0) target = $region57
    $region56: #{tpu_custom_call.1} parent=1 // pred_region
      %125 = dma.done [#allocation12], 96
    $region57: #{tpu_custom_call.1} parent=1 // pred_fallthru
      _
    // Predicated region
    $region58: #{tpu_custom_call.1} parent=1 // pred_check
      _
    $region59: #{tpu_custom_call.1} parent=1 // pred_check_branch
      %127 = sbr.rel (0) target = $region61
    $region60: #{tpu_custom_call.1} parent=1 // pred_region
      %128 = dma.done [#allocation12], 24576
    $region61: #{tpu_custom_call.1} parent=1 // pred_fallthru
      _
    // Predicated region
    $region62: #{tpu_custom_call.1} parent=1 // pred_check
      _
    $region63: #{tpu_custom_call.1} parent=1 // pred_check_branch
      %130 = sbr.rel (0) target = $region65
    $region64: #{tpu_custom_call.1} parent=1 // pred_region
      %131 = dma.done [#allocation15], 32
    $region65: #{tpu_custom_call.1} parent=1 // pred_fallthru
      _
    %v132 = vld [vmem:[#allocation2] sm:$0xff]
    %v133 = vld [vmem:[#allocation2 + $0x8] sm:$0xff]
    %v134 = vld [vmem:[#allocation2 + $0x10] sm:$0xff]
    %v135 = vld [vmem:[#allocation2 + $0x18] sm:$0xff]
    %v136 = vld [vmem:[#allocation2 + $0x20] sm:$0xff]
    %v137 = vld [vmem:[#allocation2 + $0x28] sm:$0xff]
    %v138 = vld [vmem:[#allocation7] sm:$0xff]
    %v139 = vld [vmem:[#allocation7 + $0x8] sm:$0xff]
    %v140 = vld [vmem:[#allocation7 + $0x10] sm:$0xff]
    %v141 = vld [vmem:[#allocation7 + $0x18] sm:$0xff]
    %v142 = vld [vmem:[#allocation7 + $0x20] sm:$0xff]
    %v143 = vld [vmem:[#allocation7 + $0x28] sm:$0xff]
    %v144 = vld [vmem:[#allocation7 + $0x30] sm:$0xff]
    %v145 = vld [vmem:[#allocation7 + $0x38] sm:$0xff]
    %v146 = vld [vmem:[#allocation7 + $0x40] sm:$0xff]
    %v147 = vld [vmem:[#allocation7 + $0x48] sm:$0xff]
    %v148 = vld [vmem:[#allocation7 + $0x50] sm:$0xff]
    %v149 = vld [vmem:[#allocation7 + $0x58] sm:$0xff]
    %v150 = vld [vmem:[#allocation7 + $0x60] sm:$0xff]
    %v151 = vld [vmem:[#allocation7 + $0x68] sm:$0xff]
    %v152 = vld [vmem:[#allocation7 + $0x70] sm:$0xff]
    %v153 = vld [vmem:[#allocation7 + $0x78] sm:$0xff]
    %v154 = vld [vmem:[#allocation7 + $0x80] sm:$0xff]
    %v155 = vld [vmem:[#allocation7 + $0x88] sm:$0xff]
    %v156 = vld [vmem:[#allocation7 + $0x90] sm:$0xff]
    %v157 = vld [vmem:[#allocation7 + $0x98] sm:$0xff]
    %v158 = vld [vmem:[#allocation7 + $0xa0] sm:$0xff]
    %v159 = vld [vmem:[#allocation7 + $0xa8] sm:$0xff]
    %v160 = vld [vmem:[#allocation7 + $0xb0] sm:$0xff]
    %v161 = vld [vmem:[#allocation7 + $0xb8] sm:$0xff]
    %v162 = vld [vmem:[#allocation7 + $0xc0] sm:$0xff]
    %v163 = vld [vmem:[#allocation7 + $0xc8] sm:$0xff]
    %v164 = vld [vmem:[#allocation7 + $0xd0] sm:$0xff]
    %v165 = vld [vmem:[#allocation7 + $0xd8] sm:$0xff]
    %v166 = vld [vmem:[#allocation7 + $0xe0] sm:$0xff]
    %v167 = vld [vmem:[#allocation7 + $0xe8] sm:$0xff]
    %v168 = vld [vmem:[#allocation7 + $0xf0] sm:$0xff]
    %v169 = vld [vmem:[#allocation7 + $0xf8] sm:$0xff]
    %v170 = vld [vmem:[#allocation7 + $0x100] sm:$0xff]
    %v171 = vld [vmem:[#allocation7 + $0x108] sm:$0xff]
    %v172 = vld [vmem:[#allocation7 + $0x110] sm:$0xff]
    %v173 = vld [vmem:[#allocation7 + $0x118] sm:$0xff]
    %v174 = vld [vmem:[#allocation7 + $0x120] sm:$0xff]
    %v175 = vld [vmem:[#allocation7 + $0x128] sm:$0xff]
    %v176 = vld [vmem:[#allocation7 + $0x130] sm:$0xff]
    %v177 = vld [vmem:[#allocation7 + $0x138] sm:$0xff]
    %v178 = vld [vmem:[#allocation7 + $0x140] sm:$0xff]
    %v179 = vld [vmem:[#allocation7 + $0x148] sm:$0xff]
    %v180 = vld [vmem:[#allocation7 + $0x150] sm:$0xff]
    %v181 = vld [vmem:[#allocation7 + $0x158] sm:$0xff]
    %v182 = vld [vmem:[#allocation7 + $0x160] sm:$0xff]
    %v183 = vld [vmem:[#allocation7 + $0x168] sm:$0xff]
    %v184 = vld [vmem:[#allocation7 + $0x170] sm:$0xff]
    %v185 = vld [vmem:[#allocation7 + $0x178] sm:$0xff]
    %v186 = vld [vmem:[#allocation7 + $0x180] sm:$0xff]
    %v187 = vld [vmem:[#allocation7 + $0x188] sm:$0xff]
    %v188 = vld [vmem:[#allocation7 + $0x190] sm:$0xff]
    %v189 = vld [vmem:[#allocation7 + $0x198] sm:$0xff]
    %v190 = vld [vmem:[#allocation7 + $0x1a0] sm:$0xff]
    %v191 = vld [vmem:[#allocation7 + $0x1a8] sm:$0xff]
    %v192 = vld [vmem:[#allocation7 + $0x1b0] sm:$0xff]
    %v193 = vld [vmem:[#allocation7 + $0x1b8] sm:$0xff]
    %v194 = vld [vmem:[#allocation7 + $0x1c0] sm:$0xff]
    %v195 = vld [vmem:[#allocation7 + $0x1c8] sm:$0xff]
    %v196 = vld [vmem:[#allocation7 + $0x1d0] sm:$0xff]
    %v197 = vld [vmem:[#allocation7 + $0x1d8] sm:$0xff]
    %v198 = vld [vmem:[#allocation7 + $0x1e0] sm:$0xff]
    %v199 = vld [vmem:[#allocation7 + $0x1e8] sm:$0xff]
    %v200 = vld [vmem:[#allocation7 + $0x1f0] sm:$0xff]
    %v201 = vld [vmem:[#allocation7 + $0x1f8] sm:$0xff]
    %v202 = vld [vmem:[#allocation7 + $0x200] sm:$0xff]
    %v203 = vld [vmem:[#allocation7 + $0x208] sm:$0xff]
    %v204 = vld [vmem:[#allocation7 + $0x210] sm:$0xff]
    %v205 = vld [vmem:[#allocation7 + $0x218] sm:$0xff]
    %v206 = vld [vmem:[#allocation7 + $0x220] sm:$0xff]
    %v207 = vld [vmem:[#allocation7 + $0x228] sm:$0xff]
    %v208 = vld [vmem:[#allocation7 + $0x230] sm:$0xff]
    %v209 = vld [vmem:[#allocation7 + $0x238] sm:$0xff]
    %v210 = vld [vmem:[#allocation7 + $0x240] sm:$0xff]
    %v211 = vld [vmem:[#allocation7 + $0x248] sm:$0xff]
    %v212 = vld [vmem:[#allocation7 + $0x250] sm:$0xff]
    %v213 = vld [vmem:[#allocation7 + $0x258] sm:$0xff]
    %v214 = vld [vmem:[#allocation7 + $0x260] sm:$0xff]
    %v215 = vld [vmem:[#allocation7 + $0x268] sm:$0xff]
    %v216 = vld [vmem:[#allocation7 + $0x270] sm:$0xff]
    %v217 = vld [vmem:[#allocation7 + $0x278] sm:$0xff]
    %v218 = vld [vmem:[#allocation7 + $0x280] sm:$0xff]
    %v219 = vld [vmem:[#allocation7 + $0x288] sm:$0xff]
    %v220 = vld [vmem:[#allocation7 + $0x290] sm:$0xff]
    %v221 = vld [vmem:[#allocation7 + $0x298] sm:$0xff]
    %v222 = vld [vmem:[#allocation7 + $0x2a0] sm:$0xff]
    %v223 = vld [vmem:[#allocation7 + $0x2a8] sm:$0xff]
    %v224 = vld [vmem:[#allocation7 + $0x2b0] sm:$0xff]
    %v225 = vld [vmem:[#allocation7 + $0x2b8] sm:$0xff]
    %v226 = vld [vmem:[#allocation7 + $0x2c0] sm:$0xff]
    %v227 = vld [vmem:[#allocation7 + $0x2c8] sm:$0xff]
    %v228 = vld [vmem:[#allocation7 + $0x2d0] sm:$0xff]
    %v229 = vld [vmem:[#allocation7 + $0x2d8] sm:$0xff]
    %v230 = vld [vmem:[#allocation7 + $0x2e0] sm:$0xff]
    %v231 = vld [vmem:[#allocation7 + $0x2e8] sm:$0xff]
    %v232 = vld [vmem:[#allocation7 + $0x2f0] sm:$0xff]
    %v233 = vld [vmem:[#allocation7 + $0x2f8] sm:$0xff]
    %v234 = vld [vmem:[#allocation7 + $0x300] sm:$0xff]
    %v235 = vld [vmem:[#allocation7 + $0x308] sm:$0xff]
    %v236 = vld [vmem:[#allocation7 + $0x310] sm:$0xff]
    %v237 = vld [vmem:[#allocation7 + $0x318] sm:$0xff]
    %v238 = vld [vmem:[#allocation7 + $0x320] sm:$0xff]
    %v239 = vld [vmem:[#allocation7 + $0x328] sm:$0xff]
    %v240 = vld [vmem:[#allocation7 + $0x330] sm:$0xff]
    %v241 = vld [vmem:[#allocation7 + $0x338] sm:$0xff]
    %v242 = vld [vmem:[#allocation7 + $0x340] sm:$0xff]
    %v243 = vld [vmem:[#allocation7 + $0x348] sm:$0xff]
    %v244 = vld [vmem:[#allocation7 + $0x350] sm:$0xff]
    %v245 = vld [vmem:[#allocation7 + $0x358] sm:$0xff]
    %v246 = vld [vmem:[#allocation7 + $0x360] sm:$0xff]
    %v247 = vld [vmem:[#allocation7 + $0x368] sm:$0xff]
    %v248 = vld [vmem:[#allocation7 + $0x370] sm:$0xff]
    %v249 = vld [vmem:[#allocation7 + $0x378] sm:$0xff]
    %v250 = vld [vmem:[#allocation7 + $0x380] sm:$0xff]
    %v251 = vld [vmem:[#allocation7 + $0x388] sm:$0xff]
    %v252 = vld [vmem:[#allocation7 + $0x390] sm:$0xff]
    %v253 = vld [vmem:[#allocation7 + $0x398] sm:$0xff]
    %v254 = vld [vmem:[#allocation7 + $0x3a0] sm:$0xff]
    %v255 = vld [vmem:[#allocation7 + $0x3a8] sm:$0xff]
    %v256 = vld [vmem:[#allocation7 + $0x3b0] sm:$0xff]
    %v257 = vld [vmem:[#allocation7 + $0x3b8] sm:$0xff]
    %v258 = vld [vmem:[#allocation7 + $0x3c0] sm:$0xff]
    %v259 = vld [vmem:[#allocation7 + $0x3c8] sm:$0xff]
    %v260 = vld [vmem:[#allocation7 + $0x3d0] sm:$0xff]
    %v261 = vld [vmem:[#allocation7 + $0x3d8] sm:$0xff]
    %v262 = vld [vmem:[#allocation7 + $0x3e0] sm:$0xff]
    %v263 = vld [vmem:[#allocation7 + $0x3e8] sm:$0xff]
    %v264 = vld [vmem:[#allocation7 + $0x3f0] sm:$0xff]
    %v265 = vld [vmem:[#allocation7 + $0x3f8] sm:$0xff]
    %v266 = vld [vmem:[#allocation7 + $0x400] sm:$0xff]
    %v267 = vld [vmem:[#allocation7 + $0x408] sm:$0xff]
    %v268 = vld [vmem:[#allocation7 + $0x410] sm:$0xff]
    %v269 = vld [vmem:[#allocation7 + $0x418] sm:$0xff]
    %v270 = vld [vmem:[#allocation7 + $0x420] sm:$0xff]
    %v271 = vld [vmem:[#allocation7 + $0x428] sm:$0xff]
    %v272 = vld [vmem:[#allocation7 + $0x430] sm:$0xff]
    %v273 = vld [vmem:[#allocation7 + $0x438] sm:$0xff]
    %v274 = vld [vmem:[#allocation7 + $0x440] sm:$0xff]
    %v275 = vld [vmem:[#allocation7 + $0x448] sm:$0xff]
    %v276 = vld [vmem:[#allocation7 + $0x450] sm:$0xff]
    %v277 = vld [vmem:[#allocation7 + $0x458] sm:$0xff]
    %v278 = vld [vmem:[#allocation7 + $0x460] sm:$0xff]
    %v279 = vld [vmem:[#allocation7 + $0x468] sm:$0xff]
    %v280 = vld [vmem:[#allocation7 + $0x470] sm:$0xff]
    %v281 = vld [vmem:[#allocation7 + $0x478] sm:$0xff]
    %v282 = vld [vmem:[#allocation7 + $0x480] sm:$0xff]
    %v283 = vld [vmem:[#allocation7 + $0x488] sm:$0xff]
    %v284 = vld [vmem:[#allocation7 + $0x490] sm:$0xff]
    %v285 = vld [vmem:[#allocation7 + $0x498] sm:$0xff]
    %v286 = vld [vmem:[#allocation7 + $0x4a0] sm:$0xff]
    %v287 = vld [vmem:[#allocation7 + $0x4a8] sm:$0xff]
    %v288 = vld [vmem:[#allocation7 + $0x4b0] sm:$0xff]
    %v289 = vld [vmem:[#allocation7 + $0x4b8] sm:$0xff]
    %v290 = vld [vmem:[#allocation7 + $0x4c0] sm:$0xff]
    %v291 = vld [vmem:[#allocation7 + $0x4c8] sm:$0xff]
    %v292 = vld [vmem:[#allocation7 + $0x4d0] sm:$0xff]
    %v293 = vld [vmem:[#allocation7 + $0x4d8] sm:$0xff]
    %v294 = vld [vmem:[#allocation7 + $0x4e0] sm:$0xff]
    %v295 = vld [vmem:[#allocation7 + $0x4e8] sm:$0xff]
    %v296 = vld [vmem:[#allocation7 + $0x4f0] sm:$0xff]
    %v297 = vld [vmem:[#allocation7 + $0x4f8] sm:$0xff]
    %v298 = vld [vmem:[#allocation7 + $0x500] sm:$0xff]
    %v299 = vld [vmem:[#allocation7 + $0x508] sm:$0xff]
    %v300 = vld [vmem:[#allocation7 + $0x510] sm:$0xff]
    %v301 = vld [vmem:[#allocation7 + $0x518] sm:$0xff]
    %v302 = vld [vmem:[#allocation7 + $0x520] sm:$0xff]
    %v303 = vld [vmem:[#allocation7 + $0x528] sm:$0xff]
    %v304 = vld [vmem:[#allocation7 + $0x530] sm:$0xff]
    %v305 = vld [vmem:[#allocation7 + $0x538] sm:$0xff]
    %v306 = vld [vmem:[#allocation7 + $0x540] sm:$0xff]
    %v307 = vld [vmem:[#allocation7 + $0x548] sm:$0xff]
    %v308 = vld [vmem:[#allocation7 + $0x550] sm:$0xff]
    %v309 = vld [vmem:[#allocation7 + $0x558] sm:$0xff]
    %v310 = vld [vmem:[#allocation7 + $0x560] sm:$0xff]
    %v311 = vld [vmem:[#allocation7 + $0x568] sm:$0xff]
    %v312 = vld [vmem:[#allocation7 + $0x570] sm:$0xff]
    %v313 = vld [vmem:[#allocation7 + $0x578] sm:$0xff]
    %v314 = vld [vmem:[#allocation7 + $0x580] sm:$0xff]
    %v315 = vld [vmem:[#allocation7 + $0x588] sm:$0xff]
    %v316 = vld [vmem:[#allocation7 + $0x590] sm:$0xff]
    %v317 = vld [vmem:[#allocation7 + $0x598] sm:$0xff]
    %v318 = vld [vmem:[#allocation7 + $0x5a0] sm:$0xff]
    %v319 = vld [vmem:[#allocation7 + $0x5a8] sm:$0xff]
    %v320 = vld [vmem:[#allocation7 + $0x5b0] sm:$0xff]
    %v321 = vld [vmem:[#allocation7 + $0x5b8] sm:$0xff]
    %v322 = vld [vmem:[#allocation7 + $0x5c0] sm:$0xff]
    %v323 = vld [vmem:[#allocation7 + $0x5c8] sm:$0xff]
    %v324 = vld [vmem:[#allocation7 + $0x5d0] sm:$0xff]
    %v325 = vld [vmem:[#allocation7 + $0x5d8] sm:$0xff]
    %v326 = vld [vmem:[#allocation7 + $0x5e0] sm:$0xff]
    %v327 = vld [vmem:[#allocation7 + $0x5e8] sm:$0xff]
    %v328 = vld [vmem:[#allocation7 + $0x5f0] sm:$0xff]
    %v329 = vld [vmem:[#allocation7 + $0x5f8] sm:$0xff]
    %v330 = vld [vmem:[#allocation7 + $0x600] sm:$0xff]
    %v331 = vld [vmem:[#allocation7 + $0x608] sm:$0xff]
    %v332 = vld [vmem:[#allocation7 + $0x610] sm:$0xff]
    %v333 = vld [vmem:[#allocation7 + $0x618] sm:$0xff]
    %v334 = vld [vmem:[#allocation7 + $0x620] sm:$0xff]
    %v335 = vld [vmem:[#allocation7 + $0x628] sm:$0xff]
    %v336 = vld [vmem:[#allocation7 + $0x630] sm:$0xff]
    %v337 = vld [vmem:[#allocation7 + $0x638] sm:$0xff]
    %v338 = vld [vmem:[#allocation7 + $0x640] sm:$0xff]
    %v339 = vld [vmem:[#allocation7 + $0x648] sm:$0xff]
    %v340 = vld [vmem:[#allocation7 + $0x650] sm:$0xff]
    %v341 = vld [vmem:[#allocation7 + $0x658] sm:$0xff]
    %v342 = vld [vmem:[#allocation7 + $0x660] sm:$0xff]
    %v343 = vld [vmem:[#allocation7 + $0x668] sm:$0xff]
    %v344 = vld [vmem:[#allocation7 + $0x670] sm:$0xff]
    %v345 = vld [vmem:[#allocation7 + $0x678] sm:$0xff]
    %v346 = vld [vmem:[#allocation7 + $0x680] sm:$0xff]
    %v347 = vld [vmem:[#allocation7 + $0x688] sm:$0xff]
    %v348 = vld [vmem:[#allocation7 + $0x690] sm:$0xff]
    %v349 = vld [vmem:[#allocation7 + $0x698] sm:$0xff]
    %v350 = vld [vmem:[#allocation7 + $0x6a0] sm:$0xff]
    %v351 = vld [vmem:[#allocation7 + $0x6a8] sm:$0xff]
    %v352 = vld [vmem:[#allocation7 + $0x6b0] sm:$0xff]
    %v353 = vld [vmem:[#allocation7 + $0x6b8] sm:$0xff]
    %v354 = vld [vmem:[#allocation7 + $0x6c0] sm:$0xff]
    %v355 = vld [vmem:[#allocation7 + $0x6c8] sm:$0xff]
    %v356 = vld [vmem:[#allocation7 + $0x6d0] sm:$0xff]
    %v357 = vld [vmem:[#allocation7 + $0x6d8] sm:$0xff]
    %v358 = vld [vmem:[#allocation7 + $0x6e0] sm:$0xff]
    %v359 = vld [vmem:[#allocation7 + $0x6e8] sm:$0xff]
    %v360 = vld [vmem:[#allocation7 + $0x6f0] sm:$0xff]
    %v361 = vld [vmem:[#allocation7 + $0x6f8] sm:$0xff]
    %v362 = vld [vmem:[#allocation7 + $0x700] sm:$0xff]
    %v363 = vld [vmem:[#allocation7 + $0x708] sm:$0xff]
    %v364 = vld [vmem:[#allocation7 + $0x710] sm:$0xff]
    %v365 = vld [vmem:[#allocation7 + $0x718] sm:$0xff]
    %v366 = vld [vmem:[#allocation7 + $0x720] sm:$0xff]
    %v367 = vld [vmem:[#allocation7 + $0x728] sm:$0xff]
    %v368 = vld [vmem:[#allocation7 + $0x730] sm:$0xff]
    %v369 = vld [vmem:[#allocation7 + $0x738] sm:$0xff]
    %v370 = vld [vmem:[#allocation7 + $0x740] sm:$0xff]
    %v371 = vld [vmem:[#allocation7 + $0x748] sm:$0xff]
    %v372 = vld [vmem:[#allocation7 + $0x750] sm:$0xff]
    %v373 = vld [vmem:[#allocation7 + $0x758] sm:$0xff]
    %v374 = vld [vmem:[#allocation7 + $0x760] sm:$0xff]
    %v375 = vld [vmem:[#allocation7 + $0x768] sm:$0xff]
    %v376 = vld [vmem:[#allocation7 + $0x770] sm:$0xff]
    %v377 = vld [vmem:[#allocation7 + $0x778] sm:$0xff]
    %v378 = vld [vmem:[#allocation7 + $0x780] sm:$0xff]
    %v379 = vld [vmem:[#allocation7 + $0x788] sm:$0xff]
    %v380 = vld [vmem:[#allocation7 + $0x790] sm:$0xff]
    %v381 = vld [vmem:[#allocation7 + $0x798] sm:$0xff]
    %v382 = vld [vmem:[#allocation7 + $0x7a0] sm:$0xff]
    %v383 = vld [vmem:[#allocation7 + $0x7a8] sm:$0xff]
    %v384 = vld [vmem:[#allocation7 + $0x7b0] sm:$0xff]
    %v385 = vld [vmem:[#allocation7 + $0x7b8] sm:$0xff]
    %v386 = vld [vmem:[#allocation7 + $0x7c0] sm:$0xff]
    %v387 = vld [vmem:[#allocation7 + $0x7c8] sm:$0xff]
    %v388 = vld [vmem:[#allocation7 + $0x7d0] sm:$0xff]
    %v389 = vld [vmem:[#allocation7 + $0x7d8] sm:$0xff]
    %v390 = vld [vmem:[#allocation7 + $0x7e0] sm:$0xff]
    %v391 = vld [vmem:[#allocation7 + $0x7e8] sm:$0xff]
    %v392 = vld [vmem:[#allocation7 + $0x7f0] sm:$0xff]
    %v393 = vld [vmem:[#allocation7 + $0x7f8] sm:$0xff]
    %v394 = vld [vmem:[#allocation7 + $0x800] sm:$0xff]
    %v395 = vld [vmem:[#allocation7 + $0x808] sm:$0xff]
    %v396 = vld [vmem:[#allocation7 + $0x810] sm:$0xff]
    %v397 = vld [vmem:[#allocation7 + $0x818] sm:$0xff]
    %v398 = vld [vmem:[#allocation7 + $0x820] sm:$0xff]
    %v399 = vld [vmem:[#allocation7 + $0x828] sm:$0xff]
    %v400 = vld [vmem:[#allocation7 + $0x830] sm:$0xff]
    %v401 = vld [vmem:[#allocation7 + $0x838] sm:$0xff]
    %v402 = vld [vmem:[#allocation7 + $0x840] sm:$0xff]
    %v403 = vld [vmem:[#allocation7 + $0x848] sm:$0xff]
    %v404 = vld [vmem:[#allocation7 + $0x850] sm:$0xff]
    %v405 = vld [vmem:[#allocation7 + $0x858] sm:$0xff]
    %v406 = vld [vmem:[#allocation7 + $0x860] sm:$0xff]
    %v407 = vld [vmem:[#allocation7 + $0x868] sm:$0xff]
    %v408 = vld [vmem:[#allocation7 + $0x870] sm:$0xff]
    %v409 = vld [vmem:[#allocation7 + $0x878] sm:$0xff]
    %v410 = vld [vmem:[#allocation7 + $0x880] sm:$0xff]
    %v411 = vld [vmem:[#allocation7 + $0x888] sm:$0xff]
    %v412 = vld [vmem:[#allocation7 + $0x890] sm:$0xff]
    %v413 = vld [vmem:[#allocation7 + $0x898] sm:$0xff]
    %v414 = vld [vmem:[#allocation7 + $0x8a0] sm:$0xff]
    %v415 = vld [vmem:[#allocation7 + $0x8a8] sm:$0xff]
    %v416 = vld [vmem:[#allocation7 + $0x8b0] sm:$0xff]
    %v417 = vld [vmem:[#allocation7 + $0x8b8] sm:$0xff]
    %v418 = vld [vmem:[#allocation7 + $0x8c0] sm:$0xff]
    %v419 = vld [vmem:[#allocation7 + $0x8c8] sm:$0xff]
    %v420 = vld [vmem:[#allocation7 + $0x8d0] sm:$0xff]
    %v421 = vld [vmem:[#allocation7 + $0x8d8] sm:$0xff]
    %v422 = vld [vmem:[#allocation7 + $0x8e0] sm:$0xff]
    %v423 = vld [vmem:[#allocation7 + $0x8e8] sm:$0xff]
    %v424 = vld [vmem:[#allocation7 + $0x8f0] sm:$0xff]
    %v425 = vld [vmem:[#allocation7 + $0x8f8] sm:$0xff]
    %v426 = vld [vmem:[#allocation7 + $0x900] sm:$0xff]
    %v427 = vld [vmem:[#allocation7 + $0x908] sm:$0xff]
    %v428 = vld [vmem:[#allocation7 + $0x910] sm:$0xff]
    %v429 = vld [vmem:[#allocation7 + $0x918] sm:$0xff]
    %v430 = vld [vmem:[#allocation7 + $0x920] sm:$0xff]
    %v431 = vld [vmem:[#allocation7 + $0x928] sm:$0xff]
    %v432 = vld [vmem:[#allocation7 + $0x930] sm:$0xff]
    %v433 = vld [vmem:[#allocation7 + $0x938] sm:$0xff]
    %v434 = vld [vmem:[#allocation7 + $0x940] sm:$0xff]
    %v435 = vld [vmem:[#allocation7 + $0x948] sm:$0xff]
    %v436 = vld [vmem:[#allocation7 + $0x950] sm:$0xff]
    %v437 = vld [vmem:[#allocation7 + $0x958] sm:$0xff]
    %v438 = vld [vmem:[#allocation7 + $0x960] sm:$0xff]
    %v439 = vld [vmem:[#allocation7 + $0x968] sm:$0xff]
    %v440 = vld [vmem:[#allocation7 + $0x970] sm:$0xff]
    %v441 = vld [vmem:[#allocation7 + $0x978] sm:$0xff]
    %v442 = vld [vmem:[#allocation7 + $0x980] sm:$0xff]
    %v443 = vld [vmem:[#allocation7 + $0x988] sm:$0xff]
    %v444 = vld [vmem:[#allocation7 + $0x990] sm:$0xff]
    %v445 = vld [vmem:[#allocation7 + $0x998] sm:$0xff]
    %v446 = vld [vmem:[#allocation7 + $0x9a0] sm:$0xff]
    %v447 = vld [vmem:[#allocation7 + $0x9a8] sm:$0xff]
    %v448 = vld [vmem:[#allocation7 + $0x9b0] sm:$0xff]
    %v449 = vld [vmem:[#allocation7 + $0x9b8] sm:$0xff]
    %v450 = vld [vmem:[#allocation7 + $0x9c0] sm:$0xff]
    %v451 = vld [vmem:[#allocation7 + $0x9c8] sm:$0xff]
    %v452 = vld [vmem:[#allocation7 + $0x9d0] sm:$0xff]
    %v453 = vld [vmem:[#allocation7 + $0x9d8] sm:$0xff]
    %v454 = vld [vmem:[#allocation7 + $0x9e0] sm:$0xff]
    %v455 = vld [vmem:[#allocation7 + $0x9e8] sm:$0xff]
    %v456 = vld [vmem:[#allocation7 + $0x9f0] sm:$0xff]
    %v457 = vld [vmem:[#allocation7 + $0x9f8] sm:$0xff]
    %v458 = vld [vmem:[#allocation7 + $0xa00] sm:$0xff]
    %v459 = vld [vmem:[#allocation7 + $0xa08] sm:$0xff]
    %v460 = vld [vmem:[#allocation7 + $0xa10] sm:$0xff]
    %v461 = vld [vmem:[#allocation7 + $0xa18] sm:$0xff]
    %v462 = vld [vmem:[#allocation7 + $0xa20] sm:$0xff]
    %v463 = vld [vmem:[#allocation7 + $0xa28] sm:$0xff]
    %v464 = vld [vmem:[#allocation7 + $0xa30] sm:$0xff]
    %v465 = vld [vmem:[#allocation7 + $0xa38] sm:$0xff]
    %v466 = vld [vmem:[#allocation7 + $0xa40] sm:$0xff]
    %v467 = vld [vmem:[#allocation7 + $0xa48] sm:$0xff]
    %v468 = vld [vmem:[#allocation7 + $0xa50] sm:$0xff]
    %v469 = vld [vmem:[#allocation7 + $0xa58] sm:$0xff]
    %v470 = vld [vmem:[#allocation7 + $0xa60] sm:$0xff]
    %v471 = vld [vmem:[#allocation7 + $0xa68] sm:$0xff]
    %v472 = vld [vmem:[#allocation7 + $0xa70] sm:$0xff]
    %v473 = vld [vmem:[#allocation7 + $0xa78] sm:$0xff]
    %v474 = vld [vmem:[#allocation7 + $0xa80] sm:$0xff]
    %v475 = vld [vmem:[#allocation7 + $0xa88] sm:$0xff]
    %v476 = vld [vmem:[#allocation7 + $0xa90] sm:$0xff]
    %v477 = vld [vmem:[#allocation7 + $0xa98] sm:$0xff]
    %v478 = vld [vmem:[#allocation7 + $0xaa0] sm:$0xff]
    %v479 = vld [vmem:[#allocation7 + $0xaa8] sm:$0xff]
    %v480 = vld [vmem:[#allocation7 + $0xab0] sm:$0xff]
    %v481 = vld [vmem:[#allocation7 + $0xab8] sm:$0xff]
    %v482 = vld [vmem:[#allocation7 + $0xac0] sm:$0xff]
    %v483 = vld [vmem:[#allocation7 + $0xac8] sm:$0xff]
    %v484 = vld [vmem:[#allocation7 + $0xad0] sm:$0xff]
    %v485 = vld [vmem:[#allocation7 + $0xad8] sm:$0xff]
    %v486 = vld [vmem:[#allocation7 + $0xae0] sm:$0xff]
    %v487 = vld [vmem:[#allocation7 + $0xae8] sm:$0xff]
    %v488 = vld [vmem:[#allocation7 + $0xaf0] sm:$0xff]
    %v489 = vld [vmem:[#allocation7 + $0xaf8] sm:$0xff]
    %v490 = vld [vmem:[#allocation7 + $0xb00] sm:$0xff]
    %v491 = vld [vmem:[#allocation7 + $0xb08] sm:$0xff]
    %v492 = vld [vmem:[#allocation7 + $0xb10] sm:$0xff]
    %v493 = vld [vmem:[#allocation7 + $0xb18] sm:$0xff]
    %v494 = vld [vmem:[#allocation7 + $0xb20] sm:$0xff]
    %v495 = vld [vmem:[#allocation7 + $0xb28] sm:$0xff]
    %v496 = vld [vmem:[#allocation7 + $0xb30] sm:$0xff]
    %v497 = vld [vmem:[#allocation7 + $0xb38] sm:$0xff]
    %v498 = vld [vmem:[#allocation7 + $0xb40] sm:$0xff]
    %v499 = vld [vmem:[#allocation7 + $0xb48] sm:$0xff]
    %v500 = vld [vmem:[#allocation7 + $0xb50] sm:$0xff]
    %v501 = vld [vmem:[#allocation7 + $0xb58] sm:$0xff]
    %v502 = vld [vmem:[#allocation7 + $0xb60] sm:$0xff]
    %v503 = vld [vmem:[#allocation7 + $0xb68] sm:$0xff]
    %v504 = vld [vmem:[#allocation7 + $0xb70] sm:$0xff]
    %v505 = vld [vmem:[#allocation7 + $0xb78] sm:$0xff]
    %v506 = vld [vmem:[#allocation7 + $0xb80] sm:$0xff]
    %v507 = vld [vmem:[#allocation7 + $0xb88] sm:$0xff]
    %v508 = vld [vmem:[#allocation7 + $0xb90] sm:$0xff]
    %v509 = vld [vmem:[#allocation7 + $0xb98] sm:$0xff]
    %v510 = vld [vmem:[#allocation7 + $0xba0] sm:$0xff]
    %v511 = vld [vmem:[#allocation7 + $0xba8] sm:$0xff]
    %v512 = vld [vmem:[#allocation7 + $0xbb0] sm:$0xff]
    %v513 = vld [vmem:[#allocation7 + $0xbb8] sm:$0xff]
    %v514 = vld [vmem:[#allocation7 + $0xbc0] sm:$0xff]
    %v515 = vld [vmem:[#allocation7 + $0xbc8] sm:$0xff]
    %v516 = vld [vmem:[#allocation7 + $0xbd0] sm:$0xff]
    %v517 = vld [vmem:[#allocation7 + $0xbd8] sm:$0xff]
    %v518 = vld [vmem:[#allocation7 + $0xbe0] sm:$0xff]
    %v519 = vld [vmem:[#allocation7 + $0xbe8] sm:$0xff]
    %v520 = vld [vmem:[#allocation7 + $0xbf0] sm:$0xff]
    %v521 = vld [vmem:[#allocation7 + $0xbf8] sm:$0xff]
    %v522 = vld [vmem:[#allocation7 + $0xc00] sm:$0xff]
    %v523 = vld [vmem:[#allocation7 + $0xc08] sm:$0xff]
    %v524 = vld [vmem:[#allocation7 + $0xc10] sm:$0xff]
    %v525 = vld [vmem:[#allocation7 + $0xc18] sm:$0xff]
    %v526 = vld [vmem:[#allocation7 + $0xc20] sm:$0xff]
    %v527 = vld [vmem:[#allocation7 + $0xc28] sm:$0xff]
    %v528 = vld [vmem:[#allocation7 + $0xc30] sm:$0xff]
    %v529 = vld [vmem:[#allocation7 + $0xc38] sm:$0xff]
    %v530 = vld [vmem:[#allocation7 + $0xc40] sm:$0xff]
    %v531 = vld [vmem:[#allocation7 + $0xc48] sm:$0xff]
    %v532 = vld [vmem:[#allocation7 + $0xc50] sm:$0xff]
    %v533 = vld [vmem:[#allocation7 + $0xc58] sm:$0xff]
    %v534 = vld [vmem:[#allocation7 + $0xc60] sm:$0xff]
    %v535 = vld [vmem:[#allocation7 + $0xc68] sm:$0xff]
    %v536 = vld [vmem:[#allocation7 + $0xc70] sm:$0xff]
    %v537 = vld [vmem:[#allocation7 + $0xc78] sm:$0xff]
    %v538 = vld [vmem:[#allocation7 + $0xc80] sm:$0xff]
    %v539 = vld [vmem:[#allocation7 + $0xc88] sm:$0xff]
    %v540 = vld [vmem:[#allocation7 + $0xc90] sm:$0xff]
    %v541 = vld [vmem:[#allocation7 + $0xc98] sm:$0xff]
    %v542 = vld [vmem:[#allocation7 + $0xca0] sm:$0xff]
    %v543 = vld [vmem:[#allocation7 + $0xca8] sm:$0xff]
    %v544 = vld [vmem:[#allocation7 + $0xcb0] sm:$0xff]
    %v545 = vld [vmem:[#allocation7 + $0xcb8] sm:$0xff]
    %v546 = vld [vmem:[#allocation7 + $0xcc0] sm:$0xff]
    %v547 = vld [vmem:[#allocation7 + $0xcc8] sm:$0xff]
    %v548 = vld [vmem:[#allocation7 + $0xcd0] sm:$0xff]
    %v549 = vld [vmem:[#allocation7 + $0xcd8] sm:$0xff]
    %v550 = vld [vmem:[#allocation7 + $0xce0] sm:$0xff]
    %v551 = vld [vmem:[#allocation7 + $0xce8] sm:$0xff]
    %v552 = vld [vmem:[#allocation7 + $0xcf0] sm:$0xff]
    %v553 = vld [vmem:[#allocation7 + $0xcf8] sm:$0xff]
    %v554 = vld [vmem:[#allocation7 + $0xd00] sm:$0xff]
    %v555 = vld [vmem:[#allocation7 + $0xd08] sm:$0xff]
    %v556 = vld [vmem:[#allocation7 + $0xd10] sm:$0xff]
    %v557 = vld [vmem:[#allocation7 + $0xd18] sm:$0xff]
    %v558 = vld [vmem:[#allocation7 + $0xd20] sm:$0xff]
    %v559 = vld [vmem:[#allocation7 + $0xd28] sm:$0xff]
    %v560 = vld [vmem:[#allocation7 + $0xd30] sm:$0xff]
    %v561 = vld [vmem:[#allocation7 + $0xd38] sm:$0xff]
    %v562 = vld [vmem:[#allocation7 + $0xd40] sm:$0xff]
    %v563 = vld [vmem:[#allocation7 + $0xd48] sm:$0xff]
    %v564 = vld [vmem:[#allocation7 + $0xd50] sm:$0xff]
    %v565 = vld [vmem:[#allocation7 + $0xd58] sm:$0xff]
    %v566 = vld [vmem:[#allocation7 + $0xd60] sm:$0xff]
    %v567 = vld [vmem:[#allocation7 + $0xd68] sm:$0xff]
    %v568 = vld [vmem:[#allocation7 + $0xd70] sm:$0xff]
    %v569 = vld [vmem:[#allocation7 + $0xd78] sm:$0xff]
    %v570 = vld [vmem:[#allocation7 + $0xd80] sm:$0xff]
    %v571 = vld [vmem:[#allocation7 + $0xd88] sm:$0xff]
    %v572 = vld [vmem:[#allocation7 + $0xd90] sm:$0xff]
    %v573 = vld [vmem:[#allocation7 + $0xd98] sm:$0xff]
    %v574 = vld [vmem:[#allocation7 + $0xda0] sm:$0xff]
    %v575 = vld [vmem:[#allocation7 + $0xda8] sm:$0xff]
    %v576 = vld [vmem:[#allocation7 + $0xdb0] sm:$0xff]
    %v577 = vld [vmem:[#allocation7 + $0xdb8] sm:$0xff]
    %v578 = vld [vmem:[#allocation7 + $0xdc0] sm:$0xff]
    %v579 = vld [vmem:[#allocation7 + $0xdc8] sm:$0xff]
    %v580 = vld [vmem:[#allocation7 + $0xdd0] sm:$0xff]
    %v581 = vld [vmem:[#allocation7 + $0xdd8] sm:$0xff]
    %v582 = vld [vmem:[#allocation7 + $0xde0] sm:$0xff]
    %v583 = vld [vmem:[#allocation7 + $0xde8] sm:$0xff]
    %v584 = vld [vmem:[#allocation7 + $0xdf0] sm:$0xff]
    %v585 = vld [vmem:[#allocation7 + $0xdf8] sm:$0xff]
    %v586 = vld [vmem:[#allocation7 + $0xe00] sm:$0xff]
    %v587 = vld [vmem:[#allocation7 + $0xe08] sm:$0xff]
    %v588 = vld [vmem:[#allocation7 + $0xe10] sm:$0xff]
    %v589 = vld [vmem:[#allocation7 + $0xe18] sm:$0xff]
    %v590 = vld [vmem:[#allocation7 + $0xe20] sm:$0xff]
    %v591 = vld [vmem:[#allocation7 + $0xe28] sm:$0xff]
    %v592 = vld [vmem:[#allocation7 + $0xe30] sm:$0xff]
    %v593 = vld [vmem:[#allocation7 + $0xe38] sm:$0xff]
    %v594 = vld [vmem:[#allocation7 + $0xe40] sm:$0xff]
    %v595 = vld [vmem:[#allocation7 + $0xe48] sm:$0xff]
    %v596 = vld [vmem:[#allocation7 + $0xe50] sm:$0xff]
    %v597 = vld [vmem:[#allocation7 + $0xe58] sm:$0xff]
    %v598 = vld [vmem:[#allocation7 + $0xe60] sm:$0xff]
    %v599 = vld [vmem:[#allocation7 + $0xe68] sm:$0xff]
    %v600 = vld [vmem:[#allocation7 + $0xe70] sm:$0xff]
    %v601 = vld [vmem:[#allocation7 + $0xe78] sm:$0xff]
    %v602 = vld [vmem:[#allocation7 + $0xe80] sm:$0xff]
    %v603 = vld [vmem:[#allocation7 + $0xe88] sm:$0xff]
    %v604 = vld [vmem:[#allocation7 + $0xe90] sm:$0xff]
    %v605 = vld [vmem:[#allocation7 + $0xe98] sm:$0xff]
    %v606 = vld [vmem:[#allocation7 + $0xea0] sm:$0xff]
    %v607 = vld [vmem:[#allocation7 + $0xea8] sm:$0xff]
    %v608 = vld [vmem:[#allocation7 + $0xeb0] sm:$0xff]
    %v609 = vld [vmem:[#allocation7 + $0xeb8] sm:$0xff]
    %v610 = vld [vmem:[#allocation7 + $0xec0] sm:$0xff]
    %v611 = vld [vmem:[#allocation7 + $0xec8] sm:$0xff]
    %v612 = vld [vmem:[#allocation7 + $0xed0] sm:$0xff]
    %v613 = vld [vmem:[#allocation7 + $0xed8] sm:$0xff]
    %v614 = vld [vmem:[#allocation7 + $0xee0] sm:$0xff]
    %v615 = vld [vmem:[#allocation7 + $0xee8] sm:$0xff]
    %v616 = vld [vmem:[#allocation7 + $0xef0] sm:$0xff]
    %v617 = vld [vmem:[#allocation7 + $0xef8] sm:$0xff]
    %v618 = vld [vmem:[#allocation7 + $0xf00] sm:$0xff]
    %v619 = vld [vmem:[#allocation7 + $0xf08] sm:$0xff]
    %v620 = vld [vmem:[#allocation7 + $0xf10] sm:$0xff]
    %v621 = vld [vmem:[#allocation7 + $0xf18] sm:$0xff]
    %v622 = vld [vmem:[#allocation7 + $0xf20] sm:$0xff]
    %v623 = vld [vmem:[#allocation7 + $0xf28] sm:$0xff]
    %v624 = vld [vmem:[#allocation7 + $0xf30] sm:$0xff]
    %v625 = vld [vmem:[#allocation7 + $0xf38] sm:$0xff]
    %v626 = vld [vmem:[#allocation7 + $0xf40] sm:$0xff]
    %v627 = vld [vmem:[#allocation7 + $0xf48] sm:$0xff]
    %v628 = vld [vmem:[#allocation7 + $0xf50] sm:$0xff]
    %v629 = vld [vmem:[#allocation7 + $0xf58] sm:$0xff]
    %v630 = vld [vmem:[#allocation7 + $0xf60] sm:$0xff]
    %v631 = vld [vmem:[#allocation7 + $0xf68] sm:$0xff]
    %v632 = vld [vmem:[#allocation7 + $0xf70] sm:$0xff]
    %v633 = vld [vmem:[#allocation7 + $0xf78] sm:$0xff]
    %v634 = vld [vmem:[#allocation7 + $0xf80] sm:$0xff]
    %v635 = vld [vmem:[#allocation7 + $0xf88] sm:$0xff]
    %v636 = vld [vmem:[#allocation7 + $0xf90] sm:$0xff]
    %v637 = vld [vmem:[#allocation7 + $0xf98] sm:$0xff]
    %v638 = vld [vmem:[#allocation7 + $0xfa0] sm:$0xff]
    %v639 = vld [vmem:[#allocation7 + $0xfa8] sm:$0xff]
    %v640 = vld [vmem:[#allocation7 + $0xfb0] sm:$0xff]
    %v641 = vld [vmem:[#allocation7 + $0xfb8] sm:$0xff]
    %v642 = vld [vmem:[#allocation7 + $0xfc0] sm:$0xff]
    %v643 = vld [vmem:[#allocation7 + $0xfc8] sm:$0xff]
    %v644 = vld [vmem:[#allocation7 + $0xfd0] sm:$0xff]
    %v645 = vld [vmem:[#allocation7 + $0xfd8] sm:$0xff]
    %v646 = vld [vmem:[#allocation7 + $0xfe0] sm:$0xff]
    %v647 = vld [vmem:[#allocation7 + $0xfe8] sm:$0xff]
    %v648 = vld [vmem:[#allocation7 + $0xff0] sm:$0xff]
    %v649 = vld [vmem:[#allocation7 + $0xff8] sm:$0xff]
    %v650 = vld [vmem:[#allocation7 + $0x1000] sm:$0xff]
    %v651 = vld [vmem:[#allocation7 + $0x1008] sm:$0xff]
    %v652 = vld [vmem:[#allocation7 + $0x1010] sm:$0xff]
    %v653 = vld [vmem:[#allocation7 + $0x1018] sm:$0xff]
    %v654 = vld [vmem:[#allocation7 + $0x1020] sm:$0xff]
    %v655 = vld [vmem:[#allocation7 + $0x1028] sm:$0xff]
    %v656 = vld [vmem:[#allocation7 + $0x1030] sm:$0xff]
    %v657 = vld [vmem:[#allocation7 + $0x1038] sm:$0xff]
    %v658 = vld [vmem:[#allocation7 + $0x1040] sm:$0xff]
    %v659 = vld [vmem:[#allocation7 + $0x1048] sm:$0xff]
    %v660 = vld [vmem:[#allocation7 + $0x1050] sm:$0xff]
    %v661 = vld [vmem:[#allocation7 + $0x1058] sm:$0xff]
    %v662 = vld [vmem:[#allocation7 + $0x1060] sm:$0xff]
    %v663 = vld [vmem:[#allocation7 + $0x1068] sm:$0xff]
    %v664 = vld [vmem:[#allocation7 + $0x1070] sm:$0xff]
    %v665 = vld [vmem:[#allocation7 + $0x1078] sm:$0xff]
    %v666 = vld [vmem:[#allocation7 + $0x1080] sm:$0xff]
    %v667 = vld [vmem:[#allocation7 + $0x1088] sm:$0xff]
    %v668 = vld [vmem:[#allocation7 + $0x1090] sm:$0xff]
    %v669 = vld [vmem:[#allocation7 + $0x1098] sm:$0xff]
    %v670 = vld [vmem:[#allocation7 + $0x10a0] sm:$0xff]
    %v671 = vld [vmem:[#allocation7 + $0x10a8] sm:$0xff]
    %v672 = vld [vmem:[#allocation7 + $0x10b0] sm:$0xff]
    %v673 = vld [vmem:[#allocation7 + $0x10b8] sm:$0xff]
    %v674 = vld [vmem:[#allocation7 + $0x10c0] sm:$0xff]
    %v675 = vld [vmem:[#allocation7 + $0x10c8] sm:$0xff]
    %v676 = vld [vmem:[#allocation7 + $0x10d0] sm:$0xff]
    %v677 = vld [vmem:[#allocation7 + $0x10d8] sm:$0xff]
    %v678 = vld [vmem:[#allocation7 + $0x10e0] sm:$0xff]
    %v679 = vld [vmem:[#allocation7 + $0x10e8] sm:$0xff]
    %v680 = vld [vmem:[#allocation7 + $0x10f0] sm:$0xff]
    %v681 = vld [vmem:[#allocation7 + $0x10f8] sm:$0xff]
    %v682 = vld [vmem:[#allocation7 + $0x1100] sm:$0xff]
    %v683 = vld [vmem:[#allocation7 + $0x1108] sm:$0xff]
    %v684 = vld [vmem:[#allocation7 + $0x1110] sm:$0xff]
    %v685 = vld [vmem:[#allocation7 + $0x1118] sm:$0xff]
    %v686 = vld [vmem:[#allocation7 + $0x1120] sm:$0xff]
    %v687 = vld [vmem:[#allocation7 + $0x1128] sm:$0xff]
    %v688 = vld [vmem:[#allocation7 + $0x1130] sm:$0xff]
    %v689 = vld [vmem:[#allocation7 + $0x1138] sm:$0xff]
    %v690 = vld [vmem:[#allocation7 + $0x1140] sm:$0xff]
    %v691 = vld [vmem:[#allocation7 + $0x1148] sm:$0xff]
    %v692 = vld [vmem:[#allocation7 + $0x1150] sm:$0xff]
    %v693 = vld [vmem:[#allocation7 + $0x1158] sm:$0xff]
    %v694 = vld [vmem:[#allocation7 + $0x1160] sm:$0xff]
    %v695 = vld [vmem:[#allocation7 + $0x1168] sm:$0xff]
    %v696 = vld [vmem:[#allocation7 + $0x1170] sm:$0xff]
    %v697 = vld [vmem:[#allocation7 + $0x1178] sm:$0xff]
    %v698 = vld [vmem:[#allocation7 + $0x1180] sm:$0xff]
    %v699 = vld [vmem:[#allocation7 + $0x1188] sm:$0xff]
    %v700 = vld [vmem:[#allocation7 + $0x1190] sm:$0xff]
    %v701 = vld [vmem:[#allocation7 + $0x1198] sm:$0xff]
    %v702 = vld [vmem:[#allocation7 + $0x11a0] sm:$0xff]
    %v703 = vld [vmem:[#allocation7 + $0x11a8] sm:$0xff]
    %v704 = vld [vmem:[#allocation7 + $0x11b0] sm:$0xff]
    %v705 = vld [vmem:[#allocation7 + $0x11b8] sm:$0xff]
    %v706 = vld [vmem:[#allocation7 + $0x11c0] sm:$0xff]
    %v707 = vld [vmem:[#allocation7 + $0x11c8] sm:$0xff]
    %v708 = vld [vmem:[#allocation7 + $0x11d0] sm:$0xff]
    %v709 = vld [vmem:[#allocation7 + $0x11d8] sm:$0xff]
    %v710 = vld [vmem:[#allocation7 + $0x11e0] sm:$0xff]
    %v711 = vld [vmem:[#allocation7 + $0x11e8] sm:$0xff]
    %v712 = vld [vmem:[#allocation7 + $0x11f0] sm:$0xff]
    %v713 = vld [vmem:[#allocation7 + $0x11f8] sm:$0xff]
    %v714 = vld [vmem:[#allocation8] sm:$0x3f]
    %v716 = vlaneseq
    %v717 = vshrl.u32 %v716, 7
    %v718 = vsub.s32 0, %v717
    %v719 = vrot.slane %v714, %v718
    %v720 = vlaneseq
    %v721 = vshrl.u32 %v720, 7
    %v722 = vsub.s32 1, %v721
    %v723 = vrot.slane %v714, %v722
    %v724 = vlaneseq
    %v725 = vshrl.u32 %v724, 7
    %v726 = vsub.s32 2, %v725
    %v727 = vrot.slane %v714, %v726
    %v728 = vlaneseq
    %v729 = vshrl.u32 %v728, 7
    %v730 = vsub.s32 3, %v729
    %v731 = vrot.slane %v714, %v730
    %v732 = vlaneseq
    %v733 = vshrl.u32 %v732, 7
    %v734 = vsub.s32 4, %v733
    %v735 = vrot.slane %v714, %v734
    %v736 = vlaneseq
    %v737 = vshrl.u32 %v736, 7
    %v738 = vsub.s32 5, %v737
    %v739 = vrot.slane %v714, %v738
    %746 = vmatprep.subr.mxu0 %v139
    %747 = vmatpush1.msra.mxu0 %v138
    %748 = vmatprep.subr.mxu0 %v145
    %749 = vmatpush1.msra.mxu0 %v144
    %750 = vmatprep.subr.mxu0 %v151
    %751 = vmatpush1.msra.mxu0 %v150
    %752 = vmatprep.subr.mxu0 %v157
    %753 = vmatpush1.msra.mxu0 %v156
    %754 = vmatprep.subr.mxu0 %v163
    %755 = vmatpush1.msra.mxu0 %v162
    %756 = vmatprep.subr.mxu0 %v169
    %757 = vmatpush1.msra.mxu0 %v168
    %758 = vmatprep.subr.mxu0 %v175
    %759 = vmatpush1.msra.mxu0 %v174
    %760 = vmatprep.subr.mxu0 %v181
    %761 = vmatpush1.msra.mxu0 %v180
    %762 = vmatprep.subr.mxu0 %v187
    %763 = vmatpush1.msra.mxu0 %v186
    %764 = vmatprep.subr.mxu0 %v193
    %765 = vmatpush1.msra.mxu0 %v192
    %766 = vmatprep.subr.mxu0 %v199
    %767 = vmatpush1.msra.mxu0 %v198
    %768 = vmatprep.subr.mxu0 %v205
    %769 = vmatpush1.msra.mxu0 %v204
    %770 = vmatprep.subr.mxu0 %v211
    %771 = vmatpush1.msra.mxu0 %v210
    %772 = vmatprep.subr.mxu0 %v217
    %773 = vmatpush1.msra.mxu0 %v216
    %774 = vmatprep.subr.mxu0 %v223
    %775 = vmatpush1.msra.mxu0 %v222
    %776 = vmatprep.subr.mxu0 %v229
    %777 = vmatpush1.msra.mxu0 %v228
    %778 = vmatprep.subr.mxu0 %v235
    %779 = vmatpush1.msra.mxu0 %v234
    %780 = vmatprep.subr.mxu0 %v241
    %781 = vmatpush1.msra.mxu0 %v240
    %782 = vmatprep.subr.mxu0 %v247
    %783 = vmatpush1.msra.mxu0 %v246
    %784 = vmatprep.subr.mxu0 %v253
    %785 = vmatpush1.msra.mxu0 %v252
    %786 = vmatprep.subr.mxu0 %v259
    %787 = vmatpush1.msra.mxu0 %v258
    %788 = vmatprep.subr.mxu0 %v265
    %789 = vmatpush1.msra.mxu0 %v264
    %790 = vmatprep.subr.mxu0 %v271
    %791 = vmatpush1.msra.mxu0 %v270
    %792 = vmatprep.subr.mxu0 %v277
    %793 = vmatpush1.msra.mxu0 %v276
    %794 = vmatprep.subr.mxu0 %v283
    %795 = vmatpush1.msra.mxu0 %v282
    %796 = vmatprep.subr.mxu0 %v289
    %797 = vmatpush1.msra.mxu0 %v288
    %798 = vmatprep.subr.mxu0 %v295
    %799 = vmatpush1.msra.mxu0 %v294
    %800 = vmatprep.subr.mxu0 %v301
    %801 = vmatpush1.msra.mxu0 %v300
    %802 = vmatprep.subr.mxu0 %v307
    %803 = vmatpush1.msra.mxu0 %v306
    %804 = vmatprep.subr.mxu0 %v313
    %805 = vmatpush1.msra.mxu0 %v312
    %806 = vmatprep.subr.mxu0 %v319
    %807 = vmatpush1.msra.mxu0 %v318
    %808 = vmatprep.subr.mxu0 %v325
    %809 = vmatpush1.msra.mxu0 %v324
    %810 = vmatprep.mubr.f32.mxu0 %v133
    %811 = vmatmul.mubr.f32.gmra.mrb[0].mxu0 %v132
    %v812 = vpop.f32.mrb[0].mxu0
    %v813 = vadd.f32 %v719, %v812
    %v814 = vpop.f32.mrb[0].mxu0
    %v815 = vadd.f32 %v723, %v814
    %816 = vdwg.mxu0
    %817 = vmatprep.subr.mxu0 %v331
    %818 = vmatpush1.msra.mxu0 %v330
    %819 = vmatprep.subr.mxu0 %v337
    %820 = vmatpush1.msra.mxu0 %v336
    %821 = vmatprep.subr.mxu0 %v343
    %822 = vmatpush1.msra.mxu0 %v342
    %823 = vmatprep.subr.mxu0 %v349
    %824 = vmatpush1.msra.mxu0 %v348
    %825 = vmatprep.subr.mxu0 %v355
    %826 = vmatpush1.msra.mxu0 %v354
    %827 = vmatprep.subr.mxu0 %v361
    %828 = vmatpush1.msra.mxu0 %v360
    %829 = vmatprep.subr.mxu0 %v367
    %830 = vmatpush1.msra.mxu0 %v366
    %831 = vmatprep.subr.mxu0 %v373
    %832 = vmatpush1.msra.mxu0 %v372
    %833 = vmatprep.subr.mxu0 %v379
    %834 = vmatpush1.msra.mxu0 %v378
    %835 = vmatprep.subr.mxu0 %v385
    %836 = vmatpush1.msra.mxu0 %v384
    %837 = vmatprep.subr.mxu0 %v391
    %838 = vmatpush1.msra.mxu0 %v390
    %839 = vmatprep.subr.mxu0 %v397
    %840 = vmatpush1.msra.mxu0 %v396
    %841 = vmatprep.subr.mxu0 %v403
    %842 = vmatpush1.msra.mxu0 %v402
    %843 = vmatprep.subr.mxu0 %v409
    %844 = vmatpush1.msra.mxu0 %v408
    %845 = vmatprep.subr.mxu0 %v415
    %846 = vmatpush1.msra.mxu0 %v414
    %847 = vmatprep.subr.mxu0 %v421
    %848 = vmatpush1.msra.mxu0 %v420
    %849 = vmatprep.subr.mxu0 %v427
    %850 = vmatpush1.msra.mxu0 %v426
    %851 = vmatprep.subr.mxu0 %v433
    %852 = vmatpush1.msra.mxu0 %v432
    %853 = vmatprep.subr.mxu0 %v439
    %854 = vmatpush1.msra.mxu0 %v438
    %855 = vmatprep.subr.mxu0 %v445
    %856 = vmatpush1.msra.mxu0 %v444
    %857 = vmatprep.subr.mxu0 %v451
    %858 = vmatpush1.msra.mxu0 %v450
    %859 = vmatprep.subr.mxu0 %v457
    %860 = vmatpush1.msra.mxu0 %v456
    %861 = vmatprep.subr.mxu0 %v463
    %862 = vmatpush1.msra.mxu0 %v462
    %863 = vmatprep.subr.mxu0 %v469
    %864 = vmatpush1.msra.mxu0 %v468
    %865 = vmatprep.subr.mxu0 %v475
    %866 = vmatpush1.msra.mxu0 %v474
    %867 = vmatprep.subr.mxu0 %v481
    %868 = vmatpush1.msra.mxu0 %v480
    %869 = vmatprep.subr.mxu0 %v487
    %870 = vmatpush1.msra.mxu0 %v486
    %871 = vmatprep.subr.mxu0 %v493
    %872 = vmatpush1.msra.mxu0 %v492
    %873 = vmatprep.subr.mxu0 %v499
    %874 = vmatpush1.msra.mxu0 %v498
    %875 = vmatprep.subr.mxu0 %v505
    %876 = vmatpush1.msra.mxu0 %v504
    %877 = vmatprep.subr.mxu0 %v511
    %878 = vmatpush1.msra.mxu0 %v510
    %879 = vmatprep.subr.mxu0 %v517
    %880 = vmatpush1.msra.mxu0 %v516
    %881 = vmatprep.mubr.f32.mxu0 %v135
    %882 = vmatmul.mubr.f32.gmra.mrb[0].mxu0 %v134
    %v883 = vpop.f32.mrb[0].mxu0
    %v884 = vadd.f32 %v813, %v883
    %v885 = vpop.f32.mrb[0].mxu0
    %v886 = vadd.f32 %v815, %v885
    %887 = vdwg.mxu0
    %888 = vmatprep.subr.mxu0 %v523
    %889 = vmatpush1.msra.mxu0 %v522
    %890 = vmatprep.subr.mxu0 %v529
    %891 = vmatpush1.msra.mxu0 %v528
    %892 = vmatprep.subr.mxu0 %v535
    %893 = vmatpush1.msra.mxu0 %v534
    %894 = vmatprep.subr.mxu0 %v541
    %895 = vmatpush1.msra.mxu0 %v540
    %896 = vmatprep.subr.mxu0 %v547
    %897 = vmatpush1.msra.mxu0 %v546
    %898 = vmatprep.subr.mxu0 %v553
    %899 = vmatpush1.msra.mxu0 %v552
    %900 = vmatprep.subr.mxu0 %v559
    %901 = vmatpush1.msra.mxu0 %v558
    %902 = vmatprep.subr.mxu0 %v565
    %903 = vmatpush1.msra.mxu0 %v564
    %904 = vmatprep.subr.mxu0 %v571
    %905 = vmatpush1.msra.mxu0 %v570
    %906 = vmatprep.subr.mxu0 %v577
    %907 = vmatpush1.msra.mxu0 %v576
    %908 = vmatprep.subr.mxu0 %v583
    %909 = vmatpush1.msra.mxu0 %v582
    %910 = vmatprep.subr.mxu0 %v589
    %911 = vmatpush1.msra.mxu0 %v588
    %912 = vmatprep.subr.mxu0 %v595
    %913 = vmatpush1.msra.mxu0 %v594
    %914 = vmatprep.subr.mxu0 %v601
    %915 = vmatpush1.msra.mxu0 %v600
    %916 = vmatprep.subr.mxu0 %v607
    %917 = vmatpush1.msra.mxu0 %v606
    %918 = vmatprep.subr.mxu0 %v613
    %919 = vmatpush1.msra.mxu0 %v612
    %920 = vmatprep.subr.mxu0 %v619
    %921 = vmatpush1.msra.mxu0 %v618
    %922 = vmatprep.subr.mxu0 %v625
    %923 = vmatpush1.msra.mxu0 %v624
    %924 = vmatprep.subr.mxu0 %v631
    %925 = vmatpush1.msra.mxu0 %v630
    %926 = vmatprep.subr.mxu0 %v637
    %927 = vmatpush1.msra.mxu0 %v636
    %928 = vmatprep.subr.mxu0 %v643
    %929 = vmatpush1.msra.mxu0 %v642
    %930 = vmatprep.subr.mxu0 %v649
    %931 = vmatpush1.msra.mxu0 %v648
    %932 = vmatprep.subr.mxu0 %v655
    %933 = vmatpush1.msra.mxu0 %v654
    %934 = vmatprep.subr.mxu0 %v661
    %935 = vmatpush1.msra.mxu0 %v660
    %936 = vmatprep.subr.mxu0 %v667
    %937 = vmatpush1.msra.mxu0 %v666
    %938 = vmatprep.subr.mxu0 %v673
    %939 = vmatpush1.msra.mxu0 %v672
    %940 = vmatprep.subr.mxu0 %v679
    %941 = vmatpush1.msra.mxu0 %v678
    %942 = vmatprep.subr.mxu0 %v685
    %943 = vmatpush1.msra.mxu0 %v684
    %944 = vmatprep.subr.mxu0 %v691
    %945 = vmatpush1.msra.mxu0 %v690
    %946 = vmatprep.subr.mxu0 %v697
    %947 = vmatpush1.msra.mxu0 %v696
    %948 = vmatprep.subr.mxu0 %v703
    %949 = vmatpush1.msra.mxu0 %v702
    %950 = vmatprep.subr.mxu0 %v709
    %951 = vmatpush1.msra.mxu0 %v708
    %952 = vmatprep.mubr.f32.mxu0 %v137
    %953 = vmatmul.mubr.f32.gmra.mrb[0].mxu0 %v136
    %v954 = vpop.f32.mrb[0].mxu0
    %v955 = vadd.f32 %v884, %v954
    %v956 = vpop.f32.mrb[0].mxu0
    %v957 = vadd.f32 %v886, %v956
    %958 = vdwg.mxu0
    %959 = vmatprep.subr.mxu0 %v141
    %960 = vmatpush1.msra.mxu0 %v140
    %961 = vmatprep.subr.mxu0 %v147
    %962 = vmatpush1.msra.mxu0 %v146
    %963 = vmatprep.subr.mxu0 %v153
    %964 = vmatpush1.msra.mxu0 %v152
    %965 = vmatprep.subr.mxu0 %v159
    %966 = vmatpush1.msra.mxu0 %v158
    %967 = vmatprep.subr.mxu0 %v165
    %968 = vmatpush1.msra.mxu0 %v164
    %969 = vmatprep.subr.mxu0 %v171
    %970 = vmatpush1.msra.mxu0 %v170
    %971 = vmatprep.subr.mxu0 %v177
    %972 = vmatpush1.msra.mxu0 %v176
    %973 = vmatprep.subr.mxu0 %v183
    %974 = vmatpush1.msra.mxu0 %v182
    %975 = vmatprep.subr.mxu0 %v189
    %976 = vmatpush1.msra.mxu0 %v188
    %977 = vmatprep.subr.mxu0 %v195
    %978 = vmatpush1.msra.mxu0 %v194
    %979 = vmatprep.subr.mxu0 %v201
    %980 = vmatpush1.msra.mxu0 %v200
    %981 = vmatprep.subr.mxu0 %v207
    %982 = vmatpush1.msra.mxu0 %v206
    %983 = vmatprep.subr.mxu0 %v213
    %984 = vmatpush1.msra.mxu0 %v212
    %985 = vmatprep.subr.mxu0 %v219
    %986 = vmatpush1.msra.mxu0 %v218
    %987 = vmatprep.subr.mxu0 %v225
    %988 = vmatpush1.msra.mxu0 %v224
    %989 = vmatprep.subr.mxu0 %v231
    %990 = vmatpush1.msra.mxu0 %v230
    %991 = vmatprep.subr.mxu0 %v237
    %992 = vmatpush1.msra.mxu0 %v236
    %993 = vmatprep.subr.mxu0 %v243
    %994 = vmatpush1.msra.mxu0 %v242
    %995 = vmatprep.subr.mxu0 %v249
    %996 = vmatpush1.msra.mxu0 %v248
    %997 = vmatprep.subr.mxu0 %v255
    %998 = vmatpush1.msra.mxu0 %v254
    %999 = vmatprep.subr.mxu0 %v261
    %1000 = vmatpush1.msra.mxu0 %v260
    %1001 = vmatprep.subr.mxu0 %v267
    %1002 = vmatpush1.msra.mxu0 %v266
    %1003 = vmatprep.subr.mxu0 %v273
    %1004 = vmatpush1.msra.mxu0 %v272
    %1005 = vmatprep.subr.mxu0 %v279
    %1006 = vmatpush1.msra.mxu0 %v278
    %1007 = vmatprep.subr.mxu0 %v285
    %1008 = vmatpush1.msra.mxu0 %v284
    %1009 = vmatprep.subr.mxu0 %v291
    %1010 = vmatpush1.msra.mxu0 %v290
    %1011 = vmatprep.subr.mxu0 %v297
    %1012 = vmatpush1.msra.mxu0 %v296
    %1013 = vmatprep.subr.mxu0 %v303
    %1014 = vmatpush1.msra.mxu0 %v302
    %1015 = vmatprep.subr.mxu0 %v309
    %1016 = vmatpush1.msra.mxu0 %v308
    %1017 = vmatprep.subr.mxu0 %v315
    %1018 = vmatpush1.msra.mxu0 %v314
    %1019 = vmatprep.subr.mxu0 %v321
    %1020 = vmatpush1.msra.mxu0 %v320
    %1021 = vmatprep.subr.mxu0 %v327
    %1022 = vmatpush1.msra.mxu0 %v326
    %1023 = vmatprep.mubr.f32.mxu0 %v133
    %1024 = vmatmul.mubr.f32.gmra.mrb[0].mxu0 %v132
    %v1025 = vpop.f32.mrb[0].mxu0
    %v1026 = vadd.f32 %v727, %v1025
    %v1027 = vpop.f32.mrb[0].mxu0
    %v1028 = vadd.f32 %v731, %v1027
    %1029 = vdwg.mxu0
    %1030 = vmatprep.subr.mxu0 %v333
    %1031 = vmatpush1.msra.mxu0 %v332
    %1032 = vmatprep.subr.mxu0 %v339
    %1033 = vmatpush1.msra.mxu0 %v338
    %1034 = vmatprep.subr.mxu0 %v345
    %1035 = vmatpush1.msra.mxu0 %v344
    %1036 = vmatprep.subr.mxu0 %v351
    %1037 = vmatpush1.msra.mxu0 %v350
    %1038 = vmatprep.subr.mxu0 %v357
    %1039 = vmatpush1.msra.mxu0 %v356
    %1040 = vmatprep.subr.mxu0 %v363
    %1041 = vmatpush1.msra.mxu0 %v362
    %1042 = vmatprep.subr.mxu0 %v369
    %1043 = vmatpush1.msra.mxu0 %v368
    %1044 = vmatprep.subr.mxu0 %v375
    %1045 = vmatpush1.msra.mxu0 %v374
    %1046 = vmatprep.subr.mxu0 %v381
    %1047 = vmatpush1.msra.mxu0 %v380
    %1048 = vmatprep.subr.mxu0 %v387
    %1049 = vmatpush1.msra.mxu0 %v386
    %1050 = vmatprep.subr.mxu0 %v393
    %1051 = vmatpush1.msra.mxu0 %v392
    %1052 = vmatprep.subr.mxu0 %v399
    %1053 = vmatpush1.msra.mxu0 %v398
    %1054 = vmatprep.subr.mxu0 %v405
    %1055 = vmatpush1.msra.mxu0 %v404
    %1056 = vmatprep.subr.mxu0 %v411
    %1057 = vmatpush1.msra.mxu0 %v410
    %1058 = vmatprep.subr.mxu0 %v417
    %1059 = vmatpush1.msra.mxu0 %v416
    %1060 = vmatprep.subr.mxu0 %v423
    %1061 = vmatpush1.msra.mxu0 %v422
    %1062 = vmatprep.subr.mxu0 %v429
    %1063 = vmatpush1.msra.mxu0 %v428
    %1064 = vmatprep.subr.mxu0 %v435
    %1065 = vmatpush1.msra.mxu0 %v434
    %1066 = vmatprep.subr.mxu0 %v441
    %1067 = vmatpush1.msra.mxu0 %v440
    %1068 = vmatprep.subr.mxu0 %v447
    %1069 = vmatpush1.msra.mxu0 %v446
    %1070 = vmatprep.subr.mxu0 %v453
    %1071 = vmatpush1.msra.mxu0 %v452
    %1072 = vmatprep.subr.mxu0 %v459
    %1073 = vmatpush1.msra.mxu0 %v458
    %1074 = vmatprep.subr.mxu0 %v465
    %1075 = vmatpush1.msra.mxu0 %v464
    %1076 = vmatprep.subr.mxu0 %v471
    %1077 = vmatpush1.msra.mxu0 %v470
    %1078 = vmatprep.subr.mxu0 %v477
    %1079 = vmatpush1.msra.mxu0 %v476
    %1080 = vmatprep.subr.mxu0 %v483
    %1081 = vmatpush1.msra.mxu0 %v482
    %1082 = vmatprep.subr.mxu0 %v489
    %1083 = vmatpush1.msra.mxu0 %v488
    %1084 = vmatprep.subr.mxu0 %v495
    %1085 = vmatpush1.msra.mxu0 %v494
    %1086 = vmatprep.subr.mxu0 %v501
    %1087 = vmatpush1.msra.mxu0 %v500
    %1088 = vmatprep.subr.mxu0 %v507
    %1089 = vmatpush1.msra.mxu0 %v506
    %1090 = vmatprep.subr.mxu0 %v513
    %1091 = vmatpush1.msra.mxu0 %v512
    %1092 = vmatprep.subr.mxu0 %v519
    %1093 = vmatpush1.msra.mxu0 %v518
    %1094 = vmatprep.mubr.f32.mxu0 %v135
    %1095 = vmatmul.mubr.f32.gmra.mrb[0].mxu0 %v134
    %v1096 = vpop.f32.mrb[0].mxu0
    %v1097 = vadd.f32 %v1026, %v1096
    %v1098 = vpop.f32.mrb[0].mxu0
    %v1099 = vadd.f32 %v1028, %v1098
    %1100 = vdwg.mxu0
    %1101 = vmatprep.subr.mxu0 %v525
    %1102 = vmatpush1.msra.mxu0 %v524
    %1103 = vmatprep.subr.mxu0 %v531
    %1104 = vmatpush1.msra.mxu0 %v530
    %1105 = vmatprep.subr.mxu0 %v537
    %1106 = vmatpush1.msra.mxu0 %v536
    %1107 = vmatprep.subr.mxu0 %v543
    %1108 = vmatpush1.msra.mxu0 %v542
    %1109 = vmatprep.subr.mxu0 %v549
    %1110 = vmatpush1.msra.mxu0 %v548
    %1111 = vmatprep.subr.mxu0 %v555
    %1112 = vmatpush1.msra.mxu0 %v554
    %1113 = vmatprep.subr.mxu0 %v561
    %1114 = vmatpush1.msra.mxu0 %v560
    %1115 = vmatprep.subr.mxu0 %v567
    %1116 = vmatpush1.msra.mxu0 %v566
    %1117 = vmatprep.subr.mxu0 %v573
    %1118 = vmatpush1.msra.mxu0 %v572
    %1119 = vmatprep.subr.mxu0 %v579
    %1120 = vmatpush1.msra.mxu0 %v578
    %1121 = vmatprep.subr.mxu0 %v585
    %1122 = vmatpush1.msra.mxu0 %v584
    %1123 = vmatprep.subr.mxu0 %v591
    %1124 = vmatpush1.msra.mxu0 %v590
    %1125 = vmatprep.subr.mxu0 %v597
    %1126 = vmatpush1.msra.mxu0 %v596
    %1127 = vmatprep.subr.mxu0 %v603
    %1128 = vmatpush1.msra.mxu0 %v602
    %1129 = vmatprep.subr.mxu0 %v609
    %1130 = vmatpush1.msra.mxu0 %v608
    %1131 = vmatprep.subr.mxu0 %v615
    %1132 = vmatpush1.msra.mxu0 %v614
    %1133 = vmatprep.subr.mxu0 %v621
    %1134 = vmatpush1.msra.mxu0 %v620
    %1135 = vmatprep.subr.mxu0 %v627
    %1136 = vmatpush1.msra.mxu0 %v626
    %1137 = vmatprep.subr.mxu0 %v633
    %1138 = vmatpush1.msra.mxu0 %v632
    %1139 = vmatprep.subr.mxu0 %v639
    %1140 = vmatpush1.msra.mxu0 %v638
    %1141 = vmatprep.subr.mxu0 %v645
    %1142 = vmatpush1.msra.mxu0 %v644
    %1143 = vmatprep.subr.mxu0 %v651
    %1144 = vmatpush1.msra.mxu0 %v650
    %1145 = vmatprep.subr.mxu0 %v657
    %1146 = vmatpush1.msra.mxu0 %v656
    %1147 = vmatprep.subr.mxu0 %v663
    %1148 = vmatpush1.msra.mxu0 %v662
    %1149 = vmatprep.subr.mxu0 %v669
    %1150 = vmatpush1.msra.mxu0 %v668
    %1151 = vmatprep.subr.mxu0 %v675
    %1152 = vmatpush1.msra.mxu0 %v674
    %1153 = vmatprep.subr.mxu0 %v681
    %1154 = vmatpush1.msra.mxu0 %v680
    %1155 = vmatprep.subr.mxu0 %v687
    %1156 = vmatpush1.msra.mxu0 %v686
    %1157 = vmatprep.subr.mxu0 %v693
    %1158 = vmatpush1.msra.mxu0 %v692
    %1159 = vmatprep.subr.mxu0 %v699
    %1160 = vmatpush1.msra.mxu0 %v698
    %1161 = vmatprep.subr.mxu0 %v705
    %1162 = vmatpush1.msra.mxu0 %v704
    %1163 = vmatprep.subr.mxu0 %v711
    %1164 = vmatpush1.msra.mxu0 %v710
    %1165 = vmatprep.mubr.f32.mxu0 %v137
    %1166 = vmatmul.mubr.f32.gmra.mrb[0].mxu0 %v136
    %v1167 = vpop.f32.mrb[0].mxu0
    %v1168 = vadd.f32 %v1097, %v1167
    %v1169 = vpop.f32.mrb[0].mxu0
    %v1170 = vadd.f32 %v1099, %v1169
    %1171 = vdwg.mxu0
    %1172 = vmatprep.subr.mxu0 %v143
    %1173 = vmatpush1.msra.mxu0 %v142
    %1174 = vmatprep.subr.mxu0 %v149
    %1175 = vmatpush1.msra.mxu0 %v148
    %1176 = vmatprep.subr.mxu0 %v155
    %1177 = vmatpush1.msra.mxu0 %v154
    %1178 = vmatprep.subr.mxu0 %v161
    %1179 = vmatpush1.msra.mxu0 %v160
    %1180 = vmatprep.subr.mxu0 %v167
    %1181 = vmatpush1.msra.mxu0 %v166
    %1182 = vmatprep.subr.mxu0 %v173
    %1183 = vmatpush1.msra.mxu0 %v172
    %1184 = vmatprep.subr.mxu0 %v179
    %1185 = vmatpush1.msra.mxu0 %v178
    %1186 = vmatprep.subr.mxu0 %v185
    %1187 = vmatpush1.msra.mxu0 %v184
    %1188 = vmatprep.subr.mxu0 %v191
    %1189 = vmatpush1.msra.mxu0 %v190
    %1190 = vmatprep.subr.mxu0 %v197
    %1191 = vmatpush1.msra.mxu0 %v196
    %1192 = vmatprep.subr.mxu0 %v203
    %1193 = vmatpush1.msra.mxu0 %v202
    %1194 = vmatprep.subr.mxu0 %v209
    %1195 = vmatpush1.msra.mxu0 %v208
    %1196 = vmatprep.subr.mxu0 %v215
    %1197 = vmatpush1.msra.mxu0 %v214
    %1198 = vmatprep.subr.mxu0 %v221
    %1199 = vmatpush1.msra.mxu0 %v220
    %1200 = vmatprep.subr.mxu0 %v227
    %1201 = vmatpush1.msra.mxu0 %v226
    %1202 = vmatprep.subr.mxu0 %v233
    %1203 = vmatpush1.msra.mxu0 %v232
    %1204 = vmatprep.subr.mxu0 %v239
    %1205 = vmatpush1.msra.mxu0 %v238
    %1206 = vmatprep.subr.mxu0 %v245
    %1207 = vmatpush1.msra.mxu0 %v244
    %1208 = vmatprep.subr.mxu0 %v251
    %1209 = vmatpush1.msra.mxu0 %v250
    %1210 = vmatprep.subr.mxu0 %v257
    %1211 = vmatpush1.msra.mxu0 %v256
    %1212 = vmatprep.subr.mxu0 %v263
    %1213 = vmatpush1.msra.mxu0 %v262
    %1214 = vmatprep.subr.mxu0 %v269
    %1215 = vmatpush1.msra.mxu0 %v268
    %1216 = vmatprep.subr.mxu0 %v275
    %1217 = vmatpush1.msra.mxu0 %v274
    %1218 = vmatprep.subr.mxu0 %v281
    %1219 = vmatpush1.msra.mxu0 %v280
    %1220 = vmatprep.subr.mxu0 %v287
    %1221 = vmatpush1.msra.mxu0 %v286
    %1222 = vmatprep.subr.mxu0 %v293
    %1223 = vmatpush1.msra.mxu0 %v292
    %1224 = vmatprep.subr.mxu0 %v299
    %1225 = vmatpush1.msra.mxu0 %v298
    %1226 = vmatprep.subr.mxu0 %v305
    %1227 = vmatpush1.msra.mxu0 %v304
    %1228 = vmatprep.subr.mxu0 %v311
    %1229 = vmatpush1.msra.mxu0 %v310
    %1230 = vmatprep.subr.mxu0 %v317
    %1231 = vmatpush1.msra.mxu0 %v316
    %1232 = vmatprep.subr.mxu0 %v323
    %1233 = vmatpush1.msra.mxu0 %v322
    %1234 = vmatprep.subr.mxu0 %v329
    %1235 = vmatpush1.msra.mxu0 %v328
    %1236 = vmatprep.mubr.f32.mxu0 %v133
    %1237 = vmatmul.mubr.f32.gmra.mrb[0].mxu0 %v132
    %v1238 = vpop.f32.mrb[0].mxu0
    %v1239 = vadd.f32 %v735, %v1238
    %v1240 = vpop.f32.mrb[0].mxu0
    %v1241 = vadd.f32 %v739, %v1240
    %1242 = vdwg.mxu0
    %1243 = vmatprep.subr.mxu0 %v335
    %1244 = vmatpush1.msra.mxu0 %v334
    %1245 = vmatprep.subr.mxu0 %v341
    %1246 = vmatpush1.msra.mxu0 %v340
    %1247 = vmatprep.subr.mxu0 %v347
    %1248 = vmatpush1.msra.mxu0 %v346
    %1249 = vmatprep.subr.mxu0 %v353
    %1250 = vmatpush1.msra.mxu0 %v352
    %1251 = vmatprep.subr.mxu0 %v359
    %1252 = vmatpush1.msra.mxu0 %v358
    %1253 = vmatprep.subr.mxu0 %v365
    %1254 = vmatpush1.msra.mxu0 %v364
    %1255 = vmatprep.subr.mxu0 %v371
    %1256 = vmatpush1.msra.mxu0 %v370
    %1257 = vmatprep.subr.mxu0 %v377
    %1258 = vmatpush1.msra.mxu0 %v376
    %1259 = vmatprep.subr.mxu0 %v383
    %1260 = vmatpush1.msra.mxu0 %v382
    %1261 = vmatprep.subr.mxu0 %v389
    %1262 = vmatpush1.msra.mxu0 %v388
    %1263 = vmatprep.subr.mxu0 %v395
    %1264 = vmatpush1.msra.mxu0 %v394
    %1265 = vmatprep.subr.mxu0 %v401
    %1266 = vmatpush1.msra.mxu0 %v400
    %1267 = vmatprep.subr.mxu0 %v407
    %1268 = vmatpush1.msra.mxu0 %v406
    %1269 = vmatprep.subr.mxu0 %v413
    %1270 = vmatpush1.msra.mxu0 %v412
    %1271 = vmatprep.subr.mxu0 %v419
    %1272 = vmatpush1.msra.mxu0 %v418
    %1273 = vmatprep.subr.mxu0 %v425
    %1274 = vmatpush1.msra.mxu0 %v424
    %1275 = vmatprep.subr.mxu0 %v431
    %1276 = vmatpush1.msra.mxu0 %v430
    %1277 = vmatprep.subr.mxu0 %v437
    %1278 = vmatpush1.msra.mxu0 %v436
    %1279 = vmatprep.subr.mxu0 %v443
    %1280 = vmatpush1.msra.mxu0 %v442
    %1281 = vmatprep.subr.mxu0 %v449
    %1282 = vmatpush1.msra.mxu0 %v448
    %1283 = vmatprep.subr.mxu0 %v455
    %1284 = vmatpush1.msra.mxu0 %v454
    %1285 = vmatprep.subr.mxu0 %v461
    %1286 = vmatpush1.msra.mxu0 %v460
    %1287 = vmatprep.subr.mxu0 %v467
    %1288 = vmatpush1.msra.mxu0 %v466
    %1289 = vmatprep.subr.mxu0 %v473
    %1290 = vmatpush1.msra.mxu0 %v472
    %1291 = vmatprep.subr.mxu0 %v479
    %1292 = vmatpush1.msra.mxu0 %v478
    %1293 = vmatprep.subr.mxu0 %v485
    %1294 = vmatpush1.msra.mxu0 %v484
    %1295 = vmatprep.subr.mxu0 %v491
    %1296 = vmatpush1.msra.mxu0 %v490
    %1297 = vmatprep.subr.mxu0 %v497
    %1298 = vmatpush1.msra.mxu0 %v496
    %1299 = vmatprep.subr.mxu0 %v503
    %1300 = vmatpush1.msra.mxu0 %v502
    %1301 = vmatprep.subr.mxu0 %v509
    %1302 = vmatpush1.msra.mxu0 %v508
    %1303 = vmatprep.subr.mxu0 %v515
    %1304 = vmatpush1.msra.mxu0 %v514
    %1305 = vmatprep.subr.mxu0 %v521
    %1306 = vmatpush1.msra.mxu0 %v520
    %1307 = vmatprep.mubr.f32.mxu0 %v135
    %1308 = vmatmul.mubr.f32.gmra.mrb[0].mxu0 %v134
    %v1309 = vpop.f32.mrb[0].mxu0
    %v1310 = vadd.f32 %v1239, %v1309
    %v1311 = vpop.f32.mrb[0].mxu0
    %v1312 = vadd.f32 %v1241, %v1311
    %1313 = vdwg.mxu0
    %1314 = vmatprep.subr.mxu0 %v527
    %1315 = vmatpush1.msra.mxu0 %v526
    %1316 = vmatprep.subr.mxu0 %v533
    %1317 = vmatpush1.msra.mxu0 %v532
    %1318 = vmatprep.subr.mxu0 %v539
    %1319 = vmatpush1.msra.mxu0 %v538
    %1320 = vmatprep.subr.mxu0 %v545
    %1321 = vmatpush1.msra.mxu0 %v544
    %1322 = vmatprep.subr.mxu0 %v551
    %1323 = vmatpush1.msra.mxu0 %v550
    %1324 = vmatprep.subr.mxu0 %v557
    %1325 = vmatpush1.msra.mxu0 %v556
    %1326 = vmatprep.subr.mxu0 %v563
    %1327 = vmatpush1.msra.mxu0 %v562
    %1328 = vmatprep.subr.mxu0 %v569
    %1329 = vmatpush1.msra.mxu0 %v568
    %1330 = vmatprep.subr.mxu0 %v575
    %1331 = vmatpush1.msra.mxu0 %v574
    %1332 = vmatprep.subr.mxu0 %v581
    %1333 = vmatpush1.msra.mxu0 %v580
    %1334 = vmatprep.subr.mxu0 %v587
    %1335 = vmatpush1.msra.mxu0 %v586
    %1336 = vmatprep.subr.mxu0 %v593
    %1337 = vmatpush1.msra.mxu0 %v592
    %1338 = vmatprep.subr.mxu0 %v599
    %1339 = vmatpush1.msra.mxu0 %v598
    %1340 = vmatprep.subr.mxu0 %v605
    %1341 = vmatpush1.msra.mxu0 %v604
    %1342 = vmatprep.subr.mxu0 %v611
    %1343 = vmatpush1.msra.mxu0 %v610
    %1344 = vmatprep.subr.mxu0 %v617
    %1345 = vmatpush1.msra.mxu0 %v616
    %1346 = vmatprep.subr.mxu0 %v623
    %1347 = vmatpush1.msra.mxu0 %v622
    %1348 = vmatprep.subr.mxu0 %v629
    %1349 = vmatpush1.msra.mxu0 %v628
    %1350 = vmatprep.subr.mxu0 %v635
    %1351 = vmatpush1.msra.mxu0 %v634
    %1352 = vmatprep.subr.mxu0 %v641
    %1353 = vmatpush1.msra.mxu0 %v640
    %1354 = vmatprep.subr.mxu0 %v647
    %1355 = vmatpush1.msra.mxu0 %v646
    %1356 = vmatprep.subr.mxu0 %v653
    %1357 = vmatpush1.msra.mxu0 %v652
    %1358 = vmatprep.subr.mxu0 %v659
    %1359 = vmatpush1.msra.mxu0 %v658
    %1360 = vmatprep.subr.mxu0 %v665
    %1361 = vmatpush1.msra.mxu0 %v664
    %1362 = vmatprep.subr.mxu0 %v671
    %1363 = vmatpush1.msra.mxu0 %v670
    %1364 = vmatprep.subr.mxu0 %v677
    %1365 = vmatpush1.msra.mxu0 %v676
    %1366 = vmatprep.subr.mxu0 %v683
    %1367 = vmatpush1.msra.mxu0 %v682
    %1368 = vmatprep.subr.mxu0 %v689
    %1369 = vmatpush1.msra.mxu0 %v688
    %1370 = vmatprep.subr.mxu0 %v695
    %1371 = vmatpush1.msra.mxu0 %v694
    %1372 = vmatprep.subr.mxu0 %v701
    %1373 = vmatpush1.msra.mxu0 %v700
    %1374 = vmatprep.subr.mxu0 %v707
    %1375 = vmatpush1.msra.mxu0 %v706
    %1376 = vmatprep.subr.mxu0 %v713
    %1377 = vmatpush1.msra.mxu0 %v712
    %1378 = vmatprep.mubr.f32.mxu0 %v137
    %1379 = vmatmul.mubr.f32.gmra.mrb[0].mxu0 %v136
    %v1380 = vpop.f32.mrb[0].mxu0
    %v1381 = vadd.f32 %v1310, %v1380
    %v1382 = vpop.f32.mrb[0].mxu0
    %v1383 = vadd.f32 %v1312, %v1382
    %1384 = vdwg.mxu0
    %v1385 = vmax.f32 %v955, 0.0
    %v1386 = vmax.f32 %v957, 0.0
    %v1387 = vmax.f32 %v1168, 0.0
    %v1388 = vmax.f32 %v1170, 0.0
    %v1389 = vmax.f32 %v1381, 0.0
    %v1390 = vmax.f32 %v1383, 0.0
    %v1391 = vld [vmem:[#allocation10] sm:$0xff]
    %v1392 = vld [vmem:[#allocation10 + $0x8] sm:$0xff]
    %v1393 = vld [vmem:[#allocation10 + $0x10] sm:$0xff]
    %v1394 = vld [vmem:[#allocation10 + $0x18] sm:$0xff]
    %v1395 = vld [vmem:[#allocation10 + $0x20] sm:$0xff]
    %v1396 = vld [vmem:[#allocation10 + $0x28] sm:$0xff]
    %v1397 = vld [vmem:[#allocation10 + $0x30] sm:$0xff]
    %v1398 = vld [vmem:[#allocation10 + $0x38] sm:$0xff]
    %v1399 = vld [vmem:[#allocation10 + $0x40] sm:$0xff]
    %v1400 = vld [vmem:[#allocation10 + $0x48] sm:$0xff]
    %v1401 = vld [vmem:[#allocation10 + $0x50] sm:$0xff]
    %v1402 = vld [vmem:[#allocation10 + $0x58] sm:$0xff]
    %v1403 = vld [vmem:[#allocation10 + $0x60] sm:$0xff]
    %v1404 = vld [vmem:[#allocation10 + $0x68] sm:$0xff]
    %v1405 = vld [vmem:[#allocation10 + $0x70] sm:$0xff]
    %v1406 = vld [vmem:[#allocation10 + $0x78] sm:$0xff]
    %v1407 = vld [vmem:[#allocation10 + $0x80] sm:$0xff]
    %v1408 = vld [vmem:[#allocation10 + $0x88] sm:$0xff]
    %v1409 = vld [vmem:[#allocation10 + $0x90] sm:$0xff]
    %v1410 = vld [vmem:[#allocation10 + $0x98] sm:$0xff]
    %v1411 = vld [vmem:[#allocation10 + $0xa0] sm:$0xff]
    %v1412 = vld [vmem:[#allocation10 + $0xa8] sm:$0xff]
    %v1413 = vld [vmem:[#allocation10 + $0xb0] sm:$0xff]
    %v1414 = vld [vmem:[#allocation10 + $0xb8] sm:$0xff]
    %v1415 = vld [vmem:[#allocation10 + $0xc0] sm:$0xff]
    %v1416 = vld [vmem:[#allocation10 + $0xc8] sm:$0xff]
    %v1417 = vld [vmem:[#allocation10 + $0xd0] sm:$0xff]
    %v1418 = vld [vmem:[#allocation10 + $0xd8] sm:$0xff]
    %v1419 = vld [vmem:[#allocation10 + $0xe0] sm:$0xff]
    %v1420 = vld [vmem:[#allocation10 + $0xe8] sm:$0xff]
    %v1421 = vld [vmem:[#allocation10 + $0xf0] sm:$0xff]
    %v1422 = vld [vmem:[#allocation10 + $0xf8] sm:$0xff]
    %v1423 = vld [vmem:[#allocation10 + $0x100] sm:$0xff]
    %v1424 = vld [vmem:[#allocation10 + $0x108] sm:$0xff]
    %v1425 = vld [vmem:[#allocation10 + $0x110] sm:$0xff]
    %v1426 = vld [vmem:[#allocation10 + $0x118] sm:$0xff]
    %v1427 = vld [vmem:[#allocation10 + $0x120] sm:$0xff]
    %v1428 = vld [vmem:[#allocation10 + $0x128] sm:$0xff]
    %v1429 = vld [vmem:[#allocation10 + $0x130] sm:$0xff]
    %v1430 = vld [vmem:[#allocation10 + $0x138] sm:$0xff]
    %v1431 = vld [vmem:[#allocation10 + $0x140] sm:$0xff]
    %v1432 = vld [vmem:[#allocation10 + $0x148] sm:$0xff]
    %v1433 = vld [vmem:[#allocation10 + $0x150] sm:$0xff]
    %v1434 = vld [vmem:[#allocation10 + $0x158] sm:$0xff]
    %v1435 = vld [vmem:[#allocation10 + $0x160] sm:$0xff]
    %v1436 = vld [vmem:[#allocation10 + $0x168] sm:$0xff]
    %v1437 = vld [vmem:[#allocation10 + $0x170] sm:$0xff]
    %v1438 = vld [vmem:[#allocation10 + $0x178] sm:$0xff]
    %v1439 = vld [vmem:[#allocation10 + $0x180] sm:$0xff]
    %v1440 = vld [vmem:[#allocation10 + $0x188] sm:$0xff]
    %v1441 = vld [vmem:[#allocation10 + $0x190] sm:$0xff]
    %v1442 = vld [vmem:[#allocation10 + $0x198] sm:$0xff]
    %v1443 = vld [vmem:[#allocation10 + $0x1a0] sm:$0xff]
    %v1444 = vld [vmem:[#allocation10 + $0x1a8] sm:$0xff]
    %v1445 = vld [vmem:[#allocation10 + $0x1b0] sm:$0xff]
    %v1446 = vld [vmem:[#allocation10 + $0x1b8] sm:$0xff]
    %v1447 = vld [vmem:[#allocation10 + $0x1c0] sm:$0xff]
    %v1448 = vld [vmem:[#allocation10 + $0x1c8] sm:$0xff]
    %v1449 = vld [vmem:[#allocation10 + $0x1d0] sm:$0xff]
    %v1450 = vld [vmem:[#allocation10 + $0x1d8] sm:$0xff]
    %v1451 = vld [vmem:[#allocation10 + $0x1e0] sm:$0xff]
    %v1452 = vld [vmem:[#allocation10 + $0x1e8] sm:$0xff]
    %v1453 = vld [vmem:[#allocation10 + $0x1f0] sm:$0xff]
    %v1454 = vld [vmem:[#allocation10 + $0x1f8] sm:$0xff]
    %v1455 = vld [vmem:[#allocation10 + $0x200] sm:$0xff]
    %v1456 = vld [vmem:[#allocation10 + $0x208] sm:$0xff]
    %v1457 = vld [vmem:[#allocation10 + $0x210] sm:$0xff]
    %v1458 = vld [vmem:[#allocation10 + $0x218] sm:$0xff]
    %v1459 = vld [vmem:[#allocation10 + $0x220] sm:$0xff]
    %v1460 = vld [vmem:[#allocation10 + $0x228] sm:$0xff]
    %v1461 = vld [vmem:[#allocation10 + $0x230] sm:$0xff]
    %v1462 = vld [vmem:[#allocation10 + $0x238] sm:$0xff]
    %v1463 = vld [vmem:[#allocation10 + $0x240] sm:$0xff]
    %v1464 = vld [vmem:[#allocation10 + $0x248] sm:$0xff]
    %v1465 = vld [vmem:[#allocation10 + $0x250] sm:$0xff]
    %v1466 = vld [vmem:[#allocation10 + $0x258] sm:$0xff]
    %v1467 = vld [vmem:[#allocation10 + $0x260] sm:$0xff]
    %v1468 = vld [vmem:[#allocation10 + $0x268] sm:$0xff]
    %v1469 = vld [vmem:[#allocation10 + $0x270] sm:$0xff]
    %v1470 = vld [vmem:[#allocation10 + $0x278] sm:$0xff]
    %v1471 = vld [vmem:[#allocation10 + $0x280] sm:$0xff]
    %v1472 = vld [vmem:[#allocation10 + $0x288] sm:$0xff]
    %v1473 = vld [vmem:[#allocation10 + $0x290] sm:$0xff]
    %v1474 = vld [vmem:[#allocation10 + $0x298] sm:$0xff]
    %v1475 = vld [vmem:[#allocation10 + $0x2a0] sm:$0xff]
    %v1476 = vld [vmem:[#allocation10 + $0x2a8] sm:$0xff]
    %v1477 = vld [vmem:[#allocation10 + $0x2b0] sm:$0xff]
    %v1478 = vld [vmem:[#allocation10 + $0x2b8] sm:$0xff]
    %v1479 = vld [vmem:[#allocation10 + $0x2c0] sm:$0xff]
    %v1480 = vld [vmem:[#allocation10 + $0x2c8] sm:$0xff]
    %v1481 = vld [vmem:[#allocation10 + $0x2d0] sm:$0xff]
    %v1482 = vld [vmem:[#allocation10 + $0x2d8] sm:$0xff]
    %v1483 = vld [vmem:[#allocation10 + $0x2e0] sm:$0xff]
    %v1484 = vld [vmem:[#allocation10 + $0x2e8] sm:$0xff]
    %v1485 = vld [vmem:[#allocation10 + $0x2f0] sm:$0xff]
    %v1486 = vld [vmem:[#allocation10 + $0x2f8] sm:$0xff]
    %v1487 = vld [vmem:[#allocation10 + $0x300] sm:$0xff]
    %v1488 = vld [vmem:[#allocation10 + $0x308] sm:$0xff]
    %v1489 = vld [vmem:[#allocation10 + $0x310] sm:$0xff]
    %v1490 = vld [vmem:[#allocation10 + $0x318] sm:$0xff]
    %v1491 = vld [vmem:[#allocation10 + $0x320] sm:$0xff]
    %v1492 = vld [vmem:[#allocation10 + $0x328] sm:$0xff]
    %v1493 = vld [vmem:[#allocation10 + $0x330] sm:$0xff]
    %v1494 = vld [vmem:[#allocation10 + $0x338] sm:$0xff]
    %v1495 = vld [vmem:[#allocation10 + $0x340] sm:$0xff]
    %v1496 = vld [vmem:[#allocation10 + $0x348] sm:$0xff]
    %v1497 = vld [vmem:[#allocation10 + $0x350] sm:$0xff]
    %v1498 = vld [vmem:[#allocation10 + $0x358] sm:$0xff]
    %v1499 = vld [vmem:[#allocation10 + $0x360] sm:$0xff]
    %v1500 = vld [vmem:[#allocation10 + $0x368] sm:$0xff]
    %v1501 = vld [vmem:[#allocation10 + $0x370] sm:$0xff]
    %v1502 = vld [vmem:[#allocation10 + $0x378] sm:$0xff]
    %v1503 = vld [vmem:[#allocation10 + $0x380] sm:$0xff]
    %v1504 = vld [vmem:[#allocation10 + $0x388] sm:$0xff]
    %v1505 = vld [vmem:[#allocation10 + $0x390] sm:$0xff]
    %v1506 = vld [vmem:[#allocation10 + $0x398] sm:$0xff]
    %v1507 = vld [vmem:[#allocation10 + $0x3a0] sm:$0xff]
    %v1508 = vld [vmem:[#allocation10 + $0x3a8] sm:$0xff]
    %v1509 = vld [vmem:[#allocation10 + $0x3b0] sm:$0xff]
    %v1510 = vld [vmem:[#allocation10 + $0x3b8] sm:$0xff]
    %v1511 = vld [vmem:[#allocation10 + $0x3c0] sm:$0xff]
    %v1512 = vld [vmem:[#allocation10 + $0x3c8] sm:$0xff]
    %v1513 = vld [vmem:[#allocation10 + $0x3d0] sm:$0xff]
    %v1514 = vld [vmem:[#allocation10 + $0x3d8] sm:$0xff]
    %v1515 = vld [vmem:[#allocation10 + $0x3e0] sm:$0xff]
    %v1516 = vld [vmem:[#allocation10 + $0x3e8] sm:$0xff]
    %v1517 = vld [vmem:[#allocation10 + $0x3f0] sm:$0xff]
    %v1518 = vld [vmem:[#allocation10 + $0x3f8] sm:$0xff]
    %v1519 = vld [vmem:[#allocation10 + $0x400] sm:$0xff]
    %v1520 = vld [vmem:[#allocation10 + $0x408] sm:$0xff]
    %v1521 = vld [vmem:[#allocation10 + $0x410] sm:$0xff]
    %v1522 = vld [vmem:[#allocation10 + $0x418] sm:$0xff]
    %v1523 = vld [vmem:[#allocation10 + $0x420] sm:$0xff]
    %v1524 = vld [vmem:[#allocation10 + $0x428] sm:$0xff]
    %v1525 = vld [vmem:[#allocation10 + $0x430] sm:$0xff]
    %v1526 = vld [vmem:[#allocation10 + $0x438] sm:$0xff]
    %v1527 = vld [vmem:[#allocation10 + $0x440] sm:$0xff]
    %v1528 = vld [vmem:[#allocation10 + $0x448] sm:$0xff]
    %v1529 = vld [vmem:[#allocation10 + $0x450] sm:$0xff]
    %v1530 = vld [vmem:[#allocation10 + $0x458] sm:$0xff]
    %v1531 = vld [vmem:[#allocation10 + $0x460] sm:$0xff]
    %v1532 = vld [vmem:[#allocation10 + $0x468] sm:$0xff]
    %v1533 = vld [vmem:[#allocation10 + $0x470] sm:$0xff]
    %v1534 = vld [vmem:[#allocation10 + $0x478] sm:$0xff]
    %v1535 = vld [vmem:[#allocation10 + $0x480] sm:$0xff]
    %v1536 = vld [vmem:[#allocation10 + $0x488] sm:$0xff]
    %v1537 = vld [vmem:[#allocation10 + $0x490] sm:$0xff]
    %v1538 = vld [vmem:[#allocation10 + $0x498] sm:$0xff]
    %v1539 = vld [vmem:[#allocation10 + $0x4a0] sm:$0xff]
    %v1540 = vld [vmem:[#allocation10 + $0x4a8] sm:$0xff]
    %v1541 = vld [vmem:[#allocation10 + $0x4b0] sm:$0xff]
    %v1542 = vld [vmem:[#allocation10 + $0x4b8] sm:$0xff]
    %v1543 = vld [vmem:[#allocation10 + $0x4c0] sm:$0xff]
    %v1544 = vld [vmem:[#allocation10 + $0x4c8] sm:$0xff]
    %v1545 = vld [vmem:[#allocation10 + $0x4d0] sm:$0xff]
    %v1546 = vld [vmem:[#allocation10 + $0x4d8] sm:$0xff]
    %v1547 = vld [vmem:[#allocation10 + $0x4e0] sm:$0xff]
    %v1548 = vld [vmem:[#allocation10 + $0x4e8] sm:$0xff]
    %v1549 = vld [vmem:[#allocation10 + $0x4f0] sm:$0xff]
    %v1550 = vld [vmem:[#allocation10 + $0x4f8] sm:$0xff]
    %v1551 = vld [vmem:[#allocation10 + $0x500] sm:$0xff]
    %v1552 = vld [vmem:[#allocation10 + $0x508] sm:$0xff]
    %v1553 = vld [vmem:[#allocation10 + $0x510] sm:$0xff]
    %v1554 = vld [vmem:[#allocation10 + $0x518] sm:$0xff]
    %v1555 = vld [vmem:[#allocation10 + $0x520] sm:$0xff]
    %v1556 = vld [vmem:[#allocation10 + $0x528] sm:$0xff]
    %v1557 = vld [vmem:[#allocation10 + $0x530] sm:$0xff]
    %v1558 = vld [vmem:[#allocation10 + $0x538] sm:$0xff]
    %v1559 = vld [vmem:[#allocation10 + $0x540] sm:$0xff]
    %v1560 = vld [vmem:[#allocation10 + $0x548] sm:$0xff]
    %v1561 = vld [vmem:[#allocation10 + $0x550] sm:$0xff]
    %v1562 = vld [vmem:[#allocation10 + $0x558] sm:$0xff]
    %v1563 = vld [vmem:[#allocation10 + $0x560] sm:$0xff]
    %v1564 = vld [vmem:[#allocation10 + $0x568] sm:$0xff]
    %v1565 = vld [vmem:[#allocation10 + $0x570] sm:$0xff]
    %v1566 = vld [vmem:[#allocation10 + $0x578] sm:$0xff]
    %v1567 = vld [vmem:[#allocation10 + $0x580] sm:$0xff]
    %v1568 = vld [vmem:[#allocation10 + $0x588] sm:$0xff]
    %v1569 = vld [vmem:[#allocation10 + $0x590] sm:$0xff]
    %v1570 = vld [vmem:[#allocation10 + $0x598] sm:$0xff]
    %v1571 = vld [vmem:[#allocation10 + $0x5a0] sm:$0xff]
    %v1572 = vld [vmem:[#allocation10 + $0x5a8] sm:$0xff]
    %v1573 = vld [vmem:[#allocation10 + $0x5b0] sm:$0xff]
    %v1574 = vld [vmem:[#allocation10 + $0x5b8] sm:$0xff]
    %v1575 = vld [vmem:[#allocation10 + $0x5c0] sm:$0xff]
    %v1576 = vld [vmem:[#allocation10 + $0x5c8] sm:$0xff]
    %v1577 = vld [vmem:[#allocation10 + $0x5d0] sm:$0xff]
    %v1578 = vld [vmem:[#allocation10 + $0x5d8] sm:$0xff]
    %v1579 = vld [vmem:[#allocation10 + $0x5e0] sm:$0xff]
    %v1580 = vld [vmem:[#allocation10 + $0x5e8] sm:$0xff]
    %v1581 = vld [vmem:[#allocation10 + $0x5f0] sm:$0xff]
    %v1582 = vld [vmem:[#allocation10 + $0x5f8] sm:$0xff]
    %v1583 = vld [vmem:[#allocation10 + $0x600] sm:$0xff]
    %v1584 = vld [vmem:[#allocation10 + $0x608] sm:$0xff]
    %v1585 = vld [vmem:[#allocation10 + $0x610] sm:$0xff]
    %v1586 = vld [vmem:[#allocation10 + $0x618] sm:$0xff]
    %v1587 = vld [vmem:[#allocation10 + $0x620] sm:$0xff]
    %v1588 = vld [vmem:[#allocation10 + $0x628] sm:$0xff]
    %v1589 = vld [vmem:[#allocation10 + $0x630] sm:$0xff]
    %v1590 = vld [vmem:[#allocation10 + $0x638] sm:$0xff]
    %v1591 = vld [vmem:[#allocation10 + $0x640] sm:$0xff]
    %v1592 = vld [vmem:[#allocation10 + $0x648] sm:$0xff]
    %v1593 = vld [vmem:[#allocation10 + $0x650] sm:$0xff]
    %v1594 = vld [vmem:[#allocation10 + $0x658] sm:$0xff]
    %v1595 = vld [vmem:[#allocation10 + $0x660] sm:$0xff]
    %v1596 = vld [vmem:[#allocation10 + $0x668] sm:$0xff]
    %v1597 = vld [vmem:[#allocation10 + $0x670] sm:$0xff]
    %v1598 = vld [vmem:[#allocation10 + $0x678] sm:$0xff]
    %v1599 = vld [vmem:[#allocation10 + $0x680] sm:$0xff]
    %v1600 = vld [vmem:[#allocation10 + $0x688] sm:$0xff]
    %v1601 = vld [vmem:[#allocation10 + $0x690] sm:$0xff]
    %v1602 = vld [vmem:[#allocation10 + $0x698] sm:$0xff]
    %v1603 = vld [vmem:[#allocation10 + $0x6a0] sm:$0xff]
    %v1604 = vld [vmem:[#allocation10 + $0x6a8] sm:$0xff]
    %v1605 = vld [vmem:[#allocation10 + $0x6b0] sm:$0xff]
    %v1606 = vld [vmem:[#allocation10 + $0x6b8] sm:$0xff]
    %v1607 = vld [vmem:[#allocation10 + $0x6c0] sm:$0xff]
    %v1608 = vld [vmem:[#allocation10 + $0x6c8] sm:$0xff]
    %v1609 = vld [vmem:[#allocation10 + $0x6d0] sm:$0xff]
    %v1610 = vld [vmem:[#allocation10 + $0x6d8] sm:$0xff]
    %v1611 = vld [vmem:[#allocation10 + $0x6e0] sm:$0xff]
    %v1612 = vld [vmem:[#allocation10 + $0x6e8] sm:$0xff]
    %v1613 = vld [vmem:[#allocation10 + $0x6f0] sm:$0xff]
    %v1614 = vld [vmem:[#allocation10 + $0x6f8] sm:$0xff]
    %v1615 = vld [vmem:[#allocation10 + $0x700] sm:$0xff]
    %v1616 = vld [vmem:[#allocation10 + $0x708] sm:$0xff]
    %v1617 = vld [vmem:[#allocation10 + $0x710] sm:$0xff]
    %v1618 = vld [vmem:[#allocation10 + $0x718] sm:$0xff]
    %v1619 = vld [vmem:[#allocation10 + $0x720] sm:$0xff]
    %v1620 = vld [vmem:[#allocation10 + $0x728] sm:$0xff]
    %v1621 = vld [vmem:[#allocation10 + $0x730] sm:$0xff]
    %v1622 = vld [vmem:[#allocation10 + $0x738] sm:$0xff]
    %v1623 = vld [vmem:[#allocation10 + $0x740] sm:$0xff]
    %v1624 = vld [vmem:[#allocation10 + $0x748] sm:$0xff]
    %v1625 = vld [vmem:[#allocation10 + $0x750] sm:$0xff]
    %v1626 = vld [vmem:[#allocation10 + $0x758] sm:$0xff]
    %v1627 = vld [vmem:[#allocation10 + $0x760] sm:$0xff]
    %v1628 = vld [vmem:[#allocation10 + $0x768] sm:$0xff]
    %v1629 = vld [vmem:[#allocation10 + $0x770] sm:$0xff]
    %v1630 = vld [vmem:[#allocation10 + $0x778] sm:$0xff]
    %v1631 = vld [vmem:[#allocation10 + $0x780] sm:$0xff]
    %v1632 = vld [vmem:[#allocation10 + $0x788] sm:$0xff]
    %v1633 = vld [vmem:[#allocation10 + $0x790] sm:$0xff]
    %v1634 = vld [vmem:[#allocation10 + $0x798] sm:$0xff]
    %v1635 = vld [vmem:[#allocation10 + $0x7a0] sm:$0xff]
    %v1636 = vld [vmem:[#allocation10 + $0x7a8] sm:$0xff]
    %v1637 = vld [vmem:[#allocation10 + $0x7b0] sm:$0xff]
    %v1638 = vld [vmem:[#allocation10 + $0x7b8] sm:$0xff]
    %v1639 = vld [vmem:[#allocation10 + $0x7c0] sm:$0xff]
    %v1640 = vld [vmem:[#allocation10 + $0x7c8] sm:$0xff]
    %v1641 = vld [vmem:[#allocation10 + $0x7d0] sm:$0xff]
    %v1642 = vld [vmem:[#allocation10 + $0x7d8] sm:$0xff]
    %v1643 = vld [vmem:[#allocation10 + $0x7e0] sm:$0xff]
    %v1644 = vld [vmem:[#allocation10 + $0x7e8] sm:$0xff]
    %v1645 = vld [vmem:[#allocation10 + $0x7f0] sm:$0xff]
    %v1646 = vld [vmem:[#allocation10 + $0x7f8] sm:$0xff]
    %v1647 = vld [vmem:[#allocation10 + $0x800] sm:$0xff]
    %v1648 = vld [vmem:[#allocation10 + $0x808] sm:$0xff]
    %v1649 = vld [vmem:[#allocation10 + $0x810] sm:$0xff]
    %v1650 = vld [vmem:[#allocation10 + $0x818] sm:$0xff]
    %v1651 = vld [vmem:[#allocation10 + $0x820] sm:$0xff]
    %v1652 = vld [vmem:[#allocation10 + $0x828] sm:$0xff]
    %v1653 = vld [vmem:[#allocation10 + $0x830] sm:$0xff]
    %v1654 = vld [vmem:[#allocation10 + $0x838] sm:$0xff]
    %v1655 = vld [vmem:[#allocation10 + $0x840] sm:$0xff]
    %v1656 = vld [vmem:[#allocation10 + $0x848] sm:$0xff]
    %v1657 = vld [vmem:[#allocation10 + $0x850] sm:$0xff]
    %v1658 = vld [vmem:[#allocation10 + $0x858] sm:$0xff]
    %v1659 = vld [vmem:[#allocation10 + $0x860] sm:$0xff]
    %v1660 = vld [vmem:[#allocation10 + $0x868] sm:$0xff]
    %v1661 = vld [vmem:[#allocation10 + $0x870] sm:$0xff]
    %v1662 = vld [vmem:[#allocation10 + $0x878] sm:$0xff]
    %v1663 = vld [vmem:[#allocation10 + $0x880] sm:$0xff]
    %v1664 = vld [vmem:[#allocation10 + $0x888] sm:$0xff]
    %v1665 = vld [vmem:[#allocation10 + $0x890] sm:$0xff]
    %v1666 = vld [vmem:[#allocation10 + $0x898] sm:$0xff]
    %v1667 = vld [vmem:[#allocation10 + $0x8a0] sm:$0xff]
    %v1668 = vld [vmem:[#allocation10 + $0x8a8] sm:$0xff]
    %v1669 = vld [vmem:[#allocation10 + $0x8b0] sm:$0xff]
    %v1670 = vld [vmem:[#allocation10 + $0x8b8] sm:$0xff]
    %v1671 = vld [vmem:[#allocation10 + $0x8c0] sm:$0xff]
    %v1672 = vld [vmem:[#allocation10 + $0x8c8] sm:$0xff]
    %v1673 = vld [vmem:[#allocation10 + $0x8d0] sm:$0xff]
    %v1674 = vld [vmem:[#allocation10 + $0x8d8] sm:$0xff]
    %v1675 = vld [vmem:[#allocation10 + $0x8e0] sm:$0xff]
    %v1676 = vld [vmem:[#allocation10 + $0x8e8] sm:$0xff]
    %v1677 = vld [vmem:[#allocation10 + $0x8f0] sm:$0xff]
    %v1678 = vld [vmem:[#allocation10 + $0x8f8] sm:$0xff]
    %v1679 = vld [vmem:[#allocation10 + $0x900] sm:$0xff]
    %v1680 = vld [vmem:[#allocation10 + $0x908] sm:$0xff]
    %v1681 = vld [vmem:[#allocation10 + $0x910] sm:$0xff]
    %v1682 = vld [vmem:[#allocation10 + $0x918] sm:$0xff]
    %v1683 = vld [vmem:[#allocation10 + $0x920] sm:$0xff]
    %v1684 = vld [vmem:[#allocation10 + $0x928] sm:$0xff]
    %v1685 = vld [vmem:[#allocation10 + $0x930] sm:$0xff]
    %v1686 = vld [vmem:[#allocation10 + $0x938] sm:$0xff]
    %v1687 = vld [vmem:[#allocation10 + $0x940] sm:$0xff]
    %v1688 = vld [vmem:[#allocation10 + $0x948] sm:$0xff]
    %v1689 = vld [vmem:[#allocation10 + $0x950] sm:$0xff]
    %v1690 = vld [vmem:[#allocation10 + $0x958] sm:$0xff]
    %v1691 = vld [vmem:[#allocation10 + $0x960] sm:$0xff]
    %v1692 = vld [vmem:[#allocation10 + $0x968] sm:$0xff]
    %v1693 = vld [vmem:[#allocation10 + $0x970] sm:$0xff]
    %v1694 = vld [vmem:[#allocation10 + $0x978] sm:$0xff]
    %v1695 = vld [vmem:[#allocation10 + $0x980] sm:$0xff]
    %v1696 = vld [vmem:[#allocation10 + $0x988] sm:$0xff]
    %v1697 = vld [vmem:[#allocation10 + $0x990] sm:$0xff]
    %v1698 = vld [vmem:[#allocation10 + $0x998] sm:$0xff]
    %v1699 = vld [vmem:[#allocation10 + $0x9a0] sm:$0xff]
    %v1700 = vld [vmem:[#allocation10 + $0x9a8] sm:$0xff]
    %v1701 = vld [vmem:[#allocation10 + $0x9b0] sm:$0xff]
    %v1702 = vld [vmem:[#allocation10 + $0x9b8] sm:$0xff]
    %v1703 = vld [vmem:[#allocation10 + $0x9c0] sm:$0xff]
    %v1704 = vld [vmem:[#allocation10 + $0x9c8] sm:$0xff]
    %v1705 = vld [vmem:[#allocation10 + $0x9d0] sm:$0xff]
    %v1706 = vld [vmem:[#allocation10 + $0x9d8] sm:$0xff]
    %v1707 = vld [vmem:[#allocation10 + $0x9e0] sm:$0xff]
    %v1708 = vld [vmem:[#allocation10 + $0x9e8] sm:$0xff]
    %v1709 = vld [vmem:[#allocation10 + $0x9f0] sm:$0xff]
    %v1710 = vld [vmem:[#allocation10 + $0x9f8] sm:$0xff]
    %v1711 = vld [vmem:[#allocation10 + $0xa00] sm:$0xff]
    %v1712 = vld [vmem:[#allocation10 + $0xa08] sm:$0xff]
    %v1713 = vld [vmem:[#allocation10 + $0xa10] sm:$0xff]
    %v1714 = vld [vmem:[#allocation10 + $0xa18] sm:$0xff]
    %v1715 = vld [vmem:[#allocation10 + $0xa20] sm:$0xff]
    %v1716 = vld [vmem:[#allocation10 + $0xa28] sm:$0xff]
    %v1717 = vld [vmem:[#allocation10 + $0xa30] sm:$0xff]
    %v1718 = vld [vmem:[#allocation10 + $0xa38] sm:$0xff]
    %v1719 = vld [vmem:[#allocation10 + $0xa40] sm:$0xff]
    %v1720 = vld [vmem:[#allocation10 + $0xa48] sm:$0xff]
    %v1721 = vld [vmem:[#allocation10 + $0xa50] sm:$0xff]
    %v1722 = vld [vmem:[#allocation10 + $0xa58] sm:$0xff]
    %v1723 = vld [vmem:[#allocation10 + $0xa60] sm:$0xff]
    %v1724 = vld [vmem:[#allocation10 + $0xa68] sm:$0xff]
    %v1725 = vld [vmem:[#allocation10 + $0xa70] sm:$0xff]
    %v1726 = vld [vmem:[#allocation10 + $0xa78] sm:$0xff]
    %v1727 = vld [vmem:[#allocation10 + $0xa80] sm:$0xff]
    %v1728 = vld [vmem:[#allocation10 + $0xa88] sm:$0xff]
    %v1729 = vld [vmem:[#allocation10 + $0xa90] sm:$0xff]
    %v1730 = vld [vmem:[#allocation10 + $0xa98] sm:$0xff]
    %v1731 = vld [vmem:[#allocation10 + $0xaa0] sm:$0xff]
    %v1732 = vld [vmem:[#allocation10 + $0xaa8] sm:$0xff]
    %v1733 = vld [vmem:[#allocation10 + $0xab0] sm:$0xff]
    %v1734 = vld [vmem:[#allocation10 + $0xab8] sm:$0xff]
    %v1735 = vld [vmem:[#allocation10 + $0xac0] sm:$0xff]
    %v1736 = vld [vmem:[#allocation10 + $0xac8] sm:$0xff]
    %v1737 = vld [vmem:[#allocation10 + $0xad0] sm:$0xff]
    %v1738 = vld [vmem:[#allocation10 + $0xad8] sm:$0xff]
    %v1739 = vld [vmem:[#allocation10 + $0xae0] sm:$0xff]
    %v1740 = vld [vmem:[#allocation10 + $0xae8] sm:$0xff]
    %v1741 = vld [vmem:[#allocation10 + $0xaf0] sm:$0xff]
    %v1742 = vld [vmem:[#allocation10 + $0xaf8] sm:$0xff]
    %v1743 = vld [vmem:[#allocation10 + $0xb00] sm:$0xff]
    %v1744 = vld [vmem:[#allocation10 + $0xb08] sm:$0xff]
    %v1745 = vld [vmem:[#allocation10 + $0xb10] sm:$0xff]
    %v1746 = vld [vmem:[#allocation10 + $0xb18] sm:$0xff]
    %v1747 = vld [vmem:[#allocation10 + $0xb20] sm:$0xff]
    %v1748 = vld [vmem:[#allocation10 + $0xb28] sm:$0xff]
    %v1749 = vld [vmem:[#allocation10 + $0xb30] sm:$0xff]
    %v1750 = vld [vmem:[#allocation10 + $0xb38] sm:$0xff]
    %v1751 = vld [vmem:[#allocation10 + $0xb40] sm:$0xff]
    %v1752 = vld [vmem:[#allocation10 + $0xb48] sm:$0xff]
    %v1753 = vld [vmem:[#allocation10 + $0xb50] sm:$0xff]
    %v1754 = vld [vmem:[#allocation10 + $0xb58] sm:$0xff]
    %v1755 = vld [vmem:[#allocation10 + $0xb60] sm:$0xff]
    %v1756 = vld [vmem:[#allocation10 + $0xb68] sm:$0xff]
    %v1757 = vld [vmem:[#allocation10 + $0xb70] sm:$0xff]
    %v1758 = vld [vmem:[#allocation10 + $0xb78] sm:$0xff]
    %v1759 = vld [vmem:[#allocation10 + $0xb80] sm:$0xff]
    %v1760 = vld [vmem:[#allocation10 + $0xb88] sm:$0xff]
    %v1761 = vld [vmem:[#allocation10 + $0xb90] sm:$0xff]
    %v1762 = vld [vmem:[#allocation10 + $0xb98] sm:$0xff]
    %v1763 = vld [vmem:[#allocation10 + $0xba0] sm:$0xff]
    %v1764 = vld [vmem:[#allocation10 + $0xba8] sm:$0xff]
    %v1765 = vld [vmem:[#allocation10 + $0xbb0] sm:$0xff]
    %v1766 = vld [vmem:[#allocation10 + $0xbb8] sm:$0xff]
    %v1767 = vld [vmem:[#allocation10 + $0xbc0] sm:$0xff]
    %v1768 = vld [vmem:[#allocation10 + $0xbc8] sm:$0xff]
    %v1769 = vld [vmem:[#allocation10 + $0xbd0] sm:$0xff]
    %v1770 = vld [vmem:[#allocation10 + $0xbd8] sm:$0xff]
    %v1771 = vld [vmem:[#allocation10 + $0xbe0] sm:$0xff]
    %v1772 = vld [vmem:[#allocation10 + $0xbe8] sm:$0xff]
    %v1773 = vld [vmem:[#allocation10 + $0xbf0] sm:$0xff]
    %v1774 = vld [vmem:[#allocation10 + $0xbf8] sm:$0xff]
    %v1775 = vld [vmem:[#allocation10 + $0xc00] sm:$0xff]
    %v1776 = vld [vmem:[#allocation10 + $0xc08] sm:$0xff]
    %v1777 = vld [vmem:[#allocation10 + $0xc10] sm:$0xff]
    %v1778 = vld [vmem:[#allocation10 + $0xc18] sm:$0xff]
    %v1779 = vld [vmem:[#allocation10 + $0xc20] sm:$0xff]
    %v1780 = vld [vmem:[#allocation10 + $0xc28] sm:$0xff]
    %v1781 = vld [vmem:[#allocation10 + $0xc30] sm:$0xff]
    %v1782 = vld [vmem:[#allocation10 + $0xc38] sm:$0xff]
    %v1783 = vld [vmem:[#allocation10 + $0xc40] sm:$0xff]
    %v1784 = vld [vmem:[#allocation10 + $0xc48] sm:$0xff]
    %v1785 = vld [vmem:[#allocation10 + $0xc50] sm:$0xff]
    %v1786 = vld [vmem:[#allocation10 + $0xc58] sm:$0xff]
    %v1787 = vld [vmem:[#allocation10 + $0xc60] sm:$0xff]
    %v1788 = vld [vmem:[#allocation10 + $0xc68] sm:$0xff]
    %v1789 = vld [vmem:[#allocation10 + $0xc70] sm:$0xff]
    %v1790 = vld [vmem:[#allocation10 + $0xc78] sm:$0xff]
    %v1791 = vld [vmem:[#allocation10 + $0xc80] sm:$0xff]
    %v1792 = vld [vmem:[#allocation10 + $0xc88] sm:$0xff]
    %v1793 = vld [vmem:[#allocation10 + $0xc90] sm:$0xff]
    %v1794 = vld [vmem:[#allocation10 + $0xc98] sm:$0xff]
    %v1795 = vld [vmem:[#allocation10 + $0xca0] sm:$0xff]
    %v1796 = vld [vmem:[#allocation10 + $0xca8] sm:$0xff]
    %v1797 = vld [vmem:[#allocation10 + $0xcb0] sm:$0xff]
    %v1798 = vld [vmem:[#allocation10 + $0xcb8] sm:$0xff]
    %v1799 = vld [vmem:[#allocation10 + $0xcc0] sm:$0xff]
    %v1800 = vld [vmem:[#allocation10 + $0xcc8] sm:$0xff]
    %v1801 = vld [vmem:[#allocation10 + $0xcd0] sm:$0xff]
    %v1802 = vld [vmem:[#allocation10 + $0xcd8] sm:$0xff]
    %v1803 = vld [vmem:[#allocation10 + $0xce0] sm:$0xff]
    %v1804 = vld [vmem:[#allocation10 + $0xce8] sm:$0xff]
    %v1805 = vld [vmem:[#allocation10 + $0xcf0] sm:$0xff]
    %v1806 = vld [vmem:[#allocation10 + $0xcf8] sm:$0xff]
    %v1807 = vld [vmem:[#allocation10 + $0xd00] sm:$0xff]
    %v1808 = vld [vmem:[#allocation10 + $0xd08] sm:$0xff]
    %v1809 = vld [vmem:[#allocation10 + $0xd10] sm:$0xff]
    %v1810 = vld [vmem:[#allocation10 + $0xd18] sm:$0xff]
    %v1811 = vld [vmem:[#allocation10 + $0xd20] sm:$0xff]
    %v1812 = vld [vmem:[#allocation10 + $0xd28] sm:$0xff]
    %v1813 = vld [vmem:[#allocation10 + $0xd30] sm:$0xff]
    %v1814 = vld [vmem:[#allocation10 + $0xd38] sm:$0xff]
    %v1815 = vld [vmem:[#allocation10 + $0xd40] sm:$0xff]
    %v1816 = vld [vmem:[#allocation10 + $0xd48] sm:$0xff]
    %v1817 = vld [vmem:[#allocation10 + $0xd50] sm:$0xff]
    %v1818 = vld [vmem:[#allocation10 + $0xd58] sm:$0xff]
    %v1819 = vld [vmem:[#allocation10 + $0xd60] sm:$0xff]
    %v1820 = vld [vmem:[#allocation10 + $0xd68] sm:$0xff]
    %v1821 = vld [vmem:[#allocation10 + $0xd70] sm:$0xff]
    %v1822 = vld [vmem:[#allocation10 + $0xd78] sm:$0xff]
    %v1823 = vld [vmem:[#allocation10 + $0xd80] sm:$0xff]
    %v1824 = vld [vmem:[#allocation10 + $0xd88] sm:$0xff]
    %v1825 = vld [vmem:[#allocation10 + $0xd90] sm:$0xff]
    %v1826 = vld [vmem:[#allocation10 + $0xd98] sm:$0xff]
    %v1827 = vld [vmem:[#allocation10 + $0xda0] sm:$0xff]
    %v1828 = vld [vmem:[#allocation10 + $0xda8] sm:$0xff]
    %v1829 = vld [vmem:[#allocation10 + $0xdb0] sm:$0xff]
    %v1830 = vld [vmem:[#allocation10 + $0xdb8] sm:$0xff]
    %v1831 = vld [vmem:[#allocation10 + $0xdc0] sm:$0xff]
    %v1832 = vld [vmem:[#allocation10 + $0xdc8] sm:$0xff]
    %v1833 = vld [vmem:[#allocation10 + $0xdd0] sm:$0xff]
    %v1834 = vld [vmem:[#allocation10 + $0xdd8] sm:$0xff]
    %v1835 = vld [vmem:[#allocation10 + $0xde0] sm:$0xff]
    %v1836 = vld [vmem:[#allocation10 + $0xde8] sm:$0xff]
    %v1837 = vld [vmem:[#allocation10 + $0xdf0] sm:$0xff]
    %v1838 = vld [vmem:[#allocation10 + $0xdf8] sm:$0xff]
    %v1839 = vld [vmem:[#allocation10 + $0xe00] sm:$0xff]
    %v1840 = vld [vmem:[#allocation10 + $0xe08] sm:$0xff]
    %v1841 = vld [vmem:[#allocation10 + $0xe10] sm:$0xff]
    %v1842 = vld [vmem:[#allocation10 + $0xe18] sm:$0xff]
    %v1843 = vld [vmem:[#allocation10 + $0xe20] sm:$0xff]
    %v1844 = vld [vmem:[#allocation10 + $0xe28] sm:$0xff]
    %v1845 = vld [vmem:[#allocation10 + $0xe30] sm:$0xff]
    %v1846 = vld [vmem:[#allocation10 + $0xe38] sm:$0xff]
    %v1847 = vld [vmem:[#allocation10 + $0xe40] sm:$0xff]
    %v1848 = vld [vmem:[#allocation10 + $0xe48] sm:$0xff]
    %v1849 = vld [vmem:[#allocation10 + $0xe50] sm:$0xff]
    %v1850 = vld [vmem:[#allocation10 + $0xe58] sm:$0xff]
    %v1851 = vld [vmem:[#allocation10 + $0xe60] sm:$0xff]
    %v1852 = vld [vmem:[#allocation10 + $0xe68] sm:$0xff]
    %v1853 = vld [vmem:[#allocation10 + $0xe70] sm:$0xff]
    %v1854 = vld [vmem:[#allocation10 + $0xe78] sm:$0xff]
    %v1855 = vld [vmem:[#allocation10 + $0xe80] sm:$0xff]
    %v1856 = vld [vmem:[#allocation10 + $0xe88] sm:$0xff]
    %v1857 = vld [vmem:[#allocation10 + $0xe90] sm:$0xff]
    %v1858 = vld [vmem:[#allocation10 + $0xe98] sm:$0xff]
    %v1859 = vld [vmem:[#allocation10 + $0xea0] sm:$0xff]
    %v1860 = vld [vmem:[#allocation10 + $0xea8] sm:$0xff]
    %v1861 = vld [vmem:[#allocation10 + $0xeb0] sm:$0xff]
    %v1862 = vld [vmem:[#allocation10 + $0xeb8] sm:$0xff]
    %v1863 = vld [vmem:[#allocation10 + $0xec0] sm:$0xff]
    %v1864 = vld [vmem:[#allocation10 + $0xec8] sm:$0xff]
    %v1865 = vld [vmem:[#allocation10 + $0xed0] sm:$0xff]
    %v1866 = vld [vmem:[#allocation10 + $0xed8] sm:$0xff]
    %v1867 = vld [vmem:[#allocation10 + $0xee0] sm:$0xff]
    %v1868 = vld [vmem:[#allocation10 + $0xee8] sm:$0xff]
    %v1869 = vld [vmem:[#allocation10 + $0xef0] sm:$0xff]
    %v1870 = vld [vmem:[#allocation10 + $0xef8] sm:$0xff]
    %v1871 = vld [vmem:[#allocation10 + $0xf00] sm:$0xff]
    %v1872 = vld [vmem:[#allocation10 + $0xf08] sm:$0xff]
    %v1873 = vld [vmem:[#allocation10 + $0xf10] sm:$0xff]
    %v1874 = vld [vmem:[#allocation10 + $0xf18] sm:$0xff]
    %v1875 = vld [vmem:[#allocation10 + $0xf20] sm:$0xff]
    %v1876 = vld [vmem:[#allocation10 + $0xf28] sm:$0xff]
    %v1877 = vld [vmem:[#allocation10 + $0xf30] sm:$0xff]
    %v1878 = vld [vmem:[#allocation10 + $0xf38] sm:$0xff]
    %v1879 = vld [vmem:[#allocation10 + $0xf40] sm:$0xff]
    %v1880 = vld [vmem:[#allocation10 + $0xf48] sm:$0xff]
    %v1881 = vld [vmem:[#allocation10 + $0xf50] sm:$0xff]
    %v1882 = vld [vmem:[#allocation10 + $0xf58] sm:$0xff]
    %v1883 = vld [vmem:[#allocation10 + $0xf60] sm:$0xff]
    %v1884 = vld [vmem:[#allocation10 + $0xf68] sm:$0xff]
    %v1885 = vld [vmem:[#allocation10 + $0xf70] sm:$0xff]
    %v1886 = vld [vmem:[#allocation10 + $0xf78] sm:$0xff]
    %v1887 = vld [vmem:[#allocation10 + $0xf80] sm:$0xff]
    %v1888 = vld [vmem:[#allocation10 + $0xf88] sm:$0xff]
    %v1889 = vld [vmem:[#allocation10 + $0xf90] sm:$0xff]
    %v1890 = vld [vmem:[#allocation10 + $0xf98] sm:$0xff]
    %v1891 = vld [vmem:[#allocation10 + $0xfa0] sm:$0xff]
    %v1892 = vld [vmem:[#allocation10 + $0xfa8] sm:$0xff]
    %v1893 = vld [vmem:[#allocation10 + $0xfb0] sm:$0xff]
    %v1894 = vld [vmem:[#allocation10 + $0xfb8] sm:$0xff]
    %v1895 = vld [vmem:[#allocation10 + $0xfc0] sm:$0xff]
    %v1896 = vld [vmem:[#allocation10 + $0xfc8] sm:$0xff]
    %v1897 = vld [vmem:[#allocation10 + $0xfd0] sm:$0xff]
    %v1898 = vld [vmem:[#allocation10 + $0xfd8] sm:$0xff]
    %v1899 = vld [vmem:[#allocation10 + $0xfe0] sm:$0xff]
    %v1900 = vld [vmem:[#allocation10 + $0xfe8] sm:$0xff]
    %v1901 = vld [vmem:[#allocation10 + $0xff0] sm:$0xff]
    %v1902 = vld [vmem:[#allocation10 + $0xff8] sm:$0xff]
    %v1903 = vld [vmem:[#allocation10 + $0x1000] sm:$0xff]
    %v1904 = vld [vmem:[#allocation10 + $0x1008] sm:$0xff]
    %v1905 = vld [vmem:[#allocation10 + $0x1010] sm:$0xff]
    %v1906 = vld [vmem:[#allocation10 + $0x1018] sm:$0xff]
    %v1907 = vld [vmem:[#allocation10 + $0x1020] sm:$0xff]
    %v1908 = vld [vmem:[#allocation10 + $0x1028] sm:$0xff]
    %v1909 = vld [vmem:[#allocation10 + $0x1030] sm:$0xff]
    %v1910 = vld [vmem:[#allocation10 + $0x1038] sm:$0xff]
    %v1911 = vld [vmem:[#allocation10 + $0x1040] sm:$0xff]
    %v1912 = vld [vmem:[#allocation10 + $0x1048] sm:$0xff]
    %v1913 = vld [vmem:[#allocation10 + $0x1050] sm:$0xff]
    %v1914 = vld [vmem:[#allocation10 + $0x1058] sm:$0xff]
    %v1915 = vld [vmem:[#allocation10 + $0x1060] sm:$0xff]
    %v1916 = vld [vmem:[#allocation10 + $0x1068] sm:$0xff]
    %v1917 = vld [vmem:[#allocation10 + $0x1070] sm:$0xff]
    %v1918 = vld [vmem:[#allocation10 + $0x1078] sm:$0xff]
    %v1919 = vld [vmem:[#allocation10 + $0x1080] sm:$0xff]
    %v1920 = vld [vmem:[#allocation10 + $0x1088] sm:$0xff]
    %v1921 = vld [vmem:[#allocation10 + $0x1090] sm:$0xff]
    %v1922 = vld [vmem:[#allocation10 + $0x1098] sm:$0xff]
    %v1923 = vld [vmem:[#allocation10 + $0x10a0] sm:$0xff]
    %v1924 = vld [vmem:[#allocation10 + $0x10a8] sm:$0xff]
    %v1925 = vld [vmem:[#allocation10 + $0x10b0] sm:$0xff]
    %v1926 = vld [vmem:[#allocation10 + $0x10b8] sm:$0xff]
    %v1927 = vld [vmem:[#allocation10 + $0x10c0] sm:$0xff]
    %v1928 = vld [vmem:[#allocation10 + $0x10c8] sm:$0xff]
    %v1929 = vld [vmem:[#allocation10 + $0x10d0] sm:$0xff]
    %v1930 = vld [vmem:[#allocation10 + $0x10d8] sm:$0xff]
    %v1931 = vld [vmem:[#allocation10 + $0x10e0] sm:$0xff]
    %v1932 = vld [vmem:[#allocation10 + $0x10e8] sm:$0xff]
    %v1933 = vld [vmem:[#allocation10 + $0x10f0] sm:$0xff]
    %v1934 = vld [vmem:[#allocation10 + $0x10f8] sm:$0xff]
    %v1935 = vld [vmem:[#allocation10 + $0x1100] sm:$0xff]
    %v1936 = vld [vmem:[#allocation10 + $0x1108] sm:$0xff]
    %v1937 = vld [vmem:[#allocation10 + $0x1110] sm:$0xff]
    %v1938 = vld [vmem:[#allocation10 + $0x1118] sm:$0xff]
    %v1939 = vld [vmem:[#allocation10 + $0x1120] sm:$0xff]
    %v1940 = vld [vmem:[#allocation10 + $0x1128] sm:$0xff]
    %v1941 = vld [vmem:[#allocation10 + $0x1130] sm:$0xff]
    %v1942 = vld [vmem:[#allocation10 + $0x1138] sm:$0xff]
    %v1943 = vld [vmem:[#allocation10 + $0x1140] sm:$0xff]
    %v1944 = vld [vmem:[#allocation10 + $0x1148] sm:$0xff]
    %v1945 = vld [vmem:[#allocation10 + $0x1150] sm:$0xff]
    %v1946 = vld [vmem:[#allocation10 + $0x1158] sm:$0xff]
    %v1947 = vld [vmem:[#allocation10 + $0x1160] sm:$0xff]
    %v1948 = vld [vmem:[#allocation10 + $0x1168] sm:$0xff]
    %v1949 = vld [vmem:[#allocation10 + $0x1170] sm:$0xff]
    %v1950 = vld [vmem:[#allocation10 + $0x1178] sm:$0xff]
    %v1951 = vld [vmem:[#allocation10 + $0x1180] sm:$0xff]
    %v1952 = vld [vmem:[#allocation10 + $0x1188] sm:$0xff]
    %v1953 = vld [vmem:[#allocation10 + $0x1190] sm:$0xff]
    %v1954 = vld [vmem:[#allocation10 + $0x1198] sm:$0xff]
    %v1955 = vld [vmem:[#allocation10 + $0x11a0] sm:$0xff]
    %v1956 = vld [vmem:[#allocation10 + $0x11a8] sm:$0xff]
    %v1957 = vld [vmem:[#allocation10 + $0x11b0] sm:$0xff]
    %v1958 = vld [vmem:[#allocation10 + $0x11b8] sm:$0xff]
    %v1959 = vld [vmem:[#allocation10 + $0x11c0] sm:$0xff]
    %v1960 = vld [vmem:[#allocation10 + $0x11c8] sm:$0xff]
    %v1961 = vld [vmem:[#allocation10 + $0x11d0] sm:$0xff]
    %v1962 = vld [vmem:[#allocation10 + $0x11d8] sm:$0xff]
    %v1963 = vld [vmem:[#allocation10 + $0x11e0] sm:$0xff]
    %v1964 = vld [vmem:[#allocation10 + $0x11e8] sm:$0xff]
    %v1965 = vld [vmem:[#allocation10 + $0x11f0] sm:$0xff]
    %v1966 = vld [vmem:[#allocation10 + $0x11f8] sm:$0xff]
    %v1967 = vld [vmem:[#allocation11] sm:$0x3f]
    %v1969 = vlaneseq
    %v1970 = vshrl.u32 %v1969, 7
    %v1971 = vsub.s32 0, %v1970
    %v1972 = vrot.slane %v1967, %v1971
    %v1973 = vlaneseq
    %v1974 = vshrl.u32 %v1973, 7
    %v1975 = vsub.s32 1, %v1974
    %v1976 = vrot.slane %v1967, %v1975
    %v1977 = vlaneseq
    %v1978 = vshrl.u32 %v1977, 7
    %v1979 = vsub.s32 2, %v1978
    %v1980 = vrot.slane %v1967, %v1979
    %v1981 = vlaneseq
    %v1982 = vshrl.u32 %v1981, 7
    %v1983 = vsub.s32 3, %v1982
    %v1984 = vrot.slane %v1967, %v1983
    %v1985 = vlaneseq
    %v1986 = vshrl.u32 %v1985, 7
    %v1987 = vsub.s32 4, %v1986
    %v1988 = vrot.slane %v1967, %v1987
    %v1989 = vlaneseq
    %v1990 = vshrl.u32 %v1989, 7
    %v1991 = vsub.s32 5, %v1990
    %v1992 = vrot.slane %v1967, %v1991
    %1999 = vmatprep.subr.mxu0 %v1392
    %2000 = vmatpush1.msra.mxu0 %v1391
    %2001 = vmatprep.subr.mxu0 %v1398
    %2002 = vmatpush1.msra.mxu0 %v1397
    %2003 = vmatprep.subr.mxu0 %v1404
    %2004 = vmatpush1.msra.mxu0 %v1403
    %2005 = vmatprep.subr.mxu0 %v1410
    %2006 = vmatpush1.msra.mxu0 %v1409
    %2007 = vmatprep.subr.mxu0 %v1416
    %2008 = vmatpush1.msra.mxu0 %v1415
    %2009 = vmatprep.subr.mxu0 %v1422
    %2010 = vmatpush1.msra.mxu0 %v1421
    %2011 = vmatprep.subr.mxu0 %v1428
    %2012 = vmatpush1.msra.mxu0 %v1427
    %2013 = vmatprep.subr.mxu0 %v1434
    %2014 = vmatpush1.msra.mxu0 %v1433
    %2015 = vmatprep.subr.mxu0 %v1440
    %2016 = vmatpush1.msra.mxu0 %v1439
    %2017 = vmatprep.subr.mxu0 %v1446
    %2018 = vmatpush1.msra.mxu0 %v1445
    %2019 = vmatprep.subr.mxu0 %v1452
    %2020 = vmatpush1.msra.mxu0 %v1451
    %2021 = vmatprep.subr.mxu0 %v1458
    %2022 = vmatpush1.msra.mxu0 %v1457
    %2023 = vmatprep.subr.mxu0 %v1464
    %2024 = vmatpush1.msra.mxu0 %v1463
    %2025 = vmatprep.subr.mxu0 %v1470
    %2026 = vmatpush1.msra.mxu0 %v1469
    %2027 = vmatprep.subr.mxu0 %v1476
    %2028 = vmatpush1.msra.mxu0 %v1475
    %2029 = vmatprep.subr.mxu0 %v1482
    %2030 = vmatpush1.msra.mxu0 %v1481
    %2031 = vmatprep.subr.mxu0 %v1488
    %2032 = vmatpush1.msra.mxu0 %v1487
    %2033 = vmatprep.subr.mxu0 %v1494
    %2034 = vmatpush1.msra.mxu0 %v1493
    %2035 = vmatprep.subr.mxu0 %v1500
    %2036 = vmatpush1.msra.mxu0 %v1499
    %2037 = vmatprep.subr.mxu0 %v1506
    %2038 = vmatpush1.msra.mxu0 %v1505
    %2039 = vmatprep.subr.mxu0 %v1512
    %2040 = vmatpush1.msra.mxu0 %v1511
    %2041 = vmatprep.subr.mxu0 %v1518
    %2042 = vmatpush1.msra.mxu0 %v1517
    %2043 = vmatprep.subr.mxu0 %v1524
    %2044 = vmatpush1.msra.mxu0 %v1523
    %2045 = vmatprep.subr.mxu0 %v1530
    %2046 = vmatpush1.msra.mxu0 %v1529
    %2047 = vmatprep.subr.mxu0 %v1536
    %2048 = vmatpush1.msra.mxu0 %v1535
    %2049 = vmatprep.subr.mxu0 %v1542
    %2050 = vmatpush1.msra.mxu0 %v1541
    %2051 = vmatprep.subr.mxu0 %v1548
    %2052 = vmatpush1.msra.mxu0 %v1547
    %2053 = vmatprep.subr.mxu0 %v1554
    %2054 = vmatpush1.msra.mxu0 %v1553
    %2055 = vmatprep.subr.mxu0 %v1560
    %2056 = vmatpush1.msra.mxu0 %v1559
    %2057 = vmatprep.subr.mxu0 %v1566
    %2058 = vmatpush1.msra.mxu0 %v1565
    %2059 = vmatprep.subr.mxu0 %v1572
    %2060 = vmatpush1.msra.mxu0 %v1571
    %2061 = vmatprep.subr.mxu0 %v1578
    %2062 = vmatpush1.msra.mxu0 %v1577
    %2063 = vmatprep.mubr.f32.mxu0 %v1386
    %2064 = vmatmul.mubr.f32.gmra.mrb[0].mxu0 %v1385
    %v2065 = vpop.f32.mrb[0].mxu0
    %v2066 = vadd.f32 %v1972, %v2065
    %v2067 = vpop.f32.mrb[0].mxu0
    %v2068 = vadd.f32 %v1976, %v2067
    %2069 = vdwg.mxu0
    %2070 = vmatprep.subr.mxu0 %v1584
    %2071 = vmatpush1.msra.mxu0 %v1583
    %2072 = vmatprep.subr.mxu0 %v1590
    %2073 = vmatpush1.msra.mxu0 %v1589
    %2074 = vmatprep.subr.mxu0 %v1596
    %2075 = vmatpush1.msra.mxu0 %v1595
    %2076 = vmatprep.subr.mxu0 %v1602
    %2077 = vmatpush1.msra.mxu0 %v1601
    %2078 = vmatprep.subr.mxu0 %v1608
    %2079 = vmatpush1.msra.mxu0 %v1607
    %2080 = vmatprep.subr.mxu0 %v1614
    %2081 = vmatpush1.msra.mxu0 %v1613
    %2082 = vmatprep.subr.mxu0 %v1620
    %2083 = vmatpush1.msra.mxu0 %v1619
    %2084 = vmatprep.subr.mxu0 %v1626
    %2085 = vmatpush1.msra.mxu0 %v1625
    %2086 = vmatprep.subr.mxu0 %v1632
    %2087 = vmatpush1.msra.mxu0 %v1631
    %2088 = vmatprep.subr.mxu0 %v1638
    %2089 = vmatpush1.msra.mxu0 %v1637
    %2090 = vmatprep.subr.mxu0 %v1644
    %2091 = vmatpush1.msra.mxu0 %v1643
    %2092 = vmatprep.subr.mxu0 %v1650
    %2093 = vmatpush1.msra.mxu0 %v1649
    %2094 = vmatprep.subr.mxu0 %v1656
    %2095 = vmatpush1.msra.mxu0 %v1655
    %2096 = vmatprep.subr.mxu0 %v1662
    %2097 = vmatpush1.msra.mxu0 %v1661
    %2098 = vmatprep.subr.mxu0 %v1668
    %2099 = vmatpush1.msra.mxu0 %v1667
    %2100 = vmatprep.subr.mxu0 %v1674
    %2101 = vmatpush1.msra.mxu0 %v1673
    %2102 = vmatprep.subr.mxu0 %v1680
    %2103 = vmatpush1.msra.mxu0 %v1679
    %2104 = vmatprep.subr.mxu0 %v1686
    %2105 = vmatpush1.msra.mxu0 %v1685
    %2106 = vmatprep.subr.mxu0 %v1692
    %2107 = vmatpush1.msra.mxu0 %v1691
    %2108 = vmatprep.subr.mxu0 %v1698
    %2109 = vmatpush1.msra.mxu0 %v1697
    %2110 = vmatprep.subr.mxu0 %v1704
    %2111 = vmatpush1.msra.mxu0 %v1703
    %2112 = vmatprep.subr.mxu0 %v1710
    %2113 = vmatpush1.msra.mxu0 %v1709
    %2114 = vmatprep.subr.mxu0 %v1716
    %2115 = vmatpush1.msra.mxu0 %v1715
    %2116 = vmatprep.subr.mxu0 %v1722
    %2117 = vmatpush1.msra.mxu0 %v1721
    %2118 = vmatprep.subr.mxu0 %v1728
    %2119 = vmatpush1.msra.mxu0 %v1727
    %2120 = vmatprep.subr.mxu0 %v1734
    %2121 = vmatpush1.msra.mxu0 %v1733
    %2122 = vmatprep.subr.mxu0 %v1740
    %2123 = vmatpush1.msra.mxu0 %v1739
    %2124 = vmatprep.subr.mxu0 %v1746
    %2125 = vmatpush1.msra.mxu0 %v1745
    %2126 = vmatprep.subr.mxu0 %v1752
    %2127 = vmatpush1.msra.mxu0 %v1751
    %2128 = vmatprep.subr.mxu0 %v1758
    %2129 = vmatpush1.msra.mxu0 %v1757
    %2130 = vmatprep.subr.mxu0 %v1764
    %2131 = vmatpush1.msra.mxu0 %v1763
    %2132 = vmatprep.subr.mxu0 %v1770
    %2133 = vmatpush1.msra.mxu0 %v1769
    %2134 = vmatprep.mubr.f32.mxu0 %v1388
    %2135 = vmatmul.mubr.f32.gmra.mrb[0].mxu0 %v1387
    %v2136 = vpop.f32.mrb[0].mxu0
    %v2137 = vadd.f32 %v2066, %v2136
    %v2138 = vpop.f32.mrb[0].mxu0
    %v2139 = vadd.f32 %v2068, %v2138
    %2140 = vdwg.mxu0
    %2141 = vmatprep.subr.mxu0 %v1776
    %2142 = vmatpush1.msra.mxu0 %v1775
    %2143 = vmatprep.subr.mxu0 %v1782
    %2144 = vmatpush1.msra.mxu0 %v1781
    %2145 = vmatprep.subr.mxu0 %v1788
    %2146 = vmatpush1.msra.mxu0 %v1787
    %2147 = vmatprep.subr.mxu0 %v1794
    %2148 = vmatpush1.msra.mxu0 %v1793
    %2149 = vmatprep.subr.mxu0 %v1800
    %2150 = vmatpush1.msra.mxu0 %v1799
    %2151 = vmatprep.subr.mxu0 %v1806
    %2152 = vmatpush1.msra.mxu0 %v1805
    %2153 = vmatprep.subr.mxu0 %v1812
    %2154 = vmatpush1.msra.mxu0 %v1811
    %2155 = vmatprep.subr.mxu0 %v1818
    %2156 = vmatpush1.msra.mxu0 %v1817
    %2157 = vmatprep.subr.mxu0 %v1824
    %2158 = vmatpush1.msra.mxu0 %v1823
    %2159 = vmatprep.subr.mxu0 %v1830
    %2160 = vmatpush1.msra.mxu0 %v1829
    %2161 = vmatprep.subr.mxu0 %v1836
    %2162 = vmatpush1.msra.mxu0 %v1835
    %2163 = vmatprep.subr.mxu0 %v1842
    %2164 = vmatpush1.msra.mxu0 %v1841
    %2165 = vmatprep.subr.mxu0 %v1848
    %2166 = vmatpush1.msra.mxu0 %v1847
    %2167 = vmatprep.subr.mxu0 %v1854
    %2168 = vmatpush1.msra.mxu0 %v1853
    %2169 = vmatprep.subr.mxu0 %v1860
    %2170 = vmatpush1.msra.mxu0 %v1859
    %2171 = vmatprep.subr.mxu0 %v1866
    %2172 = vmatpush1.msra.mxu0 %v1865
    %2173 = vmatprep.subr.mxu0 %v1872
    %2174 = vmatpush1.msra.mxu0 %v1871
    %2175 = vmatprep.subr.mxu0 %v1878
    %2176 = vmatpush1.msra.mxu0 %v1877
    %2177 = vmatprep.subr.mxu0 %v1884
    %2178 = vmatpush1.msra.mxu0 %v1883
    %2179 = vmatprep.subr.mxu0 %v1890
    %2180 = vmatpush1.msra.mxu0 %v1889
    %2181 = vmatprep.subr.mxu0 %v1896
    %2182 = vmatpush1.msra.mxu0 %v1895
    %2183 = vmatprep.subr.mxu0 %v1902
    %2184 = vmatpush1.msra.mxu0 %v1901
    %2185 = vmatprep.subr.mxu0 %v1908
    %2186 = vmatpush1.msra.mxu0 %v1907
    %2187 = vmatprep.subr.mxu0 %v1914
    %2188 = vmatpush1.msra.mxu0 %v1913
    %2189 = vmatprep.subr.mxu0 %v1920
    %2190 = vmatpush1.msra.mxu0 %v1919
    %2191 = vmatprep.subr.mxu0 %v1926
    %2192 = vmatpush1.msra.mxu0 %v1925
    %2193 = vmatprep.subr.mxu0 %v1932
    %2194 = vmatpush1.msra.mxu0 %v1931
    %2195 = vmatprep.subr.mxu0 %v1938
    %2196 = vmatpush1.msra.mxu0 %v1937
    %2197 = vmatprep.subr.mxu0 %v1944
    %2198 = vmatpush1.msra.mxu0 %v1943
    %2199 = vmatprep.subr.mxu0 %v1950
    %2200 = vmatpush1.msra.mxu0 %v1949
    %2201 = vmatprep.subr.mxu0 %v1956
    %2202 = vmatpush1.msra.mxu0 %v1955
    %2203 = vmatprep.subr.mxu0 %v1962
    %2204 = vmatpush1.msra.mxu0 %v1961
    %2205 = vmatprep.mubr.f32.mxu0 %v1390
    %2206 = vmatmul.mubr.f32.gmra.mrb[0].mxu0 %v1389
    %v2207 = vpop.f32.mrb[0].mxu0
    %v2208 = vadd.f32 %v2137, %v2207
    %v2209 = vpop.f32.mrb[0].mxu0
    %v2210 = vadd.f32 %v2139, %v2209
    %2211 = vdwg.mxu0
    %2212 = vmatprep.subr.mxu0 %v1394
    %2213 = vmatpush1.msra.mxu0 %v1393
    %2214 = vmatprep.subr.mxu0 %v1400
    %2215 = vmatpush1.msra.mxu0 %v1399
    %2216 = vmatprep.subr.mxu0 %v1406
    %2217 = vmatpush1.msra.mxu0 %v1405
    %2218 = vmatprep.subr.mxu0 %v1412
    %2219 = vmatpush1.msra.mxu0 %v1411
    %2220 = vmatprep.subr.mxu0 %v1418
    %2221 = vmatpush1.msra.mxu0 %v1417
    %2222 = vmatprep.subr.mxu0 %v1424
    %2223 = vmatpush1.msra.mxu0 %v1423
    %2224 = vmatprep.subr.mxu0 %v1430
    %2225 = vmatpush1.msra.mxu0 %v1429
    %2226 = vmatprep.subr.mxu0 %v1436
    %2227 = vmatpush1.msra.mxu0 %v1435
    %2228 = vmatprep.subr.mxu0 %v1442
    %2229 = vmatpush1.msra.mxu0 %v1441
    %2230 = vmatprep.subr.mxu0 %v1448
    %2231 = vmatpush1.msra.mxu0 %v1447
    %2232 = vmatprep.subr.mxu0 %v1454
    %2233 = vmatpush1.msra.mxu0 %v1453
    %2234 = vmatprep.subr.mxu0 %v1460
    %2235 = vmatpush1.msra.mxu0 %v1459
    %2236 = vmatprep.subr.mxu0 %v1466
    %2237 = vmatpush1.msra.mxu0 %v1465
    %2238 = vmatprep.subr.mxu0 %v1472
    %2239 = vmatpush1.msra.mxu0 %v1471
    %2240 = vmatprep.subr.mxu0 %v1478
    %2241 = vmatpush1.msra.mxu0 %v1477
    %2242 = vmatprep.subr.mxu0 %v1484
    %2243 = vmatpush1.msra.mxu0 %v1483
    %2244 = vmatprep.subr.mxu0 %v1490
    %2245 = vmatpush1.msra.mxu0 %v1489
    %2246 = vmatprep.subr.mxu0 %v1496
    %2247 = vmatpush1.msra.mxu0 %v1495
    %2248 = vmatprep.subr.mxu0 %v1502
    %2249 = vmatpush1.msra.mxu0 %v1501
    %2250 = vmatprep.subr.mxu0 %v1508
    %2251 = vmatpush1.msra.mxu0 %v1507
    %2252 = vmatprep.subr.mxu0 %v1514
    %2253 = vmatpush1.msra.mxu0 %v1513
    %2254 = vmatprep.subr.mxu0 %v1520
    %2255 = vmatpush1.msra.mxu0 %v1519
    %2256 = vmatprep.subr.mxu0 %v1526
    %2257 = vmatpush1.msra.mxu0 %v1525
    %2258 = vmatprep.subr.mxu0 %v1532
    %2259 = vmatpush1.msra.mxu0 %v1531
    %2260 = vmatprep.subr.mxu0 %v1538
    %2261 = vmatpush1.msra.mxu0 %v1537
    %2262 = vmatprep.subr.mxu0 %v1544
    %2263 = vmatpush1.msra.mxu0 %v1543
    %2264 = vmatprep.subr.mxu0 %v1550
    %2265 = vmatpush1.msra.mxu0 %v1549
    %2266 = vmatprep.subr.mxu0 %v1556
    %2267 = vmatpush1.msra.mxu0 %v1555
    %2268 = vmatprep.subr.mxu0 %v1562
    %2269 = vmatpush1.msra.mxu0 %v1561
    %2270 = vmatprep.subr.mxu0 %v1568
    %2271 = vmatpush1.msra.mxu0 %v1567
    %2272 = vmatprep.subr.mxu0 %v1574
    %2273 = vmatpush1.msra.mxu0 %v1573
    %2274 = vmatprep.subr.mxu0 %v1580
    %2275 = vmatpush1.msra.mxu0 %v1579
    %2276 = vmatprep.mubr.f32.mxu0 %v1386
    %2277 = vmatmul.mubr.f32.gmra.mrb[0].mxu0 %v1385
    %v2278 = vpop.f32.mrb[0].mxu0
    %v2279 = vadd.f32 %v1980, %v2278
    %v2280 = vpop.f32.mrb[0].mxu0
    %v2281 = vadd.f32 %v1984, %v2280
    %2282 = vdwg.mxu0
    %2283 = vmatprep.subr.mxu0 %v1586
    %2284 = vmatpush1.msra.mxu0 %v1585
    %2285 = vmatprep.subr.mxu0 %v1592
    %2286 = vmatpush1.msra.mxu0 %v1591
    %2287 = vmatprep.subr.mxu0 %v1598
    %2288 = vmatpush1.msra.mxu0 %v1597
    %2289 = vmatprep.subr.mxu0 %v1604
    %2290 = vmatpush1.msra.mxu0 %v1603
    %2291 = vmatprep.subr.mxu0 %v1610
    %2292 = vmatpush1.msra.mxu0 %v1609
    %2293 = vmatprep.subr.mxu0 %v1616
    %2294 = vmatpush1.msra.mxu0 %v1615
    %2295 = vmatprep.subr.mxu0 %v1622
    %2296 = vmatpush1.msra.mxu0 %v1621
    %2297 = vmatprep.subr.mxu0 %v1628
    %2298 = vmatpush1.msra.mxu0 %v1627
    %2299 = vmatprep.subr.mxu0 %v1634
    %2300 = vmatpush1.msra.mxu0 %v1633
    %2301 = vmatprep.subr.mxu0 %v1640
    %2302 = vmatpush1.msra.mxu0 %v1639
    %2303 = vmatprep.subr.mxu0 %v1646
    %2304 = vmatpush1.msra.mxu0 %v1645
    %2305 = vmatprep.subr.mxu0 %v1652
    %2306 = vmatpush1.msra.mxu0 %v1651
    %2307 = vmatprep.subr.mxu0 %v1658
    %2308 = vmatpush1.msra.mxu0 %v1657
    %2309 = vmatprep.subr.mxu0 %v1664
    %2310 = vmatpush1.msra.mxu0 %v1663
    %2311 = vmatprep.subr.mxu0 %v1670
    %2312 = vmatpush1.msra.mxu0 %v1669
    %2313 = vmatprep.subr.mxu0 %v1676
    %2314 = vmatpush1.msra.mxu0 %v1675
    %2315 = vmatprep.subr.mxu0 %v1682
    %2316 = vmatpush1.msra.mxu0 %v1681
    %2317 = vmatprep.subr.mxu0 %v1688
    %2318 = vmatpush1.msra.mxu0 %v1687
    %2319 = vmatprep.subr.mxu0 %v1694
    %2320 = vmatpush1.msra.mxu0 %v1693
    %2321 = vmatprep.subr.mxu0 %v1700
    %2322 = vmatpush1.msra.mxu0 %v1699
    %2323 = vmatprep.subr.mxu0 %v1706
    %2324 = vmatpush1.msra.mxu0 %v1705
    %2325 = vmatprep.subr.mxu0 %v1712
    %2326 = vmatpush1.msra.mxu0 %v1711
    %2327 = vmatprep.subr.mxu0 %v1718
    %2328 = vmatpush1.msra.mxu0 %v1717
    %2329 = vmatprep.subr.mxu0 %v1724
    %2330 = vmatpush1.msra.mxu0 %v1723
    %2331 = vmatprep.subr.mxu0 %v1730
    %2332 = vmatpush1.msra.mxu0 %v1729
    %2333 = vmatprep.subr.mxu0 %v1736
    %2334 = vmatpush1.msra.mxu0 %v1735
    %2335 = vmatprep.subr.mxu0 %v1742
    %2336 = vmatpush1.msra.mxu0 %v1741
    %2337 = vmatprep.subr.mxu0 %v1748
    %2338 = vmatpush1.msra.mxu0 %v1747
    %2339 = vmatprep.subr.mxu0 %v1754
    %2340 = vmatpush1.msra.mxu0 %v1753
    %2341 = vmatprep.subr.mxu0 %v1760
    %2342 = vmatpush1.msra.mxu0 %v1759
    %2343 = vmatprep.subr.mxu0 %v1766
    %2344 = vmatpush1.msra.mxu0 %v1765
    %2345 = vmatprep.subr.mxu0 %v1772
    %2346 = vmatpush1.msra.mxu0 %v1771
    %2347 = vmatprep.mubr.f32.mxu0 %v1388
    %2348 = vmatmul.mubr.f32.gmra.mrb[0].mxu0 %v1387
    %v2349 = vpop.f32.mrb[0].mxu0
    %v2350 = vadd.f32 %v2279, %v2349
    %v2351 = vpop.f32.mrb[0].mxu0
    %v2352 = vadd.f32 %v2281, %v2351
    %2353 = vdwg.mxu0
    %2354 = vmatprep.subr.mxu0 %v1778
    %2355 = vmatpush1.msra.mxu0 %v1777
    %2356 = vmatprep.subr.mxu0 %v1784
    %2357 = vmatpush1.msra.mxu0 %v1783
    %2358 = vmatprep.subr.mxu0 %v1790
    %2359 = vmatpush1.msra.mxu0 %v1789
    %2360 = vmatprep.subr.mxu0 %v1796
    %2361 = vmatpush1.msra.mxu0 %v1795
    %2362 = vmatprep.subr.mxu0 %v1802
    %2363 = vmatpush1.msra.mxu0 %v1801
    %2364 = vmatprep.subr.mxu0 %v1808
    %2365 = vmatpush1.msra.mxu0 %v1807
    %2366 = vmatprep.subr.mxu0 %v1814
    %2367 = vmatpush1.msra.mxu0 %v1813
    %2368 = vmatprep.subr.mxu0 %v1820
    %2369 = vmatpush1.msra.mxu0 %v1819
    %2370 = vmatprep.subr.mxu0 %v1826
    %2371 = vmatpush1.msra.mxu0 %v1825
    %2372 = vmatprep.subr.mxu0 %v1832
    %2373 = vmatpush1.msra.mxu0 %v1831
    %2374 = vmatprep.subr.mxu0 %v1838
    %2375 = vmatpush1.msra.mxu0 %v1837
    %2376 = vmatprep.subr.mxu0 %v1844
    %2377 = vmatpush1.msra.mxu0 %v1843
    %2378 = vmatprep.subr.mxu0 %v1850
    %2379 = vmatpush1.msra.mxu0 %v1849
    %2380 = vmatprep.subr.mxu0 %v1856
    %2381 = vmatpush1.msra.mxu0 %v1855
    %2382 = vmatprep.subr.mxu0 %v1862
    %2383 = vmatpush1.msra.mxu0 %v1861
    %2384 = vmatprep.subr.mxu0 %v1868
    %2385 = vmatpush1.msra.mxu0 %v1867
    %2386 = vmatprep.subr.mxu0 %v1874
    %2387 = vmatpush1.msra.mxu0 %v1873
    %2388 = vmatprep.subr.mxu0 %v1880
    %2389 = vmatpush1.msra.mxu0 %v1879
    %2390 = vmatprep.subr.mxu0 %v1886
    %2391 = vmatpush1.msra.mxu0 %v1885
    %2392 = vmatprep.subr.mxu0 %v1892
    %2393 = vmatpush1.msra.mxu0 %v1891
    %2394 = vmatprep.subr.mxu0 %v1898
    %2395 = vmatpush1.msra.mxu0 %v1897
    %2396 = vmatprep.subr.mxu0 %v1904
    %2397 = vmatpush1.msra.mxu0 %v1903
    %2398 = vmatprep.subr.mxu0 %v1910
    %2399 = vmatpush1.msra.mxu0 %v1909
    %2400 = vmatprep.subr.mxu0 %v1916
    %2401 = vmatpush1.msra.mxu0 %v1915
    %2402 = vmatprep.subr.mxu0 %v1922
    %2403 = vmatpush1.msra.mxu0 %v1921
    %2404 = vmatprep.subr.mxu0 %v1928
    %2405 = vmatpush1.msra.mxu0 %v1927
    %2406 = vmatprep.subr.mxu0 %v1934
    %2407 = vmatpush1.msra.mxu0 %v1933
    %2408 = vmatprep.subr.mxu0 %v1940
    %2409 = vmatpush1.msra.mxu0 %v1939
    %2410 = vmatprep.subr.mxu0 %v1946
    %2411 = vmatpush1.msra.mxu0 %v1945
    %2412 = vmatprep.subr.mxu0 %v1952
    %2413 = vmatpush1.msra.mxu0 %v1951
    %2414 = vmatprep.subr.mxu0 %v1958
    %2415 = vmatpush1.msra.mxu0 %v1957
    %2416 = vmatprep.subr.mxu0 %v1964
    %2417 = vmatpush1.msra.mxu0 %v1963
    %2418 = vmatprep.mubr.f32.mxu0 %v1390
    %2419 = vmatmul.mubr.f32.gmra.mrb[0].mxu0 %v1389
    %v2420 = vpop.f32.mrb[0].mxu0
    %v2421 = vadd.f32 %v2350, %v2420
    %v2422 = vpop.f32.mrb[0].mxu0
    %v2423 = vadd.f32 %v2352, %v2422
    %2424 = vdwg.mxu0
    %2425 = vmatprep.subr.mxu0 %v1396
    %2426 = vmatpush1.msra.mxu0 %v1395
    %2427 = vmatprep.subr.mxu0 %v1402
    %2428 = vmatpush1.msra.mxu0 %v1401
    %2429 = vmatprep.subr.mxu0 %v1408
    %2430 = vmatpush1.msra.mxu0 %v1407
    %2431 = vmatprep.subr.mxu0 %v1414
    %2432 = vmatpush1.msra.mxu0 %v1413
    %2433 = vmatprep.subr.mxu0 %v1420
    %2434 = vmatpush1.msra.mxu0 %v1419
    %2435 = vmatprep.subr.mxu0 %v1426
    %2436 = vmatpush1.msra.mxu0 %v1425
    %2437 = vmatprep.subr.mxu0 %v1432
    %2438 = vmatpush1.msra.mxu0 %v1431
    %2439 = vmatprep.subr.mxu0 %v1438
    %2440 = vmatpush1.msra.mxu0 %v1437
    %2441 = vmatprep.subr.mxu0 %v1444
    %2442 = vmatpush1.msra.mxu0 %v1443
    %2443 = vmatprep.subr.mxu0 %v1450
    %2444 = vmatpush1.msra.mxu0 %v1449
    %2445 = vmatprep.subr.mxu0 %v1456
    %2446 = vmatpush1.msra.mxu0 %v1455
    %2447 = vmatprep.subr.mxu0 %v1462
    %2448 = vmatpush1.msra.mxu0 %v1461
    %2449 = vmatprep.subr.mxu0 %v1468
    %2450 = vmatpush1.msra.mxu0 %v1467
    %2451 = vmatprep.subr.mxu0 %v1474
    %2452 = vmatpush1.msra.mxu0 %v1473
    %2453 = vmatprep.subr.mxu0 %v1480
    %2454 = vmatpush1.msra.mxu0 %v1479
    %2455 = vmatprep.subr.mxu0 %v1486
    %2456 = vmatpush1.msra.mxu0 %v1485
    %2457 = vmatprep.subr.mxu0 %v1492
    %2458 = vmatpush1.msra.mxu0 %v1491
    %2459 = vmatprep.subr.mxu0 %v1498
    %2460 = vmatpush1.msra.mxu0 %v1497
    %2461 = vmatprep.subr.mxu0 %v1504
    %2462 = vmatpush1.msra.mxu0 %v1503
    %2463 = vmatprep.subr.mxu0 %v1510
    %2464 = vmatpush1.msra.mxu0 %v1509
    %2465 = vmatprep.subr.mxu0 %v1516
    %2466 = vmatpush1.msra.mxu0 %v1515
    %2467 = vmatprep.subr.mxu0 %v1522
    %2468 = vmatpush1.msra.mxu0 %v1521
    %2469 = vmatprep.subr.mxu0 %v1528
    %2470 = vmatpush1.msra.mxu0 %v1527
    %2471 = vmatprep.subr.mxu0 %v1534
    %2472 = vmatpush1.msra.mxu0 %v1533
    %2473 = vmatprep.subr.mxu0 %v1540
    %2474 = vmatpush1.msra.mxu0 %v1539
    %2475 = vmatprep.subr.mxu0 %v1546
    %2476 = vmatpush1.msra.mxu0 %v1545
    %2477 = vmatprep.subr.mxu0 %v1552
    %2478 = vmatpush1.msra.mxu0 %v1551
    %2479 = vmatprep.subr.mxu0 %v1558
    %2480 = vmatpush1.msra.mxu0 %v1557
    %2481 = vmatprep.subr.mxu0 %v1564
    %2482 = vmatpush1.msra.mxu0 %v1563
    %2483 = vmatprep.subr.mxu0 %v1570
    %2484 = vmatpush1.msra.mxu0 %v1569
    %2485 = vmatprep.subr.mxu0 %v1576
    %2486 = vmatpush1.msra.mxu0 %v1575
    %2487 = vmatprep.subr.mxu0 %v1582
    %2488 = vmatpush1.msra.mxu0 %v1581
    %2489 = vmatprep.mubr.f32.mxu0 %v1386
    %2490 = vmatmul.mubr.f32.gmra.mrb[0].mxu0 %v1385
    %v2491 = vpop.f32.mrb[0].mxu0
    %v2492 = vadd.f32 %v1988, %v2491
    %v2493 = vpop.f32.mrb[0].mxu0
    %v2494 = vadd.f32 %v1992, %v2493
    %2495 = vdwg.mxu0
    %2496 = vmatprep.subr.mxu0 %v1588
    %2497 = vmatpush1.msra.mxu0 %v1587
    %2498 = vmatprep.subr.mxu0 %v1594
    %2499 = vmatpush1.msra.mxu0 %v1593
    %2500 = vmatprep.subr.mxu0 %v1600
    %2501 = vmatpush1.msra.mxu0 %v1599
    %2502 = vmatprep.subr.mxu0 %v1606
    %2503 = vmatpush1.msra.mxu0 %v1605
    %2504 = vmatprep.subr.mxu0 %v1612
    %2505 = vmatpush1.msra.mxu0 %v1611
    %2506 = vmatprep.subr.mxu0 %v1618
    %2507 = vmatpush1.msra.mxu0 %v1617
    %2508 = vmatprep.subr.mxu0 %v1624
    %2509 = vmatpush1.msra.mxu0 %v1623
    %2510 = vmatprep.subr.mxu0 %v1630
    %2511 = vmatpush1.msra.mxu0 %v1629
    %2512 = vmatprep.subr.mxu0 %v1636
    %2513 = vmatpush1.msra.mxu0 %v1635
    %2514 = vmatprep.subr.mxu0 %v1642
    %2515 = vmatpush1.msra.mxu0 %v1641
    %2516 = vmatprep.subr.mxu0 %v1648
    %2517 = vmatpush1.msra.mxu0 %v1647
    %2518 = vmatprep.subr.mxu0 %v1654
    %2519 = vmatpush1.msra.mxu0 %v1653
    %2520 = vmatprep.subr.mxu0 %v1660
    %2521 = vmatpush1.msra.mxu0 %v1659
    %2522 = vmatprep.subr.mxu0 %v1666
    %2523 = vmatpush1.msra.mxu0 %v1665
    %2524 = vmatprep.subr.mxu0 %v1672
    %2525 = vmatpush1.msra.mxu0 %v1671
    %2526 = vmatprep.subr.mxu0 %v1678
    %2527 = vmatpush1.msra.mxu0 %v1677
    %2528 = vmatprep.subr.mxu0 %v1684
    %2529 = vmatpush1.msra.mxu0 %v1683
    %2530 = vmatprep.subr.mxu0 %v1690
    %2531 = vmatpush1.msra.mxu0 %v1689
    %2532 = vmatprep.subr.mxu0 %v1696
    %2533 = vmatpush1.msra.mxu0 %v1695
    %2534 = vmatprep.subr.mxu0 %v1702
    %2535 = vmatpush1.msra.mxu0 %v1701
    %2536 = vmatprep.subr.mxu0 %v1708
    %2537 = vmatpush1.msra.mxu0 %v1707
    %2538 = vmatprep.subr.mxu0 %v1714
    %2539 = vmatpush1.msra.mxu0 %v1713
    %2540 = vmatprep.subr.mxu0 %v1720
    %2541 = vmatpush1.msra.mxu0 %v1719
    %2542 = vmatprep.subr.mxu0 %v1726
    %2543 = vmatpush1.msra.mxu0 %v1725
    %2544 = vmatprep.subr.mxu0 %v1732
    %2545 = vmatpush1.msra.mxu0 %v1731
    %2546 = vmatprep.subr.mxu0 %v1738
    %2547 = vmatpush1.msra.mxu0 %v1737
    %2548 = vmatprep.subr.mxu0 %v1744
    %2549 = vmatpush1.msra.mxu0 %v1743
    %2550 = vmatprep.subr.mxu0 %v1750
    %2551 = vmatpush1.msra.mxu0 %v1749
    %2552 = vmatprep.subr.mxu0 %v1756
    %2553 = vmatpush1.msra.mxu0 %v1755
    %2554 = vmatprep.subr.mxu0 %v1762
    %2555 = vmatpush1.msra.mxu0 %v1761
    %2556 = vmatprep.subr.mxu0 %v1768
    %2557 = vmatpush1.msra.mxu0 %v1767
    %2558 = vmatprep.subr.mxu0 %v1774
    %2559 = vmatpush1.msra.mxu0 %v1773
    %2560 = vmatprep.mubr.f32.mxu0 %v1388
    %2561 = vmatmul.mubr.f32.gmra.mrb[0].mxu0 %v1387
    %v2562 = vpop.f32.mrb[0].mxu0
    %v2563 = vadd.f32 %v2492, %v2562
    %v2564 = vpop.f32.mrb[0].mxu0
    %v2565 = vadd.f32 %v2494, %v2564
    %2566 = vdwg.mxu0
    %2567 = vmatprep.subr.mxu0 %v1780
    %2568 = vmatpush1.msra.mxu0 %v1779
    %2569 = vmatprep.subr.mxu0 %v1786
    %2570 = vmatpush1.msra.mxu0 %v1785
    %2571 = vmatprep.subr.mxu0 %v1792
    %2572 = vmatpush1.msra.mxu0 %v1791
    %2573 = vmatprep.subr.mxu0 %v1798
    %2574 = vmatpush1.msra.mxu0 %v1797
    %2575 = vmatprep.subr.mxu0 %v1804
    %2576 = vmatpush1.msra.mxu0 %v1803
    %2577 = vmatprep.subr.mxu0 %v1810
    %2578 = vmatpush1.msra.mxu0 %v1809
    %2579 = vmatprep.subr.mxu0 %v1816
    %2580 = vmatpush1.msra.mxu0 %v1815
    %2581 = vmatprep.subr.mxu0 %v1822
    %2582 = vmatpush1.msra.mxu0 %v1821
    %2583 = vmatprep.subr.mxu0 %v1828
    %2584 = vmatpush1.msra.mxu0 %v1827
    %2585 = vmatprep.subr.mxu0 %v1834
    %2586 = vmatpush1.msra.mxu0 %v1833
    %2587 = vmatprep.subr.mxu0 %v1840
    %2588 = vmatpush1.msra.mxu0 %v1839
    %2589 = vmatprep.subr.mxu0 %v1846
    %2590 = vmatpush1.msra.mxu0 %v1845
    %2591 = vmatprep.subr.mxu0 %v1852
    %2592 = vmatpush1.msra.mxu0 %v1851
    %2593 = vmatprep.subr.mxu0 %v1858
    %2594 = vmatpush1.msra.mxu0 %v1857
    %2595 = vmatprep.subr.mxu0 %v1864
    %2596 = vmatpush1.msra.mxu0 %v1863
    %2597 = vmatprep.subr.mxu0 %v1870
    %2598 = vmatpush1.msra.mxu0 %v1869
    %2599 = vmatprep.subr.mxu0 %v1876
    %2600 = vmatpush1.msra.mxu0 %v1875
    %2601 = vmatprep.subr.mxu0 %v1882
    %2602 = vmatpush1.msra.mxu0 %v1881
    %2603 = vmatprep.subr.mxu0 %v1888
    %2604 = vmatpush1.msra.mxu0 %v1887
    %2605 = vmatprep.subr.mxu0 %v1894
    %2606 = vmatpush1.msra.mxu0 %v1893
    %2607 = vmatprep.subr.mxu0 %v1900
    %2608 = vmatpush1.msra.mxu0 %v1899
    %2609 = vmatprep.subr.mxu0 %v1906
    %2610 = vmatpush1.msra.mxu0 %v1905
    %2611 = vmatprep.subr.mxu0 %v1912
    %2612 = vmatpush1.msra.mxu0 %v1911
    %2613 = vmatprep.subr.mxu0 %v1918
    %2614 = vmatpush1.msra.mxu0 %v1917
    %2615 = vmatprep.subr.mxu0 %v1924
    %2616 = vmatpush1.msra.mxu0 %v1923
    %2617 = vmatprep.subr.mxu0 %v1930
    %2618 = vmatpush1.msra.mxu0 %v1929
    %2619 = vmatprep.subr.mxu0 %v1936
    %2620 = vmatpush1.msra.mxu0 %v1935
    %2621 = vmatprep.subr.mxu0 %v1942
    %2622 = vmatpush1.msra.mxu0 %v1941
    %2623 = vmatprep.subr.mxu0 %v1948
    %2624 = vmatpush1.msra.mxu0 %v1947
    %2625 = vmatprep.subr.mxu0 %v1954
    %2626 = vmatpush1.msra.mxu0 %v1953
    %2627 = vmatprep.subr.mxu0 %v1960
    %2628 = vmatpush1.msra.mxu0 %v1959
    %2629 = vmatprep.subr.mxu0 %v1966
    %2630 = vmatpush1.msra.mxu0 %v1965
    %2631 = vmatprep.mubr.f32.mxu0 %v1390
    %2632 = vmatmul.mubr.f32.gmra.mrb[0].mxu0 %v1389
    %v2633 = vpop.f32.mrb[0].mxu0
    %v2634 = vadd.f32 %v2563, %v2633
    %v2635 = vpop.f32.mrb[0].mxu0
    %v2636 = vadd.f32 %v2565, %v2635
    %2637 = vdwg.mxu0
    %v2638 = vmax.f32 %v2208, 0.0
    %v2639 = vmax.f32 %v2210, 0.0
    %v2640 = vmax.f32 %v2421, 0.0
    %v2641 = vmax.f32 %v2423, 0.0
    %v2642 = vmax.f32 %v2634, 0.0
    %v2643 = vmax.f32 %v2636, 0.0
    %v2644 = vld [vmem:[#allocation13] sm:$0xff]
    %v2645 = vld [vmem:[#allocation13 + $0x8] sm:$0xff]
    %v2646 = vld [vmem:[#allocation13 + $0x10] sm:$0xff]
    %v2647 = vld [vmem:[#allocation13 + $0x18] sm:$0xff]
    %v2648 = vld [vmem:[#allocation13 + $0x20] sm:$0xff]
    %v2649 = vld [vmem:[#allocation13 + $0x28] sm:$0xff]
    %v2650 = vld [vmem:[#allocation13 + $0x30] sm:$0xff]
    %v2651 = vld [vmem:[#allocation13 + $0x38] sm:$0xff]
    %v2652 = vld [vmem:[#allocation13 + $0x40] sm:$0xff]
    %v2653 = vld [vmem:[#allocation13 + $0x48] sm:$0xff]
    %v2654 = vld [vmem:[#allocation13 + $0x50] sm:$0xff]
    %v2655 = vld [vmem:[#allocation13 + $0x58] sm:$0xff]
    %v2656 = vld [vmem:[#allocation13 + $0x60] sm:$0xff]
    %v2657 = vld [vmem:[#allocation13 + $0x68] sm:$0xff]
    %v2658 = vld [vmem:[#allocation13 + $0x70] sm:$0xff]
    %v2659 = vld [vmem:[#allocation13 + $0x78] sm:$0xff]
    %v2660 = vld [vmem:[#allocation13 + $0x80] sm:$0xff]
    %v2661 = vld [vmem:[#allocation13 + $0x88] sm:$0xff]
    %v2662 = vld [vmem:[#allocation13 + $0x90] sm:$0xff]
    %v2663 = vld [vmem:[#allocation13 + $0x98] sm:$0xff]
    %v2664 = vld [vmem:[#allocation13 + $0xa0] sm:$0xff]
    %v2665 = vld [vmem:[#allocation13 + $0xa8] sm:$0xff]
    %v2666 = vld [vmem:[#allocation13 + $0xb0] sm:$0xff]
    %v2667 = vld [vmem:[#allocation13 + $0xb8] sm:$0xff]
    %v2668 = vld [vmem:[#allocation13 + $0xc0] sm:$0xff]
    %v2669 = vld [vmem:[#allocation13 + $0xc8] sm:$0xff]
    %v2670 = vld [vmem:[#allocation13 + $0xd0] sm:$0xff]
    %v2671 = vld [vmem:[#allocation13 + $0xd8] sm:$0xff]
    %v2672 = vld [vmem:[#allocation13 + $0xe0] sm:$0xff]
    %v2673 = vld [vmem:[#allocation13 + $0xe8] sm:$0xff]
    %v2674 = vld [vmem:[#allocation13 + $0xf0] sm:$0xff]
    %v2675 = vld [vmem:[#allocation13 + $0xf8] sm:$0xff]
    %v2676 = vld [vmem:[#allocation13 + $0x100] sm:$0xff]
    %v2677 = vld [vmem:[#allocation13 + $0x108] sm:$0xff]
    %v2678 = vld [vmem:[#allocation13 + $0x110] sm:$0xff]
    %v2679 = vld [vmem:[#allocation13 + $0x118] sm:$0xff]
    %v2680 = vld [vmem:[#allocation13 + $0x120] sm:$0xff]
    %v2681 = vld [vmem:[#allocation13 + $0x128] sm:$0xff]
    %v2682 = vld [vmem:[#allocation13 + $0x130] sm:$0xff]
    %v2683 = vld [vmem:[#allocation13 + $0x138] sm:$0xff]
    %v2684 = vld [vmem:[#allocation13 + $0x140] sm:$0xff]
    %v2685 = vld [vmem:[#allocation13 + $0x148] sm:$0xff]
    %v2686 = vld [vmem:[#allocation13 + $0x150] sm:$0xff]
    %v2687 = vld [vmem:[#allocation13 + $0x158] sm:$0xff]
    %v2688 = vld [vmem:[#allocation13 + $0x160] sm:$0xff]
    %v2689 = vld [vmem:[#allocation13 + $0x168] sm:$0xff]
    %v2690 = vld [vmem:[#allocation13 + $0x170] sm:$0xff]
    %v2691 = vld [vmem:[#allocation13 + $0x178] sm:$0xff]
    %v2692 = vld [vmem:[#allocation13 + $0x180] sm:$0xff]
    %v2693 = vld [vmem:[#allocation13 + $0x188] sm:$0xff]
    %v2694 = vld [vmem:[#allocation13 + $0x190] sm:$0xff]
    %v2695 = vld [vmem:[#allocation13 + $0x198] sm:$0xff]
    %v2696 = vld [vmem:[#allocation13 + $0x1a0] sm:$0xff]
    %v2697 = vld [vmem:[#allocation13 + $0x1a8] sm:$0xff]
    %v2698 = vld [vmem:[#allocation13 + $0x1b0] sm:$0xff]
    %v2699 = vld [vmem:[#allocation13 + $0x1b8] sm:$0xff]
    %v2700 = vld [vmem:[#allocation13 + $0x1c0] sm:$0xff]
    %v2701 = vld [vmem:[#allocation13 + $0x1c8] sm:$0xff]
    %v2702 = vld [vmem:[#allocation13 + $0x1d0] sm:$0xff]
    %v2703 = vld [vmem:[#allocation13 + $0x1d8] sm:$0xff]
    %v2704 = vld [vmem:[#allocation13 + $0x1e0] sm:$0xff]
    %v2705 = vld [vmem:[#allocation13 + $0x1e8] sm:$0xff]
    %v2706 = vld [vmem:[#allocation13 + $0x1f0] sm:$0xff]
    %v2707 = vld [vmem:[#allocation13 + $0x1f8] sm:$0xff]
    %v2708 = vld [vmem:[#allocation13 + $0x200] sm:$0xff]
    %v2709 = vld [vmem:[#allocation13 + $0x208] sm:$0xff]
    %v2710 = vld [vmem:[#allocation13 + $0x210] sm:$0xff]
    %v2711 = vld [vmem:[#allocation13 + $0x218] sm:$0xff]
    %v2712 = vld [vmem:[#allocation13 + $0x220] sm:$0xff]
    %v2713 = vld [vmem:[#allocation13 + $0x228] sm:$0xff]
    %v2714 = vld [vmem:[#allocation13 + $0x230] sm:$0xff]
    %v2715 = vld [vmem:[#allocation13 + $0x238] sm:$0xff]
    %v2716 = vld [vmem:[#allocation13 + $0x240] sm:$0xff]
    %v2717 = vld [vmem:[#allocation13 + $0x248] sm:$0xff]
    %v2718 = vld [vmem:[#allocation13 + $0x250] sm:$0xff]
    %v2719 = vld [vmem:[#allocation13 + $0x258] sm:$0xff]
    %v2720 = vld [vmem:[#allocation13 + $0x260] sm:$0xff]
    %v2721 = vld [vmem:[#allocation13 + $0x268] sm:$0xff]
    %v2722 = vld [vmem:[#allocation13 + $0x270] sm:$0xff]
    %v2723 = vld [vmem:[#allocation13 + $0x278] sm:$0xff]
    %v2724 = vld [vmem:[#allocation13 + $0x280] sm:$0xff]
    %v2725 = vld [vmem:[#allocation13 + $0x288] sm:$0xff]
    %v2726 = vld [vmem:[#allocation13 + $0x290] sm:$0xff]
    %v2727 = vld [vmem:[#allocation13 + $0x298] sm:$0xff]
    %v2728 = vld [vmem:[#allocation13 + $0x2a0] sm:$0xff]
    %v2729 = vld [vmem:[#allocation13 + $0x2a8] sm:$0xff]
    %v2730 = vld [vmem:[#allocation13 + $0x2b0] sm:$0xff]
    %v2731 = vld [vmem:[#allocation13 + $0x2b8] sm:$0xff]
    %v2732 = vld [vmem:[#allocation13 + $0x2c0] sm:$0xff]
    %v2733 = vld [vmem:[#allocation13 + $0x2c8] sm:$0xff]
    %v2734 = vld [vmem:[#allocation13 + $0x2d0] sm:$0xff]
    %v2735 = vld [vmem:[#allocation13 + $0x2d8] sm:$0xff]
    %v2736 = vld [vmem:[#allocation13 + $0x2e0] sm:$0xff]
    %v2737 = vld [vmem:[#allocation13 + $0x2e8] sm:$0xff]
    %v2738 = vld [vmem:[#allocation13 + $0x2f0] sm:$0xff]
    %v2739 = vld [vmem:[#allocation13 + $0x2f8] sm:$0xff]
    %v2740 = vld [vmem:[#allocation13 + $0x300] sm:$0xff]
    %v2741 = vld [vmem:[#allocation13 + $0x308] sm:$0xff]
    %v2742 = vld [vmem:[#allocation13 + $0x310] sm:$0xff]
    %v2743 = vld [vmem:[#allocation13 + $0x318] sm:$0xff]
    %v2744 = vld [vmem:[#allocation13 + $0x320] sm:$0xff]
    %v2745 = vld [vmem:[#allocation13 + $0x328] sm:$0xff]
    %v2746 = vld [vmem:[#allocation13 + $0x330] sm:$0xff]
    %v2747 = vld [vmem:[#allocation13 + $0x338] sm:$0xff]
    %v2748 = vld [vmem:[#allocation13 + $0x340] sm:$0xff]
    %v2749 = vld [vmem:[#allocation13 + $0x348] sm:$0xff]
    %v2750 = vld [vmem:[#allocation13 + $0x350] sm:$0xff]
    %v2751 = vld [vmem:[#allocation13 + $0x358] sm:$0xff]
    %v2752 = vld [vmem:[#allocation13 + $0x360] sm:$0xff]
    %v2753 = vld [vmem:[#allocation13 + $0x368] sm:$0xff]
    %v2754 = vld [vmem:[#allocation13 + $0x370] sm:$0xff]
    %v2755 = vld [vmem:[#allocation13 + $0x378] sm:$0xff]
    %v2756 = vld [vmem:[#allocation13 + $0x380] sm:$0xff]
    %v2757 = vld [vmem:[#allocation13 + $0x388] sm:$0xff]
    %v2758 = vld [vmem:[#allocation13 + $0x390] sm:$0xff]
    %v2759 = vld [vmem:[#allocation13 + $0x398] sm:$0xff]
    %v2760 = vld [vmem:[#allocation13 + $0x3a0] sm:$0xff]
    %v2761 = vld [vmem:[#allocation13 + $0x3a8] sm:$0xff]
    %v2762 = vld [vmem:[#allocation13 + $0x3b0] sm:$0xff]
    %v2763 = vld [vmem:[#allocation13 + $0x3b8] sm:$0xff]
    %v2764 = vld [vmem:[#allocation13 + $0x3c0] sm:$0xff]
    %v2765 = vld [vmem:[#allocation13 + $0x3c8] sm:$0xff]
    %v2766 = vld [vmem:[#allocation13 + $0x3d0] sm:$0xff]
    %v2767 = vld [vmem:[#allocation13 + $0x3d8] sm:$0xff]
    %v2768 = vld [vmem:[#allocation13 + $0x3e0] sm:$0xff]
    %v2769 = vld [vmem:[#allocation13 + $0x3e8] sm:$0xff]
    %v2770 = vld [vmem:[#allocation13 + $0x3f0] sm:$0xff]
    %v2771 = vld [vmem:[#allocation13 + $0x3f8] sm:$0xff]
    %v2772 = vld [vmem:[#allocation13 + $0x400] sm:$0xff]
    %v2773 = vld [vmem:[#allocation13 + $0x408] sm:$0xff]
    %v2774 = vld [vmem:[#allocation13 + $0x410] sm:$0xff]
    %v2775 = vld [vmem:[#allocation13 + $0x418] sm:$0xff]
    %v2776 = vld [vmem:[#allocation13 + $0x420] sm:$0xff]
    %v2777 = vld [vmem:[#allocation13 + $0x428] sm:$0xff]
    %v2778 = vld [vmem:[#allocation13 + $0x430] sm:$0xff]
    %v2779 = vld [vmem:[#allocation13 + $0x438] sm:$0xff]
    %v2780 = vld [vmem:[#allocation13 + $0x440] sm:$0xff]
    %v2781 = vld [vmem:[#allocation13 + $0x448] sm:$0xff]
    %v2782 = vld [vmem:[#allocation13 + $0x450] sm:$0xff]
    %v2783 = vld [vmem:[#allocation13 + $0x458] sm:$0xff]
    %v2784 = vld [vmem:[#allocation13 + $0x460] sm:$0xff]
    %v2785 = vld [vmem:[#allocation13 + $0x468] sm:$0xff]
    %v2786 = vld [vmem:[#allocation13 + $0x470] sm:$0xff]
    %v2787 = vld [vmem:[#allocation13 + $0x478] sm:$0xff]
    %v2788 = vld [vmem:[#allocation13 + $0x480] sm:$0xff]
    %v2789 = vld [vmem:[#allocation13 + $0x488] sm:$0xff]
    %v2790 = vld [vmem:[#allocation13 + $0x490] sm:$0xff]
    %v2791 = vld [vmem:[#allocation13 + $0x498] sm:$0xff]
    %v2792 = vld [vmem:[#allocation13 + $0x4a0] sm:$0xff]
    %v2793 = vld [vmem:[#allocation13 + $0x4a8] sm:$0xff]
    %v2794 = vld [vmem:[#allocation13 + $0x4b0] sm:$0xff]
    %v2795 = vld [vmem:[#allocation13 + $0x4b8] sm:$0xff]
    %v2796 = vld [vmem:[#allocation13 + $0x4c0] sm:$0xff]
    %v2797 = vld [vmem:[#allocation13 + $0x4c8] sm:$0xff]
    %v2798 = vld [vmem:[#allocation13 + $0x4d0] sm:$0xff]
    %v2799 = vld [vmem:[#allocation13 + $0x4d8] sm:$0xff]
    %v2800 = vld [vmem:[#allocation13 + $0x4e0] sm:$0xff]
    %v2801 = vld [vmem:[#allocation13 + $0x4e8] sm:$0xff]
    %v2802 = vld [vmem:[#allocation13 + $0x4f0] sm:$0xff]
    %v2803 = vld [vmem:[#allocation13 + $0x4f8] sm:$0xff]
    %v2804 = vld [vmem:[#allocation13 + $0x500] sm:$0xff]
    %v2805 = vld [vmem:[#allocation13 + $0x508] sm:$0xff]
    %v2806 = vld [vmem:[#allocation13 + $0x510] sm:$0xff]
    %v2807 = vld [vmem:[#allocation13 + $0x518] sm:$0xff]
    %v2808 = vld [vmem:[#allocation13 + $0x520] sm:$0xff]
    %v2809 = vld [vmem:[#allocation13 + $0x528] sm:$0xff]
    %v2810 = vld [vmem:[#allocation13 + $0x530] sm:$0xff]
    %v2811 = vld [vmem:[#allocation13 + $0x538] sm:$0xff]
    %v2812 = vld [vmem:[#allocation13 + $0x540] sm:$0xff]
    %v2813 = vld [vmem:[#allocation13 + $0x548] sm:$0xff]
    %v2814 = vld [vmem:[#allocation13 + $0x550] sm:$0xff]
    %v2815 = vld [vmem:[#allocation13 + $0x558] sm:$0xff]
    %v2816 = vld [vmem:[#allocation13 + $0x560] sm:$0xff]
    %v2817 = vld [vmem:[#allocation13 + $0x568] sm:$0xff]
    %v2818 = vld [vmem:[#allocation13 + $0x570] sm:$0xff]
    %v2819 = vld [vmem:[#allocation13 + $0x578] sm:$0xff]
    %v2820 = vld [vmem:[#allocation13 + $0x580] sm:$0xff]
    %v2821 = vld [vmem:[#allocation13 + $0x588] sm:$0xff]
    %v2822 = vld [vmem:[#allocation13 + $0x590] sm:$0xff]
    %v2823 = vld [vmem:[#allocation13 + $0x598] sm:$0xff]
    %v2824 = vld [vmem:[#allocation13 + $0x5a0] sm:$0xff]
    %v2825 = vld [vmem:[#allocation13 + $0x5a8] sm:$0xff]
    %v2826 = vld [vmem:[#allocation13 + $0x5b0] sm:$0xff]
    %v2827 = vld [vmem:[#allocation13 + $0x5b8] sm:$0xff]
    %v2828 = vld [vmem:[#allocation13 + $0x5c0] sm:$0xff]
    %v2829 = vld [vmem:[#allocation13 + $0x5c8] sm:$0xff]
    %v2830 = vld [vmem:[#allocation13 + $0x5d0] sm:$0xff]
    %v2831 = vld [vmem:[#allocation13 + $0x5d8] sm:$0xff]
    %v2832 = vld [vmem:[#allocation13 + $0x5e0] sm:$0xff]
    %v2833 = vld [vmem:[#allocation13 + $0x5e8] sm:$0xff]
    %v2834 = vld [vmem:[#allocation13 + $0x5f0] sm:$0xff]
    %v2835 = vld [vmem:[#allocation13 + $0x5f8] sm:$0xff]
    %v2836 = vld [vmem:[#allocation14] sm:$0x3]
    %v2838 = vlaneseq
    %v2839 = vshrl.u32 %v2838, 7
    %v2840 = vsub.s32 0, %v2839
    %v2841 = vrot.slane %v2836, %v2840
    %v2842 = vlaneseq
    %v2843 = vshrl.u32 %v2842, 7
    %v2844 = vsub.s32 1, %v2843
    %v2845 = vrot.slane %v2836, %v2844
    %2848 = vmatprep.subr.mxu0 %v2645
    %2849 = vmatpush1.msra.mxu0 %v2644
    %2850 = vmatprep.subr.mxu0 %v2647
    %2851 = vmatpush1.msra.mxu0 %v2646
    %2852 = vmatprep.subr.mxu0 %v2649
    %2853 = vmatpush1.msra.mxu0 %v2648
    %2854 = vmatprep.subr.mxu0 %v2651
    %2855 = vmatpush1.msra.mxu0 %v2650
    %2856 = vmatprep.subr.mxu0 %v2653
    %2857 = vmatpush1.msra.mxu0 %v2652
    %2858 = vmatprep.subr.mxu0 %v2655
    %2859 = vmatpush1.msra.mxu0 %v2654
    %2860 = vmatprep.subr.mxu0 %v2657
    %2861 = vmatpush1.msra.mxu0 %v2656
    %2862 = vmatprep.subr.mxu0 %v2659
    %2863 = vmatpush1.msra.mxu0 %v2658
    %2864 = vmatprep.subr.mxu0 %v2661
    %2865 = vmatpush1.msra.mxu0 %v2660
    %2866 = vmatprep.subr.mxu0 %v2663
    %2867 = vmatpush1.msra.mxu0 %v2662
    %2868 = vmatprep.subr.mxu0 %v2665
    %2869 = vmatpush1.msra.mxu0 %v2664
    %2870 = vmatprep.subr.mxu0 %v2667
    %2871 = vmatpush1.msra.mxu0 %v2666
    %2872 = vmatprep.subr.mxu0 %v2669
    %2873 = vmatpush1.msra.mxu0 %v2668
    %2874 = vmatprep.subr.mxu0 %v2671
    %2875 = vmatpush1.msra.mxu0 %v2670
    %2876 = vmatprep.subr.mxu0 %v2673
    %2877 = vmatpush1.msra.mxu0 %v2672
    %2878 = vmatprep.subr.mxu0 %v2675
    %2879 = vmatpush1.msra.mxu0 %v2674
    %2880 = vmatprep.subr.mxu0 %v2677
    %2881 = vmatpush1.msra.mxu0 %v2676
    %2882 = vmatprep.subr.mxu0 %v2679
    %2883 = vmatpush1.msra.mxu0 %v2678
    %2884 = vmatprep.subr.mxu0 %v2681
    %2885 = vmatpush1.msra.mxu0 %v2680
    %2886 = vmatprep.subr.mxu0 %v2683
    %2887 = vmatpush1.msra.mxu0 %v2682
    %2888 = vmatprep.subr.mxu0 %v2685
    %2889 = vmatpush1.msra.mxu0 %v2684
    %2890 = vmatprep.subr.mxu0 %v2687
    %2891 = vmatpush1.msra.mxu0 %v2686
    %2892 = vmatprep.subr.mxu0 %v2689
    %2893 = vmatpush1.msra.mxu0 %v2688
    %2894 = vmatprep.subr.mxu0 %v2691
    %2895 = vmatpush1.msra.mxu0 %v2690
    %2896 = vmatprep.subr.mxu0 %v2693
    %2897 = vmatpush1.msra.mxu0 %v2692
    %2898 = vmatprep.subr.mxu0 %v2695
    %2899 = vmatpush1.msra.mxu0 %v2694
    %2900 = vmatprep.subr.mxu0 %v2697
    %2901 = vmatpush1.msra.mxu0 %v2696
    %2902 = vmatprep.subr.mxu0 %v2699
    %2903 = vmatpush1.msra.mxu0 %v2698
    %2904 = vmatprep.subr.mxu0 %v2701
    %2905 = vmatpush1.msra.mxu0 %v2700
    %2906 = vmatprep.subr.mxu0 %v2703
    %2907 = vmatpush1.msra.mxu0 %v2702
    %2908 = vmatprep.subr.mxu0 %v2705
    %2909 = vmatpush1.msra.mxu0 %v2704
    %2910 = vmatprep.subr.mxu0 %v2707
    %2911 = vmatpush1.msra.mxu0 %v2706
    %2912 = vmatprep.mubr.f32.mxu0 %v2639
    %2913 = vmatmul.mubr.f32.gmra.mrb[0].mxu0 %v2638
    %v2914 = vpop.f32.mrb[0].mxu0
    %v2915 = vadd.f32 %v2841, %v2914
    %v2916 = vpop.f32.mrb[0].mxu0
    %v2917 = vadd.f32 %v2845, %v2916
    %2918 = vdwg.mxu0
    %2919 = vmatprep.subr.mxu0 %v2709
    %2920 = vmatpush1.msra.mxu0 %v2708
    %2921 = vmatprep.subr.mxu0 %v2711
    %2922 = vmatpush1.msra.mxu0 %v2710
    %2923 = vmatprep.subr.mxu0 %v2713
    %2924 = vmatpush1.msra.mxu0 %v2712
    %2925 = vmatprep.subr.mxu0 %v2715
    %2926 = vmatpush1.msra.mxu0 %v2714
    %2927 = vmatprep.subr.mxu0 %v2717
    %2928 = vmatpush1.msra.mxu0 %v2716
    %2929 = vmatprep.subr.mxu0 %v2719
    %2930 = vmatpush1.msra.mxu0 %v2718
    %2931 = vmatprep.subr.mxu0 %v2721
    %2932 = vmatpush1.msra.mxu0 %v2720
    %2933 = vmatprep.subr.mxu0 %v2723
    %2934 = vmatpush1.msra.mxu0 %v2722
    %2935 = vmatprep.subr.mxu0 %v2725
    %2936 = vmatpush1.msra.mxu0 %v2724
    %2937 = vmatprep.subr.mxu0 %v2727
    %2938 = vmatpush1.msra.mxu0 %v2726
    %2939 = vmatprep.subr.mxu0 %v2729
    %2940 = vmatpush1.msra.mxu0 %v2728
    %2941 = vmatprep.subr.mxu0 %v2731
    %2942 = vmatpush1.msra.mxu0 %v2730
    %2943 = vmatprep.subr.mxu0 %v2733
    %2944 = vmatpush1.msra.mxu0 %v2732
    %2945 = vmatprep.subr.mxu0 %v2735
    %2946 = vmatpush1.msra.mxu0 %v2734
    %2947 = vmatprep.subr.mxu0 %v2737
    %2948 = vmatpush1.msra.mxu0 %v2736
    %2949 = vmatprep.subr.mxu0 %v2739
    %2950 = vmatpush1.msra.mxu0 %v2738
    %2951 = vmatprep.subr.mxu0 %v2741
    %2952 = vmatpush1.msra.mxu0 %v2740
    %2953 = vmatprep.subr.mxu0 %v2743
    %2954 = vmatpush1.msra.mxu0 %v2742
    %2955 = vmatprep.subr.mxu0 %v2745
    %2956 = vmatpush1.msra.mxu0 %v2744
    %2957 = vmatprep.subr.mxu0 %v2747
    %2958 = vmatpush1.msra.mxu0 %v2746
    %2959 = vmatprep.subr.mxu0 %v2749
    %2960 = vmatpush1.msra.mxu0 %v2748
    %2961 = vmatprep.subr.mxu0 %v2751
    %2962 = vmatpush1.msra.mxu0 %v2750
    %2963 = vmatprep.subr.mxu0 %v2753
    %2964 = vmatpush1.msra.mxu0 %v2752
    %2965 = vmatprep.subr.mxu0 %v2755
    %2966 = vmatpush1.msra.mxu0 %v2754
    %2967 = vmatprep.subr.mxu0 %v2757
    %2968 = vmatpush1.msra.mxu0 %v2756
    %2969 = vmatprep.subr.mxu0 %v2759
    %2970 = vmatpush1.msra.mxu0 %v2758
    %2971 = vmatprep.subr.mxu0 %v2761
    %2972 = vmatpush1.msra.mxu0 %v2760
    %2973 = vmatprep.subr.mxu0 %v2763
    %2974 = vmatpush1.msra.mxu0 %v2762
    %2975 = vmatprep.subr.mxu0 %v2765
    %2976 = vmatpush1.msra.mxu0 %v2764
    %2977 = vmatprep.subr.mxu0 %v2767
    %2978 = vmatpush1.msra.mxu0 %v2766
    %2979 = vmatprep.subr.mxu0 %v2769
    %2980 = vmatpush1.msra.mxu0 %v2768
    %2981 = vmatprep.subr.mxu0 %v2771
    %2982 = vmatpush1.msra.mxu0 %v2770
    %2983 = vmatprep.mubr.f32.mxu0 %v2641
    %2984 = vmatmul.mubr.f32.gmra.mrb[0].mxu0 %v2640
    %v2985 = vpop.f32.mrb[0].mxu0
    %v2986 = vadd.f32 %v2915, %v2985
    %v2987 = vpop.f32.mrb[0].mxu0
    %v2988 = vadd.f32 %v2917, %v2987
    %2989 = vdwg.mxu0
    %2990 = vmatprep.subr.mxu0 %v2773
    %2991 = vmatpush1.msra.mxu0 %v2772
    %2992 = vmatprep.subr.mxu0 %v2775
    %2993 = vmatpush1.msra.mxu0 %v2774
    %2994 = vmatprep.subr.mxu0 %v2777
    %2995 = vmatpush1.msra.mxu0 %v2776
    %2996 = vmatprep.subr.mxu0 %v2779
    %2997 = vmatpush1.msra.mxu0 %v2778
    %2998 = vmatprep.subr.mxu0 %v2781
    %2999 = vmatpush1.msra.mxu0 %v2780
    %3000 = vmatprep.subr.mxu0 %v2783
    %3001 = vmatpush1.msra.mxu0 %v2782
    %3002 = vmatprep.subr.mxu0 %v2785
    %3003 = vmatpush1.msra.mxu0 %v2784
    %3004 = vmatprep.subr.mxu0 %v2787
    %3005 = vmatpush1.msra.mxu0 %v2786
    %3006 = vmatprep.subr.mxu0 %v2789
    %3007 = vmatpush1.msra.mxu0 %v2788
    %3008 = vmatprep.subr.mxu0 %v2791
    %3009 = vmatpush1.msra.mxu0 %v2790
    %3010 = vmatprep.subr.mxu0 %v2793
    %3011 = vmatpush1.msra.mxu0 %v2792
    %3012 = vmatprep.subr.mxu0 %v2795
    %3013 = vmatpush1.msra.mxu0 %v2794
    %3014 = vmatprep.subr.mxu0 %v2797
    %3015 = vmatpush1.msra.mxu0 %v2796
    %3016 = vmatprep.subr.mxu0 %v2799
    %3017 = vmatpush1.msra.mxu0 %v2798
    %3018 = vmatprep.subr.mxu0 %v2801
    %3019 = vmatpush1.msra.mxu0 %v2800
    %3020 = vmatprep.subr.mxu0 %v2803
    %3021 = vmatpush1.msra.mxu0 %v2802
    %3022 = vmatprep.subr.mxu0 %v2805
    %3023 = vmatpush1.msra.mxu0 %v2804
    %3024 = vmatprep.subr.mxu0 %v2807
    %3025 = vmatpush1.msra.mxu0 %v2806
    %3026 = vmatprep.subr.mxu0 %v2809
    %3027 = vmatpush1.msra.mxu0 %v2808
    %3028 = vmatprep.subr.mxu0 %v2811
    %3029 = vmatpush1.msra.mxu0 %v2810
    %3030 = vmatprep.subr.mxu0 %v2813
    %3031 = vmatpush1.msra.mxu0 %v2812
    %3032 = vmatprep.subr.mxu0 %v2815
    %3033 = vmatpush1.msra.mxu0 %v2814
    %3034 = vmatprep.subr.mxu0 %v2817
    %3035 = vmatpush1.msra.mxu0 %v2816
    %3036 = vmatprep.subr.mxu0 %v2819
    %3037 = vmatpush1.msra.mxu0 %v2818
    %3038 = vmatprep.subr.mxu0 %v2821
    %3039 = vmatpush1.msra.mxu0 %v2820
    %3040 = vmatprep.subr.mxu0 %v2823
    %3041 = vmatpush1.msra.mxu0 %v2822
    %3042 = vmatprep.subr.mxu0 %v2825
    %3043 = vmatpush1.msra.mxu0 %v2824
    %3044 = vmatprep.subr.mxu0 %v2827
    %3045 = vmatpush1.msra.mxu0 %v2826
    %3046 = vmatprep.subr.mxu0 %v2829
    %3047 = vmatpush1.msra.mxu0 %v2828
    %3048 = vmatprep.subr.mxu0 %v2831
    %3049 = vmatpush1.msra.mxu0 %v2830
    %3050 = vmatprep.subr.mxu0 %v2833
    %3051 = vmatpush1.msra.mxu0 %v2832
    %3052 = vmatprep.subr.mxu0 %v2835
    %3053 = vmatpush1.msra.mxu0 %v2834
    %3054 = vmatprep.mubr.f32.mxu0 %v2643
    %3055 = vmatmul.mubr.f32.gmra.mrb[0].mxu0 %v2642
    %v3056 = vpop.f32.mrb[0].mxu0
    %v3057 = vadd.f32 %v2986, %v3056
    %v3058 = vpop.f32.mrb[0].mxu0
    %v3059 = vadd.f32 %v2988, %v3058
    %3060 = vdwg.mxu0
    %v3061 = vld [vmem:[#allocation5] sm:$0xff]
    %v3062 = vld [vmem:[#allocation5 + $0x8] sm:$0xff]
    %v3063 = vadd.f32 %v3057, %v3061
    %v3064 = vadd.f32 %v3059, %v3062
    %v3065 = vmax.f32 %v3063, %v3064
    %3066 = vmax.xlane.f32.xlu0 %v3065
    %v3067 = vpop.xlane.xlu0 %3066
    %v3068 = vlaneseq
    %v3069 = vand.u32 %v3068, 127
    %v3070 = vadd.s32 %v3069, 128
    %v3071 = vcvt.s32.f32 %v3069
    %v3072 = vcvt.s32.f32 %v3070
    %vm3073 = vcmp.ge.f32.partialorder %v3063, %v3067
    %vm3074 = vcmp.ge.f32.partialorder %v3064, %v3067
    %v3075 = vsel %vm3073, %v3071, 256.0
    %v3076 = vsel %vm3074, %v3072, 256.0
    %v3077 = vmin.f32 %v3075, %v3076
    %3078 = vmin.xlane.f32.xlu0 %v3077
    %v3079 = vpop.xlane.xlu0 %3078
    %vm3080 = vcmp.eq.f32.partialorder %v3071, %v3079
    %vm3081 = vcmp.eq.f32.partialorder %v3072, %v3079
    %v3082 = vsel %vm3080, 1, 0
    %v3083 = vsel %vm3081, 1, 0
    %v3084 = vcvt.s32.f32 %v3082
    %v3085 = vcvt.s32.f32 %v3083
    %v3086 = vmul.f32 %v3057, %v3084
    %v3087 = vmul.f32 %v3059, %v3085
    %v3088 = vadd.f32 %v3086, %v3087
    %3089 = vadd.xlane.f32.xlu0 %v3088
    %v3090 = vpop.xlane.xlu0 %3089
    %v3091 = vmax.f32 %v3057, %v3059
    %3092 = vmax.xlane.f32.xlu0 %v3091
    %v3093 = vpop.xlane.xlu0 %3092
    %v3094 = vsub.f32 %v3057, %v3093
    %v3095 = vsub.f32 %v3059, %v3093
    %v3096 = vmul.f32 %v3094, 1.442695
    %v3097 = vpow.pop %v3096
    %v3098 = vmul.f32 %v3095, 1.442695
    %v3099 = vpow.pop %v3098
    %v3100 = vadd.f32 %v3097, %v3099
    %3101 = vadd.xlane.f32.xlu0 %v3100
    %v3102 = vpop.xlane.xlu0 %3101
    %v3103 = vlog2.pop %v3102
    %v3104 = vmul.f32 %v3103, 0.6931472
    %v3105 = vadd.f32 %v3093, %v3104
    %v3106 = vsub.f32 %v3090, %v3105
    %v3107 = vlaneseq
    %v3108 = vshrl.u32 %v3107, 7
    %vm3109 = vcmp.eq.s32.totalorder %v3108, %v3069
    %v3110 = vsel %vm3109, %v3079, 0.0
    %vm3111 = vcmask 64512
    %v3112 = vsel %vm3111, %v3110, 0.0
    %v3113 = vrot.slane %v3112, 4
    %v3114 = vadd.f32 %v3112, %v3113
    %v3115 = vrot.slane %v3114, 2
    %v3116 = vadd.f32 %v3114, %v3115
    %v3117 = vrot.slane %v3116, 1
    %v3118 = vadd.f32 %v3116, %v3117
    %v3119 = vsel %vm3109, %v3106, 0.0
    %v3120 = vsel %vm3111, %v3119, 0.0
    %v3121 = vrot.slane %v3120, 4
    %v3122 = vadd.f32 %v3120, %v3121
    %v3123 = vrot.slane %v3122, 2
    %v3124 = vadd.f32 %v3122, %v3123
    %v3125 = vrot.slane %v3124, 1
    %v3126 = vadd.f32 %v3124, %v3125
    %v3127 = vcvt.f32.s32.to.zero.pseudo %v3118
    %vm3128 = vcmask 57344
    %3129 = vst.msk [vmem:[#allocation16] sm:$0x1] %vm3128, %v3127
    %3130 = vst.msk [vmem:[#allocation17] sm:$0x1] %vm3128, %v3126
    // Predicated region
    $region66: #{tpu_custom_call.1} parent=1 // pred_check
      _
    $region67: #{tpu_custom_call.1} parent=1 // pred_check_branch
      %3132 = sbr.rel (0) target = $region69
    $region68: #{tpu_custom_call.1} parent=1 // pred_region
      %s3134 = ssub.s32 16, 16
      %3135 = vsyncadd [#allocation4], %s3134
      %s3137 = sshll.u32 [#allocation16], 4
      %s3138 = int_to_ptr.vmem [resolvable:$true] %s3137
      %3140 = dma.vmem_to_hbm [thread:$0]  %s3138, 16, %s8, [#allocation4]
    $region69: #{tpu_custom_call.1} parent=1 // pred_fallthru
      _
    // Predicated region
    $region70: #{tpu_custom_call.1} parent=1 // pred_check
      _
    $region71: #{tpu_custom_call.1} parent=1 // pred_check_branch
      %3142 = sbr.rel (0) target = $region73
    $region72: #{tpu_custom_call.1} parent=1 // pred_region
      %s3144 = ssub.s32 16, 16
      %3145 = vsyncadd [#allocation18], %s3144
      %s3147 = sshll.u32 [#allocation17], 4
      %s3148 = int_to_ptr.vmem [resolvable:$true] %s3147
      %3150 = dma.vmem_to_hbm [thread:$0]  %s3148, 16, %s9, [#allocation18]
    $region73: #{tpu_custom_call.1} parent=1 // pred_fallthru
      _
    // Predicated region
    $region74: #{tpu_custom_call.1} parent=1 // pred_check
      _
    $region75: #{tpu_custom_call.1} parent=1 // pred_check_branch
      %3152 = sbr.rel (0) target = $region77
    $region76: #{tpu_custom_call.1} parent=1 // pred_region
      %3153 = dma.done [#allocation4], 16
    $region77: #{tpu_custom_call.1} parent=1 // pred_fallthru
      _
    // Predicated region
    $region78: #{tpu_custom_call.1} parent=1 // pred_check
      _
    $region79: #{tpu_custom_call.1} parent=1 // pred_check_branch
      %3155 = sbr.rel (0) target = $region81
    $region80: #{tpu_custom_call.1} parent=1 // pred_region
      %3156 = dma.done [#allocation18], 16
    $region81: #{tpu_custom_call.1} parent=1 // pred_fallthru
      _
    %3157 = vsyncpa [#allocation3], 1
    %3158 = vsyncpa [#allocation6], 1
    %3159 = vsyncpa [#allocation9], 1
    %3160 = vsyncpa [#allocation12], 1
    %3161 = vsyncpa [#allocation15], 1
    %3162 = vsyncpa [#allocation4], 1
    %3163 = vsyncpa [#allocation18], 1

</llo_original>
